<compile_context>
chip_gen: v5e
topology: v5e:2x2
jax: 0.10.0
libtpu: 0.0.40
codegen_flags: <defaults>
</compile_context>

<pallas_src>
import functools

import jax
import jax.numpy as jnp
import numpy as np
from jax import lax
from jax.experimental import pallas as pl
from jax.experimental.pallas import tpu as pltpu

# ---------------- model constants ----------------
H1 = 10           # gated sum-message width
H2 = 10           # gated max-message width
EF_DIM = 12       # raw edge-feature width
EF_PAD = 16       # padded edge-feature width
X_W = 16          # node-embedding width (= padded nf width)
HID = 32          # MLP hidden width
OUT_PAD = 16      # padded layer-output width (true out_nf sliced in wrapper)
GF_W = 16         # fused (f1|gate) matmul output width (1 + H1 padded to 16)
NEG_MASK = -1.0e30  # finite masked-max sentinel (bf16-safe; -inf*0 would NaN)

# ---------------- packed weight-slab row offsets (per layer) ----------------
R_M1X = 0      # 32 rows: msg MLP L1, src block ([0:16]=x part, [16:32]=nf part)
R_M1D = 32     # 32 rows: msg MLP L1, dst block (same layout)
R_M1E = 64     # 16 rows: msg MLP L1, ef block ([0:12] real)
R_M2 = 80      # 32 rows
R_M3 = 112     # 32 rows
R_M4A = 144    # 32 rows: msg MLP L4: cols 0:10 = f1, col 10 = gate, rest 0
R_M4T = 176    # 16 rows: rows 0:10 = f2 weights transposed, row 10 = gate weights
R_M4TB = 192   # 16 rows: col 0 holds f2 biases (rows 0:10) and gate bias (row 10)
R_R1X = 208    # 32 rows: reduce MLP L1, node block ([0:16]=x, [16:32]=nf)
R_R1A = 240    # 16 rows: reduce MLP L1, nf1 block (rows 0:10; rows 10:16 zero)
R_R1B = 256    # 16 rows: reduce MLP L1, nf2 block (rows 0:10)
R_R2 = 272     # 32 rows
R_R3 = 304     # 32 rows
R_R4 = 336     # 32 rows: cols 0:out_nf real
R_TOT = 368
B_ROWS = 8     # bias slab rows: mb1..mb3, [f1 biases|gate bias], rb1..rb3, rb4


def _leaky(x):
    return jnp.maximum(x, 0.2 * x)


def _sigmoid(x):
    # stable sigmoid on the EUP (tanh), avoids exp overflow for large -x
    return 0.5 * (jnp.tanh(0.5 * x) + 1.0)


# ---------------- fused multi-layer kernel ----------------
def deepgcnii_kernel(nf_ref, ef_ref, src_ref, dst_ref, dstT_ref, am_ref, hin_ref,
                     w_ref, b_ref, out_ref, x_ref):
    f32 = jnp.float32
    bf16 = jnp.bfloat16
    l = pl.program_id(0)
    last = pl.num_programs(0) - 1

    @pl.when(l == 0)
    def _init():
        x_ref[...] = jnp.zeros_like(x_ref)

    dotf = functools.partial(jnp.dot, preferred_element_type=f32)

    x = x_ref[...]                     # (N,16) f32 running node embedding
    xb = x.astype(bf16)
    nf = nf_ref[...]                   # (N,16) bf16 raw node features (padded)
    ef = ef_ref[...]                   # (E,16) bf16 edge features (padded)
    src_oh = src_ref[...]              # (E,N) bf16 one-hot src incidence
    dst_oh = dst_ref[...]              # (E,N) bf16 one-hot dst incidence
    dstT = dstT_ref[...]               # (N,E) bf16 one-hot dst incidence (transposed)
    am = am_ref[...]                   # (N,E) bf16 additive mask: 0 on edges, -1e30 else
    has_in = hin_ref[...]              # (N,1) f32 0/1 "node has at least one in-edge"

    # ---- message MLP layer 1: project the [x|nf] layer input at NODE level,
    #      then gather+sum at edges with plain incidence matmuls (no transposes).
    y_src = (dotf(xb, w_ref[R_M1X:R_M1X + X_W, :])
             + dotf(nf, w_ref[R_M1X + X_W:R_M1X + HID, :])).astype(bf16)   # (N,32)
    y_dst = (dotf(xb, w_ref[R_M1D:R_M1D + X_W, :])
             + dotf(nf, w_ref[R_M1D + X_W:R_M1D + HID, :])).astype(bf16)   # (N,32)

    h = _leaky(dotf(src_oh, y_src) + dotf(dst_oh, y_dst)
               + dotf(ef, w_ref[R_M1E:R_M1E + EF_PAD, :])
               + b_ref[0:1, :])                                            # (E,32)
    h = _leaky(dotf(h.astype(bf16), w_ref[R_M2:R_M2 + HID, :]) + b_ref[1:2, :])
    h = _leaky(dotf(h.astype(bf16), w_ref[R_M3:R_M3 + HID, :]) + b_ref[2:3, :])
    hb = h.astype(bf16)                                                    # (E,32)

    # ---- last message layer, fused f1|gate matmul (one MXU push) ----
    gf = dotf(hb, w_ref[R_M4A:R_M4A + HID, 0:GF_W]) + b_ref[3:4, 0:GF_W]   # (E,16)
    gate = _sigmoid(gf[:, H1:H1 + 1])                                      # (E,1)
    # cols 0:10 = ef1; col 10 = gate_logit*gate (finite junk, killed by a zero
    # weight row in the R_R1A block); cols 11:16 = 0.
    f1g = (gf * gate).astype(bf16)                                         # (E,16)

    # f2 (and gate again) in edge-on-lanes layout for the lane-dense masked max
    t = lax.dot_general(w_ref[R_M4T:R_M4T + X_W, :], hb, (((1,), (1,)), ((), ())),
                        preferred_element_type=f32)                        # (16,E)
    t = t + w_ref[R_M4TB:R_M4TB + X_W, 0:1].astype(f32)                    # + column biases
    f2kt = (t[0:H2, :] * _sigmoid(t[H2:H2 + 1, :])).astype(bf16)           # (H2,E)

    # ---- aggregation ----
    # update_all(copy_e, sum): scatter-add as a bf16 incidence matmul
    nf1 = dotf(dstT, f1g)                                                  # (N,16) f32

    # update_all(copy_e, max): per-channel additive-mask max with E on lanes
    # (packed bf16 selects/maxes; on v5e Mosaic unpacks — correct, just slower).
    # The reduce-MLP first-layer contribution is accumulated directly as outer
    # products, so no (N,E,H2) intermediate and no lane concatenation.
    wr1b = w_ref[R_R1B:R_R1B + X_W, :].astype(f32)                         # (16,32)
    nf2_term = jnp.zeros((x.shape[0], HID), f32)
    for c in range(H2):
        m = jnp.max(f2kt[c:c + 1, :] + am, axis=1, keepdims=True)          # (N,1) bf16
        # DGL gives 0 to nodes with no in-edge; -1e30*0 = 0 so a plain multiply works.
        nf2_term = nf2_term + (m.astype(f32) * has_in) * wr1b[c:c + 1, :]

    # ---- reduce MLP on [layer_input | nf1 | nf2] (first layer split by block) ----
    r = _leaky(dotf(xb, w_ref[R_R1X:R_R1X + X_W, :])
               + dotf(nf, w_ref[R_R1X + X_W:R_R1X + HID, :])
               + dotf(nf1.astype(bf16), w_ref[R_R1A:R_R1A + X_W, :])
               + nf2_term
               + b_ref[4:5, :])
    r = _leaky(dotf(r.astype(bf16), w_ref[R_R2:R_R2 + HID, :]) + b_ref[5:6, :])
    r = _leaky(dotf(r.astype(bf16), w_ref[R_R3:R_R3 + HID, :]) + b_ref[6:7, :])
    r = dotf(r.astype(bf16), w_ref[R_R4:R_R4 + HID, 0:OUT_PAD]) + b_ref[7:8, 0:OUT_PAD]

    @pl.when(l < last)
    def _carry():
        # layer0: x = r (+0);  middle layers: residual x = r + x
        x_ref[...] = x + r

    @pl.when(l == last)
    def _emit():
        out_ref[...] = r


# ---------------- wrapper ----------------
_HAS_BUFFERED = hasattr(pl, "Buffered")


def _resident_spec(shape):
    """Layer-invariant, whole-array-resident input: single-buffered if supported."""
    imap = lambda l: (0,) * len(shape)
    if _HAS_BUFFERED:
        try:
            return pl.BlockSpec(shape, imap, pipeline_mode=pl.Buffered(1))
        except TypeError:
            pass
    return pl.BlockSpec(shape, imap)


def _vmem_limit_bytes():
    # v5e/v6e: 128 MiB physical VMEM per core; v7x: 64 MiB.  Use ~75% of what
    # this chip actually has, with a conservative cross-generation fallback.
    try:
        cap = getattr(pltpu.get_tpu_info(), "vmem_capacity_bytes", 0)
        if cap:
            return int(min(cap * 3 // 4, 100 * 1024 * 1024))
    except Exception:
        pass
    return 48 * 1024 * 1024


def deepgcnii_forward(w_stack, b_stack, nf, ef, src, dst, out_nf):
    n = nf.shape[0]
    e = ef.shape[0]
    n_layers = w_stack.shape[0]

    # layer-invariant precompute (bf16 MXU operands; one-hot incidence is exact in bf16)
    nf_pad = jnp.pad(nf, ((0, 0), (0, X_W - nf.shape[1]))).astype(jnp.bfloat16)
    ef_pad = jnp.pad(ef, ((0, 0), (0, EF_PAD - ef.shape[1]))).astype(jnp.bfloat16)
    src_oh = jax.nn.one_hot(src, n, dtype=jnp.bfloat16)                 # (E,N)
    dst_oh = jax.nn.one_hot(dst, n, dtype=jnp.bfloat16)                 # (E,N)
    dst_mask = jnp.arange(n)[:, None] == dst[None, :]                   # (N,E) bool
    dst_oh_t = dst_mask.astype(jnp.bfloat16)                            # (N,E)
    addmask = jnp.where(dst_mask, 0.0, NEG_MASK).astype(jnp.bfloat16)   # (N,E)
    has_in = jnp.any(dst_mask, axis=1).astype(jnp.float32).reshape(n, 1)

    out = pl.pallas_call(
        deepgcnii_kernel,
        out_shape=jax.ShapeDtypeStruct((n, OUT_PAD), jnp.float32),
        grid=(n_layers,),
        in_specs=[
            _resident_spec((n, X_W)),        # nf (padded, bf16)
            _resident_spec((e, EF_PAD)),     # ef (padded, bf16)
            _resident_spec((e, n)),          # src one-hot incidence
            _resident_spec((e, n)),          # dst one-hot incidence
            _resident_spec((n, e)),          # dst incidence transposed (scatter-sum)
            _resident_spec((n, e)),          # additive max-mask
            _resident_spec((n, 1)),          # has_in
            pl.BlockSpec((None, R_TOT, HID), lambda l: (l, 0, 0)),   # per-layer weights (bf16)
            pl.BlockSpec((None, B_ROWS, HID), lambda l: (l, 0, 0)),  # per-layer biases (f32)
        ],
        out_specs=pl.BlockSpec((n, OUT_PAD), lambda l: (0, 0)),
        scratch_shapes=[pltpu.VMEM((n, X_W), jnp.float32)],              # running x
        compiler_params=pltpu.CompilerParams(
            dimension_semantics=("arbitrary",),
            vmem_limit_bytes=_vmem_limit_bytes(),
        ),
    )(nf_pad, ef_pad, src_oh, dst_oh, dst_oh_t, addmask, has_in, w_stack, b_stack)
    return out[:, :out_nf]


# ---------------- parameter construction & packing (deterministic) ----------------
def _init_linear(key, fan_in, fan_out):
    kw, kb = jax.random.split(key)
    bound = 1.0 / float(np.sqrt(fan_in))
    w = jax.random.uniform(kw, (fan_in, fan_out), jnp.float32, -bound, bound)
    b = jax.random.uniform(kb, (fan_out,), jnp.float32, -bound, bound)
    return w, b


def _init_allconv(key, in_nf, out_nf):
    sizes_msg = (2 * in_nf + EF_DIM, HID, HID, HID, 1 + H1 + H2)
    sizes_red = (in_nf + H1 + H2, HID, HID, HID, out_nf)
    params = []
    for sizes in (sizes_msg, sizes_red):
        for i in range(1, len(sizes)):
            key, sub = jax.random.split(key)
            w, b = _init_linear(sub, sizes[i - 1], sizes[i])
            params += [w, b]
    return params   # mw1,mb1,...,mw4,mb4, rw1,rb1,...,rw4,rb4


def pack_deepgcnii(key, n_layers, in_nf, out_nf):
    # (layer in_nf, layer out_nf, column offset of the layer's input inside the
    #  unified [x(16) | nf(16)] feature layout)
    dims = ([(in_nf, 16, X_W)]
            + [(X_W + in_nf, 16, 0)] * (n_layers - 2)
            + [(X_W, out_nf, 0)])
    keys = jax.random.split(key, n_layers)
    w_stack = np.zeros((n_layers, R_TOT, HID), np.float32)
    b_stack = np.zeros((n_layers, B_ROWS, HID), np.float32)
    for li, ((lin, lout, col0), k) in enumerate(zip(dims, keys)):
        p = [np.asarray(a) for a in _init_allconv(k, lin, lout)]
        (mw1, mb1, mw2, mb2, mw3, mb3, mw4, mb4,
         rw1, rb1, rw2, rb2, rw3, rb3, rw4, rb4) = p
        W, B = w_stack[li], b_stack[li]
        W[R_M1X + col0:R_M1X + col0 + lin] = mw1[:lin]
        W[R_M1D + col0:R_M1D + col0 + lin] = mw1[lin:2 * lin]
        W[R_M1E:R_M1E + EF_DIM] = mw1[2 * lin:]
        W[R_M2:R_M2 + HID] = mw2
        W[R_M3:R_M3 + HID] = mw3
        # fused last message layer: cols 0:10 = f1 weights, col 10 = gate weights
        W[R_M4A:R_M4A + HID, 0:H1] = mw4[:, 1:1 + H1]
        W[R_M4A:R_M4A + HID, H1] = mw4[:, 0]
        # transposed block for the edge-on-lanes f2/gate path
        W[R_M4T:R_M4T + H2] = mw4[:, 1 + H1:].T
        W[R_M4T + H2] = mw4[:, 0]
        W[R_M4TB:R_M4TB + H2, 0] = mb4[1 + H1:]
        W[R_M4TB + H2, 0] = mb4[0]
        W[R_R1X + col0:R_R1X + col0 + lin] = rw1[:lin]
        W[R_R1A:R_R1A + H1] = rw1[lin:lin + H1]          # rows 10:16 stay 0 (kill junk lane)
        W[R_R1B:R_R1B + H2] = rw1[lin + H1:]
        W[R_R2:R_R2 + HID] = rw2
        W[R_R3:R_R3 + HID] = rw3
        W[R_R4:R_R4 + HID, :lout] = rw4
        B[0], B[1], B[2] = mb1, mb2, mb3
        B[3, 0:H1] = mb4[1:1 + H1]
        B[3, H1] = mb4[0]
        B[4], B[5], B[6] = rb1, rb2, rb3
        B[7, :lout] = rb4
    return jnp.asarray(w_stack, jnp.bfloat16), jnp.asarray(b_stack, jnp.float32)


if __name__ == "__main__":
    key = jax.random.PRNGKey(0)

    N_NODES = 128
    N_EDGES = 512        # multiple of 128 -> lane-dense (N, E) masked max
    IN_NF = 10           # g.ndata['nf'] width expected by layer0
    OUT_NF = 8
    N_LAYERS = 4         # layer0 + 2 residual AllConv(26,16) layers + layern

    key, k_nf, k_ef, k_src, k_dst, k_par = jax.random.split(key, 6)
    nf = jax.random.normal(k_nf, (N_NODES, IN_NF), jnp.float32)
    ef = jax.random.normal(k_ef, (N_EDGES, EF_DIM), jnp.float32)
    src = jax.random.randint(k_src, (N_EDGES,), 0, N_NODES)
    dst = jax.random.randint(k_dst, (N_EDGES,), 0, N_NODES)

    w_stack, b_stack = pack_deepgcnii(k_par, N_LAYERS, IN_NF, OUT_NF)

    forward = jax.jit(deepgcnii_forward, static_argnums=(6,))
    out = forward(w_stack, b_stack, nf, ef, src, dst, OUT_NF)
    out = jax.block_until_ready(out)

    assert out.shape == (N_NODES, OUT_NF), out.shape
    assert bool(jnp.all(jnp.isfinite(out)))
    print("KERNEL_OK")
</pallas_src>

<mosaic_0001>
module attributes {stable_mosaic.version = 11 : i64} {
  func.func @deepgcnii_kernel(%arg0: i32, %arg1: memref<128x16xbf16, #tpu.memory_space<vmem>>, %arg2: memref<512x16xbf16, #tpu.memory_space<vmem>>, %arg3: memref<512x128xbf16, #tpu.memory_space<vmem>>, %arg4: memref<512x128xbf16, #tpu.memory_space<vmem>>, %arg5: memref<128x512xbf16, #tpu.memory_space<vmem>>, %arg6: memref<128x512xbf16, #tpu.memory_space<vmem>>, %arg7: memref<128x1xf32, #tpu.memory_space<vmem>>, %arg8: memref<1x368x32xbf16, #tpu.memory_space<vmem>>, %arg9: memref<1x8x32xf32, #tpu.memory_space<vmem>>, %arg10: memref<128x16xf32, #tpu.memory_space<vmem>>, %arg11: memref<128x16xf32, #tpu.memory_space<vmem>>) attributes {dimension_semantics = [#tpu.dimension_semantics<arbitrary>], iteration_bounds = array<i64: 4>, scalar_prefetch = 0 : i64, scratch_operands = 1 : i64, tpu.core_type = #tpu.core_type<tc>, window_params = [{pipeline_mode = #tpu.pipeline_mode<synchronous>, transform_indices = @transform_0, window_bounds = array<i64: 128, 16>}, {pipeline_mode = #tpu.pipeline_mode<synchronous>, transform_indices = @transform_1, window_bounds = array<i64: 512, 16>}, {pipeline_mode = #tpu.pipeline_mode<synchronous>, transform_indices = @transform_2, window_bounds = array<i64: 512, 128>}, {pipeline_mode = #tpu.pipeline_mode<synchronous>, transform_indices = @transform_3, window_bounds = array<i64: 512, 128>}, {pipeline_mode = #tpu.pipeline_mode<synchronous>, transform_indices = @transform_4, window_bounds = array<i64: 128, 512>}, {pipeline_mode = #tpu.pipeline_mode<synchronous>, transform_indices = @transform_5, window_bounds = array<i64: 128, 512>}, {pipeline_mode = #tpu.pipeline_mode<synchronous>, transform_indices = @transform_6, window_bounds = array<i64: 128, 1>}, {transform_indices = @transform_7, window_bounds = array<i64: 1, 368, 32>}, {transform_indices = @transform_8, window_bounds = array<i64: 1, 8, 32>}, {pipeline_mode = #tpu.pipeline_mode<synchronous>, transform_indices = @transform_9, window_bounds = array<i64: 128, 16>}]} {
    %c0_i32 = arith.constant 0 : i32
    %0 = arith.cmpi eq, %arg0, %c0_i32 : i32
    %1 = arith.extui %0 : i1 to i32
    %c0_i32_0 = arith.constant 0 : i32
    %2 = arith.cmpi ne, %1, %c0_i32_0 : i32
    scf.if %2 {
      %cst_111 = arith.constant 0.000000e+00 : f32
      %284 = vector.broadcast %cst_111 : f32 to vector<128x16xf32>
      %c0_112 = arith.constant 0 : index
      %c0_113 = arith.constant 0 : index
      %285 = vector.load %arg11[%c0_112, %c0_113] : memref<128x16xf32, #tpu.memory_space<vmem>>, vector<128x16xf32>
      tpu.vector_store %arg11[%c0_112, %c0_113], %284 {strides = array<i32>} : memref<128x16xf32, #tpu.memory_space<vmem>>, vector<128x16xf32>,
    } else {
    }
    %c0 = arith.constant 0 : index
    %c0_1 = arith.constant 0 : index
    %3 = vector.load %arg11[%c0, %c0_1] : memref<128x16xf32, #tpu.memory_space<vmem>>, vector<128x16xf32>
    %4 = arith.truncf %3 : vector<128x16xf32> to vector<128x16xbf16>
    %c0_2 = arith.constant 0 : index
    %c0_3 = arith.constant 0 : index
    %5 = vector.load %arg1[%c0_2, %c0_3] : memref<128x16xbf16, #tpu.memory_space<vmem>>, vector<128x16xbf16>
    %c0_4 = arith.constant 0 : index
    %c0_5 = arith.constant 0 : index
    %6 = vector.load %arg2[%c0_4, %c0_5] : memref<512x16xbf16, #tpu.memory_space<vmem>>, vector<512x16xbf16>
    %c0_6 = arith.constant 0 : index
    %c0_7 = arith.constant 0 : index
    %7 = vector.load %arg3[%c0_6, %c0_7] : memref<512x128xbf16, #tpu.memory_space<vmem>>, vector<512x128xbf16>
    %c0_8 = arith.constant 0 : index
    %c0_9 = arith.constant 0 : index
    %8 = vector.load %arg4[%c0_8, %c0_9] : memref<512x128xbf16, #tpu.memory_space<vmem>>, vector<512x128xbf16>
    %c0_10 = arith.constant 0 : index
    %c0_11 = arith.constant 0 : index
    %9 = vector.load %arg5[%c0_10, %c0_11] : memref<128x512xbf16, #tpu.memory_space<vmem>>, vector<128x512xbf16>
    %c0_12 = arith.constant 0 : index
    %c0_13 = arith.constant 0 : index
    %10 = vector.load %arg6[%c0_12, %c0_13] : memref<128x512xbf16, #tpu.memory_space<vmem>>, vector<128x512xbf16>
    %c0_14 = arith.constant 0 : index
    %c0_15 = arith.constant 0 : index
    %11 = vector.load %arg7[%c0_14, %c0_15] : memref<128x1xf32, #tpu.memory_space<vmem>>, vector<128x1xf32>
    %c0_16 = arith.constant 0 : index
    %c0_17 = arith.constant 0 : index
    %c0_18 = arith.constant 0 : index
    %12 = vector.load %arg8[%c0_16, %c0_17, %c0_18] : memref<1x368x32xbf16, #tpu.memory_space<vmem>>, vector<1x16x32xbf16>
    %13 = vector.shape_cast %12 : vector<1x16x32xbf16> to vector<16x32xbf16>
    %cst = arith.constant dense<0.000000e+00> : vector<128x32xf32>
    %14 = tpu.matmul %4, %13, %cst {dimension_numbers = #tpu.dot_dimension_numbers<[1], [0], [0], [1], [0, 0, 1, 1], [], []>} : vector<128x16xbf16>, vector<16x32xbf16>, vector<128x32xf32> -> vector<128x32xf32>
    %c0_19 = arith.constant 0 : index
    %c16 = arith.constant 16 : index
    %c0_20 = arith.constant 0 : index
    %15 = vector.load %arg8[%c0_19, %c16, %c0_20] : memref<1x368x32xbf16, #tpu.memory_space<vmem>>, vector<1x16x32xbf16>
    %16 = vector.shape_cast %15 : vector<1x16x32xbf16> to vector<16x32xbf16>
    %cst_21 = arith.constant dense<0.000000e+00> : vector<128x32xf32>
    %17 = tpu.matmul %5, %16, %cst_21 {dimension_numbers = #tpu.dot_dimension_numbers<[1], [0], [0], [1], [0, 0, 1, 1], [], []>} : vector<128x16xbf16>, vector<16x32xbf16>, vector<128x32xf32> -> vector<128x32xf32>
    %18 = arith.addf %14, %17 : vector<128x32xf32>
    %19 = arith.truncf %18 : vector<128x32xf32> to vector<128x32xbf16>
    %c0_22 = arith.constant 0 : index
    %c32 = arith.constant 32 : index
    %c0_23 = arith.constant 0 : index
    %20 = vector.load %arg8[%c0_22, %c32, %c0_23] : memref<1x368x32xbf16, #tpu.memory_space<vmem>>, vector<1x16x32xbf16>
    %21 = vector.shape_cast %20 : vector<1x16x32xbf16> to vector<16x32xbf16>
    %cst_24 = arith.constant dense<0.000000e+00> : vector<128x32xf32>
    %22 = tpu.matmul %4, %21, %cst_24 {dimension_numbers = #tpu.dot_dimension_numbers<[1], [0], [0], [1], [0, 0, 1, 1], [], []>} : vector<128x16xbf16>, vector<16x32xbf16>, vector<128x32xf32> -> vector<128x32xf32>
    %c0_25 = arith.constant 0 : index
    %c48 = arith.constant 48 : index
    %c0_26 = arith.constant 0 : index
    %23 = vector.load %arg8[%c0_25, %c48, %c0_26] : memref<1x368x32xbf16, #tpu.memory_space<vmem>>, vector<1x16x32xbf16>
    %24 = vector.shape_cast %23 : vector<1x16x32xbf16> to vector<16x32xbf16>
    %cst_27 = arith.constant dense<0.000000e+00> : vector<128x32xf32>
    %25 = tpu.matmul %5, %24, %cst_27 {dimension_numbers = #tpu.dot_dimension_numbers<[1], [0], [0], [1], [0, 0, 1, 1], [], []>} : vector<128x16xbf16>, vector<16x32xbf16>, vector<128x32xf32> -> vector<128x32xf32>
    %26 = arith.addf %22, %25 : vector<128x32xf32>
    %27 = arith.truncf %26 : vector<128x32xf32> to vector<128x32xbf16>
    %cst_28 = arith.constant dense<0.000000e+00> : vector<512x32xf32>
    %28 = tpu.matmul %7, %19, %cst_28 {dimension_numbers = #tpu.dot_dimension_numbers<[1], [0], [0], [1], [0, 0, 1, 1], [], []>} : vector<512x128xbf16>, vector<128x32xbf16>, vector<512x32xf32> -> vector<512x32xf32>
    %cst_29 = arith.constant dense<0.000000e+00> : vector<512x32xf32>
    %29 = tpu.matmul %8, %27, %cst_29 {dimension_numbers = #tpu.dot_dimension_numbers<[1], [0], [0], [1], [0, 0, 1, 1], [], []>} : vector<512x128xbf16>, vector<128x32xbf16>, vector<512x32xf32> -> vector<512x32xf32>
    %30 = arith.addf %28, %29 : vector<512x32xf32>
    %c0_30 = arith.constant 0 : index
    %c64 = arith.constant 64 : index
    %c0_31 = arith.constant 0 : index
    %31 = vector.load %arg8[%c0_30, %c64, %c0_31] : memref<1x368x32xbf16, #tpu.memory_space<vmem>>, vector<1x16x32xbf16>
    %32 = vector.shape_cast %31 : vector<1x16x32xbf16> to vector<16x32xbf16>
    %cst_32 = arith.constant dense<0.000000e+00> : vector<512x32xf32>
    %33 = tpu.matmul %6, %32, %cst_32 {dimension_numbers = #tpu.dot_dimension_numbers<[1], [0], [0], [1], [0, 0, 1, 1], [], []>} : vector<512x16xbf16>, vector<16x32xbf16>, vector<512x32xf32> -> vector<512x32xf32>
    %34 = arith.addf %30, %33 : vector<512x32xf32>
    %c0_33 = arith.constant 0 : index
    %c0_34 = arith.constant 0 : index
    %c0_35 = arith.constant 0 : index
    %35 = vector.load %arg9[%c0_33, %c0_34, %c0_35] : memref<1x8x32xf32, #tpu.memory_space<vmem>>, vector<1x1x32xf32>
    %36 = vector.shape_cast %35 : vector<1x1x32xf32> to vector<1x32xf32>
    %37 = vector.broadcast %36 : vector<1x32xf32> to vector<512x32xf32>
    %38 = arith.addf %34, %37 : vector<512x32xf32>
    %cst_36 = arith.constant 2.000000e-01 : f32
    %39 = vector.broadcast %cst_36 : f32 to vector<512x32xf32>
    %40 = arith.mulf %39, %38 : vector<512x32xf32>
    %41 = arith.maximumf %38, %40 : vector<512x32xf32>
    %42 = arith.truncf %41 : vector<512x32xf32> to vector<512x32xbf16>
    %c0_37 = arith.constant 0 : index
    %c80 = arith.constant 80 : index
    %c0_38 = arith.constant 0 : index
    %43 = vector.load %arg8[%c0_37, %c80, %c0_38] : memref<1x368x32xbf16, #tpu.memory_space<vmem>>, vector<1x32x32xbf16>
    %44 = vector.shape_cast %43 : vector<1x32x32xbf16> to vector<32x32xbf16>
    %cst_39 = arith.constant dense<0.000000e+00> : vector<512x32xf32>
    %45 = tpu.matmul %42, %44, %cst_39 {dimension_numbers = #tpu.dot_dimension_numbers<[1], [0], [0], [1], [0, 0, 1, 1], [], []>} : vector<512x32xbf16>, vector<32x32xbf16>, vector<512x32xf32> -> vector<512x32xf32>
    %c0_40 = arith.constant 0 : index
    %c1 = arith.constant 1 : index
    %c0_41 = arith.constant 0 : index
    %46 = vector.load %arg9[%c0_40, %c1, %c0_41] : memref<1x8x32xf32, #tpu.memory_space<vmem>>, vector<1x1x32xf32>
    %47 = vector.shape_cast %46 : vector<1x1x32xf32> to vector<1x32xf32>
    %48 = vector.broadcast %47 : vector<1x32xf32> to vector<512x32xf32>
    %49 = arith.addf %45, %48 : vector<512x32xf32>
    %cst_42 = arith.constant 2.000000e-01 : f32
    %50 = vector.broadcast %cst_42 : f32 to vector<512x32xf32>
    %51 = arith.mulf %50, %49 : vector<512x32xf32>
    %52 = arith.maximumf %49, %51 : vector<512x32xf32>
    %53 = arith.truncf %52 : vector<512x32xf32> to vector<512x32xbf16>
    %c0_43 = arith.constant 0 : index
    %c112 = arith.constant 112 : index
    %c0_44 = arith.constant 0 : index
    %54 = vector.load %arg8[%c0_43, %c112, %c0_44] : memref<1x368x32xbf16, #tpu.memory_space<vmem>>, vector<1x32x32xbf16>
    %55 = vector.shape_cast %54 : vector<1x32x32xbf16> to vector<32x32xbf16>
    %cst_45 = arith.constant dense<0.000000e+00> : vector<512x32xf32>
    %56 = tpu.matmul %53, %55, %cst_45 {dimension_numbers = #tpu.dot_dimension_numbers<[1], [0], [0], [1], [0, 0, 1, 1], [], []>} : vector<512x32xbf16>, vector<32x32xbf16>, vector<512x32xf32> -> vector<512x32xf32>
    %c0_46 = arith.constant 0 : index
    %c2 = arith.constant 2 : index
    %c0_47 = arith.constant 0 : index
    %57 = vector.load %arg9[%c0_46, %c2, %c0_47] : memref<1x8x32xf32, #tpu.memory_space<vmem>>, vector<1x1x32xf32>
    %58 = vector.shape_cast %57 : vector<1x1x32xf32> to vector<1x32xf32>
    %59 = vector.broadcast %58 : vector<1x32xf32> to vector<512x32xf32>
    %60 = arith.addf %56, %59 : vector<512x32xf32>
    %cst_48 = arith.constant 2.000000e-01 : f32
    %61 = vector.broadcast %cst_48 : f32 to vector<512x32xf32>
    %62 = arith.mulf %61, %60 : vector<512x32xf32>
    %63 = arith.maximumf %60, %62 : vector<512x32xf32>
    %64 = arith.truncf %63 : vector<512x32xf32> to vector<512x32xbf16>
    %c0_49 = arith.constant 0 : index
    %c144 = arith.constant 144 : index
    %c0_50 = arith.constant 0 : index
    %65 = vector.load %arg8[%c0_49, %c144, %c0_50] : memref<1x368x32xbf16, #tpu.memory_space<vmem>>, vector<1x32x16xbf16>
    %66 = vector.shape_cast %65 : vector<1x32x16xbf16> to vector<32x16xbf16>
    %cst_51 = arith.constant dense<0.000000e+00> : vector<512x16xf32>
    %67 = tpu.matmul %64, %66, %cst_51 {dimension_numbers = #tpu.dot_dimension_numbers<[1], [0], [0], [1], [0, 0, 1, 1], [], []>} : vector<512x32xbf16>, vector<32x16xbf16>, vector<512x16xf32> -> vector<512x16xf32>
    %c0_52 = arith.constant 0 : index
    %c3 = arith.constant 3 : index
    %c0_53 = arith.constant 0 : index
    %68 = vector.load %arg9[%c0_52, %c3, %c0_53] : memref<1x8x32xf32, #tpu.memory_space<vmem>>, vector<1x1x16xf32>
    %69 = vector.shape_cast %68 : vector<1x1x16xf32> to vector<1x16xf32>
    %70 = vector.broadcast %69 : vector<1x16xf32> to vector<512x16xf32>
    %71 = arith.addf %67, %70 : vector<512x16xf32>
    %72 = vector.extract_strided_slice %71 {offsets = [0, 10], sizes = [512, 1], strides = [1, 1]} : vector<512x16xf32> to vector<512x1xf32>
    %cst_54 = arith.constant 5.000000e-01 : f32
    %73 = vector.broadcast %cst_54 : f32 to vector<512x1xf32>
    %74 = arith.mulf %73, %72 : vector<512x1xf32>
    %75 = math.tanh %74 : vector<512x1xf32>
    %cst_55 = arith.constant 1.000000e+00 : f32
    %76 = vector.broadcast %cst_55 : f32 to vector<512x1xf32>
    %77 = arith.addf %75, %76 : vector<512x1xf32>
    %cst_56 = arith.constant 5.000000e-01 : f32
    %78 = vector.broadcast %cst_56 : f32 to vector<512x1xf32>
    %79 = arith.mulf %78, %77 : vector<512x1xf32>
    %80 = vector.broadcast %79 : vector<512x1xf32> to vector<512x16xf32>
    %81 = arith.mulf %71, %80 : vector<512x16xf32>
    %82 = arith.truncf %81 : vector<512x16xf32> to vector<512x16xbf16>
    %c0_57 = arith.constant 0 : index
    %c176 = arith.constant 176 : index
    %c0_58 = arith.constant 0 : index
    %83 = vector.load %arg8[%c0_57, %c176, %c0_58] : memref<1x368x32xbf16, #tpu.memory_space<vmem>>, vector<1x16x32xbf16>
    %84 = vector.shape_cast %83 : vector<1x16x32xbf16> to vector<16x32xbf16>
    %cst_59 = arith.constant dense<0.000000e+00> : vector<16x512xf32>
    %85 = tpu.matmul %84, %64, %cst_59 {dimension_numbers = #tpu.dot_dimension_numbers<[1], [1], [0], [0], [0, 0, 1, 0], [], []>} : vector<16x32xbf16>, vector<512x32xbf16>, vector<16x512xf32> -> vector<16x512xf32>
    %c0_60 = arith.constant 0 : index
    %c192 = arith.constant 192 : index
    %c0_61 = arith.constant 0 : index
    %86 = vector.load %arg8[%c0_60, %c192, %c0_61] : memref<1x368x32xbf16, #tpu.memory_space<vmem>>, vector<1x16x1xbf16>
    %87 = vector.shape_cast %86 : vector<1x16x1xbf16> to vector<16x1xbf16>
    %88 = arith.extf %87 : vector<16x1xbf16> to vector<16x1xf32>
    %89 = vector.broadcast %88 : vector<16x1xf32> to vector<16x512xf32>
    %90 = arith.addf %85, %89 : vector<16x512xf32>
    %91 = vector.extract_strided_slice %90 {offsets = [0, 0], sizes = [10, 512], strides = [1, 1]} : vector<16x512xf32> to vector<10x512xf32>
    %92 = vector.extract_strided_slice %90 {offsets = [10, 0], sizes = [1, 512], strides = [1, 1]} : vector<16x512xf32> to vector<1x512xf32>
    %cst_62 = arith.constant 5.000000e-01 : f32
    %93 = vector.broadcast %cst_62 : f32 to vector<1x512xf32>
    %94 = arith.mulf %93, %92 : vector<1x512xf32>
    %95 = math.tanh %94 : vector<1x512xf32>
    %cst_63 = arith.constant 1.000000e+00 : f32
    %96 = vector.broadcast %cst_63 : f32 to vector<1x512xf32>
    %97 = arith.addf %95, %96 : vector<1x512xf32>
    %cst_64 = arith.constant 5.000000e-01 : f32
    %98 = vector.broadcast %cst_64 : f32 to vector<1x512xf32>
    %99 = arith.mulf %98, %97 : vector<1x512xf32>
    %100 = vector.broadcast %99 : vector<1x512xf32> to vector<10x512xf32>
    %101 = arith.mulf %91, %100 : vector<10x512xf32>
    %102 = arith.truncf %101 : vector<10x512xf32> to vector<10x512xbf16>
    %cst_65 = arith.constant dense<0.000000e+00> : vector<128x16xf32>
    %103 = tpu.matmul %9, %82, %cst_65 {dimension_numbers = #tpu.dot_dimension_numbers<[1], [0], [0], [1], [0, 0, 1, 1], [], []>} : vector<128x512xbf16>, vector<512x16xbf16>, vector<128x16xf32> -> vector<128x16xf32>
    %c0_66 = arith.constant 0 : index
    %c256 = arith.constant 256 : index
    %c0_67 = arith.constant 0 : index
    %104 = vector.load %arg8[%c0_66, %c256, %c0_67] : memref<1x368x32xbf16, #tpu.memory_space<vmem>>, vector<1x16x32xbf16>
    %105 = vector.shape_cast %104 : vector<1x16x32xbf16> to vector<16x32xbf16>
    %106 = arith.extf %105 : vector<16x32xbf16> to vector<16x32xf32>
    %cst_68 = arith.constant 0.000000e+00 : f32
    %107 = vector.broadcast %cst_68 : f32 to vector<128x32xf32>
    %108 = vector.extract_strided_slice %102 {offsets = [0, 0], sizes = [1, 512], strides = [1, 1]} : vector<10x512xbf16> to vector<1x512xbf16>
    %109 = vector.broadcast %108 : vector<1x512xbf16> to vector<128x512xbf16>
    %110 = arith.addf %109, %10 : vector<128x512xbf16>
    %cst_69 = arith.constant dense<0xFF80> : vector<128xbf16>
    %111 = vector.multi_reduction <maximumf>, %110, %cst_69 [1] : vector<128x512xbf16> to vector<128xbf16>
    %112 = vector.shape_cast %111 : vector<128xbf16> to vector<128x1xbf16>
    %113 = arith.extf %112 : vector<128x1xbf16> to vector<128x1xf32>
    %114 = arith.mulf %113, %11 : vector<128x1xf32>
    %115 = vector.extract_strided_slice %106 {offsets = [0, 0], sizes = [1, 32], strides = [1, 1]} : vector<16x32xf32> to vector<1x32xf32>
    %116 = vector.broadcast %114 : vector<128x1xf32> to vector<128x32xf32>
    %117 = vector.broadcast %115 : vector<1x32xf32> to vector<128x32xf32>
    %118 = arith.mulf %116, %117 : vector<128x32xf32>
    %119 = arith.addf %107, %118 : vector<128x32xf32>
    %120 = vector.extract_strided_slice %102 {offsets = [1, 0], sizes = [1, 512], strides = [1, 1]} : vector<10x512xbf16> to vector<1x512xbf16>
    %121 = vector.broadcast %120 : vector<1x512xbf16> to vector<128x512xbf16>
    %122 = arith.addf %121, %10 : vector<128x512xbf16>
    %cst_70 = arith.constant dense<0xFF80> : vector<128xbf16>
    %123 = vector.multi_reduction <maximumf>, %122, %cst_70 [1] : vector<128x512xbf16> to vector<128xbf16>
    %124 = vector.shape_cast %123 : vector<128xbf16> to vector<128x1xbf16>
    %125 = arith.extf %124 : vector<128x1xbf16> to vector<128x1xf32>
    %126 = arith.mulf %125, %11 : vector<128x1xf32>
    %127 = vector.extract_strided_slice %106 {offsets = [1, 0], sizes = [1, 32], strides = [1, 1]} : vector<16x32xf32> to vector<1x32xf32>
    %128 = vector.broadcast %126 : vector<128x1xf32> to vector<128x32xf32>
    %129 = vector.broadcast %127 : vector<1x32xf32> to vector<128x32xf32>
    %130 = arith.mulf %128, %129 : vector<128x32xf32>
    %131 = arith.addf %119, %130 : vector<128x32xf32>
    %132 = vector.extract_strided_slice %102 {offsets = [2, 0], sizes = [1, 512], strides = [1, 1]} : vector<10x512xbf16> to vector<1x512xbf16>
    %133 = vector.broadcast %132 : vector<1x512xbf16> to vector<128x512xbf16>
    %134 = arith.addf %133, %10 : vector<128x512xbf16>
    %cst_71 = arith.constant dense<0xFF80> : vector<128xbf16>
    %135 = vector.multi_reduction <maximumf>, %134, %cst_71 [1] : vector<128x512xbf16> to vector<128xbf16>
    %136 = vector.shape_cast %135 : vector<128xbf16> to vector<128x1xbf16>
    %137 = arith.extf %136 : vector<128x1xbf16> to vector<128x1xf32>
    %138 = arith.mulf %137, %11 : vector<128x1xf32>
    %139 = vector.extract_strided_slice %106 {offsets = [2, 0], sizes = [1, 32], strides = [1, 1]} : vector<16x32xf32> to vector<1x32xf32>
    %140 = vector.broadcast %138 : vector<128x1xf32> to vector<128x32xf32>
    %141 = vector.broadcast %139 : vector<1x32xf32> to vector<128x32xf32>
    %142 = arith.mulf %140, %141 : vector<128x32xf32>
    %143 = arith.addf %131, %142 : vector<128x32xf32>
    %144 = vector.extract_strided_slice %102 {offsets = [3, 0], sizes = [1, 512], strides = [1, 1]} : vector<10x512xbf16> to vector<1x512xbf16>
    %145 = vector.broadcast %144 : vector<1x512xbf16> to vector<128x512xbf16>
    %146 = arith.addf %145, %10 : vector<128x512xbf16>
    %cst_72 = arith.constant dense<0xFF80> : vector<128xbf16>
    %147 = vector.multi_reduction <maximumf>, %146, %cst_72 [1] : vector<128x512xbf16> to vector<128xbf16>
    %148 = vector.shape_cast %147 : vector<128xbf16> to vector<128x1xbf16>
    %149 = arith.extf %148 : vector<128x1xbf16> to vector<128x1xf32>
    %150 = arith.mulf %149, %11 : vector<128x1xf32>
    %151 = vector.extract_strided_slice %106 {offsets = [3, 0], sizes = [1, 32], strides = [1, 1]} : vector<16x32xf32> to vector<1x32xf32>
    %152 = vector.broadcast %150 : vector<128x1xf32> to vector<128x32xf32>
    %153 = vector.broadcast %151 : vector<1x32xf32> to vector<128x32xf32>
    %154 = arith.mulf %152, %153 : vector<128x32xf32>
    %155 = arith.addf %143, %154 : vector<128x32xf32>
    %156 = vector.extract_strided_slice %102 {offsets = [4, 0], sizes = [1, 512], strides = [1, 1]} : vector<10x512xbf16> to vector<1x512xbf16>
    %157 = vector.broadcast %156 : vector<1x512xbf16> to vector<128x512xbf16>
    %158 = arith.addf %157, %10 : vector<128x512xbf16>
    %cst_73 = arith.constant dense<0xFF80> : vector<128xbf16>
    %159 = vector.multi_reduction <maximumf>, %158, %cst_73 [1] : vector<128x512xbf16> to vector<128xbf16>
    %160 = vector.shape_cast %159 : vector<128xbf16> to vector<128x1xbf16>
    %161 = arith.extf %160 : vector<128x1xbf16> to vector<128x1xf32>
    %162 = arith.mulf %161, %11 : vector<128x1xf32>
    %163 = vector.extract_strided_slice %106 {offsets = [4, 0], sizes = [1, 32], strides = [1, 1]} : vector<16x32xf32> to vector<1x32xf32>
    %164 = vector.broadcast %162 : vector<128x1xf32> to vector<128x32xf32>
    %165 = vector.broadcast %163 : vector<1x32xf32> to vector<128x32xf32>
    %166 = arith.mulf %164, %165 : vector<128x32xf32>
    %167 = arith.addf %155, %166 : vector<128x32xf32>
    %168 = vector.extract_strided_slice %102 {offsets = [5, 0], sizes = [1, 512], strides = [1, 1]} : vector<10x512xbf16> to vector<1x512xbf16>
    %169 = vector.broadcast %168 : vector<1x512xbf16> to vector<128x512xbf16>
    %170 = arith.addf %169, %10 : vector<128x512xbf16>
    %cst_74 = arith.constant dense<0xFF80> : vector<128xbf16>
    %171 = vector.multi_reduction <maximumf>, %170, %cst_74 [1] : vector<128x512xbf16> to vector<128xbf16>
    %172 = vector.shape_cast %171 : vector<128xbf16> to vector<128x1xbf16>
    %173 = arith.extf %172 : vector<128x1xbf16> to vector<128x1xf32>
    %174 = arith.mulf %173, %11 : vector<128x1xf32>
    %175 = vector.extract_strided_slice %106 {offsets = [5, 0], sizes = [1, 32], strides = [1, 1]} : vector<16x32xf32> to vector<1x32xf32>
    %176 = vector.broadcast %174 : vector<128x1xf32> to vector<128x32xf32>
    %177 = vector.broadcast %175 : vector<1x32xf32> to vector<128x32xf32>
    %178 = arith.mulf %176, %177 : vector<128x32xf32>
    %179 = arith.addf %167, %178 : vector<128x32xf32>
    %180 = vector.extract_strided_slice %102 {offsets = [6, 0], sizes = [1, 512], strides = [1, 1]} : vector<10x512xbf16> to vector<1x512xbf16>
    %181 = vector.broadcast %180 : vector<1x512xbf16> to vector<128x512xbf16>
    %182 = arith.addf %181, %10 : vector<128x512xbf16>
    %cst_75 = arith.constant dense<0xFF80> : vector<128xbf16>
    %183 = vector.multi_reduction <maximumf>, %182, %cst_75 [1] : vector<128x512xbf16> to vector<128xbf16>
    %184 = vector.shape_cast %183 : vector<128xbf16> to vector<128x1xbf16>
    %185 = arith.extf %184 : vector<128x1xbf16> to vector<128x1xf32>
    %186 = arith.mulf %185, %11 : vector<128x1xf32>
    %187 = vector.extract_strided_slice %106 {offsets = [6, 0], sizes = [1, 32], strides = [1, 1]} : vector<16x32xf32> to vector<1x32xf32>
    %188 = vector.broadcast %186 : vector<128x1xf32> to vector<128x32xf32>
    %189 = vector.broadcast %187 : vector<1x32xf32> to vector<128x32xf32>
    %190 = arith.mulf %188, %189 : vector<128x32xf32>
    %191 = arith.addf %179, %190 : vector<128x32xf32>
    %192 = vector.extract_strided_slice %102 {offsets = [7, 0], sizes = [1, 512], strides = [1, 1]} : vector<10x512xbf16> to vector<1x512xbf16>
    %193 = vector.broadcast %192 : vector<1x512xbf16> to vector<128x512xbf16>
    %194 = arith.addf %193, %10 : vector<128x512xbf16>
    %cst_76 = arith.constant dense<0xFF80> : vector<128xbf16>
    %195 = vector.multi_reduction <maximumf>, %194, %cst_76 [1] : vector<128x512xbf16> to vector<128xbf16>
    %196 = vector.shape_cast %195 : vector<128xbf16> to vector<128x1xbf16>
    %197 = arith.extf %196 : vector<128x1xbf16> to vector<128x1xf32>
    %198 = arith.mulf %197, %11 : vector<128x1xf32>
    %199 = vector.extract_strided_slice %106 {offsets = [7, 0], sizes = [1, 32], strides = [1, 1]} : vector<16x32xf32> to vector<1x32xf32>
    %200 = vector.broadcast %198 : vector<128x1xf32> to vector<128x32xf32>
    %201 = vector.broadcast %199 : vector<1x32xf32> to vector<128x32xf32>
    %202 = arith.mulf %200, %201 : vector<128x32xf32>
    %203 = arith.addf %191, %202 : vector<128x32xf32>
    %204 = vector.extract_strided_slice %102 {offsets = [8, 0], sizes = [1, 512], strides = [1, 1]} : vector<10x512xbf16> to vector<1x512xbf16>
    %205 = vector.broadcast %204 : vector<1x512xbf16> to vector<128x512xbf16>
    %206 = arith.addf %205, %10 : vector<128x512xbf16>
    %cst_77 = arith.constant dense<0xFF80> : vector<128xbf16>
    %207 = vector.multi_reduction <maximumf>, %206, %cst_77 [1] : vector<128x512xbf16> to vector<128xbf16>
    %208 = vector.shape_cast %207 : vector<128xbf16> to vector<128x1xbf16>
    %209 = arith.extf %208 : vector<128x1xbf16> to vector<128x1xf32>
    %210 = arith.mulf %209, %11 : vector<128x1xf32>
    %211 = vector.extract_strided_slice %106 {offsets = [8, 0], sizes = [1, 32], strides = [1, 1]} : vector<16x32xf32> to vector<1x32xf32>
    %212 = vector.broadcast %210 : vector<128x1xf32> to vector<128x32xf32>
    %213 = vector.broadcast %211 : vector<1x32xf32> to vector<128x32xf32>
    %214 = arith.mulf %212, %213 : vector<128x32xf32>
    %215 = arith.addf %203, %214 : vector<128x32xf32>
    %216 = vector.extract_strided_slice %102 {offsets = [9, 0], sizes = [1, 512], strides = [1, 1]} : vector<10x512xbf16> to vector<1x512xbf16>
    %217 = vector.broadcast %216 : vector<1x512xbf16> to vector<128x512xbf16>
    %218 = arith.addf %217, %10 : vector<128x512xbf16>
    %cst_78 = arith.constant dense<0xFF80> : vector<128xbf16>
    %219 = vector.multi_reduction <maximumf>, %218, %cst_78 [1] : vector<128x512xbf16> to vector<128xbf16>
    %220 = vector.shape_cast %219 : vector<128xbf16> to vector<128x1xbf16>
    %221 = arith.extf %220 : vector<128x1xbf16> to vector<128x1xf32>
    %222 = arith.mulf %221, %11 : vector<128x1xf32>
    %223 = vector.extract_strided_slice %106 {offsets = [9, 0], sizes = [1, 32], strides = [1, 1]} : vector<16x32xf32> to vector<1x32xf32>
    %224 = vector.broadcast %222 : vector<128x1xf32> to vector<128x32xf32>
    %225 = vector.broadcast %223 : vector<1x32xf32> to vector<128x32xf32>
    %226 = arith.mulf %224, %225 : vector<128x32xf32>
    %227 = arith.addf %215, %226 : vector<128x32xf32>
    %c0_79 = arith.constant 0 : index
    %c208 = arith.constant 208 : index
    %c0_80 = arith.constant 0 : index
    %228 = vector.load %arg8[%c0_79, %c208, %c0_80] : memref<1x368x32xbf16, #tpu.memory_space<vmem>>, vector<1x16x32xbf16>
    %229 = vector.shape_cast %228 : vector<1x16x32xbf16> to vector<16x32xbf16>
    %cst_81 = arith.constant dense<0.000000e+00> : vector<128x32xf32>
    %230 = tpu.matmul %4, %229, %cst_81 {dimension_numbers = #tpu.dot_dimension_numbers<[1], [0], [0], [1], [0, 0, 1, 1], [], []>} : vector<128x16xbf16>, vector<16x32xbf16>, vector<128x32xf32> -> vector<128x32xf32>
    %c0_82 = arith.constant 0 : index
    %c224 = arith.constant 224 : index
    %c0_83 = arith.constant 0 : index
    %231 = vector.load %arg8[%c0_82, %c224, %c0_83] : memref<1x368x32xbf16, #tpu.memory_space<vmem>>, vector<1x16x32xbf16>
    %232 = vector.shape_cast %231 : vector<1x16x32xbf16> to vector<16x32xbf16>
    %cst_84 = arith.constant dense<0.000000e+00> : vector<128x32xf32>
    %233 = tpu.matmul %5, %232, %cst_84 {dimension_numbers = #tpu.dot_dimension_numbers<[1], [0], [0], [1], [0, 0, 1, 1], [], []>} : vector<128x16xbf16>, vector<16x32xbf16>, vector<128x32xf32> -> vector<128x32xf32>
    %234 = arith.addf %230, %233 : vector<128x32xf32>
    %235 = arith.truncf %103 : vector<128x16xf32> to vector<128x16xbf16>
    %c0_85 = arith.constant 0 : index
    %c240 = arith.constant 240 : index
    %c0_86 = arith.constant 0 : index
    %236 = vector.load %arg8[%c0_85, %c240, %c0_86] : memref<1x368x32xbf16, #tpu.memory_space<vmem>>, vector<1x16x32xbf16>
    %237 = vector.shape_cast %236 : vector<1x16x32xbf16> to vector<16x32xbf16>
    %cst_87 = arith.constant dense<0.000000e+00> : vector<128x32xf32>
    %238 = tpu.matmul %235, %237, %cst_87 {dimension_numbers = #tpu.dot_dimension_numbers<[1], [0], [0], [1], [0, 0, 1, 1], [], []>} : vector<128x16xbf16>, vector<16x32xbf16>, vector<128x32xf32> -> vector<128x32xf32>
    %239 = arith.addf %234, %238 : vector<128x32xf32>
    %240 = arith.addf %239, %227 : vector<128x32xf32>
    %c0_88 = arith.constant 0 : index
    %c4 = arith.constant 4 : index
    %c0_89 = arith.constant 0 : index
    %241 = vector.load %arg9[%c0_88, %c4, %c0_89] : memref<1x8x32xf32, #tpu.memory_space<vmem>>, vector<1x1x32xf32>
    %242 = vector.shape_cast %241 : vector<1x1x32xf32> to vector<1x32xf32>
    %243 = vector.broadcast %242 : vector<1x32xf32> to vector<128x32xf32>
    %244 = arith.addf %240, %243 : vector<128x32xf32>
    %cst_90 = arith.constant 2.000000e-01 : f32
    %245 = vector.broadcast %cst_90 : f32 to vector<128x32xf32>
    %246 = arith.mulf %245, %244 : vector<128x32xf32>
    %247 = arith.maximumf %244, %246 : vector<128x32xf32>
    %248 = arith.truncf %247 : vector<128x32xf32> to vector<128x32xbf16>
    %c0_91 = arith.constant 0 : index
    %c272 = arith.constant 272 : index
    %c0_92 = arith.constant 0 : index
    %249 = vector.load %arg8[%c0_91, %c272, %c0_92] : memref<1x368x32xbf16, #tpu.memory_space<vmem>>, vector<1x32x32xbf16>
    %250 = vector.shape_cast %249 : vector<1x32x32xbf16> to vector<32x32xbf16>
    %cst_93 = arith.constant dense<0.000000e+00> : vector<128x32xf32>
    %251 = tpu.matmul %248, %250, %cst_93 {dimension_numbers = #tpu.dot_dimension_numbers<[1], [0], [0], [1], [0, 0, 1, 1], [], []>} : vector<128x32xbf16>, vector<32x32xbf16>, vector<128x32xf32> -> vector<128x32xf32>
    %c0_94 = arith.constant 0 : index
    %c5 = arith.constant 5 : index
    %c0_95 = arith.constant 0 : index
    %252 = vector.load %arg9[%c0_94, %c5, %c0_95] : memref<1x8x32xf32, #tpu.memory_space<vmem>>, vector<1x1x32xf32>
    %253 = vector.shape_cast %252 : vector<1x1x32xf32> to vector<1x32xf32>
    %254 = vector.broadcast %253 : vector<1x32xf32> to vector<128x32xf32>
    %255 = arith.addf %251, %254 : vector<128x32xf32>
    %cst_96 = arith.constant 2.000000e-01 : f32
    %256 = vector.broadcast %cst_96 : f32 to vector<128x32xf32>
    %257 = arith.mulf %256, %255 : vector<128x32xf32>
    %258 = arith.maximumf %255, %257 : vector<128x32xf32>
    %259 = arith.truncf %258 : vector<128x32xf32> to vector<128x32xbf16>
    %c0_97 = arith.constant 0 : index
    %c304 = arith.constant 304 : index
    %c0_98 = arith.constant 0 : index
    %260 = vector.load %arg8[%c0_97, %c304, %c0_98] : memref<1x368x32xbf16, #tpu.memory_space<vmem>>, vector<1x32x32xbf16>
    %261 = vector.shape_cast %260 : vector<1x32x32xbf16> to vector<32x32xbf16>
    %cst_99 = arith.constant dense<0.000000e+00> : vector<128x32xf32>
    %262 = tpu.matmul %259, %261, %cst_99 {dimension_numbers = #tpu.dot_dimension_numbers<[1], [0], [0], [1], [0, 0, 1, 1], [], []>} : vector<128x32xbf16>, vector<32x32xbf16>, vector<128x32xf32> -> vector<128x32xf32>
    %c0_100 = arith.constant 0 : index
    %c6 = arith.constant 6 : index
    %c0_101 = arith.constant 0 : index
    %263 = vector.load %arg9[%c0_100, %c6, %c0_101] : memref<1x8x32xf32, #tpu.memory_space<vmem>>, vector<1x1x32xf32>
    %264 = vector.shape_cast %263 : vector<1x1x32xf32> to vector<1x32xf32>
    %265 = vector.broadcast %264 : vector<1x32xf32> to vector<128x32xf32>
    %266 = arith.addf %262, %265 : vector<128x32xf32>
    %cst_102 = arith.constant 2.000000e-01 : f32
    %267 = vector.broadcast %cst_102 : f32 to vector<128x32xf32>
    %268 = arith.mulf %267, %266 : vector<128x32xf32>
    %269 = arith.maximumf %266, %268 : vector<128x32xf32>
    %270 = arith.truncf %269 : vector<128x32xf32> to vector<128x32xbf16>
    %c0_103 = arith.constant 0 : index
    %c336 = arith.constant 336 : index
    %c0_104 = arith.constant 0 : index
    %271 = vector.load %arg8[%c0_103, %c336, %c0_104] : memref<1x368x32xbf16, #tpu.memory_space<vmem>>, vector<1x32x16xbf16>
    %272 = vector.shape_cast %271 : vector<1x32x16xbf16> to vector<32x16xbf16>
    %cst_105 = arith.constant dense<0.000000e+00> : vector<128x16xf32>
    %273 = tpu.matmul %270, %272, %cst_105 {dimension_numbers = #tpu.dot_dimension_numbers<[1], [0], [0], [1], [0, 0, 1, 1], [], []>} : vector<128x32xbf16>, vector<32x16xbf16>, vector<128x16xf32> -> vector<128x16xf32>
    %c0_106 = arith.constant 0 : index
    %c7 = arith.constant 7 : index
    %c0_107 = arith.constant 0 : index
    %274 = vector.load %arg9[%c0_106, %c7, %c0_107] : memref<1x8x32xf32, #tpu.memory_space<vmem>>, vector<1x1x16xf32>
    %275 = vector.shape_cast %274 : vector<1x1x16xf32> to vector<1x16xf32>
    %276 = vector.broadcast %275 : vector<1x16xf32> to vector<128x16xf32>
    %277 = arith.addf %273, %276 : vector<128x16xf32>
    %c3_i32 = arith.constant 3 : i32
    %278 = arith.cmpi slt, %arg0, %c3_i32 : i32
    %279 = arith.extui %278 : i1 to i32
    %c0_i32_108 = arith.constant 0 : i32
    %280 = arith.cmpi ne, %279, %c0_i32_108 : i32
    scf.if %280 {
      %284 = arith.addf %3, %277 : vector<128x16xf32>
      %c0_111 = arith.constant 0 : index
      %c0_112 = arith.constant 0 : index
      %285 = vector.load %arg11[%c0_111, %c0_112] : memref<128x16xf32, #tpu.memory_space<vmem>>, vector<128x16xf32>
      tpu.vector_store %arg11[%c0_111, %c0_112], %284 {strides = array<i32>} : memref<128x16xf32, #tpu.memory_space<vmem>>, vector<128x16xf32>,
    } else {
    }
    %c3_i32_109 = arith.constant 3 : i32
    %281 = arith.cmpi eq, %arg0, %c3_i32_109 : i32
    %282 = arith.extui %281 : i1 to i32
    %c0_i32_110 = arith.constant 0 : i32
    %283 = arith.cmpi ne, %282, %c0_i32_110 : i32
    scf.if %283 {
      %c0_111 = arith.constant 0 : index
      %c0_112 = arith.constant 0 : index
      %284 = vector.load %arg10[%c0_111, %c0_112] : memref<128x16xf32, #tpu.memory_space<vmem>>, vector<128x16xf32>
      tpu.vector_store %arg10[%c0_111, %c0_112], %277 {strides = array<i32>} : memref<128x16xf32, #tpu.memory_space<vmem>>, vector<128x16xf32>,
    } else {
    }
    return
  }
  func.func @transform_0(%arg0: i32) -> (i32, i32) {
    %c0_i32 = arith.constant 0 : i32
    %c0_i32_0 = arith.constant 0 : i32
    %c0_i32_1 = arith.constant 0 : i32
    return %c0_i32, %c0_i32_0 : i32, i32
  }
  func.func @transform_1(%arg0: i32) -> (i32, i32) {
    %c0_i32 = arith.constant 0 : i32
    %c0_i32_0 = arith.constant 0 : i32
    %c0_i32_1 = arith.constant 0 : i32
    return %c0_i32, %c0_i32_0 : i32, i32
  }
  func.func @transform_2(%arg0: i32) -> (i32, i32) {
    %c0_i32 = arith.constant 0 : i32
    %c0_i32_0 = arith.constant 0 : i32
    %c0_i32_1 = arith.constant 0 : i32
    return %c0_i32, %c0_i32_0 : i32, i32
  }
  func.func @transform_3(%arg0: i32) -> (i32, i32) {
    %c0_i32 = arith.constant 0 : i32
    %c0_i32_0 = arith.constant 0 : i32
    %c0_i32_1 = arith.constant 0 : i32
    return %c0_i32, %c0_i32_0 : i32, i32
  }
  func.func @transform_4(%arg0: i32) -> (i32, i32) {
    %c0_i32 = arith.constant 0 : i32
    %c0_i32_0 = arith.constant 0 : i32
    %c0_i32_1 = arith.constant 0 : i32
    return %c0_i32, %c0_i32_0 : i32, i32
  }
  func.func @transform_5(%arg0: i32) -> (i32, i32) {
    %c0_i32 = arith.constant 0 : i32
    %c0_i32_0 = arith.constant 0 : i32
    %c0_i32_1 = arith.constant 0 : i32
    return %c0_i32, %c0_i32_0 : i32, i32
  }
  func.func @transform_6(%arg0: i32) -> (i32, i32) {
    %c0_i32 = arith.constant 0 : i32
    %c0_i32_0 = arith.constant 0 : i32
    %c0_i32_1 = arith.constant 0 : i32
    return %c0_i32, %c0_i32_0 : i32, i32
  }
  func.func @transform_7(%arg0: i32) -> (i32, i32, i32) {
    %c0_i32 = arith.constant 0 : i32
    %c0_i32_0 = arith.constant 0 : i32
    %c0_i32_1 = arith.constant 0 : i32
    return %arg0, %c0_i32, %c0_i32_0 : i32, i32, i32
  }
  func.func @transform_8(%arg0: i32) -> (i32, i32, i32) {
    %c0_i32 = arith.constant 0 : i32
    %c0_i32_0 = arith.constant 0 : i32
    %c0_i32_1 = arith.constant 0 : i32
    return %arg0, %c0_i32, %c0_i32_0 : i32, i32, i32
  }
  func.func @transform_9(%arg0: i32) -> (i32, i32) {
    %c0_i32 = arith.constant 0 : i32
    %c0_i32_0 = arith.constant 0 : i32
    %c0_i32_1 = arith.constant 0 : i32
    return %c0_i32, %c0_i32_0 : i32, i32
  }
}

</mosaic_0001>

<llo_original>
// kernel: deepgcnii_forward.1
$region0: #{deepgcnii_forward.1}
  #allocation0 [shape = 'u32[]', space=smem, size = 0x4, offset = 0x4, fixed_abs, tag = 'smem constant byte address 0x4 - core index']
  #allocation1 [shape = 'u32[72,128]{1,0:T(1,128)}', space=vmem, size = 0x9000, scoped, tag = 'internal scratch']
  #allocation2 [shape = 'f32[128,16]{1,0:T(8,128)}', space=vmem, size = 0x10000, scoped, tag = 'scratch operand']
  %s0 = inlined_call_operand.vmem [shape: bf16[128,16], index: 0, kind: input, shape index: {}]
  %s1 = inlined_call_operand.vmem [shape: bf16[512,16], index: 1, kind: input, shape index: {}]
  %s2 = inlined_call_operand.vmem [shape: bf16[512,128], index: 2, kind: input, shape index: {}]
  %s3 = inlined_call_operand.vmem [shape: bf16[512,128], index: 3, kind: input, shape index: {}]
  %s4 = inlined_call_operand.vmem [shape: bf16[128,512], index: 4, kind: input, shape index: {}]
  %s5 = inlined_call_operand.vmem [shape: bf16[128,512], index: 5, kind: input, shape index: {}]
  %s6 = inlined_call_operand.vmem [shape: f32[128,1], index: 6, kind: input, shape index: {}]
  %s7 = inlined_call_operand.vmem [shape: bf16[4,368,32], index: 7, kind: input, shape index: {}]
  %s8 = inlined_call_operand.vmem [shape: f32[4,8,32], index: 8, kind: input, shape index: {}]
  %s9 = inlined_call_operand.vmem [shape: f32[128,16], index: 9, kind: output, shape index: {}]
  %s10 = sld [smem:[#allocation0]]
  $region81: #{deepgcnii_forward.1} parent=0
    _
  %s12 = ssub.s32 1, %s10
  %s13 = scalar_select 0, %s12, %s10
  loop: start=0, step=1, limit=6
  $region2: #{deepgcnii_forward.1} parent=0 // loop_pre_header
    _
  $region3: #{deepgcnii_forward.1} parent=0 // loop_header
    %s15 = sphi 0, %s19
    %p16 = scmp.ge.s32.totalorder %s15, 6
    %s23 = sphi 0, %s23
    %s25 = sphi 0, %s23
    %s26 = sphi 0, %s25
    %s40 = sphi 0, %s26
    %s44 = sphi 0, %s44
    %s46 = sphi 0, %s44
    %s47 = sphi 0, %s46
    %s61 = sphi 0, %s47
    %s65 = sphi 0, %s65
    %s67 = sphi 0, %s65
    %s68 = sphi 0, %s67
    %s82 = sphi 0, %s68
    %s86 = sphi 0, %s86
    %s88 = sphi 0, %s86
    %s89 = sphi 0, %s88
    %s103 = sphi 0, %s89
    %s107 = sphi 0, %s107
    %s109 = sphi 0, %s107
    %s110 = sphi 0, %s109
    %s124 = sphi 0, %s110
    %s128 = sphi 0, %s128
    %s130 = sphi 0, %s128
    %s131 = sphi 0, %s130
    %s145 = sphi 0, %s131
    %s149 = sphi 0, %s149
    %s151 = sphi 0, %s149
    %s152 = sphi 0, %s151
    %s166 = sphi 0, %s152
    %s172 = sphi 0, %s174
    %s175 = sphi 0, %s172
    %s176 = sphi 0, %s175
    %s192 = sphi 0, %s176
    %s198 = sphi 0, %s200
    %s201 = sphi 0, %s198
    %s202 = sphi 0, %s201
    %s218 = sphi 0, %s202
    %s222 = sphi 0, %s222
    %s224 = sphi 0, %s222
    %s225 = sphi 0, %s224
    %s239 = sphi 0, %s225
  $region4: #{deepgcnii_forward.1} parent=0 // loop_header_branch
    %18 = sbr.rel (%p16) target = $region8
  $region5: #{deepgcnii_forward.1} parent=0 // loop_body
    %s20 = ssub.s32 %s15, 1
    %s21 = ssub.s32 %s15, 2
    %s22 = sadd.s32 %s15, 1
    %s24 = sadd.s32 %s23, 1
    %p27 = scmp.eq.s32.totalorder %s15, 3
    %p28 = scmp.ne.s32.totalorder %s23, %s25
    %p29 = scmp.eq.s32.totalorder %s15, 0
    %p30 = por %p28, %p29
    %p31 = scmp.ne.s32.totalorder %s23, %s25
    %p32 = scmp.eq.s32.totalorder %s20, 3
    %p33 = por %p31, %p32
    %p34 = scmp.ne.s32.totalorder %s25, %s26
    %p35 = scmp.eq.s32.totalorder %s20, 0
    %p36 = por %p34, %p35
    %p37 = scmp.ne.s32.totalorder %s25, %s26
    %p38 = scmp.eq.s32.totalorder %s21, 3
    %p39 = por %p37, %p38
    %p41 = scmp.ne.s32.totalorder %s26, %s40
    %p42 = scmp.eq.s32.totalorder %s21, 0
    %p43 = por %p41, %p42
    %s45 = sadd.s32 %s44, 1
    %p48 = scmp.eq.s32.totalorder %s15, 3
    %p49 = scmp.ne.s32.totalorder %s44, %s46
    %p50 = scmp.eq.s32.totalorder %s15, 0
    %p51 = por %p49, %p50
    %p52 = scmp.ne.s32.totalorder %s44, %s46
    %p53 = scmp.eq.s32.totalorder %s20, 3
    %p54 = por %p52, %p53
    %p55 = scmp.ne.s32.totalorder %s46, %s47
    %p56 = scmp.eq.s32.totalorder %s20, 0
    %p57 = por %p55, %p56
    %p58 = scmp.ne.s32.totalorder %s46, %s47
    %p59 = scmp.eq.s32.totalorder %s21, 3
    %p60 = por %p58, %p59
    %p62 = scmp.ne.s32.totalorder %s47, %s61
    %p63 = scmp.eq.s32.totalorder %s21, 0
    %p64 = por %p62, %p63
    %s66 = sadd.s32 %s65, 1
    %p69 = scmp.eq.s32.totalorder %s15, 3
    %p70 = scmp.ne.s32.totalorder %s65, %s67
    %p71 = scmp.eq.s32.totalorder %s15, 0
    %p72 = por %p70, %p71
    %p73 = scmp.ne.s32.totalorder %s65, %s67
    %p74 = scmp.eq.s32.totalorder %s20, 3
    %p75 = por %p73, %p74
    %p76 = scmp.ne.s32.totalorder %s67, %s68
    %p77 = scmp.eq.s32.totalorder %s20, 0
    %p78 = por %p76, %p77
    %p79 = scmp.ne.s32.totalorder %s67, %s68
    %p80 = scmp.eq.s32.totalorder %s21, 3
    %p81 = por %p79, %p80
    %p83 = scmp.ne.s32.totalorder %s68, %s82
    %p84 = scmp.eq.s32.totalorder %s21, 0
    %p85 = por %p83, %p84
    %s87 = sadd.s32 %s86, 1
    %p90 = scmp.eq.s32.totalorder %s15, 3
    %p91 = scmp.ne.s32.totalorder %s86, %s88
    %p92 = scmp.eq.s32.totalorder %s15, 0
    %p93 = por %p91, %p92
    %p94 = scmp.ne.s32.totalorder %s86, %s88
    %p95 = scmp.eq.s32.totalorder %s20, 3
    %p96 = por %p94, %p95
    %p97 = scmp.ne.s32.totalorder %s88, %s89
    %p98 = scmp.eq.s32.totalorder %s20, 0
    %p99 = por %p97, %p98
    %p100 = scmp.ne.s32.totalorder %s88, %s89
    %p101 = scmp.eq.s32.totalorder %s21, 3
    %p102 = por %p100, %p101
    %p104 = scmp.ne.s32.totalorder %s89, %s103
    %p105 = scmp.eq.s32.totalorder %s21, 0
    %p106 = por %p104, %p105
    %s108 = sadd.s32 %s107, 1
    %p111 = scmp.eq.s32.totalorder %s15, 3
    %p112 = scmp.ne.s32.totalorder %s107, %s109
    %p113 = scmp.eq.s32.totalorder %s15, 0
    %p114 = por %p112, %p113
    %p115 = scmp.ne.s32.totalorder %s107, %s109
    %p116 = scmp.eq.s32.totalorder %s20, 3
    %p117 = por %p115, %p116
    %p118 = scmp.ne.s32.totalorder %s109, %s110
    %p119 = scmp.eq.s32.totalorder %s20, 0
    %p120 = por %p118, %p119
    %p121 = scmp.ne.s32.totalorder %s109, %s110
    %p122 = scmp.eq.s32.totalorder %s21, 3
    %p123 = por %p121, %p122
    %p125 = scmp.ne.s32.totalorder %s110, %s124
    %p126 = scmp.eq.s32.totalorder %s21, 0
    %p127 = por %p125, %p126
    %s129 = sadd.s32 %s128, 1
    %p132 = scmp.eq.s32.totalorder %s15, 3
    %p133 = scmp.ne.s32.totalorder %s128, %s130
    %p134 = scmp.eq.s32.totalorder %s15, 0
    %p135 = por %p133, %p134
    %p136 = scmp.ne.s32.totalorder %s128, %s130
    %p137 = scmp.eq.s32.totalorder %s20, 3
    %p138 = por %p136, %p137
    %p139 = scmp.ne.s32.totalorder %s130, %s131
    %p140 = scmp.eq.s32.totalorder %s20, 0
    %p141 = por %p139, %p140
    %p142 = scmp.ne.s32.totalorder %s130, %s131
    %p143 = scmp.eq.s32.totalorder %s21, 3
    %p144 = por %p142, %p143
    %p146 = scmp.ne.s32.totalorder %s131, %s145
    %p147 = scmp.eq.s32.totalorder %s21, 0
    %p148 = por %p146, %p147
    %s150 = sadd.s32 %s149, 1
    %p153 = scmp.eq.s32.totalorder %s15, 3
    %p154 = scmp.ne.s32.totalorder %s149, %s151
    %p155 = scmp.eq.s32.totalorder %s15, 0
    %p156 = por %p154, %p155
    %p157 = scmp.ne.s32.totalorder %s149, %s151
    %p158 = scmp.eq.s32.totalorder %s20, 3
    %p159 = por %p157, %p158
    %p160 = scmp.ne.s32.totalorder %s151, %s152
    %p161 = scmp.eq.s32.totalorder %s20, 0
    %p162 = por %p160, %p161
    %p163 = scmp.ne.s32.totalorder %s151, %s152
    %p164 = scmp.eq.s32.totalorder %s21, 3
    %p165 = por %p163, %p164
    %p167 = scmp.ne.s32.totalorder %s152, %s166
    %p168 = scmp.eq.s32.totalorder %s21, 0
    %p169 = por %p167, %p168
    %s170 = ssub.s32 %s15, %s22
    %p171 = scmp.eq.s32.totalorder %s170, 0
    %s173 = sadd.s32 %s172, 1
    %s174 = scalar_select %p171, %s172, %s173
    %p177 = pneg %p171
    %p178 = scmp.eq.s32.totalorder %s15, 3
    %p179 = por %p177, %p178
    %p180 = scmp.ne.s32.totalorder %s172, %s175
    %p181 = scmp.eq.s32.totalorder %s15, 0
    %p182 = por %p180, %p181
    %p183 = scmp.ne.s32.totalorder %s172, %s175
    %p184 = scmp.eq.s32.totalorder %s20, 3
    %p185 = por %p183, %p184
    %p186 = scmp.ne.s32.totalorder %s175, %s176
    %p187 = scmp.eq.s32.totalorder %s20, 0
    %p188 = por %p186, %p187
    %p189 = scmp.ne.s32.totalorder %s175, %s176
    %p190 = scmp.eq.s32.totalorder %s21, 3
    %p191 = por %p189, %p190
    %p193 = scmp.ne.s32.totalorder %s176, %s192
    %p194 = scmp.eq.s32.totalorder %s21, 0
    %p195 = por %p193, %p194
    %s196 = ssub.s32 %s15, %s22
    %p197 = scmp.eq.s32.totalorder %s196, 0
    %s199 = sadd.s32 %s198, 1
    %s200 = scalar_select %p197, %s198, %s199
    %p203 = pneg %p197
    %p204 = scmp.eq.s32.totalorder %s15, 3
    %p205 = por %p203, %p204
    %p206 = scmp.ne.s32.totalorder %s198, %s201
    %p207 = scmp.eq.s32.totalorder %s15, 0
    %p208 = por %p206, %p207
    %p209 = scmp.ne.s32.totalorder %s198, %s201
    %p210 = scmp.eq.s32.totalorder %s20, 3
    %p211 = por %p209, %p210
    %p212 = scmp.ne.s32.totalorder %s201, %s202
    %p213 = scmp.eq.s32.totalorder %s20, 0
    %p214 = por %p212, %p213
    %p215 = scmp.ne.s32.totalorder %s201, %s202
    %p216 = scmp.eq.s32.totalorder %s21, 3
    %p217 = por %p215, %p216
    %p219 = scmp.ne.s32.totalorder %s202, %s218
    %p220 = scmp.eq.s32.totalorder %s21, 0
    %p221 = por %p219, %p220
    %s223 = sadd.s32 %s222, 1
    %p226 = scmp.eq.s32.totalorder %s15, 3
    %p227 = scmp.ne.s32.totalorder %s222, %s224
    %p228 = scmp.eq.s32.totalorder %s15, 0
    %p229 = por %p227, %p228
    %p230 = scmp.ne.s32.totalorder %s222, %s224
    %p231 = scmp.eq.s32.totalorder %s20, 3
    %p232 = por %p230, %p231
    %p233 = scmp.ne.s32.totalorder %s224, %s225
    %p234 = scmp.eq.s32.totalorder %s20, 0
    %p235 = por %p233, %p234
    %p236 = scmp.ne.s32.totalorder %s224, %s225
    %p237 = scmp.eq.s32.totalorder %s21, 3
    %p238 = por %p236, %p237
    %p240 = scmp.ne.s32.totalorder %s225, %s239
    %p241 = scmp.eq.s32.totalorder %s21, 0
    %p242 = por %p240, %p241
    %p243 = scmp.le.s32.totalorder 1, %s15
    %p244 = scmp.lt.s32.totalorder %s15, 5
    %p245 = pnand %p243, %p244
    %p246 = pneg %p245
    // Predicated region
    $region9: #{deepgcnii_forward.1} parent=5 // pred_check
      _
    $region10: #{deepgcnii_forward.1} parent=5 // pred_check_branch
      %248 = sbr.rel (%p245) target = $region12
    $region11: #{deepgcnii_forward.1} parent=5 // pred_region
      %s249 = ssub.s32 %s15, 1
      // Predicated region
      $region13: #{deepgcnii_forward.1} parent=11 // pred_check
        %p250 = pneg %p36
      $region14: #{deepgcnii_forward.1} parent=11 // pred_check_branch
        %252 = sbr.rel (%p250) target = $region16
      $region15: #{deepgcnii_forward.1} parent=11 // pred_region
        _
      $region16: #{deepgcnii_forward.1} parent=11 // pred_fallthru
        _
      // Predicated region
      $region17: #{deepgcnii_forward.1} parent=11 // pred_check
        %p253 = pneg %p57
      $region18: #{deepgcnii_forward.1} parent=11 // pred_check_branch
        %255 = sbr.rel (%p253) target = $region20
      $region19: #{deepgcnii_forward.1} parent=11 // pred_region
        _
      $region20: #{deepgcnii_forward.1} parent=11 // pred_fallthru
        _
      // Predicated region
      $region21: #{deepgcnii_forward.1} parent=11 // pred_check
        %p256 = pneg %p78
      $region22: #{deepgcnii_forward.1} parent=11 // pred_check_branch
        %258 = sbr.rel (%p256) target = $region24
      $region23: #{deepgcnii_forward.1} parent=11 // pred_region
        _
      $region24: #{deepgcnii_forward.1} parent=11 // pred_fallthru
        _
      // Predicated region
      $region25: #{deepgcnii_forward.1} parent=11 // pred_check
        %p259 = pneg %p99
      $region26: #{deepgcnii_forward.1} parent=11 // pred_check_branch
        %261 = sbr.rel (%p259) target = $region28
      $region27: #{deepgcnii_forward.1} parent=11 // pred_region
        _
      $region28: #{deepgcnii_forward.1} parent=11 // pred_fallthru
        _
      // Predicated region
      $region29: #{deepgcnii_forward.1} parent=11 // pred_check
        %p262 = pneg %p120
      $region30: #{deepgcnii_forward.1} parent=11 // pred_check_branch
        %264 = sbr.rel (%p262) target = $region32
      $region31: #{deepgcnii_forward.1} parent=11 // pred_region
        _
      $region32: #{deepgcnii_forward.1} parent=11 // pred_fallthru
        _
      // Predicated region
      $region33: #{deepgcnii_forward.1} parent=11 // pred_check
        %p265 = pneg %p141
      $region34: #{deepgcnii_forward.1} parent=11 // pred_check_branch
        %267 = sbr.rel (%p265) target = $region36
      $region35: #{deepgcnii_forward.1} parent=11 // pred_region
        _
      $region36: #{deepgcnii_forward.1} parent=11 // pred_fallthru
        _
      // Predicated region
      $region37: #{deepgcnii_forward.1} parent=11 // pred_check
        %p268 = pneg %p162
      $region38: #{deepgcnii_forward.1} parent=11 // pred_check_branch
        %270 = sbr.rel (%p268) target = $region40
      $region39: #{deepgcnii_forward.1} parent=11 // pred_region
        _
      $region40: #{deepgcnii_forward.1} parent=11 // pred_fallthru
        _
    $region12: #{deepgcnii_forward.1} parent=5 // pred_fallthru
      _
    %p271 = scmp.lt.s32.totalorder %s15, 4
    // Predicated region
    $region41: #{deepgcnii_forward.1} parent=5 // pred_check
      %p272 = pneg %p271
    $region42: #{deepgcnii_forward.1} parent=5 // pred_check_branch
      %274 = sbr.rel (%p272) target = $region44
    $region43: #{deepgcnii_forward.1} parent=5 // pred_region
      // Predicated region
      $region45: #{deepgcnii_forward.1} parent=43 // pred_check
        %p275 = pneg %p182
      $region46: #{deepgcnii_forward.1} parent=43 // pred_check_branch
        %277 = sbr.rel (%p275) target = $region48
      $region47: #{deepgcnii_forward.1} parent=43 // pred_region
        %p278 = scmp.lt.s32.totalorder %s15, 3
        %s279 = scalar_select %p278, %s15, 3
        %s280 = smul.addr %s279, 46
        %s281 = smul.addr %s280, 4
        %s282 = scalar_lea.vmem %s7, %s281
      $region48: #{deepgcnii_forward.1} parent=43 // pred_fallthru
        _
      // Predicated region
      $region49: #{deepgcnii_forward.1} parent=43 // pred_check
        %p283 = pneg %p208
      $region50: #{deepgcnii_forward.1} parent=43 // pred_check_branch
        %285 = sbr.rel (%p283) target = $region52
      $region51: #{deepgcnii_forward.1} parent=43 // pred_region
        %p286 = scmp.lt.s32.totalorder %s15, 3
        %s287 = scalar_select %p286, %s15, 3
        %s288 = smul.addr %s287, 8
        %s289 = scalar_lea.vmem %s8, %s288
      $region52: #{deepgcnii_forward.1} parent=43 // pred_fallthru
        _
    $region44: #{deepgcnii_forward.1} parent=5 // pred_fallthru
      _
    %p290 = scmp.le.s32.totalorder 1, %s15
    %p291 = scmp.lt.s32.totalorder %s15, 5
    %p292 = pnand %p290, %p291
    %p293 = pneg %p292
    // Predicated region
    $region53: #{deepgcnii_forward.1} parent=5 // pred_check
      _
    $region54: #{deepgcnii_forward.1} parent=5 // pred_check_branch
      %295 = sbr.rel (%p292) target = $region56
    $region55: #{deepgcnii_forward.1} parent=5 // pred_region
      %s296 = ssub.s32 %s15, 1
      %p297 = pneg %p36
      %p298 = pneg %p33
      %p299 = pneg %p57
      %p300 = pneg %p54
      %p301 = pneg %p78
      %p302 = pneg %p75
      %p303 = pneg %p99
      %p304 = pneg %p96
      %p305 = pneg %p120
      %p306 = pneg %p117
      %p307 = pneg %p141
      %p308 = pneg %p138
      %p309 = pneg %p162
      %p310 = pneg %p159
      %p311 = scmp.lt.s32.totalorder %s20, 3
      %s312 = scalar_select %p311, %s20, 3
      %s313 = smul.addr %s312, 46
      %s314 = smul.addr %s313, 4
      %s315 = scalar_lea.vmem %s7, %s314
      %p316 = pneg %p188
      %p317 = pneg %p185
      %p318 = scmp.lt.s32.totalorder %s20, 3
      %s319 = scalar_select %p318, %s20, 3
      %s320 = smul.addr %s319, 8
      %s321 = scalar_lea.vmem %s8, %s320
      %p322 = pneg %p214
      %p323 = pneg %p211
      %p324 = pneg %p235
      %p325 = pneg %p232
      %p326 = scmp.lt.s32.totalorder %s20, 3
      %s327 = scalar_select %p326, %s20, 3
      %s328 = smul.addr %s327, 46
      %s329 = smul.addr %s328, 4
      %s330 = scalar_lea.vmem %s7, %s329
      %p331 = scmp.lt.s32.totalorder %s20, 3
      %s332 = scalar_select %p331, %s20, 3
      %s333 = smul.addr %s332, 8
      %s334 = scalar_lea.vmem %s8, %s333
      %p336 = scmp.eq.s32.totalorder %s20, 0
      // Predicated region
      $region57: #{deepgcnii_forward.1} parent=55 // pred_check
        %p337 = pneg %p336
      $region58: #{deepgcnii_forward.1} parent=55 // pred_check_branch
        %339 = sbr.rel (%p337) target = $region60
      $region59: #{deepgcnii_forward.1} parent=55 // pred_region
        %vm340 = vcmask 130048
        %341 = vst.msk [vmem:[#allocation2] sm:$0xff] %vm340, 0.0
        %342 = vst.msk [vmem:[#allocation2 + $0x8] sm:$0xff] %vm340, 0.0
        %343 = vst.msk [vmem:[#allocation2 + $0x10] sm:$0xff] %vm340, 0.0
        %344 = vst.msk [vmem:[#allocation2 + $0x18] sm:$0xff] %vm340, 0.0
        %345 = vst.msk [vmem:[#allocation2 + $0x20] sm:$0xff] %vm340, 0.0
        %346 = vst.msk [vmem:[#allocation2 + $0x28] sm:$0xff] %vm340, 0.0
        %347 = vst.msk [vmem:[#allocation2 + $0x30] sm:$0xff] %vm340, 0.0
        %348 = vst.msk [vmem:[#allocation2 + $0x38] sm:$0xff] %vm340, 0.0
        %349 = vst.msk [vmem:[#allocation2 + $0x40] sm:$0xff] %vm340, 0.0
        %350 = vst.msk [vmem:[#allocation2 + $0x48] sm:$0xff] %vm340, 0.0
        %351 = vst.msk [vmem:[#allocation2 + $0x50] sm:$0xff] %vm340, 0.0
        %352 = vst.msk [vmem:[#allocation2 + $0x58] sm:$0xff] %vm340, 0.0
        %353 = vst.msk [vmem:[#allocation2 + $0x60] sm:$0xff] %vm340, 0.0
        %354 = vst.msk [vmem:[#allocation2 + $0x68] sm:$0xff] %vm340, 0.0
        %355 = vst.msk [vmem:[#allocation2 + $0x70] sm:$0xff] %vm340, 0.0
        %356 = vst.msk [vmem:[#allocation2 + $0x78] sm:$0xff] %vm340, 0.0
      $region60: #{deepgcnii_forward.1} parent=55 // pred_fallthru
        _
      %v357 = vld [vmem:[#allocation2] sm:$0xff]
      %v358 = vld [vmem:[#allocation2 + $0x8] sm:$0xff]
      %v359 = vld [vmem:[#allocation2 + $0x10] sm:$0xff]
      %v360 = vld [vmem:[#allocation2 + $0x18] sm:$0xff]
      %v361 = vld [vmem:[#allocation2 + $0x20] sm:$0xff]
      %v362 = vld [vmem:[#allocation2 + $0x28] sm:$0xff]
      %v363 = vld [vmem:[#allocation2 + $0x30] sm:$0xff]
      %v364 = vld [vmem:[#allocation2 + $0x38] sm:$0xff]
      %v365 = vld [vmem:[#allocation2 + $0x40] sm:$0xff]
      %v366 = vld [vmem:[#allocation2 + $0x48] sm:$0xff]
      %v367 = vld [vmem:[#allocation2 + $0x50] sm:$0xff]
      %v368 = vld [vmem:[#allocation2 + $0x58] sm:$0xff]
      %v369 = vld [vmem:[#allocation2 + $0x60] sm:$0xff]
      %v370 = vld [vmem:[#allocation2 + $0x68] sm:$0xff]
      %v371 = vld [vmem:[#allocation2 + $0x70] sm:$0xff]
      %v372 = vld [vmem:[#allocation2 + $0x78] sm:$0xff]
      %v373 = vpack.c.bf16 %v358, %v357
      %v374 = vpack.c.bf16 %v360, %v359
      %v375 = vpack.c.bf16 %v362, %v361
      %v376 = vpack.c.bf16 %v364, %v363
      %v377 = vpack.c.bf16 %v366, %v365
      %v378 = vpack.c.bf16 %v368, %v367
      %v379 = vpack.c.bf16 %v370, %v369
      %v380 = vpack.c.bf16 %v372, %v371
      %v381 = vld [vmem:[%s0] sm:$0xf]
      %v382 = vld [vmem:[%s0 + $0x4] sm:$0xf]
      %v383 = vld [vmem:[%s0 + $0x8] sm:$0xf]
      %v384 = vld [vmem:[%s0 + $0xc] sm:$0xf]
      %v385 = vld [vmem:[%s0 + $0x10] sm:$0xf]
      %v386 = vld [vmem:[%s0 + $0x14] sm:$0xf]
      %v387 = vld [vmem:[%s0 + $0x18] sm:$0xf]
      %v388 = vld [vmem:[%s0 + $0x1c] sm:$0xf]
      %v389 = vld [vmem:[%s0 + $0x20] sm:$0xf]
      %v390 = vld [vmem:[%s0 + $0x24] sm:$0xf]
      %v391 = vld [vmem:[%s0 + $0x28] sm:$0xf]
      %v392 = vld [vmem:[%s0 + $0x2c] sm:$0xf]
      %v393 = vld [vmem:[%s0 + $0x30] sm:$0xf]
      %v394 = vld [vmem:[%s0 + $0x34] sm:$0xf]
      %v395 = vld [vmem:[%s0 + $0x38] sm:$0xf]
      %v396 = vld [vmem:[%s0 + $0x3c] sm:$0xf]
      %v397 = vld [vmem:[%s1] sm:$0xf]
      %v398 = vld [vmem:[%s1 + $0x4] sm:$0xf]
      %v399 = vld [vmem:[%s1 + $0x8] sm:$0xf]
      %v400 = vld [vmem:[%s1 + $0xc] sm:$0xf]
      %v401 = vld [vmem:[%s1 + $0x10] sm:$0xf]
      %v402 = vld [vmem:[%s1 + $0x14] sm:$0xf]
      %v403 = vld [vmem:[%s1 + $0x18] sm:$0xf]
      %v404 = vld [vmem:[%s1 + $0x1c] sm:$0xf]
      %v405 = vld [vmem:[%s1 + $0x20] sm:$0xf]
      %v406 = vld [vmem:[%s1 + $0x24] sm:$0xf]
      %v407 = vld [vmem:[%s1 + $0x28] sm:$0xf]
      %v408 = vld [vmem:[%s1 + $0x2c] sm:$0xf]
      %v409 = vld [vmem:[%s1 + $0x30] sm:$0xf]
      %v410 = vld [vmem:[%s1 + $0x34] sm:$0xf]
      %v411 = vld [vmem:[%s1 + $0x38] sm:$0xf]
      %v412 = vld [vmem:[%s1 + $0x3c] sm:$0xf]
      %v413 = vld [vmem:[%s1 + $0x40] sm:$0xf]
      %v414 = vld [vmem:[%s1 + $0x44] sm:$0xf]
      %v415 = vld [vmem:[%s1 + $0x48] sm:$0xf]
      %v416 = vld [vmem:[%s1 + $0x4c] sm:$0xf]
      %v417 = vld [vmem:[%s1 + $0x50] sm:$0xf]
      %v418 = vld [vmem:[%s1 + $0x54] sm:$0xf]
      %v419 = vld [vmem:[%s1 + $0x58] sm:$0xf]
      %v420 = vld [vmem:[%s1 + $0x5c] sm:$0xf]
      %v421 = vld [vmem:[%s1 + $0x60] sm:$0xf]
      %v422 = vld [vmem:[%s1 + $0x64] sm:$0xf]
      %v423 = vld [vmem:[%s1 + $0x68] sm:$0xf]
      %v424 = vld [vmem:[%s1 + $0x6c] sm:$0xf]
      %v425 = vld [vmem:[%s1 + $0x70] sm:$0xf]
      %v426 = vld [vmem:[%s1 + $0x74] sm:$0xf]
      %v427 = vld [vmem:[%s1 + $0x78] sm:$0xf]
      %v428 = vld [vmem:[%s1 + $0x7c] sm:$0xf]
      %v429 = vld [vmem:[%s1 + $0x80] sm:$0xf]
      %v430 = vld [vmem:[%s1 + $0x84] sm:$0xf]
      %v431 = vld [vmem:[%s1 + $0x88] sm:$0xf]
      %v432 = vld [vmem:[%s1 + $0x8c] sm:$0xf]
      %v433 = vld [vmem:[%s1 + $0x90] sm:$0xf]
      %v434 = vld [vmem:[%s1 + $0x94] sm:$0xf]
      %v435 = vld [vmem:[%s1 + $0x98] sm:$0xf]
      %v436 = vld [vmem:[%s1 + $0x9c] sm:$0xf]
      %v437 = vld [vmem:[%s1 + $0xa0] sm:$0xf]
      %v438 = vld [vmem:[%s1 + $0xa4] sm:$0xf]
      %v439 = vld [vmem:[%s1 + $0xa8] sm:$0xf]
      %v440 = vld [vmem:[%s1 + $0xac] sm:$0xf]
      %v441 = vld [vmem:[%s1 + $0xb0] sm:$0xf]
      %v442 = vld [vmem:[%s1 + $0xb4] sm:$0xf]
      %v443 = vld [vmem:[%s1 + $0xb8] sm:$0xf]
      %v444 = vld [vmem:[%s1 + $0xbc] sm:$0xf]
      %v445 = vld [vmem:[%s1 + $0xc0] sm:$0xf]
      %v446 = vld [vmem:[%s1 + $0xc4] sm:$0xf]
      %v447 = vld [vmem:[%s1 + $0xc8] sm:$0xf]
      %v448 = vld [vmem:[%s1 + $0xcc] sm:$0xf]
      %v449 = vld [vmem:[%s1 + $0xd0] sm:$0xf]
      %v450 = vld [vmem:[%s1 + $0xd4] sm:$0xf]
      %v451 = vld [vmem:[%s1 + $0xd8] sm:$0xf]
      %v452 = vld [vmem:[%s1 + $0xdc] sm:$0xf]
      %v453 = vld [vmem:[%s1 + $0xe0] sm:$0xf]
      %v454 = vld [vmem:[%s1 + $0xe4] sm:$0xf]
      %v455 = vld [vmem:[%s1 + $0xe8] sm:$0xf]
      %v456 = vld [vmem:[%s1 + $0xec] sm:$0xf]
      %v457 = vld [vmem:[%s1 + $0xf0] sm:$0xf]
      %v458 = vld [vmem:[%s1 + $0xf4] sm:$0xf]
      %v459 = vld [vmem:[%s1 + $0xf8] sm:$0xf]
      %v460 = vld [vmem:[%s1 + $0xfc] sm:$0xf]
      %v461 = vld [vmem:[%s2] sm:$0xf]
      %v462 = vld [vmem:[%s2 + $0x4] sm:$0xf]
      %v463 = vld [vmem:[%s2 + $0x8] sm:$0xf]
      %v464 = vld [vmem:[%s2 + $0xc] sm:$0xf]
      %v465 = vld [vmem:[%s2 + $0x10] sm:$0xf]
      %v466 = vld [vmem:[%s2 + $0x14] sm:$0xf]
      %v467 = vld [vmem:[%s2 + $0x18] sm:$0xf]
      %v468 = vld [vmem:[%s2 + $0x1c] sm:$0xf]
      %v469 = vld [vmem:[%s2 + $0x20] sm:$0xf]
      %v470 = vld [vmem:[%s2 + $0x24] sm:$0xf]
      %v471 = vld [vmem:[%s2 + $0x28] sm:$0xf]
      %v472 = vld [vmem:[%s2 + $0x2c] sm:$0xf]
      %v473 = vld [vmem:[%s2 + $0x30] sm:$0xf]
      %v474 = vld [vmem:[%s2 + $0x34] sm:$0xf]
      %v475 = vld [vmem:[%s2 + $0x38] sm:$0xf]
      %v476 = vld [vmem:[%s2 + $0x3c] sm:$0xf]
      %v477 = vld [vmem:[%s2 + $0x40] sm:$0xf]
      %v478 = vld [vmem:[%s2 + $0x44] sm:$0xf]
      %v479 = vld [vmem:[%s2 + $0x48] sm:$0xf]
      %v480 = vld [vmem:[%s2 + $0x4c] sm:$0xf]
      %v481 = vld [vmem:[%s2 + $0x50] sm:$0xf]
      %v482 = vld [vmem:[%s2 + $0x54] sm:$0xf]
      %v483 = vld [vmem:[%s2 + $0x58] sm:$0xf]
      %v484 = vld [vmem:[%s2 + $0x5c] sm:$0xf]
      %v485 = vld [vmem:[%s2 + $0x60] sm:$0xf]
      %v486 = vld [vmem:[%s2 + $0x64] sm:$0xf]
      %v487 = vld [vmem:[%s2 + $0x68] sm:$0xf]
      %v488 = vld [vmem:[%s2 + $0x6c] sm:$0xf]
      %v489 = vld [vmem:[%s2 + $0x70] sm:$0xf]
      %v490 = vld [vmem:[%s2 + $0x74] sm:$0xf]
      %v491 = vld [vmem:[%s2 + $0x78] sm:$0xf]
      %v492 = vld [vmem:[%s2 + $0x7c] sm:$0xf]
      %v493 = vld [vmem:[%s2 + $0x80] sm:$0xf]
      %v494 = vld [vmem:[%s2 + $0x84] sm:$0xf]
      %v495 = vld [vmem:[%s2 + $0x88] sm:$0xf]
      %v496 = vld [vmem:[%s2 + $0x8c] sm:$0xf]
      %v497 = vld [vmem:[%s2 + $0x90] sm:$0xf]
      %v498 = vld [vmem:[%s2 + $0x94] sm:$0xf]
      %v499 = vld [vmem:[%s2 + $0x98] sm:$0xf]
      %v500 = vld [vmem:[%s2 + $0x9c] sm:$0xf]
      %v501 = vld [vmem:[%s2 + $0xa0] sm:$0xf]
      %v502 = vld [vmem:[%s2 + $0xa4] sm:$0xf]
      %v503 = vld [vmem:[%s2 + $0xa8] sm:$0xf]
      %v504 = vld [vmem:[%s2 + $0xac] sm:$0xf]
      %v505 = vld [vmem:[%s2 + $0xb0] sm:$0xf]
      %v506 = vld [vmem:[%s2 + $0xb4] sm:$0xf]
      %v507 = vld [vmem:[%s2 + $0xb8] sm:$0xf]
      %v508 = vld [vmem:[%s2 + $0xbc] sm:$0xf]
      %v509 = vld [vmem:[%s2 + $0xc0] sm:$0xf]
      %v510 = vld [vmem:[%s2 + $0xc4] sm:$0xf]
      %v511 = vld [vmem:[%s2 + $0xc8] sm:$0xf]
      %v512 = vld [vmem:[%s2 + $0xcc] sm:$0xf]
      %v513 = vld [vmem:[%s2 + $0xd0] sm:$0xf]
      %v514 = vld [vmem:[%s2 + $0xd4] sm:$0xf]
      %v515 = vld [vmem:[%s2 + $0xd8] sm:$0xf]
      %v516 = vld [vmem:[%s2 + $0xdc] sm:$0xf]
      %v517 = vld [vmem:[%s2 + $0xe0] sm:$0xf]
      %v518 = vld [vmem:[%s2 + $0xe4] sm:$0xf]
      %v519 = vld [vmem:[%s2 + $0xe8] sm:$0xf]
      %v520 = vld [vmem:[%s2 + $0xec] sm:$0xf]
      %v521 = vld [vmem:[%s2 + $0xf0] sm:$0xf]
      %v522 = vld [vmem:[%s2 + $0xf4] sm:$0xf]
      %v523 = vld [vmem:[%s2 + $0xf8] sm:$0xf]
      %v524 = vld [vmem:[%s2 + $0xfc] sm:$0xf]
      %v525 = vld [vmem:[%s3] sm:$0xf]
      %v526 = vld [vmem:[%s3 + $0x4] sm:$0xf]
      %v527 = vld [vmem:[%s3 + $0x8] sm:$0xf]
      %v528 = vld [vmem:[%s3 + $0xc] sm:$0xf]
      %v529 = vld [vmem:[%s3 + $0x10] sm:$0xf]
      %v530 = vld [vmem:[%s3 + $0x14] sm:$0xf]
      %v531 = vld [vmem:[%s3 + $0x18] sm:$0xf]
      %v532 = vld [vmem:[%s3 + $0x1c] sm:$0xf]
      %v533 = vld [vmem:[%s3 + $0x20] sm:$0xf]
      %v534 = vld [vmem:[%s3 + $0x24] sm:$0xf]
      %v535 = vld [vmem:[%s3 + $0x28] sm:$0xf]
      %v536 = vld [vmem:[%s3 + $0x2c] sm:$0xf]
      %v537 = vld [vmem:[%s3 + $0x30] sm:$0xf]
      %v538 = vld [vmem:[%s3 + $0x34] sm:$0xf]
      %v539 = vld [vmem:[%s3 + $0x38] sm:$0xf]
      %v540 = vld [vmem:[%s3 + $0x3c] sm:$0xf]
      %v541 = vld [vmem:[%s3 + $0x40] sm:$0xf]
      %v542 = vld [vmem:[%s3 + $0x44] sm:$0xf]
      %v543 = vld [vmem:[%s3 + $0x48] sm:$0xf]
      %v544 = vld [vmem:[%s3 + $0x4c] sm:$0xf]
      %v545 = vld [vmem:[%s3 + $0x50] sm:$0xf]
      %v546 = vld [vmem:[%s3 + $0x54] sm:$0xf]
      %v547 = vld [vmem:[%s3 + $0x58] sm:$0xf]
      %v548 = vld [vmem:[%s3 + $0x5c] sm:$0xf]
      %v549 = vld [vmem:[%s3 + $0x60] sm:$0xf]
      %v550 = vld [vmem:[%s3 + $0x64] sm:$0xf]
      %v551 = vld [vmem:[%s3 + $0x68] sm:$0xf]
      %v552 = vld [vmem:[%s3 + $0x6c] sm:$0xf]
      %v553 = vld [vmem:[%s3 + $0x70] sm:$0xf]
      %v554 = vld [vmem:[%s3 + $0x74] sm:$0xf]
      %v555 = vld [vmem:[%s3 + $0x78] sm:$0xf]
      %v556 = vld [vmem:[%s3 + $0x7c] sm:$0xf]
      %v557 = vld [vmem:[%s3 + $0x80] sm:$0xf]
      %v558 = vld [vmem:[%s3 + $0x84] sm:$0xf]
      %v559 = vld [vmem:[%s3 + $0x88] sm:$0xf]
      %v560 = vld [vmem:[%s3 + $0x8c] sm:$0xf]
      %v561 = vld [vmem:[%s3 + $0x90] sm:$0xf]
      %v562 = vld [vmem:[%s3 + $0x94] sm:$0xf]
      %v563 = vld [vmem:[%s3 + $0x98] sm:$0xf]
      %v564 = vld [vmem:[%s3 + $0x9c] sm:$0xf]
      %v565 = vld [vmem:[%s3 + $0xa0] sm:$0xf]
      %v566 = vld [vmem:[%s3 + $0xa4] sm:$0xf]
      %v567 = vld [vmem:[%s3 + $0xa8] sm:$0xf]
      %v568 = vld [vmem:[%s3 + $0xac] sm:$0xf]
      %v569 = vld [vmem:[%s3 + $0xb0] sm:$0xf]
      %v570 = vld [vmem:[%s3 + $0xb4] sm:$0xf]
      %v571 = vld [vmem:[%s3 + $0xb8] sm:$0xf]
      %v572 = vld [vmem:[%s3 + $0xbc] sm:$0xf]
      %v573 = vld [vmem:[%s3 + $0xc0] sm:$0xf]
      %v574 = vld [vmem:[%s3 + $0xc4] sm:$0xf]
      %v575 = vld [vmem:[%s3 + $0xc8] sm:$0xf]
      %v576 = vld [vmem:[%s3 + $0xcc] sm:$0xf]
      %v577 = vld [vmem:[%s3 + $0xd0] sm:$0xf]
      %v578 = vld [vmem:[%s3 + $0xd4] sm:$0xf]
      %v579 = vld [vmem:[%s3 + $0xd8] sm:$0xf]
      %v580 = vld [vmem:[%s3 + $0xdc] sm:$0xf]
      %v581 = vld [vmem:[%s3 + $0xe0] sm:$0xf]
      %v582 = vld [vmem:[%s3 + $0xe4] sm:$0xf]
      %v583 = vld [vmem:[%s3 + $0xe8] sm:$0xf]
      %v584 = vld [vmem:[%s3 + $0xec] sm:$0xf]
      %v585 = vld [vmem:[%s3 + $0xf0] sm:$0xf]
      %v586 = vld [vmem:[%s3 + $0xf4] sm:$0xf]
      %v587 = vld [vmem:[%s3 + $0xf8] sm:$0xf]
      %v588 = vld [vmem:[%s3 + $0xfc] sm:$0xf]
      %v589 = vld [vmem:[%s4] sm:$0xff]
      %v590 = vld [vmem:[%s4 + $0x8] sm:$0xff]
      %v591 = vld [vmem:[%s4 + $0x10] sm:$0xff]
      %v592 = vld [vmem:[%s4 + $0x18] sm:$0xff]
      %v593 = vld [vmem:[%s4 + $0x20] sm:$0xff]
      %v594 = vld [vmem:[%s4 + $0x28] sm:$0xff]
      %v595 = vld [vmem:[%s4 + $0x30] sm:$0xff]
      %v596 = vld [vmem:[%s4 + $0x38] sm:$0xff]
      %v597 = vld [vmem:[%s4 + $0x40] sm:$0xff]
      %v598 = vld [vmem:[%s4 + $0x48] sm:$0xff]
      %v599 = vld [vmem:[%s4 + $0x50] sm:$0xff]
      %v600 = vld [vmem:[%s4 + $0x58] sm:$0xff]
      %v601 = vld [vmem:[%s4 + $0x60] sm:$0xff]
      %v602 = vld [vmem:[%s4 + $0x68] sm:$0xff]
      %v603 = vld [vmem:[%s4 + $0x70] sm:$0xff]
      %v604 = vld [vmem:[%s4 + $0x78] sm:$0xff]
      %v605 = vld [vmem:[%s4 + $0x80] sm:$0xff]
      %v606 = vld [vmem:[%s4 + $0x88] sm:$0xff]
      %v607 = vld [vmem:[%s4 + $0x90] sm:$0xff]
      %v608 = vld [vmem:[%s4 + $0x98] sm:$0xff]
      %v609 = vld [vmem:[%s4 + $0xa0] sm:$0xff]
      %v610 = vld [vmem:[%s4 + $0xa8] sm:$0xff]
      %v611 = vld [vmem:[%s4 + $0xb0] sm:$0xff]
      %v612 = vld [vmem:[%s4 + $0xb8] sm:$0xff]
      %v613 = vld [vmem:[%s4 + $0xc0] sm:$0xff]
      %v614 = vld [vmem:[%s4 + $0xc8] sm:$0xff]
      %v615 = vld [vmem:[%s4 + $0xd0] sm:$0xff]
      %v616 = vld [vmem:[%s4 + $0xd8] sm:$0xff]
      %v617 = vld [vmem:[%s4 + $0xe0] sm:$0xff]
      %v618 = vld [vmem:[%s4 + $0xe8] sm:$0xff]
      %v619 = vld [vmem:[%s4 + $0xf0] sm:$0xff]
      %v620 = vld [vmem:[%s4 + $0xf8] sm:$0xff]
      %v621 = vld [vmem:[%s5] sm:$0xff]
      %v622 = vld [vmem:[%s5 + $0x8] sm:$0xff]
      %v623 = vld [vmem:[%s5 + $0x10] sm:$0xff]
      %v624 = vld [vmem:[%s5 + $0x18] sm:$0xff]
      %v625 = vld [vmem:[%s5 + $0x20] sm:$0xff]
      %v626 = vld [vmem:[%s5 + $0x28] sm:$0xff]
      %v627 = vld [vmem:[%s5 + $0x30] sm:$0xff]
      %v628 = vld [vmem:[%s5 + $0x38] sm:$0xff]
      %v629 = vld [vmem:[%s5 + $0x40] sm:$0xff]
      %v630 = vld [vmem:[%s5 + $0x48] sm:$0xff]
      %v631 = vld [vmem:[%s5 + $0x50] sm:$0xff]
      %v632 = vld [vmem:[%s5 + $0x58] sm:$0xff]
      %v633 = vld [vmem:[%s5 + $0x60] sm:$0xff]
      %v634 = vld [vmem:[%s5 + $0x68] sm:$0xff]
      %v635 = vld [vmem:[%s5 + $0x70] sm:$0xff]
      %v636 = vld [vmem:[%s5 + $0x78] sm:$0xff]
      %v637 = vld [vmem:[%s5 + $0x80] sm:$0xff]
      %v638 = vld [vmem:[%s5 + $0x88] sm:$0xff]
      %v639 = vld [vmem:[%s5 + $0x90] sm:$0xff]
      %v640 = vld [vmem:[%s5 + $0x98] sm:$0xff]
      %v641 = vld [vmem:[%s5 + $0xa0] sm:$0xff]
      %v642 = vld [vmem:[%s5 + $0xa8] sm:$0xff]
      %v643 = vld [vmem:[%s5 + $0xb0] sm:$0xff]
      %v644 = vld [vmem:[%s5 + $0xb8] sm:$0xff]
      %v645 = vld [vmem:[%s5 + $0xc0] sm:$0xff]
      %v646 = vld [vmem:[%s5 + $0xc8] sm:$0xff]
      %v647 = vld [vmem:[%s5 + $0xd0] sm:$0xff]
      %v648 = vld [vmem:[%s5 + $0xd8] sm:$0xff]
      %v649 = vld [vmem:[%s5 + $0xe0] sm:$0xff]
      %v650 = vld [vmem:[%s5 + $0xe8] sm:$0xff]
      %v651 = vld [vmem:[%s5 + $0xf0] sm:$0xff]
      %v652 = vld [vmem:[%s5 + $0xf8] sm:$0xff]
      %v653 = vld [vmem:[%s6] sm:$0xff]
      %v654 = vld [vmem:[%s6 + $0x8] sm:$0xff]
      %v655 = vld [vmem:[%s6 + $0x10] sm:$0xff]
      %v656 = vld [vmem:[%s6 + $0x18] sm:$0xff]
      %v657 = vld [vmem:[%s6 + $0x20] sm:$0xff]
      %v658 = vld [vmem:[%s6 + $0x28] sm:$0xff]
      %v659 = vld [vmem:[%s6 + $0x30] sm:$0xff]
      %v660 = vld [vmem:[%s6 + $0x38] sm:$0xff]
      %v661 = vld [vmem:[%s6 + $0x40] sm:$0xff]
      %v662 = vld [vmem:[%s6 + $0x48] sm:$0xff]
      %v663 = vld [vmem:[%s6 + $0x50] sm:$0xff]
      %v664 = vld [vmem:[%s6 + $0x58] sm:$0xff]
      %v665 = vld [vmem:[%s6 + $0x60] sm:$0xff]
      %v666 = vld [vmem:[%s6 + $0x68] sm:$0xff]
      %v667 = vld [vmem:[%s6 + $0x70] sm:$0xff]
      %v668 = vld [vmem:[%s6 + $0x78] sm:$0xff]
      %v669 = vld [vmem:[%s330] sm:$0xf]
      %v670 = vld [vmem:[%s330 + $0x4] sm:$0xf]
      %v671 = vld [vmem:[%s330 + $0x8] sm:$0xf]
      %v672 = vld [vmem:[%s330 + $0xc] sm:$0xf]
      %v689 = vunpack.c.l.b16 %v381
      %v690 = vunpack.c.l.b16 %v382
      %v691 = vunpack.c.l.b16 %v383
      %v692 = vunpack.c.l.b16 %v384
      %v693 = vunpack.c.l.b16 %v385
      %v694 = vunpack.c.l.b16 %v386
      %v695 = vunpack.c.l.b16 %v387
      %v696 = vunpack.c.l.b16 %v388
      %v697 = vunpack.c.l.b16 %v389
      %v698 = vunpack.c.l.b16 %v390
      %v699 = vunpack.c.l.b16 %v391
      %v700 = vunpack.c.l.b16 %v392
      %v701 = vunpack.c.l.b16 %v393
      %v702 = vunpack.c.l.b16 %v394
      %v703 = vunpack.c.l.b16 %v395
      %v704 = vunpack.c.l.b16 %v396
      %v705 = vpack.c.b16 %v690, %v689
      %v706 = vpack.c.b16 %v692, %v691
      %v707 = vpack.c.b16 %v694, %v693
      %v708 = vpack.c.b16 %v696, %v695
      %v709 = vpack.c.b16 %v698, %v697
      %v710 = vpack.c.b16 %v700, %v699
      %v711 = vpack.c.b16 %v702, %v701
      %v712 = vpack.c.b16 %v704, %v703
      %v715 = vunpack.c.l.b16 %v671
      %v716 = vunpack.c.l.b16 %v672
      %v717 = vpack.c.b16 %v716, %v715
      %vm719 = vcmask 130048
      %v721 = vsel %vm719, %v705, 0
      %v724 = vsel %vm719, %v706, 0
      %v727 = vsel %vm719, %v707, 0
      %v730 = vsel %vm719, %v708, 0
      %v733 = vsel %vm719, %v709, 0
      %v736 = vsel %vm719, %v710, 0
      %v739 = vsel %vm719, %v711, 0
      %v742 = vsel %vm719, %v712, 0
      %744 = vmatpush.bf16.msra.mxu0 0
      %745 = vmatpush.bf16.msra.mxu0 0
      %746 = vmatpush.bf16.msra.mxu0 0
      %747 = vmatpush.bf16.msra.mxu0 0
      %748 = vmatpush.bf16.msra.mxu0 0
      %749 = vmatpush.bf16.msra.mxu0 0
      %750 = vmatpush.bf16.msra.mxu0 0
      %751 = vmatpush.bf16.msra.mxu0 %v717
      %752 = vmatmul.bf16.gmra.mxu0 %v721
      %v753 = vpop.f32.mrf.mxu0
      %v754 = vadd.f32 0.0, %v753
      %v755 = vpop.f32.mrf.mxu0
      %v756 = vadd.f32 0.0, %v755
      %757 = vmatmul.bf16.gmra.mxu0 %v724
      %v758 = vpop.f32.mrf.mxu0
      %v759 = vadd.f32 0.0, %v758
      %v760 = vpop.f32.mrf.mxu0
      %v761 = vadd.f32 0.0, %v760
      %762 = vmatmul.bf16.gmra.mxu0 %v727
      %v763 = vpop.f32.mrf.mxu0
      %v764 = vadd.f32 0.0, %v763
      %v765 = vpop.f32.mrf.mxu0
      %v766 = vadd.f32 0.0, %v765
      %767 = vmatmul.bf16.gmra.mxu0 %v730
      %v768 = vpop.f32.mrf.mxu0
      %v769 = vadd.f32 0.0, %v768
      %v770 = vpop.f32.mrf.mxu0
      %v771 = vadd.f32 0.0, %v770
      %772 = vmatmul.bf16.gmra.mxu0 %v733
      %v773 = vpop.f32.mrf.mxu0
      %v774 = vadd.f32 0.0, %v773
      %v775 = vpop.f32.mrf.mxu0
      %v776 = vadd.f32 0.0, %v775
      %777 = vmatmul.bf16.gmra.mxu0 %v736
      %v778 = vpop.f32.mrf.mxu0
      %v779 = vadd.f32 0.0, %v778
      %v780 = vpop.f32.mrf.mxu0
      %v781 = vadd.f32 0.0, %v780
      %782 = vmatmul.bf16.gmra.mxu0 %v739
      %v783 = vpop.f32.mrf.mxu0
      %v784 = vadd.f32 0.0, %v783
      %v785 = vpop.f32.mrf.mxu0
      %v786 = vadd.f32 0.0, %v785
      %787 = vmatmul.bf16.gmra.mxu0 %v742
      %v788 = vpop.f32.mrf.mxu0
      %v789 = vadd.f32 0.0, %v788
      %v790 = vpop.f32.mrf.mxu0
      %v791 = vadd.f32 0.0, %v790
      %792 = vdwg.mxu0
      %v795 = vunpack.c.l.b16 %v669
      %v796 = vunpack.c.l.b16 %v670
      %v797 = vpack.c.b16 %v796, %v795
      %v800 = vsel %vm719, %v373, 0
      %v803 = vsel %vm719, %v374, 0
      %v806 = vsel %vm719, %v375, 0
      %v809 = vsel %vm719, %v376, 0
      %v812 = vsel %vm719, %v377, 0
      %v815 = vsel %vm719, %v378, 0
      %v818 = vsel %vm719, %v379, 0
      %v821 = vsel %vm719, %v380, 0
      %823 = vmatpush.bf16.msra.mxu0 0
      %824 = vmatpush.bf16.msra.mxu0 0
      %825 = vmatpush.bf16.msra.mxu0 0
      %826 = vmatpush.bf16.msra.mxu0 0
      %827 = vmatpush.bf16.msra.mxu0 0
      %828 = vmatpush.bf16.msra.mxu0 0
      %829 = vmatpush.bf16.msra.mxu0 0
      %830 = vmatpush.bf16.msra.mxu0 %v797
      %831 = vmatmul.bf16.gmra.mxu0 %v800
      %v832 = vpop.f32.mrf.mxu0
      %v833 = vadd.f32 %v754, %v832
      %v834 = vpop.f32.mrf.mxu0
      %v835 = vadd.f32 %v756, %v834
      %836 = vmatmul.bf16.gmra.mxu0 %v803
      %v837 = vpop.f32.mrf.mxu0
      %v838 = vadd.f32 %v759, %v837
      %v839 = vpop.f32.mrf.mxu0
      %v840 = vadd.f32 %v761, %v839
      %841 = vmatmul.bf16.gmra.mxu0 %v806
      %v842 = vpop.f32.mrf.mxu0
      %v843 = vadd.f32 %v764, %v842
      %v844 = vpop.f32.mrf.mxu0
      %v845 = vadd.f32 %v766, %v844
      %846 = vmatmul.bf16.gmra.mxu0 %v809
      %v847 = vpop.f32.mrf.mxu0
      %v848 = vadd.f32 %v769, %v847
      %v849 = vpop.f32.mrf.mxu0
      %v850 = vadd.f32 %v771, %v849
      %851 = vmatmul.bf16.gmra.mxu0 %v812
      %v852 = vpop.f32.mrf.mxu0
      %v853 = vadd.f32 %v774, %v852
      %v854 = vpop.f32.mrf.mxu0
      %v855 = vadd.f32 %v776, %v854
      %856 = vmatmul.bf16.gmra.mxu0 %v815
      %v857 = vpop.f32.mrf.mxu0
      %v858 = vadd.f32 %v779, %v857
      %v859 = vpop.f32.mrf.mxu0
      %v860 = vadd.f32 %v781, %v859
      %861 = vmatmul.bf16.gmra.mxu0 %v818
      %v862 = vpop.f32.mrf.mxu0
      %v863 = vadd.f32 %v784, %v862
      %v864 = vpop.f32.mrf.mxu0
      %v865 = vadd.f32 %v786, %v864
      %866 = vmatmul.bf16.gmra.mxu0 %v821
      %v867 = vpop.f32.mrf.mxu0
      %v868 = vadd.f32 %v789, %v867
      %v869 = vpop.f32.mrf.mxu0
      %v870 = vadd.f32 %v791, %v869
      %871 = vdwg.mxu0
      %v872 = vpack.c.bf16 %v835, %v833
      %v873 = vpack.c.bf16 %v840, %v838
      %v874 = vpack.c.bf16 %v845, %v843
      %v875 = vpack.c.bf16 %v850, %v848
      %v876 = vpack.c.bf16 %v855, %v853
      %v877 = vpack.c.bf16 %v860, %v858
      %v878 = vpack.c.bf16 %v865, %v863
      %v879 = vpack.c.bf16 %v870, %v868
      %v880 = vld [vmem:[%s330 + $0x10] sm:$0xf]
      %v881 = vld [vmem:[%s330 + $0x14] sm:$0xf]
      %v882 = vld [vmem:[%s330 + $0x18] sm:$0xf]
      %v883 = vld [vmem:[%s330 + $0x1c] sm:$0xf]
      %v886 = vunpack.c.l.b16 %v882
      %v887 = vunpack.c.l.b16 %v883
      %v888 = vpack.c.b16 %v887, %v886
      %890 = vmatpush.bf16.msra.mxu0 0
      %891 = vmatpush.bf16.msra.mxu0 0
      %892 = vmatpush.bf16.msra.mxu0 0
      %893 = vmatpush.bf16.msra.mxu0 0
      %894 = vmatpush.bf16.msra.mxu0 0
      %895 = vmatpush.bf16.msra.mxu0 0
      %896 = vmatpush.bf16.msra.mxu0 0
      %897 = vmatpush.bf16.msra.mxu0 %v888
      %898 = vmatmul.bf16.gmra.mxu0 %v721
      %v899 = vpop.f32.mrf.mxu0
      %v900 = vadd.f32 0.0, %v899
      %v901 = vpop.f32.mrf.mxu0
      %v902 = vadd.f32 0.0, %v901
      %903 = vmatmul.bf16.gmra.mxu0 %v724
      %v904 = vpop.f32.mrf.mxu0
      %v905 = vadd.f32 0.0, %v904
      %v906 = vpop.f32.mrf.mxu0
      %v907 = vadd.f32 0.0, %v906
      %908 = vmatmul.bf16.gmra.mxu0 %v727
      %v909 = vpop.f32.mrf.mxu0
      %v910 = vadd.f32 0.0, %v909
      %v911 = vpop.f32.mrf.mxu0
      %v912 = vadd.f32 0.0, %v911
      %913 = vmatmul.bf16.gmra.mxu0 %v730
      %v914 = vpop.f32.mrf.mxu0
      %v915 = vadd.f32 0.0, %v914
      %v916 = vpop.f32.mrf.mxu0
      %v917 = vadd.f32 0.0, %v916
      %918 = vmatmul.bf16.gmra.mxu0 %v733
      %v919 = vpop.f32.mrf.mxu0
      %v920 = vadd.f32 0.0, %v919
      %v921 = vpop.f32.mrf.mxu0
      %v922 = vadd.f32 0.0, %v921
      %923 = vmatmul.bf16.gmra.mxu0 %v736
      %v924 = vpop.f32.mrf.mxu0
      %v925 = vadd.f32 0.0, %v924
      %v926 = vpop.f32.mrf.mxu0
      %v927 = vadd.f32 0.0, %v926
      %928 = vmatmul.bf16.gmra.mxu0 %v739
      %v929 = vpop.f32.mrf.mxu0
      %v930 = vadd.f32 0.0, %v929
      %v931 = vpop.f32.mrf.mxu0
      %v932 = vadd.f32 0.0, %v931
      %933 = vmatmul.bf16.gmra.mxu0 %v742
      %v934 = vpop.f32.mrf.mxu0
      %v935 = vadd.f32 0.0, %v934
      %v936 = vpop.f32.mrf.mxu0
      %v937 = vadd.f32 0.0, %v936
      %938 = vdwg.mxu0
      %v941 = vunpack.c.l.b16 %v880
      %v942 = vunpack.c.l.b16 %v881
      %v943 = vpack.c.b16 %v942, %v941
      %945 = vmatpush.bf16.msra.mxu0 0
      %946 = vmatpush.bf16.msra.mxu0 0
      %947 = vmatpush.bf16.msra.mxu0 0
      %948 = vmatpush.bf16.msra.mxu0 0
      %949 = vmatpush.bf16.msra.mxu0 0
      %950 = vmatpush.bf16.msra.mxu0 0
      %951 = vmatpush.bf16.msra.mxu0 0
      %952 = vmatpush.bf16.msra.mxu0 %v943
      %953 = vmatmul.bf16.gmra.mxu0 %v800
      %v954 = vpop.f32.mrf.mxu0
      %v955 = vadd.f32 %v900, %v954
      %v956 = vpop.f32.mrf.mxu0
      %v957 = vadd.f32 %v902, %v956
      %958 = vmatmul.bf16.gmra.mxu0 %v803
      %v959 = vpop.f32.mrf.mxu0
      %v960 = vadd.f32 %v905, %v959
      %v961 = vpop.f32.mrf.mxu0
      %v962 = vadd.f32 %v907, %v961
      %963 = vmatmul.bf16.gmra.mxu0 %v806
      %v964 = vpop.f32.mrf.mxu0
      %v965 = vadd.f32 %v910, %v964
      %v966 = vpop.f32.mrf.mxu0
      %v967 = vadd.f32 %v912, %v966
      %968 = vmatmul.bf16.gmra.mxu0 %v809
      %v969 = vpop.f32.mrf.mxu0
      %v970 = vadd.f32 %v915, %v969
      %v971 = vpop.f32.mrf.mxu0
      %v972 = vadd.f32 %v917, %v971
      %973 = vmatmul.bf16.gmra.mxu0 %v812
      %v974 = vpop.f32.mrf.mxu0
      %v975 = vadd.f32 %v920, %v974
      %v976 = vpop.f32.mrf.mxu0
      %v977 = vadd.f32 %v922, %v976
      %978 = vmatmul.bf16.gmra.mxu0 %v815
      %v979 = vpop.f32.mrf.mxu0
      %v980 = vadd.f32 %v925, %v979
      %v981 = vpop.f32.mrf.mxu0
      %v982 = vadd.f32 %v927, %v981
      %983 = vmatmul.bf16.gmra.mxu0 %v818
      %v984 = vpop.f32.mrf.mxu0
      %v985 = vadd.f32 %v930, %v984
      %v986 = vpop.f32.mrf.mxu0
      %v987 = vadd.f32 %v932, %v986
      %988 = vmatmul.bf16.gmra.mxu0 %v821
      %v989 = vpop.f32.mrf.mxu0
      %v990 = vadd.f32 %v935, %v989
      %v991 = vpop.f32.mrf.mxu0
      %v992 = vadd.f32 %v937, %v991
      %993 = vdwg.mxu0
      %v994 = vpack.c.bf16 %v957, %v955
      %v995 = vpack.c.bf16 %v962, %v960
      %v996 = vpack.c.bf16 %v967, %v965
      %v997 = vpack.c.bf16 %v972, %v970
      %v998 = vpack.c.bf16 %v977, %v975
      %v999 = vpack.c.bf16 %v982, %v980
      %v1000 = vpack.c.bf16 %v987, %v985
      %v1001 = vpack.c.bf16 %v992, %v990
      %v1066 = vunpack.c.l.b16 %v525
      %v1067 = vunpack.c.l.b16 %v526
      %v1068 = vunpack.c.l.b16 %v527
      %v1069 = vunpack.c.l.b16 %v528
      %v1070 = vunpack.c.l.b16 %v529
      %v1071 = vunpack.c.l.b16 %v530
      %v1072 = vunpack.c.l.b16 %v531
      %v1073 = vunpack.c.l.b16 %v532
      %v1074 = vunpack.c.l.b16 %v533
      %v1075 = vunpack.c.l.b16 %v534
      %v1076 = vunpack.c.l.b16 %v535
      %v1077 = vunpack.c.l.b16 %v536
      %v1078 = vunpack.c.l.b16 %v537
      %v1079 = vunpack.c.l.b16 %v538
      %v1080 = vunpack.c.l.b16 %v539
      %v1081 = vunpack.c.l.b16 %v540
      %v1082 = vunpack.c.l.b16 %v541
      %v1083 = vunpack.c.l.b16 %v542
      %v1084 = vunpack.c.l.b16 %v543
      %v1085 = vunpack.c.l.b16 %v544
      %v1086 = vunpack.c.l.b16 %v545
      %v1087 = vunpack.c.l.b16 %v546
      %v1088 = vunpack.c.l.b16 %v547
      %v1089 = vunpack.c.l.b16 %v548
      %v1090 = vunpack.c.l.b16 %v549
      %v1091 = vunpack.c.l.b16 %v550
      %v1092 = vunpack.c.l.b16 %v551
      %v1093 = vunpack.c.l.b16 %v552
      %v1094 = vunpack.c.l.b16 %v553
      %v1095 = vunpack.c.l.b16 %v554
      %v1096 = vunpack.c.l.b16 %v555
      %v1097 = vunpack.c.l.b16 %v556
      %v1098 = vunpack.c.l.b16 %v557
      %v1099 = vunpack.c.l.b16 %v558
      %v1100 = vunpack.c.l.b16 %v559
      %v1101 = vunpack.c.l.b16 %v560
      %v1102 = vunpack.c.l.b16 %v561
      %v1103 = vunpack.c.l.b16 %v562
      %v1104 = vunpack.c.l.b16 %v563
      %v1105 = vunpack.c.l.b16 %v564
      %v1106 = vunpack.c.l.b16 %v565
      %v1107 = vunpack.c.l.b16 %v566
      %v1108 = vunpack.c.l.b16 %v567
      %v1109 = vunpack.c.l.b16 %v568
      %v1110 = vunpack.c.l.b16 %v569
      %v1111 = vunpack.c.l.b16 %v570
      %v1112 = vunpack.c.l.b16 %v571
      %v1113 = vunpack.c.l.b16 %v572
      %v1114 = vunpack.c.l.b16 %v573
      %v1115 = vunpack.c.l.b16 %v574
      %v1116 = vunpack.c.l.b16 %v575
      %v1117 = vunpack.c.l.b16 %v576
      %v1118 = vunpack.c.l.b16 %v577
      %v1119 = vunpack.c.l.b16 %v578
      %v1120 = vunpack.c.l.b16 %v579
      %v1121 = vunpack.c.l.b16 %v580
      %v1122 = vunpack.c.l.b16 %v581
      %v1123 = vunpack.c.l.b16 %v582
      %v1124 = vunpack.c.l.b16 %v583
      %v1125 = vunpack.c.l.b16 %v584
      %v1126 = vunpack.c.l.b16 %v585
      %v1127 = vunpack.c.l.b16 %v586
      %v1128 = vunpack.c.l.b16 %v587
      %v1129 = vunpack.c.l.b16 %v588
      %v1130 = vpack.c.b16 %v1067, %v1066
      %v1131 = vpack.c.b16 %v1069, %v1068
      %v1132 = vpack.c.b16 %v1071, %v1070
      %v1133 = vpack.c.b16 %v1073, %v1072
      %v1134 = vpack.c.b16 %v1075, %v1074
      %v1135 = vpack.c.b16 %v1077, %v1076
      %v1136 = vpack.c.b16 %v1079, %v1078
      %v1137 = vpack.c.b16 %v1081, %v1080
      %v1138 = vpack.c.b16 %v1083, %v1082
      %v1139 = vpack.c.b16 %v1085, %v1084
      %v1140 = vpack.c.b16 %v1087, %v1086
      %v1141 = vpack.c.b16 %v1089, %v1088
      %v1142 = vpack.c.b16 %v1091, %v1090
      %v1143 = vpack.c.b16 %v1093, %v1092
      %v1144 = vpack.c.b16 %v1095, %v1094
      %v1145 = vpack.c.b16 %v1097, %v1096
      %v1146 = vpack.c.b16 %v1099, %v1098
      %v1147 = vpack.c.b16 %v1101, %v1100
      %v1148 = vpack.c.b16 %v1103, %v1102
      %v1149 = vpack.c.b16 %v1105, %v1104
      %v1150 = vpack.c.b16 %v1107, %v1106
      %v1151 = vpack.c.b16 %v1109, %v1108
      %v1152 = vpack.c.b16 %v1111, %v1110
      %v1153 = vpack.c.b16 %v1113, %v1112
      %v1154 = vpack.c.b16 %v1115, %v1114
      %v1155 = vpack.c.b16 %v1117, %v1116
      %v1156 = vpack.c.b16 %v1119, %v1118
      %v1157 = vpack.c.b16 %v1121, %v1120
      %v1158 = vpack.c.b16 %v1123, %v1122
      %v1159 = vpack.c.b16 %v1125, %v1124
      %v1160 = vpack.c.b16 %v1127, %v1126
      %v1161 = vpack.c.b16 %v1129, %v1128
      %1194 = vmatpush.bf16.msra.mxu0 %v1001
      %1195 = vmatpush.bf16.msra.mxu0 %v1000
      %1196 = vmatpush.bf16.msra.mxu0 %v999
      %1197 = vmatpush.bf16.msra.mxu0 %v998
      %1198 = vmatpush.bf16.msra.mxu0 %v997
      %1199 = vmatpush.bf16.msra.mxu0 %v996
      %1200 = vmatpush.bf16.msra.mxu0 %v995
      %1201 = vmatpush.bf16.msra.mxu0 %v994
      %1202 = vmatmul.bf16.gmra.mxu0 %v1130
      %v1203 = vpop.f32.mrf.mxu0
      %v1204 = vadd.f32 0.0, %v1203
      %v1205 = vpop.f32.mrf.mxu0
      %v1206 = vadd.f32 0.0, %v1205
      %1207 = vmatmul.bf16.gmra.mxu0 %v1131
      %v1208 = vpop.f32.mrf.mxu0
      %v1209 = vadd.f32 0.0, %v1208
      %v1210 = vpop.f32.mrf.mxu0
      %v1211 = vadd.f32 0.0, %v1210
      %1212 = vmatmul.bf16.gmra.mxu0 %v1132
      %v1213 = vpop.f32.mrf.mxu0
      %v1214 = vadd.f32 0.0, %v1213
      %v1215 = vpop.f32.mrf.mxu0
      %v1216 = vadd.f32 0.0, %v1215
      %1217 = vmatmul.bf16.gmra.mxu0 %v1133
      %v1218 = vpop.f32.mrf.mxu0
      %v1219 = vadd.f32 0.0, %v1218
      %v1220 = vpop.f32.mrf.mxu0
      %v1221 = vadd.f32 0.0, %v1220
      %1222 = vmatmul.bf16.gmra.mxu0 %v1134
      %v1223 = vpop.f32.mrf.mxu0
      %v1224 = vadd.f32 0.0, %v1223
      %v1225 = vpop.f32.mrf.mxu0
      %v1226 = vadd.f32 0.0, %v1225
      %1227 = vmatmul.bf16.gmra.mxu0 %v1135
      %v1228 = vpop.f32.mrf.mxu0
      %v1229 = vadd.f32 0.0, %v1228
      %v1230 = vpop.f32.mrf.mxu0
      %v1231 = vadd.f32 0.0, %v1230
      %1232 = vmatmul.bf16.gmra.mxu0 %v1136
      %v1233 = vpop.f32.mrf.mxu0
      %v1234 = vadd.f32 0.0, %v1233
      %v1235 = vpop.f32.mrf.mxu0
      %v1236 = vadd.f32 0.0, %v1235
      %1237 = vmatmul.bf16.gmra.mxu0 %v1137
      %v1238 = vpop.f32.mrf.mxu0
      %v1239 = vadd.f32 0.0, %v1238
      %v1240 = vpop.f32.mrf.mxu0
      %v1241 = vadd.f32 0.0, %v1240
      %1242 = vmatmul.bf16.gmra.mxu0 %v1138
      %v1243 = vpop.f32.mrf.mxu0
      %v1244 = vadd.f32 0.0, %v1243
      %v1245 = vpop.f32.mrf.mxu0
      %v1246 = vadd.f32 0.0, %v1245
      %1247 = vmatmul.bf16.gmra.mxu0 %v1139
      %v1248 = vpop.f32.mrf.mxu0
      %v1249 = vadd.f32 0.0, %v1248
      %v1250 = vpop.f32.mrf.mxu0
      %v1251 = vadd.f32 0.0, %v1250
      %1252 = vmatmul.bf16.gmra.mxu0 %v1140
      %v1253 = vpop.f32.mrf.mxu0
      %v1254 = vadd.f32 0.0, %v1253
      %v1255 = vpop.f32.mrf.mxu0
      %v1256 = vadd.f32 0.0, %v1255
      %1257 = vmatmul.bf16.gmra.mxu0 %v1141
      %v1258 = vpop.f32.mrf.mxu0
      %v1259 = vadd.f32 0.0, %v1258
      %v1260 = vpop.f32.mrf.mxu0
      %v1261 = vadd.f32 0.0, %v1260
      %1262 = vmatmul.bf16.gmra.mxu0 %v1142
      %v1263 = vpop.f32.mrf.mxu0
      %v1264 = vadd.f32 0.0, %v1263
      %v1265 = vpop.f32.mrf.mxu0
      %v1266 = vadd.f32 0.0, %v1265
      %1267 = vmatmul.bf16.gmra.mxu0 %v1143
      %v1268 = vpop.f32.mrf.mxu0
      %v1269 = vadd.f32 0.0, %v1268
      %v1270 = vpop.f32.mrf.mxu0
      %v1271 = vadd.f32 0.0, %v1270
      %1272 = vmatmul.bf16.gmra.mxu0 %v1144
      %v1273 = vpop.f32.mrf.mxu0
      %v1274 = vadd.f32 0.0, %v1273
      %v1275 = vpop.f32.mrf.mxu0
      %v1276 = vadd.f32 0.0, %v1275
      %1277 = vmatmul.bf16.gmra.mxu0 %v1145
      %v1278 = vpop.f32.mrf.mxu0
      %v1279 = vadd.f32 0.0, %v1278
      %v1280 = vpop.f32.mrf.mxu0
      %v1281 = vadd.f32 0.0, %v1280
      %1282 = vmatmul.bf16.gmra.mxu0 %v1146
      %v1283 = vpop.f32.mrf.mxu0
      %v1284 = vadd.f32 0.0, %v1283
      %v1285 = vpop.f32.mrf.mxu0
      %v1286 = vadd.f32 0.0, %v1285
      %1287 = vmatmul.bf16.gmra.mxu0 %v1147
      %v1288 = vpop.f32.mrf.mxu0
      %v1289 = vadd.f32 0.0, %v1288
      %v1290 = vpop.f32.mrf.mxu0
      %v1291 = vadd.f32 0.0, %v1290
      %1292 = vmatmul.bf16.gmra.mxu0 %v1148
      %v1293 = vpop.f32.mrf.mxu0
      %v1294 = vadd.f32 0.0, %v1293
      %v1295 = vpop.f32.mrf.mxu0
      %v1296 = vadd.f32 0.0, %v1295
      %1297 = vmatmul.bf16.gmra.mxu0 %v1149
      %v1298 = vpop.f32.mrf.mxu0
      %v1299 = vadd.f32 0.0, %v1298
      %v1300 = vpop.f32.mrf.mxu0
      %v1301 = vadd.f32 0.0, %v1300
      %1302 = vmatmul.bf16.gmra.mxu0 %v1150
      %v1303 = vpop.f32.mrf.mxu0
      %v1304 = vadd.f32 0.0, %v1303
      %v1305 = vpop.f32.mrf.mxu0
      %v1306 = vadd.f32 0.0, %v1305
      %1307 = vmatmul.bf16.gmra.mxu0 %v1151
      %v1308 = vpop.f32.mrf.mxu0
      %v1309 = vadd.f32 0.0, %v1308
      %v1310 = vpop.f32.mrf.mxu0
      %v1311 = vadd.f32 0.0, %v1310
      %1312 = vmatmul.bf16.gmra.mxu0 %v1152
      %v1313 = vpop.f32.mrf.mxu0
      %v1314 = vadd.f32 0.0, %v1313
      %v1315 = vpop.f32.mrf.mxu0
      %v1316 = vadd.f32 0.0, %v1315
      %1317 = vmatmul.bf16.gmra.mxu0 %v1153
      %v1318 = vpop.f32.mrf.mxu0
      %v1319 = vadd.f32 0.0, %v1318
      %v1320 = vpop.f32.mrf.mxu0
      %v1321 = vadd.f32 0.0, %v1320
      %1322 = vmatmul.bf16.gmra.mxu0 %v1154
      %v1323 = vpop.f32.mrf.mxu0
      %v1324 = vadd.f32 0.0, %v1323
      %v1325 = vpop.f32.mrf.mxu0
      %v1326 = vadd.f32 0.0, %v1325
      %1327 = vmatmul.bf16.gmra.mxu0 %v1155
      %v1328 = vpop.f32.mrf.mxu0
      %v1329 = vadd.f32 0.0, %v1328
      %v1330 = vpop.f32.mrf.mxu0
      %v1331 = vadd.f32 0.0, %v1330
      %1332 = vmatmul.bf16.gmra.mxu0 %v1156
      %v1333 = vpop.f32.mrf.mxu0
      %v1334 = vadd.f32 0.0, %v1333
      %v1335 = vpop.f32.mrf.mxu0
      %v1336 = vadd.f32 0.0, %v1335
      %1337 = vmatmul.bf16.gmra.mxu0 %v1157
      %v1338 = vpop.f32.mrf.mxu0
      %v1339 = vadd.f32 0.0, %v1338
      %v1340 = vpop.f32.mrf.mxu0
      %v1341 = vadd.f32 0.0, %v1340
      %1342 = vmatmul.bf16.gmra.mxu0 %v1158
      %v1343 = vpop.f32.mrf.mxu0
      %v1344 = vadd.f32 0.0, %v1343
      %v1345 = vpop.f32.mrf.mxu0
      %v1346 = vadd.f32 0.0, %v1345
      %1347 = vmatmul.bf16.gmra.mxu0 %v1159
      %v1348 = vpop.f32.mrf.mxu0
      %v1349 = vadd.f32 0.0, %v1348
      %v1350 = vpop.f32.mrf.mxu0
      %v1351 = vadd.f32 0.0, %v1350
      %1352 = vmatmul.bf16.gmra.mxu0 %v1160
      %v1353 = vpop.f32.mrf.mxu0
      %v1354 = vadd.f32 0.0, %v1353
      %v1355 = vpop.f32.mrf.mxu0
      %v1356 = vadd.f32 0.0, %v1355
      %1357 = vmatmul.bf16.gmra.mxu0 %v1161
      %v1358 = vpop.f32.mrf.mxu0
      %v1359 = vadd.f32 0.0, %v1358
      %v1360 = vpop.f32.mrf.mxu0
      %v1361 = vadd.f32 0.0, %v1360
      %1362 = vdwg.mxu0
      %v1427 = vunpack.c.l.b16 %v461
      %v1428 = vunpack.c.l.b16 %v462
      %v1429 = vunpack.c.l.b16 %v463
      %v1430 = vunpack.c.l.b16 %v464
      %v1431 = vunpack.c.l.b16 %v465
      %v1432 = vunpack.c.l.b16 %v466
      %v1433 = vunpack.c.l.b16 %v467
      %v1434 = vunpack.c.l.b16 %v468
      %v1435 = vunpack.c.l.b16 %v469
      %v1436 = vunpack.c.l.b16 %v470
      %v1437 = vunpack.c.l.b16 %v471
      %v1438 = vunpack.c.l.b16 %v472
      %v1439 = vunpack.c.l.b16 %v473
      %v1440 = vunpack.c.l.b16 %v474
      %v1441 = vunpack.c.l.b16 %v475
      %v1442 = vunpack.c.l.b16 %v476
      %v1443 = vunpack.c.l.b16 %v477
      %v1444 = vunpack.c.l.b16 %v478
      %v1445 = vunpack.c.l.b16 %v479
      %v1446 = vunpack.c.l.b16 %v480
      %v1447 = vunpack.c.l.b16 %v481
      %v1448 = vunpack.c.l.b16 %v482
      %v1449 = vunpack.c.l.b16 %v483
      %v1450 = vunpack.c.l.b16 %v484
      %v1451 = vunpack.c.l.b16 %v485
      %v1452 = vunpack.c.l.b16 %v486
      %v1453 = vunpack.c.l.b16 %v487
      %v1454 = vunpack.c.l.b16 %v488
      %v1455 = vunpack.c.l.b16 %v489
      %v1456 = vunpack.c.l.b16 %v490
      %v1457 = vunpack.c.l.b16 %v491
      %v1458 = vunpack.c.l.b16 %v492
      %v1459 = vunpack.c.l.b16 %v493
      %v1460 = vunpack.c.l.b16 %v494
      %v1461 = vunpack.c.l.b16 %v495
      %v1462 = vunpack.c.l.b16 %v496
      %v1463 = vunpack.c.l.b16 %v497
      %v1464 = vunpack.c.l.b16 %v498
      %v1465 = vunpack.c.l.b16 %v499
      %v1466 = vunpack.c.l.b16 %v500
      %v1467 = vunpack.c.l.b16 %v501
      %v1468 = vunpack.c.l.b16 %v502
      %v1469 = vunpack.c.l.b16 %v503
      %v1470 = vunpack.c.l.b16 %v504
      %v1471 = vunpack.c.l.b16 %v505
      %v1472 = vunpack.c.l.b16 %v506
      %v1473 = vunpack.c.l.b16 %v507
      %v1474 = vunpack.c.l.b16 %v508
      %v1475 = vunpack.c.l.b16 %v509
      %v1476 = vunpack.c.l.b16 %v510
      %v1477 = vunpack.c.l.b16 %v511
      %v1478 = vunpack.c.l.b16 %v512
      %v1479 = vunpack.c.l.b16 %v513
      %v1480 = vunpack.c.l.b16 %v514
      %v1481 = vunpack.c.l.b16 %v515
      %v1482 = vunpack.c.l.b16 %v516
      %v1483 = vunpack.c.l.b16 %v517
      %v1484 = vunpack.c.l.b16 %v518
      %v1485 = vunpack.c.l.b16 %v519
      %v1486 = vunpack.c.l.b16 %v520
      %v1487 = vunpack.c.l.b16 %v521
      %v1488 = vunpack.c.l.b16 %v522
      %v1489 = vunpack.c.l.b16 %v523
      %v1490 = vunpack.c.l.b16 %v524
      %v1491 = vpack.c.b16 %v1428, %v1427
      %v1492 = vpack.c.b16 %v1430, %v1429
      %v1493 = vpack.c.b16 %v1432, %v1431
      %v1494 = vpack.c.b16 %v1434, %v1433
      %v1495 = vpack.c.b16 %v1436, %v1435
      %v1496 = vpack.c.b16 %v1438, %v1437
      %v1497 = vpack.c.b16 %v1440, %v1439
      %v1498 = vpack.c.b16 %v1442, %v1441
      %v1499 = vpack.c.b16 %v1444, %v1443
      %v1500 = vpack.c.b16 %v1446, %v1445
      %v1501 = vpack.c.b16 %v1448, %v1447
      %v1502 = vpack.c.b16 %v1450, %v1449
      %v1503 = vpack.c.b16 %v1452, %v1451
      %v1504 = vpack.c.b16 %v1454, %v1453
      %v1505 = vpack.c.b16 %v1456, %v1455
      %v1506 = vpack.c.b16 %v1458, %v1457
      %v1507 = vpack.c.b16 %v1460, %v1459
      %v1508 = vpack.c.b16 %v1462, %v1461
      %v1509 = vpack.c.b16 %v1464, %v1463
      %v1510 = vpack.c.b16 %v1466, %v1465
      %v1511 = vpack.c.b16 %v1468, %v1467
      %v1512 = vpack.c.b16 %v1470, %v1469
      %v1513 = vpack.c.b16 %v1472, %v1471
      %v1514 = vpack.c.b16 %v1474, %v1473
      %v1515 = vpack.c.b16 %v1476, %v1475
      %v1516 = vpack.c.b16 %v1478, %v1477
      %v1517 = vpack.c.b16 %v1480, %v1479
      %v1518 = vpack.c.b16 %v1482, %v1481
      %v1519 = vpack.c.b16 %v1484, %v1483
      %v1520 = vpack.c.b16 %v1486, %v1485
      %v1521 = vpack.c.b16 %v1488, %v1487
      %v1522 = vpack.c.b16 %v1490, %v1489
      %1555 = vmatpush.bf16.msra.mxu0 %v879
      %1556 = vmatpush.bf16.msra.mxu0 %v878
      %1557 = vmatpush.bf16.msra.mxu0 %v877
      %1558 = vmatpush.bf16.msra.mxu0 %v876
      %1559 = vmatpush.bf16.msra.mxu0 %v875
      %1560 = vmatpush.bf16.msra.mxu0 %v874
      %1561 = vmatpush.bf16.msra.mxu0 %v873
      %1562 = vmatpush.bf16.msra.mxu0 %v872
      %1563 = vmatmul.bf16.gmra.mxu0 %v1491
      %v1564 = vpop.f32.mrf.mxu0
      %v1565 = vadd.f32 %v1204, %v1564
      %v1566 = vpop.f32.mrf.mxu0
      %v1567 = vadd.f32 %v1206, %v1566
      %1568 = vmatmul.bf16.gmra.mxu0 %v1492
      %v1569 = vpop.f32.mrf.mxu0
      %v1570 = vadd.f32 %v1209, %v1569
      %v1571 = vpop.f32.mrf.mxu0
      %v1572 = vadd.f32 %v1211, %v1571
      %1573 = vmatmul.bf16.gmra.mxu0 %v1493
      %v1574 = vpop.f32.mrf.mxu0
      %v1575 = vadd.f32 %v1214, %v1574
      %v1576 = vpop.f32.mrf.mxu0
      %v1577 = vadd.f32 %v1216, %v1576
      %1578 = vmatmul.bf16.gmra.mxu0 %v1494
      %v1579 = vpop.f32.mrf.mxu0
      %v1580 = vadd.f32 %v1219, %v1579
      %v1581 = vpop.f32.mrf.mxu0
      %v1582 = vadd.f32 %v1221, %v1581
      %1583 = vmatmul.bf16.gmra.mxu0 %v1495
      %v1584 = vpop.f32.mrf.mxu0
      %v1585 = vadd.f32 %v1224, %v1584
      %v1586 = vpop.f32.mrf.mxu0
      %v1587 = vadd.f32 %v1226, %v1586
      %1588 = vmatmul.bf16.gmra.mxu0 %v1496
      %v1589 = vpop.f32.mrf.mxu0
      %v1590 = vadd.f32 %v1229, %v1589
      %v1591 = vpop.f32.mrf.mxu0
      %v1592 = vadd.f32 %v1231, %v1591
      %1593 = vmatmul.bf16.gmra.mxu0 %v1497
      %v1594 = vpop.f32.mrf.mxu0
      %v1595 = vadd.f32 %v1234, %v1594
      %v1596 = vpop.f32.mrf.mxu0
      %v1597 = vadd.f32 %v1236, %v1596
      %1598 = vmatmul.bf16.gmra.mxu0 %v1498
      %v1599 = vpop.f32.mrf.mxu0
      %v1600 = vadd.f32 %v1239, %v1599
      %v1601 = vpop.f32.mrf.mxu0
      %v1602 = vadd.f32 %v1241, %v1601
      %1603 = vmatmul.bf16.gmra.mxu0 %v1499
      %v1604 = vpop.f32.mrf.mxu0
      %v1605 = vadd.f32 %v1244, %v1604
      %v1606 = vpop.f32.mrf.mxu0
      %v1607 = vadd.f32 %v1246, %v1606
      %1608 = vmatmul.bf16.gmra.mxu0 %v1500
      %v1609 = vpop.f32.mrf.mxu0
      %v1610 = vadd.f32 %v1249, %v1609
      %v1611 = vpop.f32.mrf.mxu0
      %v1612 = vadd.f32 %v1251, %v1611
      %1613 = vmatmul.bf16.gmra.mxu0 %v1501
      %v1614 = vpop.f32.mrf.mxu0
      %v1615 = vadd.f32 %v1254, %v1614
      %v1616 = vpop.f32.mrf.mxu0
      %v1617 = vadd.f32 %v1256, %v1616
      %1618 = vmatmul.bf16.gmra.mxu0 %v1502
      %v1619 = vpop.f32.mrf.mxu0
      %v1620 = vadd.f32 %v1259, %v1619
      %v1621 = vpop.f32.mrf.mxu0
      %v1622 = vadd.f32 %v1261, %v1621
      %1623 = vmatmul.bf16.gmra.mxu0 %v1503
      %v1624 = vpop.f32.mrf.mxu0
      %v1625 = vadd.f32 %v1264, %v1624
      %v1626 = vpop.f32.mrf.mxu0
      %v1627 = vadd.f32 %v1266, %v1626
      %1628 = vmatmul.bf16.gmra.mxu0 %v1504
      %v1629 = vpop.f32.mrf.mxu0
      %v1630 = vadd.f32 %v1269, %v1629
      %v1631 = vpop.f32.mrf.mxu0
      %v1632 = vadd.f32 %v1271, %v1631
      %1633 = vmatmul.bf16.gmra.mxu0 %v1505
      %v1634 = vpop.f32.mrf.mxu0
      %v1635 = vadd.f32 %v1274, %v1634
      %v1636 = vpop.f32.mrf.mxu0
      %v1637 = vadd.f32 %v1276, %v1636
      %1638 = vmatmul.bf16.gmra.mxu0 %v1506
      %v1639 = vpop.f32.mrf.mxu0
      %v1640 = vadd.f32 %v1279, %v1639
      %v1641 = vpop.f32.mrf.mxu0
      %v1642 = vadd.f32 %v1281, %v1641
      %1643 = vmatmul.bf16.gmra.mxu0 %v1507
      %v1644 = vpop.f32.mrf.mxu0
      %v1645 = vadd.f32 %v1284, %v1644
      %v1646 = vpop.f32.mrf.mxu0
      %v1647 = vadd.f32 %v1286, %v1646
      %1648 = vmatmul.bf16.gmra.mxu0 %v1508
      %v1649 = vpop.f32.mrf.mxu0
      %v1650 = vadd.f32 %v1289, %v1649
      %v1651 = vpop.f32.mrf.mxu0
      %v1652 = vadd.f32 %v1291, %v1651
      %1653 = vmatmul.bf16.gmra.mxu0 %v1509
      %v1654 = vpop.f32.mrf.mxu0
      %v1655 = vadd.f32 %v1294, %v1654
      %v1656 = vpop.f32.mrf.mxu0
      %v1657 = vadd.f32 %v1296, %v1656
      %1658 = vmatmul.bf16.gmra.mxu0 %v1510
      %v1659 = vpop.f32.mrf.mxu0
      %v1660 = vadd.f32 %v1299, %v1659
      %v1661 = vpop.f32.mrf.mxu0
      %v1662 = vadd.f32 %v1301, %v1661
      %1663 = vmatmul.bf16.gmra.mxu0 %v1511
      %v1664 = vpop.f32.mrf.mxu0
      %v1665 = vadd.f32 %v1304, %v1664
      %v1666 = vpop.f32.mrf.mxu0
      %v1667 = vadd.f32 %v1306, %v1666
      %1668 = vmatmul.bf16.gmra.mxu0 %v1512
      %v1669 = vpop.f32.mrf.mxu0
      %v1670 = vadd.f32 %v1309, %v1669
      %v1671 = vpop.f32.mrf.mxu0
      %v1672 = vadd.f32 %v1311, %v1671
      %1673 = vmatmul.bf16.gmra.mxu0 %v1513
      %v1674 = vpop.f32.mrf.mxu0
      %v1675 = vadd.f32 %v1314, %v1674
      %v1676 = vpop.f32.mrf.mxu0
      %v1677 = vadd.f32 %v1316, %v1676
      %1678 = vmatmul.bf16.gmra.mxu0 %v1514
      %v1679 = vpop.f32.mrf.mxu0
      %v1680 = vadd.f32 %v1319, %v1679
      %v1681 = vpop.f32.mrf.mxu0
      %v1682 = vadd.f32 %v1321, %v1681
      %1683 = vmatmul.bf16.gmra.mxu0 %v1515
      %v1684 = vpop.f32.mrf.mxu0
      %v1685 = vadd.f32 %v1324, %v1684
      %v1686 = vpop.f32.mrf.mxu0
      %v1687 = vadd.f32 %v1326, %v1686
      %1688 = vmatmul.bf16.gmra.mxu0 %v1516
      %v1689 = vpop.f32.mrf.mxu0
      %v1690 = vadd.f32 %v1329, %v1689
      %v1691 = vpop.f32.mrf.mxu0
      %v1692 = vadd.f32 %v1331, %v1691
      %1693 = vmatmul.bf16.gmra.mxu0 %v1517
      %v1694 = vpop.f32.mrf.mxu0
      %v1695 = vadd.f32 %v1334, %v1694
      %v1696 = vpop.f32.mrf.mxu0
      %v1697 = vadd.f32 %v1336, %v1696
      %1698 = vmatmul.bf16.gmra.mxu0 %v1518
      %v1699 = vpop.f32.mrf.mxu0
      %v1700 = vadd.f32 %v1339, %v1699
      %v1701 = vpop.f32.mrf.mxu0
      %v1702 = vadd.f32 %v1341, %v1701
      %1703 = vmatmul.bf16.gmra.mxu0 %v1519
      %v1704 = vpop.f32.mrf.mxu0
      %v1705 = vadd.f32 %v1344, %v1704
      %v1706 = vpop.f32.mrf.mxu0
      %v1707 = vadd.f32 %v1346, %v1706
      %1708 = vmatmul.bf16.gmra.mxu0 %v1520
      %v1709 = vpop.f32.mrf.mxu0
      %v1710 = vadd.f32 %v1349, %v1709
      %v1711 = vpop.f32.mrf.mxu0
      %v1712 = vadd.f32 %v1351, %v1711
      %1713 = vmatmul.bf16.gmra.mxu0 %v1521
      %v1714 = vpop.f32.mrf.mxu0
      %v1715 = vadd.f32 %v1354, %v1714
      %v1716 = vpop.f32.mrf.mxu0
      %v1717 = vadd.f32 %v1356, %v1716
      %1718 = vmatmul.bf16.gmra.mxu0 %v1522
      %v1719 = vpop.f32.mrf.mxu0
      %v1720 = vadd.f32 %v1359, %v1719
      %v1721 = vpop.f32.mrf.mxu0
      %v1722 = vadd.f32 %v1361, %v1721
      %1723 = vdwg.mxu0
      %v1724 = vld [vmem:[%s330 + $0x20] sm:$0xf]
      %v1725 = vld [vmem:[%s330 + $0x24] sm:$0xf]
      %v1790 = vunpack.c.l.b16 %v397
      %v1791 = vunpack.c.l.b16 %v398
      %v1792 = vunpack.c.l.b16 %v399
      %v1793 = vunpack.c.l.b16 %v400
      %v1794 = vunpack.c.l.b16 %v401
      %v1795 = vunpack.c.l.b16 %v402
      %v1796 = vunpack.c.l.b16 %v403
      %v1797 = vunpack.c.l.b16 %v404
      %v1798 = vunpack.c.l.b16 %v405
      %v1799 = vunpack.c.l.b16 %v406
      %v1800 = vunpack.c.l.b16 %v407
      %v1801 = vunpack.c.l.b16 %v408
      %v1802 = vunpack.c.l.b16 %v409
      %v1803 = vunpack.c.l.b16 %v410
      %v1804 = vunpack.c.l.b16 %v411
      %v1805 = vunpack.c.l.b16 %v412
      %v1806 = vunpack.c.l.b16 %v413
      %v1807 = vunpack.c.l.b16 %v414
      %v1808 = vunpack.c.l.b16 %v415
      %v1809 = vunpack.c.l.b16 %v416
      %v1810 = vunpack.c.l.b16 %v417
      %v1811 = vunpack.c.l.b16 %v418
      %v1812 = vunpack.c.l.b16 %v419
      %v1813 = vunpack.c.l.b16 %v420
      %v1814 = vunpack.c.l.b16 %v421
      %v1815 = vunpack.c.l.b16 %v422
      %v1816 = vunpack.c.l.b16 %v423
      %v1817 = vunpack.c.l.b16 %v424
      %v1818 = vunpack.c.l.b16 %v425
      %v1819 = vunpack.c.l.b16 %v426
      %v1820 = vunpack.c.l.b16 %v427
      %v1821 = vunpack.c.l.b16 %v428
      %v1822 = vunpack.c.l.b16 %v429
      %v1823 = vunpack.c.l.b16 %v430
      %v1824 = vunpack.c.l.b16 %v431
      %v1825 = vunpack.c.l.b16 %v432
      %v1826 = vunpack.c.l.b16 %v433
      %v1827 = vunpack.c.l.b16 %v434
      %v1828 = vunpack.c.l.b16 %v435
      %v1829 = vunpack.c.l.b16 %v436
      %v1830 = vunpack.c.l.b16 %v437
      %v1831 = vunpack.c.l.b16 %v438
      %v1832 = vunpack.c.l.b16 %v439
      %v1833 = vunpack.c.l.b16 %v440
      %v1834 = vunpack.c.l.b16 %v441
      %v1835 = vunpack.c.l.b16 %v442
      %v1836 = vunpack.c.l.b16 %v443
      %v1837 = vunpack.c.l.b16 %v444
      %v1838 = vunpack.c.l.b16 %v445
      %v1839 = vunpack.c.l.b16 %v446
      %v1840 = vunpack.c.l.b16 %v447
      %v1841 = vunpack.c.l.b16 %v448
      %v1842 = vunpack.c.l.b16 %v449
      %v1843 = vunpack.c.l.b16 %v450
      %v1844 = vunpack.c.l.b16 %v451
      %v1845 = vunpack.c.l.b16 %v452
      %v1846 = vunpack.c.l.b16 %v453
      %v1847 = vunpack.c.l.b16 %v454
      %v1848 = vunpack.c.l.b16 %v455
      %v1849 = vunpack.c.l.b16 %v456
      %v1850 = vunpack.c.l.b16 %v457
      %v1851 = vunpack.c.l.b16 %v458
      %v1852 = vunpack.c.l.b16 %v459
      %v1853 = vunpack.c.l.b16 %v460
      %v1854 = vpack.c.b16 %v1791, %v1790
      %v1855 = vpack.c.b16 %v1793, %v1792
      %v1856 = vpack.c.b16 %v1795, %v1794
      %v1857 = vpack.c.b16 %v1797, %v1796
      %v1858 = vpack.c.b16 %v1799, %v1798
      %v1859 = vpack.c.b16 %v1801, %v1800
      %v1860 = vpack.c.b16 %v1803, %v1802
      %v1861 = vpack.c.b16 %v1805, %v1804
      %v1862 = vpack.c.b16 %v1807, %v1806
      %v1863 = vpack.c.b16 %v1809, %v1808
      %v1864 = vpack.c.b16 %v1811, %v1810
      %v1865 = vpack.c.b16 %v1813, %v1812
      %v1866 = vpack.c.b16 %v1815, %v1814
      %v1867 = vpack.c.b16 %v1817, %v1816
      %v1868 = vpack.c.b16 %v1819, %v1818
      %v1869 = vpack.c.b16 %v1821, %v1820
      %v1870 = vpack.c.b16 %v1823, %v1822
      %v1871 = vpack.c.b16 %v1825, %v1824
      %v1872 = vpack.c.b16 %v1827, %v1826
      %v1873 = vpack.c.b16 %v1829, %v1828
      %v1874 = vpack.c.b16 %v1831, %v1830
      %v1875 = vpack.c.b16 %v1833, %v1832
      %v1876 = vpack.c.b16 %v1835, %v1834
      %v1877 = vpack.c.b16 %v1837, %v1836
      %v1878 = vpack.c.b16 %v1839, %v1838
      %v1879 = vpack.c.b16 %v1841, %v1840
      %v1880 = vpack.c.b16 %v1843, %v1842
      %v1881 = vpack.c.b16 %v1845, %v1844
      %v1882 = vpack.c.b16 %v1847, %v1846
      %v1883 = vpack.c.b16 %v1849, %v1848
      %v1884 = vpack.c.b16 %v1851, %v1850
      %v1885 = vpack.c.b16 %v1853, %v1852
      %v1888 = vunpack.c.l.b16 %v1724
      %v1889 = vunpack.c.l.b16 %v1725
      %v1890 = vpack.c.b16 %v1889, %v1888
      %v1893 = vsel %vm719, %v1854, 0
      %v1896 = vsel %vm719, %v1855, 0
      %v1899 = vsel %vm719, %v1856, 0
      %v1902 = vsel %vm719, %v1857, 0
      %v1905 = vsel %vm719, %v1858, 0
      %v1908 = vsel %vm719, %v1859, 0
      %v1911 = vsel %vm719, %v1860, 0
      %v1914 = vsel %vm719, %v1861, 0
      %v1917 = vsel %vm719, %v1862, 0
      %v1920 = vsel %vm719, %v1863, 0
      %v1923 = vsel %vm719, %v1864, 0
      %v1926 = vsel %vm719, %v1865, 0
      %v1929 = vsel %vm719, %v1866, 0
      %v1932 = vsel %vm719, %v1867, 0
      %v1935 = vsel %vm719, %v1868, 0
      %v1938 = vsel %vm719, %v1869, 0
      %v1941 = vsel %vm719, %v1870, 0
      %v1944 = vsel %vm719, %v1871, 0
      %v1947 = vsel %vm719, %v1872, 0
      %v1950 = vsel %vm719, %v1873, 0
      %v1953 = vsel %vm719, %v1874, 0
      %v1956 = vsel %vm719, %v1875, 0
      %v1959 = vsel %vm719, %v1876, 0
      %v1962 = vsel %vm719, %v1877, 0
      %v1965 = vsel %vm719, %v1878, 0
      %v1968 = vsel %vm719, %v1879, 0
      %v1971 = vsel %vm719, %v1880, 0
      %v1974 = vsel %vm719, %v1881, 0
      %v1977 = vsel %vm719, %v1882, 0
      %v1980 = vsel %vm719, %v1883, 0
      %v1983 = vsel %vm719, %v1884, 0
      %v1986 = vsel %vm719, %v1885, 0
      %1988 = vmatpush.bf16.msra.mxu0 0
      %1989 = vmatpush.bf16.msra.mxu0 0
      %1990 = vmatpush.bf16.msra.mxu0 0
      %1991 = vmatpush.bf16.msra.mxu0 0
      %1992 = vmatpush.bf16.msra.mxu0 0
      %1993 = vmatpush.bf16.msra.mxu0 0
      %1994 = vmatpush.bf16.msra.mxu0 0
      %1995 = vmatpush.bf16.msra.mxu0 %v1890
      %1996 = vmatmul.bf16.gmra.mxu0 %v1893
      %v1997 = vpop.f32.mrf.mxu0
      %v1998 = vadd.f32 0.0, %v1997
      %v1999 = vpop.f32.mrf.mxu0
      %v2000 = vadd.f32 0.0, %v1999
      %2001 = vmatmul.bf16.gmra.mxu0 %v1896
      %v2002 = vpop.f32.mrf.mxu0
      %v2003 = vadd.f32 0.0, %v2002
      %v2004 = vpop.f32.mrf.mxu0
      %v2005 = vadd.f32 0.0, %v2004
      %2006 = vmatmul.bf16.gmra.mxu0 %v1899
      %v2007 = vpop.f32.mrf.mxu0
      %v2008 = vadd.f32 0.0, %v2007
      %v2009 = vpop.f32.mrf.mxu0
      %v2010 = vadd.f32 0.0, %v2009
      %2011 = vmatmul.bf16.gmra.mxu0 %v1902
      %v2012 = vpop.f32.mrf.mxu0
      %v2013 = vadd.f32 0.0, %v2012
      %v2014 = vpop.f32.mrf.mxu0
      %v2015 = vadd.f32 0.0, %v2014
      %2016 = vmatmul.bf16.gmra.mxu0 %v1905
      %v2017 = vpop.f32.mrf.mxu0
      %v2018 = vadd.f32 0.0, %v2017
      %v2019 = vpop.f32.mrf.mxu0
      %v2020 = vadd.f32 0.0, %v2019
      %2021 = vmatmul.bf16.gmra.mxu0 %v1908
      %v2022 = vpop.f32.mrf.mxu0
      %v2023 = vadd.f32 0.0, %v2022
      %v2024 = vpop.f32.mrf.mxu0
      %v2025 = vadd.f32 0.0, %v2024
      %2026 = vmatmul.bf16.gmra.mxu0 %v1911
      %v2027 = vpop.f32.mrf.mxu0
      %v2028 = vadd.f32 0.0, %v2027
      %v2029 = vpop.f32.mrf.mxu0
      %v2030 = vadd.f32 0.0, %v2029
      %2031 = vmatmul.bf16.gmra.mxu0 %v1914
      %v2032 = vpop.f32.mrf.mxu0
      %v2033 = vadd.f32 0.0, %v2032
      %v2034 = vpop.f32.mrf.mxu0
      %v2035 = vadd.f32 0.0, %v2034
      %2036 = vmatmul.bf16.gmra.mxu0 %v1917
      %v2037 = vpop.f32.mrf.mxu0
      %v2038 = vadd.f32 0.0, %v2037
      %v2039 = vpop.f32.mrf.mxu0
      %v2040 = vadd.f32 0.0, %v2039
      %2041 = vmatmul.bf16.gmra.mxu0 %v1920
      %v2042 = vpop.f32.mrf.mxu0
      %v2043 = vadd.f32 0.0, %v2042
      %v2044 = vpop.f32.mrf.mxu0
      %v2045 = vadd.f32 0.0, %v2044
      %2046 = vmatmul.bf16.gmra.mxu0 %v1923
      %v2047 = vpop.f32.mrf.mxu0
      %v2048 = vadd.f32 0.0, %v2047
      %v2049 = vpop.f32.mrf.mxu0
      %v2050 = vadd.f32 0.0, %v2049
      %2051 = vmatmul.bf16.gmra.mxu0 %v1926
      %v2052 = vpop.f32.mrf.mxu0
      %v2053 = vadd.f32 0.0, %v2052
      %v2054 = vpop.f32.mrf.mxu0
      %v2055 = vadd.f32 0.0, %v2054
      %2056 = vmatmul.bf16.gmra.mxu0 %v1929
      %v2057 = vpop.f32.mrf.mxu0
      %v2058 = vadd.f32 0.0, %v2057
      %v2059 = vpop.f32.mrf.mxu0
      %v2060 = vadd.f32 0.0, %v2059
      %2061 = vmatmul.bf16.gmra.mxu0 %v1932
      %v2062 = vpop.f32.mrf.mxu0
      %v2063 = vadd.f32 0.0, %v2062
      %v2064 = vpop.f32.mrf.mxu0
      %v2065 = vadd.f32 0.0, %v2064
      %2066 = vmatmul.bf16.gmra.mxu0 %v1935
      %v2067 = vpop.f32.mrf.mxu0
      %v2068 = vadd.f32 0.0, %v2067
      %v2069 = vpop.f32.mrf.mxu0
      %v2070 = vadd.f32 0.0, %v2069
      %2071 = vmatmul.bf16.gmra.mxu0 %v1938
      %v2072 = vpop.f32.mrf.mxu0
      %v2073 = vadd.f32 0.0, %v2072
      %v2074 = vpop.f32.mrf.mxu0
      %v2075 = vadd.f32 0.0, %v2074
      %2076 = vmatmul.bf16.gmra.mxu0 %v1941
      %v2077 = vpop.f32.mrf.mxu0
      %v2078 = vadd.f32 0.0, %v2077
      %v2079 = vpop.f32.mrf.mxu0
      %v2080 = vadd.f32 0.0, %v2079
      %2081 = vmatmul.bf16.gmra.mxu0 %v1944
      %v2082 = vpop.f32.mrf.mxu0
      %v2083 = vadd.f32 0.0, %v2082
      %v2084 = vpop.f32.mrf.mxu0
      %v2085 = vadd.f32 0.0, %v2084
      %2086 = vmatmul.bf16.gmra.mxu0 %v1947
      %v2087 = vpop.f32.mrf.mxu0
      %v2088 = vadd.f32 0.0, %v2087
      %v2089 = vpop.f32.mrf.mxu0
      %v2090 = vadd.f32 0.0, %v2089
      %2091 = vmatmul.bf16.gmra.mxu0 %v1950
      %v2092 = vpop.f32.mrf.mxu0
      %v2093 = vadd.f32 0.0, %v2092
      %v2094 = vpop.f32.mrf.mxu0
      %v2095 = vadd.f32 0.0, %v2094
      %2096 = vmatmul.bf16.gmra.mxu0 %v1953
      %v2097 = vpop.f32.mrf.mxu0
      %v2098 = vadd.f32 0.0, %v2097
      %v2099 = vpop.f32.mrf.mxu0
      %v2100 = vadd.f32 0.0, %v2099
      %2101 = vmatmul.bf16.gmra.mxu0 %v1956
      %v2102 = vpop.f32.mrf.mxu0
      %v2103 = vadd.f32 0.0, %v2102
      %v2104 = vpop.f32.mrf.mxu0
      %v2105 = vadd.f32 0.0, %v2104
      %2106 = vmatmul.bf16.gmra.mxu0 %v1959
      %v2107 = vpop.f32.mrf.mxu0
      %v2108 = vadd.f32 0.0, %v2107
      %v2109 = vpop.f32.mrf.mxu0
      %v2110 = vadd.f32 0.0, %v2109
      %2111 = vmatmul.bf16.gmra.mxu0 %v1962
      %v2112 = vpop.f32.mrf.mxu0
      %v2113 = vadd.f32 0.0, %v2112
      %v2114 = vpop.f32.mrf.mxu0
      %v2115 = vadd.f32 0.0, %v2114
      %2116 = vmatmul.bf16.gmra.mxu0 %v1965
      %v2117 = vpop.f32.mrf.mxu0
      %v2118 = vadd.f32 0.0, %v2117
      %v2119 = vpop.f32.mrf.mxu0
      %v2120 = vadd.f32 0.0, %v2119
      %2121 = vmatmul.bf16.gmra.mxu0 %v1968
      %v2122 = vpop.f32.mrf.mxu0
      %v2123 = vadd.f32 0.0, %v2122
      %v2124 = vpop.f32.mrf.mxu0
      %v2125 = vadd.f32 0.0, %v2124
      %2126 = vmatmul.bf16.gmra.mxu0 %v1971
      %v2127 = vpop.f32.mrf.mxu0
      %v2128 = vadd.f32 0.0, %v2127
      %v2129 = vpop.f32.mrf.mxu0
      %v2130 = vadd.f32 0.0, %v2129
      %2131 = vmatmul.bf16.gmra.mxu0 %v1974
      %v2132 = vpop.f32.mrf.mxu0
      %v2133 = vadd.f32 0.0, %v2132
      %v2134 = vpop.f32.mrf.mxu0
      %v2135 = vadd.f32 0.0, %v2134
      %2136 = vmatmul.bf16.gmra.mxu0 %v1977
      %v2137 = vpop.f32.mrf.mxu0
      %v2138 = vadd.f32 0.0, %v2137
      %v2139 = vpop.f32.mrf.mxu0
      %v2140 = vadd.f32 0.0, %v2139
      %2141 = vmatmul.bf16.gmra.mxu0 %v1980
      %v2142 = vpop.f32.mrf.mxu0
      %v2143 = vadd.f32 0.0, %v2142
      %v2144 = vpop.f32.mrf.mxu0
      %v2145 = vadd.f32 0.0, %v2144
      %2146 = vmatmul.bf16.gmra.mxu0 %v1983
      %v2147 = vpop.f32.mrf.mxu0
      %v2148 = vadd.f32 0.0, %v2147
      %v2149 = vpop.f32.mrf.mxu0
      %v2150 = vadd.f32 0.0, %v2149
      %2151 = vmatmul.bf16.gmra.mxu0 %v1986
      %v2152 = vpop.f32.mrf.mxu0
      %v2153 = vadd.f32 0.0, %v2152
      %v2154 = vpop.f32.mrf.mxu0
      %v2155 = vadd.f32 0.0, %v2154
      %2156 = vdwg.mxu0
      %v2157 = vadd.f32 %v1565, %v1998
      %v2158 = vadd.f32 %v1567, %v2000
      %v2159 = vadd.f32 %v1570, %v2003
      %v2160 = vadd.f32 %v1572, %v2005
      %v2161 = vadd.f32 %v1575, %v2008
      %v2162 = vadd.f32 %v1577, %v2010
      %v2163 = vadd.f32 %v1580, %v2013
      %v2164 = vadd.f32 %v1582, %v2015
      %v2165 = vadd.f32 %v1585, %v2018
      %v2166 = vadd.f32 %v1587, %v2020
      %v2167 = vadd.f32 %v1590, %v2023
      %v2168 = vadd.f32 %v1592, %v2025
      %v2169 = vadd.f32 %v1595, %v2028
      %v2170 = vadd.f32 %v1597, %v2030
      %v2171 = vadd.f32 %v1600, %v2033
      %v2172 = vadd.f32 %v1602, %v2035
      %v2173 = vadd.f32 %v1605, %v2038
      %v2174 = vadd.f32 %v1607, %v2040
      %v2175 = vadd.f32 %v1610, %v2043
      %v2176 = vadd.f32 %v1612, %v2045
      %v2177 = vadd.f32 %v1615, %v2048
      %v2178 = vadd.f32 %v1617, %v2050
      %v2179 = vadd.f32 %v1620, %v2053
      %v2180 = vadd.f32 %v1622, %v2055
      %v2181 = vadd.f32 %v1625, %v2058
      %v2182 = vadd.f32 %v1627, %v2060
      %v2183 = vadd.f32 %v1630, %v2063
      %v2184 = vadd.f32 %v1632, %v2065
      %v2185 = vadd.f32 %v1635, %v2068
      %v2186 = vadd.f32 %v1637, %v2070
      %v2187 = vadd.f32 %v1640, %v2073
      %v2188 = vadd.f32 %v1642, %v2075
      %v2189 = vadd.f32 %v1645, %v2078
      %v2190 = vadd.f32 %v1647, %v2080
      %v2191 = vadd.f32 %v1650, %v2083
      %v2192 = vadd.f32 %v1652, %v2085
      %v2193 = vadd.f32 %v1655, %v2088
      %v2194 = vadd.f32 %v1657, %v2090
      %v2195 = vadd.f32 %v1660, %v2093
      %v2196 = vadd.f32 %v1662, %v2095
      %v2197 = vadd.f32 %v1665, %v2098
      %v2198 = vadd.f32 %v1667, %v2100
      %v2199 = vadd.f32 %v1670, %v2103
      %v2200 = vadd.f32 %v1672, %v2105
      %v2201 = vadd.f32 %v1675, %v2108
      %v2202 = vadd.f32 %v1677, %v2110
      %v2203 = vadd.f32 %v1680, %v2113
      %v2204 = vadd.f32 %v1682, %v2115
      %v2205 = vadd.f32 %v1685, %v2118
      %v2206 = vadd.f32 %v1687, %v2120
      %v2207 = vadd.f32 %v1690, %v2123
      %v2208 = vadd.f32 %v1692, %v2125
      %v2209 = vadd.f32 %v1695, %v2128
      %v2210 = vadd.f32 %v1697, %v2130
      %v2211 = vadd.f32 %v1700, %v2133
      %v2212 = vadd.f32 %v1702, %v2135
      %v2213 = vadd.f32 %v1705, %v2138
      %v2214 = vadd.f32 %v1707, %v2140
      %v2215 = vadd.f32 %v1710, %v2143
      %v2216 = vadd.f32 %v1712, %v2145
      %v2217 = vadd.f32 %v1715, %v2148
      %v2218 = vadd.f32 %v1717, %v2150
      %v2219 = vadd.f32 %v1720, %v2153
      %v2220 = vadd.f32 %v1722, %v2155
      %v2221 = vld [vmem:[%s334] sm:$0x1]
      %v2222 = vperm.slane %v2221, 0
      %v2223 = vadd.f32 %v2157, %v2222
      %v2224 = vadd.f32 %v2158, %v2222
      %v2225 = vadd.f32 %v2159, %v2222
      %v2226 = vadd.f32 %v2160, %v2222
      %v2227 = vadd.f32 %v2161, %v2222
      %v2228 = vadd.f32 %v2162, %v2222
      %v2229 = vadd.f32 %v2163, %v2222
      %v2230 = vadd.f32 %v2164, %v2222
      %v2231 = vadd.f32 %v2165, %v2222
      %v2232 = vadd.f32 %v2166, %v2222
      %v2233 = vadd.f32 %v2167, %v2222
      %v2234 = vadd.f32 %v2168, %v2222
      %v2235 = vadd.f32 %v2169, %v2222
      %v2236 = vadd.f32 %v2170, %v2222
      %v2237 = vadd.f32 %v2171, %v2222
      %v2238 = vadd.f32 %v2172, %v2222
      %v2239 = vadd.f32 %v2173, %v2222
      %v2240 = vadd.f32 %v2174, %v2222
      %v2241 = vadd.f32 %v2175, %v2222
      %v2242 = vadd.f32 %v2176, %v2222
      %v2243 = vadd.f32 %v2177, %v2222
      %v2244 = vadd.f32 %v2178, %v2222
      %v2245 = vadd.f32 %v2179, %v2222
      %v2246 = vadd.f32 %v2180, %v2222
      %v2247 = vadd.f32 %v2181, %v2222
      %v2248 = vadd.f32 %v2182, %v2222
      %v2249 = vadd.f32 %v2183, %v2222
      %v2250 = vadd.f32 %v2184, %v2222
      %v2251 = vadd.f32 %v2185, %v2222
      %v2252 = vadd.f32 %v2186, %v2222
      %v2253 = vadd.f32 %v2187, %v2222
      %v2254 = vadd.f32 %v2188, %v2222
      %v2255 = vadd.f32 %v2189, %v2222
      %v2256 = vadd.f32 %v2190, %v2222
      %v2257 = vadd.f32 %v2191, %v2222
      %v2258 = vadd.f32 %v2192, %v2222
      %v2259 = vadd.f32 %v2193, %v2222
      %v2260 = vadd.f32 %v2194, %v2222
      %v2261 = vadd.f32 %v2195, %v2222
      %v2262 = vadd.f32 %v2196, %v2222
      %v2263 = vadd.f32 %v2197, %v2222
      %v2264 = vadd.f32 %v2198, %v2222
      %v2265 = vadd.f32 %v2199, %v2222
      %v2266 = vadd.f32 %v2200, %v2222
      %v2267 = vadd.f32 %v2201, %v2222
      %v2268 = vadd.f32 %v2202, %v2222
      %v2269 = vadd.f32 %v2203, %v2222
      %v2270 = vadd.f32 %v2204, %v2222
      %v2271 = vadd.f32 %v2205, %v2222
      %v2272 = vadd.f32 %v2206, %v2222
      %v2273 = vadd.f32 %v2207, %v2222
      %v2274 = vadd.f32 %v2208, %v2222
      %v2275 = vadd.f32 %v2209, %v2222
      %v2276 = vadd.f32 %v2210, %v2222
      %v2277 = vadd.f32 %v2211, %v2222
      %v2278 = vadd.f32 %v2212, %v2222
      %v2279 = vadd.f32 %v2213, %v2222
      %v2280 = vadd.f32 %v2214, %v2222
      %v2281 = vadd.f32 %v2215, %v2222
      %v2282 = vadd.f32 %v2216, %v2222
      %v2283 = vadd.f32 %v2217, %v2222
      %v2284 = vadd.f32 %v2218, %v2222
      %v2285 = vadd.f32 %v2219, %v2222
      %v2286 = vadd.f32 %v2220, %v2222
      %v2287 = vmul.f32 %v2223, 0.2
      %v2288 = vmul.f32 %v2224, 0.2
      %v2289 = vmul.f32 %v2225, 0.2
      %v2290 = vmul.f32 %v2226, 0.2
      %v2291 = vmul.f32 %v2227, 0.2
      %v2292 = vmul.f32 %v2228, 0.2
      %v2293 = vmul.f32 %v2229, 0.2
      %v2294 = vmul.f32 %v2230, 0.2
      %v2295 = vmul.f32 %v2231, 0.2
      %v2296 = vmul.f32 %v2232, 0.2
      %v2297 = vmul.f32 %v2233, 0.2
      %v2298 = vmul.f32 %v2234, 0.2
      %v2299 = vmul.f32 %v2235, 0.2
      %v2300 = vmul.f32 %v2236, 0.2
      %v2301 = vmul.f32 %v2237, 0.2
      %v2302 = vmul.f32 %v2238, 0.2
      %v2303 = vmul.f32 %v2239, 0.2
      %v2304 = vmul.f32 %v2240, 0.2
      %v2305 = vmul.f32 %v2241, 0.2
      %v2306 = vmul.f32 %v2242, 0.2
      %v2307 = vmul.f32 %v2243, 0.2
      %v2308 = vmul.f32 %v2244, 0.2
      %v2309 = vmul.f32 %v2245, 0.2
      %v2310 = vmul.f32 %v2246, 0.2
      %v2311 = vmul.f32 %v2247, 0.2
      %v2312 = vmul.f32 %v2248, 0.2
      %v2313 = vmul.f32 %v2249, 0.2
      %v2314 = vmul.f32 %v2250, 0.2
      %v2315 = vmul.f32 %v2251, 0.2
      %v2316 = vmul.f32 %v2252, 0.2
      %v2317 = vmul.f32 %v2253, 0.2
      %v2318 = vmul.f32 %v2254, 0.2
      %v2319 = vmul.f32 %v2255, 0.2
      %v2320 = vmul.f32 %v2256, 0.2
      %v2321 = vmul.f32 %v2257, 0.2
      %v2322 = vmul.f32 %v2258, 0.2
      %v2323 = vmul.f32 %v2259, 0.2
      %v2324 = vmul.f32 %v2260, 0.2
      %v2325 = vmul.f32 %v2261, 0.2
      %v2326 = vmul.f32 %v2262, 0.2
      %v2327 = vmul.f32 %v2263, 0.2
      %v2328 = vmul.f32 %v2264, 0.2
      %v2329 = vmul.f32 %v2265, 0.2
      %v2330 = vmul.f32 %v2266, 0.2
      %v2331 = vmul.f32 %v2267, 0.2
      %v2332 = vmul.f32 %v2268, 0.2
      %v2333 = vmul.f32 %v2269, 0.2
      %v2334 = vmul.f32 %v2270, 0.2
      %v2335 = vmul.f32 %v2271, 0.2
      %v2336 = vmul.f32 %v2272, 0.2
      %v2337 = vmul.f32 %v2273, 0.2
      %v2338 = vmul.f32 %v2274, 0.2
      %v2339 = vmul.f32 %v2275, 0.2
      %v2340 = vmul.f32 %v2276, 0.2
      %v2341 = vmul.f32 %v2277, 0.2
      %v2342 = vmul.f32 %v2278, 0.2
      %v2343 = vmul.f32 %v2279, 0.2
      %v2344 = vmul.f32 %v2280, 0.2
      %v2345 = vmul.f32 %v2281, 0.2
      %v2346 = vmul.f32 %v2282, 0.2
      %v2347 = vmul.f32 %v2283, 0.2
      %v2348 = vmul.f32 %v2284, 0.2
      %v2349 = vmul.f32 %v2285, 0.2
      %v2350 = vmul.f32 %v2286, 0.2
      %v2351 = vmax.f32 %v2223, %v2287
      %v2352 = vmax.f32 %v2224, %v2288
      %v2353 = vmax.f32 %v2225, %v2289
      %v2354 = vmax.f32 %v2226, %v2290
      %v2355 = vmax.f32 %v2227, %v2291
      %v2356 = vmax.f32 %v2228, %v2292
      %v2357 = vmax.f32 %v2229, %v2293
      %v2358 = vmax.f32 %v2230, %v2294
      %v2359 = vmax.f32 %v2231, %v2295
      %v2360 = vmax.f32 %v2232, %v2296
      %v2361 = vmax.f32 %v2233, %v2297
      %v2362 = vmax.f32 %v2234, %v2298
      %v2363 = vmax.f32 %v2235, %v2299
      %v2364 = vmax.f32 %v2236, %v2300
      %v2365 = vmax.f32 %v2237, %v2301
      %v2366 = vmax.f32 %v2238, %v2302
      %v2367 = vmax.f32 %v2239, %v2303
      %v2368 = vmax.f32 %v2240, %v2304
      %v2369 = vmax.f32 %v2241, %v2305
      %v2370 = vmax.f32 %v2242, %v2306
      %v2371 = vmax.f32 %v2243, %v2307
      %v2372 = vmax.f32 %v2244, %v2308
      %v2373 = vmax.f32 %v2245, %v2309
      %v2374 = vmax.f32 %v2246, %v2310
      %v2375 = vmax.f32 %v2247, %v2311
      %v2376 = vmax.f32 %v2248, %v2312
      %v2377 = vmax.f32 %v2249, %v2313
      %v2378 = vmax.f32 %v2250, %v2314
      %v2379 = vmax.f32 %v2251, %v2315
      %v2380 = vmax.f32 %v2252, %v2316
      %v2381 = vmax.f32 %v2253, %v2317
      %v2382 = vmax.f32 %v2254, %v2318
      %v2383 = vmax.f32 %v2255, %v2319
      %v2384 = vmax.f32 %v2256, %v2320
      %v2385 = vmax.f32 %v2257, %v2321
      %v2386 = vmax.f32 %v2258, %v2322
      %v2387 = vmax.f32 %v2259, %v2323
      %v2388 = vmax.f32 %v2260, %v2324
      %v2389 = vmax.f32 %v2261, %v2325
      %v2390 = vmax.f32 %v2262, %v2326
      %v2391 = vmax.f32 %v2263, %v2327
      %v2392 = vmax.f32 %v2264, %v2328
      %v2393 = vmax.f32 %v2265, %v2329
      %v2394 = vmax.f32 %v2266, %v2330
      %v2395 = vmax.f32 %v2267, %v2331
      %v2396 = vmax.f32 %v2268, %v2332
      %v2397 = vmax.f32 %v2269, %v2333
      %v2398 = vmax.f32 %v2270, %v2334
      %v2399 = vmax.f32 %v2271, %v2335
      %v2400 = vmax.f32 %v2272, %v2336
      %v2401 = vmax.f32 %v2273, %v2337
      %v2402 = vmax.f32 %v2274, %v2338
      %v2403 = vmax.f32 %v2275, %v2339
      %v2404 = vmax.f32 %v2276, %v2340
      %v2405 = vmax.f32 %v2277, %v2341
      %v2406 = vmax.f32 %v2278, %v2342
      %v2407 = vmax.f32 %v2279, %v2343
      %v2408 = vmax.f32 %v2280, %v2344
      %v2409 = vmax.f32 %v2281, %v2345
      %v2410 = vmax.f32 %v2282, %v2346
      %v2411 = vmax.f32 %v2283, %v2347
      %v2412 = vmax.f32 %v2284, %v2348
      %v2413 = vmax.f32 %v2285, %v2349
      %v2414 = vmax.f32 %v2286, %v2350
      %v2415 = vpack.c.bf16 %v2352, %v2351
      %v2416 = vpack.c.bf16 %v2354, %v2353
      %v2417 = vpack.c.bf16 %v2356, %v2355
      %v2418 = vpack.c.bf16 %v2358, %v2357
      %v2419 = vpack.c.bf16 %v2360, %v2359
      %v2420 = vpack.c.bf16 %v2362, %v2361
      %v2421 = vpack.c.bf16 %v2364, %v2363
      %v2422 = vpack.c.bf16 %v2366, %v2365
      %v2423 = vpack.c.bf16 %v2368, %v2367
      %v2424 = vpack.c.bf16 %v2370, %v2369
      %v2425 = vpack.c.bf16 %v2372, %v2371
      %v2426 = vpack.c.bf16 %v2374, %v2373
      %v2427 = vpack.c.bf16 %v2376, %v2375
      %v2428 = vpack.c.bf16 %v2378, %v2377
      %v2429 = vpack.c.bf16 %v2380, %v2379
      %v2430 = vpack.c.bf16 %v2382, %v2381
      %v2431 = vpack.c.bf16 %v2384, %v2383
      %v2432 = vpack.c.bf16 %v2386, %v2385
      %v2433 = vpack.c.bf16 %v2388, %v2387
      %v2434 = vpack.c.bf16 %v2390, %v2389
      %v2435 = vpack.c.bf16 %v2392, %v2391
      %v2436 = vpack.c.bf16 %v2394, %v2393
      %v2437 = vpack.c.bf16 %v2396, %v2395
      %v2438 = vpack.c.bf16 %v2398, %v2397
      %v2439 = vpack.c.bf16 %v2400, %v2399
      %v2440 = vpack.c.bf16 %v2402, %v2401
      %v2441 = vpack.c.bf16 %v2404, %v2403
      %v2442 = vpack.c.bf16 %v2406, %v2405
      %v2443 = vpack.c.bf16 %v2408, %v2407
      %v2444 = vpack.c.bf16 %v2410, %v2409
      %v2445 = vpack.c.bf16 %v2412, %v2411
      %v2446 = vpack.c.bf16 %v2414, %v2413
      %v2447 = vld [vmem:[%s330 + $0x28] sm:$0xf]
      %v2448 = vld [vmem:[%s330 + $0x2c] sm:$0xf]
      %v2449 = vld [vmem:[%s330 + $0x30] sm:$0xf]
      %v2450 = vld [vmem:[%s330 + $0x34] sm:$0xf]
      %v2451 = vld [vmem:[%s334 + $0x1] sm:$0x1]
      %v2452 = vperm.slane %v2451, 0
      %v2457 = vunpack.c.l.b16 %v2447
      %v2458 = vunpack.c.l.b16 %v2448
      %v2459 = vunpack.c.l.b16 %v2449
      %v2460 = vunpack.c.l.b16 %v2450
      %v2461 = vpack.c.b16 %v2458, %v2457
      %v2462 = vpack.c.b16 %v2460, %v2459
      %vm2465 = vcmask 261120
      %v2467 = vsel %vm2465, %v2415, 0
      %v2470 = vsel %vm2465, %v2416, 0
      %v2473 = vsel %vm2465, %v2417, 0
      %v2476 = vsel %vm2465, %v2418, 0
      %v2479 = vsel %vm2465, %v2419, 0
      %v2482 = vsel %vm2465, %v2420, 0
      %v2485 = vsel %vm2465, %v2421, 0
      %v2488 = vsel %vm2465, %v2422, 0
      %v2491 = vsel %vm2465, %v2423, 0
      %v2494 = vsel %vm2465, %v2424, 0
      %v2497 = vsel %vm2465, %v2425, 0
      %v2500 = vsel %vm2465, %v2426, 0
      %v2503 = vsel %vm2465, %v2427, 0
      %v2506 = vsel %vm2465, %v2428, 0
      %v2509 = vsel %vm2465, %v2429, 0
      %v2512 = vsel %vm2465, %v2430, 0
      %v2515 = vsel %vm2465, %v2431, 0
      %v2518 = vsel %vm2465, %v2432, 0
      %v2521 = vsel %vm2465, %v2433, 0
      %v2524 = vsel %vm2465, %v2434, 0
      %v2527 = vsel %vm2465, %v2435, 0
      %v2530 = vsel %vm2465, %v2436, 0
      %v2533 = vsel %vm2465, %v2437, 0
      %v2536 = vsel %vm2465, %v2438, 0
      %v2539 = vsel %vm2465, %v2439, 0
      %v2542 = vsel %vm2465, %v2440, 0
      %v2545 = vsel %vm2465, %v2441, 0
      %v2548 = vsel %vm2465, %v2442, 0
      %v2551 = vsel %vm2465, %v2443, 0
      %v2554 = vsel %vm2465, %v2444, 0
      %v2557 = vsel %vm2465, %v2445, 0
      %v2560 = vsel %vm2465, %v2446, 0
      %2562 = vmatpush.bf16.msra.mxu0 0
      %2563 = vmatpush.bf16.msra.mxu0 0
      %2564 = vmatpush.bf16.msra.mxu0 0
      %2565 = vmatpush.bf16.msra.mxu0 0
      %2566 = vmatpush.bf16.msra.mxu0 0
      %2567 = vmatpush.bf16.msra.mxu0 0
      %2568 = vmatpush.bf16.msra.mxu0 %v2462
      %2569 = vmatpush.bf16.msra.mxu0 %v2461
      %2570 = vmatmul.bf16.gmra.mxu0 %v2467
      %v2571 = vpop.f32.mrf.mxu0
      %v2572 = vadd.f32 %v2452, %v2571
      %v2573 = vpop.f32.mrf.mxu0
      %v2574 = vadd.f32 %v2452, %v2573
      %2575 = vmatmul.bf16.gmra.mxu0 %v2470
      %v2576 = vpop.f32.mrf.mxu0
      %v2577 = vadd.f32 %v2452, %v2576
      %v2578 = vpop.f32.mrf.mxu0
      %v2579 = vadd.f32 %v2452, %v2578
      %2580 = vmatmul.bf16.gmra.mxu0 %v2473
      %v2581 = vpop.f32.mrf.mxu0
      %v2582 = vadd.f32 %v2452, %v2581
      %v2583 = vpop.f32.mrf.mxu0
      %v2584 = vadd.f32 %v2452, %v2583
      %2585 = vmatmul.bf16.gmra.mxu0 %v2476
      %v2586 = vpop.f32.mrf.mxu0
      %v2587 = vadd.f32 %v2452, %v2586
      %v2588 = vpop.f32.mrf.mxu0
      %v2589 = vadd.f32 %v2452, %v2588
      %2590 = vmatmul.bf16.gmra.mxu0 %v2479
      %v2591 = vpop.f32.mrf.mxu0
      %v2592 = vadd.f32 %v2452, %v2591
      %v2593 = vpop.f32.mrf.mxu0
      %v2594 = vadd.f32 %v2452, %v2593
      %2595 = vmatmul.bf16.gmra.mxu0 %v2482
      %v2596 = vpop.f32.mrf.mxu0
      %v2597 = vadd.f32 %v2452, %v2596
      %v2598 = vpop.f32.mrf.mxu0
      %v2599 = vadd.f32 %v2452, %v2598
      %2600 = vmatmul.bf16.gmra.mxu0 %v2485
      %v2601 = vpop.f32.mrf.mxu0
      %v2602 = vadd.f32 %v2452, %v2601
      %v2603 = vpop.f32.mrf.mxu0
      %v2604 = vadd.f32 %v2452, %v2603
      %2605 = vmatmul.bf16.gmra.mxu0 %v2488
      %v2606 = vpop.f32.mrf.mxu0
      %v2607 = vadd.f32 %v2452, %v2606
      %v2608 = vpop.f32.mrf.mxu0
      %v2609 = vadd.f32 %v2452, %v2608
      %2610 = vmatmul.bf16.gmra.mxu0 %v2491
      %v2611 = vpop.f32.mrf.mxu0
      %v2612 = vadd.f32 %v2452, %v2611
      %v2613 = vpop.f32.mrf.mxu0
      %v2614 = vadd.f32 %v2452, %v2613
      %2615 = vmatmul.bf16.gmra.mxu0 %v2494
      %v2616 = vpop.f32.mrf.mxu0
      %v2617 = vadd.f32 %v2452, %v2616
      %v2618 = vpop.f32.mrf.mxu0
      %v2619 = vadd.f32 %v2452, %v2618
      %2620 = vmatmul.bf16.gmra.mxu0 %v2497
      %v2621 = vpop.f32.mrf.mxu0
      %v2622 = vadd.f32 %v2452, %v2621
      %v2623 = vpop.f32.mrf.mxu0
      %v2624 = vadd.f32 %v2452, %v2623
      %2625 = vmatmul.bf16.gmra.mxu0 %v2500
      %v2626 = vpop.f32.mrf.mxu0
      %v2627 = vadd.f32 %v2452, %v2626
      %v2628 = vpop.f32.mrf.mxu0
      %v2629 = vadd.f32 %v2452, %v2628
      %2630 = vmatmul.bf16.gmra.mxu0 %v2503
      %v2631 = vpop.f32.mrf.mxu0
      %v2632 = vadd.f32 %v2452, %v2631
      %v2633 = vpop.f32.mrf.mxu0
      %v2634 = vadd.f32 %v2452, %v2633
      %2635 = vmatmul.bf16.gmra.mxu0 %v2506
      %v2636 = vpop.f32.mrf.mxu0
      %v2637 = vadd.f32 %v2452, %v2636
      %v2638 = vpop.f32.mrf.mxu0
      %v2639 = vadd.f32 %v2452, %v2638
      %2640 = vmatmul.bf16.gmra.mxu0 %v2509
      %v2641 = vpop.f32.mrf.mxu0
      %v2642 = vadd.f32 %v2452, %v2641
      %v2643 = vpop.f32.mrf.mxu0
      %v2644 = vadd.f32 %v2452, %v2643
      %2645 = vmatmul.bf16.gmra.mxu0 %v2512
      %v2646 = vpop.f32.mrf.mxu0
      %v2647 = vadd.f32 %v2452, %v2646
      %v2648 = vpop.f32.mrf.mxu0
      %v2649 = vadd.f32 %v2452, %v2648
      %2650 = vmatmul.bf16.gmra.mxu0 %v2515
      %v2651 = vpop.f32.mrf.mxu0
      %v2652 = vadd.f32 %v2452, %v2651
      %v2653 = vpop.f32.mrf.mxu0
      %v2654 = vadd.f32 %v2452, %v2653
      %2655 = vmatmul.bf16.gmra.mxu0 %v2518
      %v2656 = vpop.f32.mrf.mxu0
      %v2657 = vadd.f32 %v2452, %v2656
      %v2658 = vpop.f32.mrf.mxu0
      %v2659 = vadd.f32 %v2452, %v2658
      %2660 = vmatmul.bf16.gmra.mxu0 %v2521
      %v2661 = vpop.f32.mrf.mxu0
      %v2662 = vadd.f32 %v2452, %v2661
      %v2663 = vpop.f32.mrf.mxu0
      %v2664 = vadd.f32 %v2452, %v2663
      %2665 = vmatmul.bf16.gmra.mxu0 %v2524
      %v2666 = vpop.f32.mrf.mxu0
      %v2667 = vadd.f32 %v2452, %v2666
      %v2668 = vpop.f32.mrf.mxu0
      %v2669 = vadd.f32 %v2452, %v2668
      %2670 = vmatmul.bf16.gmra.mxu0 %v2527
      %v2671 = vpop.f32.mrf.mxu0
      %v2672 = vadd.f32 %v2452, %v2671
      %v2673 = vpop.f32.mrf.mxu0
      %v2674 = vadd.f32 %v2452, %v2673
      %2675 = vmatmul.bf16.gmra.mxu0 %v2530
      %v2676 = vpop.f32.mrf.mxu0
      %v2677 = vadd.f32 %v2452, %v2676
      %v2678 = vpop.f32.mrf.mxu0
      %v2679 = vadd.f32 %v2452, %v2678
      %2680 = vmatmul.bf16.gmra.mxu0 %v2533
      %v2681 = vpop.f32.mrf.mxu0
      %v2682 = vadd.f32 %v2452, %v2681
      %v2683 = vpop.f32.mrf.mxu0
      %v2684 = vadd.f32 %v2452, %v2683
      %2685 = vmatmul.bf16.gmra.mxu0 %v2536
      %v2686 = vpop.f32.mrf.mxu0
      %v2687 = vadd.f32 %v2452, %v2686
      %v2688 = vpop.f32.mrf.mxu0
      %v2689 = vadd.f32 %v2452, %v2688
      %2690 = vmatmul.bf16.gmra.mxu0 %v2539
      %v2691 = vpop.f32.mrf.mxu0
      %v2692 = vadd.f32 %v2452, %v2691
      %v2693 = vpop.f32.mrf.mxu0
      %v2694 = vadd.f32 %v2452, %v2693
      %2695 = vmatmul.bf16.gmra.mxu0 %v2542
      %v2696 = vpop.f32.mrf.mxu0
      %v2697 = vadd.f32 %v2452, %v2696
      %v2698 = vpop.f32.mrf.mxu0
      %v2699 = vadd.f32 %v2452, %v2698
      %2700 = vmatmul.bf16.gmra.mxu0 %v2545
      %v2701 = vpop.f32.mrf.mxu0
      %v2702 = vadd.f32 %v2452, %v2701
      %v2703 = vpop.f32.mrf.mxu0
      %v2704 = vadd.f32 %v2452, %v2703
      %2705 = vmatmul.bf16.gmra.mxu0 %v2548
      %v2706 = vpop.f32.mrf.mxu0
      %v2707 = vadd.f32 %v2452, %v2706
      %v2708 = vpop.f32.mrf.mxu0
      %v2709 = vadd.f32 %v2452, %v2708
      %2710 = vmatmul.bf16.gmra.mxu0 %v2551
      %v2711 = vpop.f32.mrf.mxu0
      %v2712 = vadd.f32 %v2452, %v2711
      %v2713 = vpop.f32.mrf.mxu0
      %v2714 = vadd.f32 %v2452, %v2713
      %2715 = vmatmul.bf16.gmra.mxu0 %v2554
      %v2716 = vpop.f32.mrf.mxu0
      %v2717 = vadd.f32 %v2452, %v2716
      %v2718 = vpop.f32.mrf.mxu0
      %v2719 = vadd.f32 %v2452, %v2718
      %2720 = vmatmul.bf16.gmra.mxu0 %v2557
      %v2721 = vpop.f32.mrf.mxu0
      %v2722 = vadd.f32 %v2452, %v2721
      %v2723 = vpop.f32.mrf.mxu0
      %v2724 = vadd.f32 %v2452, %v2723
      %2725 = vmatmul.bf16.gmra.mxu0 %v2560
      %v2726 = vpop.f32.mrf.mxu0
      %v2727 = vadd.f32 %v2452, %v2726
      %v2728 = vpop.f32.mrf.mxu0
      %v2729 = vadd.f32 %v2452, %v2728
      %2730 = vdwg.mxu0
      %v2731 = vmul.f32 %v2572, 0.2
      %v2732 = vmul.f32 %v2574, 0.2
      %v2733 = vmul.f32 %v2577, 0.2
      %v2734 = vmul.f32 %v2579, 0.2
      %v2735 = vmul.f32 %v2582, 0.2
      %v2736 = vmul.f32 %v2584, 0.2
      %v2737 = vmul.f32 %v2587, 0.2
      %v2738 = vmul.f32 %v2589, 0.2
      %v2739 = vmul.f32 %v2592, 0.2
      %v2740 = vmul.f32 %v2594, 0.2
      %v2741 = vmul.f32 %v2597, 0.2
      %v2742 = vmul.f32 %v2599, 0.2
      %v2743 = vmul.f32 %v2602, 0.2
      %v2744 = vmul.f32 %v2604, 0.2
      %v2745 = vmul.f32 %v2607, 0.2
      %v2746 = vmul.f32 %v2609, 0.2
      %v2747 = vmul.f32 %v2612, 0.2
      %v2748 = vmul.f32 %v2614, 0.2
      %v2749 = vmul.f32 %v2617, 0.2
      %v2750 = vmul.f32 %v2619, 0.2
      %v2751 = vmul.f32 %v2622, 0.2
      %v2752 = vmul.f32 %v2624, 0.2
      %v2753 = vmul.f32 %v2627, 0.2
      %v2754 = vmul.f32 %v2629, 0.2
      %v2755 = vmul.f32 %v2632, 0.2
      %v2756 = vmul.f32 %v2634, 0.2
      %v2757 = vmul.f32 %v2637, 0.2
      %v2758 = vmul.f32 %v2639, 0.2
      %v2759 = vmul.f32 %v2642, 0.2
      %v2760 = vmul.f32 %v2644, 0.2
      %v2761 = vmul.f32 %v2647, 0.2
      %v2762 = vmul.f32 %v2649, 0.2
      %v2763 = vmul.f32 %v2652, 0.2
      %v2764 = vmul.f32 %v2654, 0.2
      %v2765 = vmul.f32 %v2657, 0.2
      %v2766 = vmul.f32 %v2659, 0.2
      %v2767 = vmul.f32 %v2662, 0.2
      %v2768 = vmul.f32 %v2664, 0.2
      %v2769 = vmul.f32 %v2667, 0.2
      %v2770 = vmul.f32 %v2669, 0.2
      %v2771 = vmul.f32 %v2672, 0.2
      %v2772 = vmul.f32 %v2674, 0.2
      %v2773 = vmul.f32 %v2677, 0.2
      %v2774 = vmul.f32 %v2679, 0.2
      %v2775 = vmul.f32 %v2682, 0.2
      %v2776 = vmul.f32 %v2684, 0.2
      %v2777 = vmul.f32 %v2687, 0.2
      %v2778 = vmul.f32 %v2689, 0.2
      %v2779 = vmul.f32 %v2692, 0.2
      %v2780 = vmul.f32 %v2694, 0.2
      %v2781 = vmul.f32 %v2697, 0.2
      %v2782 = vmul.f32 %v2699, 0.2
      %v2783 = vmul.f32 %v2702, 0.2
      %v2784 = vmul.f32 %v2704, 0.2
      %v2785 = vmul.f32 %v2707, 0.2
      %v2786 = vmul.f32 %v2709, 0.2
      %v2787 = vmul.f32 %v2712, 0.2
      %v2788 = vmul.f32 %v2714, 0.2
      %v2789 = vmul.f32 %v2717, 0.2
      %v2790 = vmul.f32 %v2719, 0.2
      %v2791 = vmul.f32 %v2722, 0.2
      %v2792 = vmul.f32 %v2724, 0.2
      %v2793 = vmul.f32 %v2727, 0.2
      %v2794 = vmul.f32 %v2729, 0.2
      %v2795 = vmax.f32 %v2572, %v2731
      %v2796 = vmax.f32 %v2574, %v2732
      %v2797 = vmax.f32 %v2577, %v2733
      %v2798 = vmax.f32 %v2579, %v2734
      %v2799 = vmax.f32 %v2582, %v2735
      %v2800 = vmax.f32 %v2584, %v2736
      %v2801 = vmax.f32 %v2587, %v2737
      %v2802 = vmax.f32 %v2589, %v2738
      %v2803 = vmax.f32 %v2592, %v2739
      %v2804 = vmax.f32 %v2594, %v2740
      %v2805 = vmax.f32 %v2597, %v2741
      %v2806 = vmax.f32 %v2599, %v2742
      %v2807 = vmax.f32 %v2602, %v2743
      %v2808 = vmax.f32 %v2604, %v2744
      %v2809 = vmax.f32 %v2607, %v2745
      %v2810 = vmax.f32 %v2609, %v2746
      %v2811 = vmax.f32 %v2612, %v2747
      %v2812 = vmax.f32 %v2614, %v2748
      %v2813 = vmax.f32 %v2617, %v2749
      %v2814 = vmax.f32 %v2619, %v2750
      %v2815 = vmax.f32 %v2622, %v2751
      %v2816 = vmax.f32 %v2624, %v2752
      %v2817 = vmax.f32 %v2627, %v2753
      %v2818 = vmax.f32 %v2629, %v2754
      %v2819 = vmax.f32 %v2632, %v2755
      %v2820 = vmax.f32 %v2634, %v2756
      %v2821 = vmax.f32 %v2637, %v2757
      %v2822 = vmax.f32 %v2639, %v2758
      %v2823 = vmax.f32 %v2642, %v2759
      %v2824 = vmax.f32 %v2644, %v2760
      %v2825 = vmax.f32 %v2647, %v2761
      %v2826 = vmax.f32 %v2649, %v2762
      %v2827 = vmax.f32 %v2652, %v2763
      %v2828 = vmax.f32 %v2654, %v2764
      %v2829 = vmax.f32 %v2657, %v2765
      %v2830 = vmax.f32 %v2659, %v2766
      %v2831 = vmax.f32 %v2662, %v2767
      %v2832 = vmax.f32 %v2664, %v2768
      %v2833 = vmax.f32 %v2667, %v2769
      %v2834 = vmax.f32 %v2669, %v2770
      %v2835 = vmax.f32 %v2672, %v2771
      %v2836 = vmax.f32 %v2674, %v2772
      %v2837 = vmax.f32 %v2677, %v2773
      %v2838 = vmax.f32 %v2679, %v2774
      %v2839 = vmax.f32 %v2682, %v2775
      %v2840 = vmax.f32 %v2684, %v2776
      %v2841 = vmax.f32 %v2687, %v2777
      %v2842 = vmax.f32 %v2689, %v2778
      %v2843 = vmax.f32 %v2692, %v2779
      %v2844 = vmax.f32 %v2694, %v2780
      %v2845 = vmax.f32 %v2697, %v2781
      %v2846 = vmax.f32 %v2699, %v2782
      %v2847 = vmax.f32 %v2702, %v2783
      %v2848 = vmax.f32 %v2704, %v2784
      %v2849 = vmax.f32 %v2707, %v2785
      %v2850 = vmax.f32 %v2709, %v2786
      %v2851 = vmax.f32 %v2712, %v2787
      %v2852 = vmax.f32 %v2714, %v2788
      %v2853 = vmax.f32 %v2717, %v2789
      %v2854 = vmax.f32 %v2719, %v2790
      %v2855 = vmax.f32 %v2722, %v2791
      %v2856 = vmax.f32 %v2724, %v2792
      %v2857 = vmax.f32 %v2727, %v2793
      %v2858 = vmax.f32 %v2729, %v2794
      %v2859 = vpack.c.bf16 %v2796, %v2795
      %v2860 = vpack.c.bf16 %v2798, %v2797
      %v2861 = vpack.c.bf16 %v2800, %v2799
      %v2862 = vpack.c.bf16 %v2802, %v2801
      %v2863 = vpack.c.bf16 %v2804, %v2803
      %v2864 = vpack.c.bf16 %v2806, %v2805
      %v2865 = vpack.c.bf16 %v2808, %v2807
      %v2866 = vpack.c.bf16 %v2810, %v2809
      %v2867 = vpack.c.bf16 %v2812, %v2811
      %v2868 = vpack.c.bf16 %v2814, %v2813
      %v2869 = vpack.c.bf16 %v2816, %v2815
      %v2870 = vpack.c.bf16 %v2818, %v2817
      %v2871 = vpack.c.bf16 %v2820, %v2819
      %v2872 = vpack.c.bf16 %v2822, %v2821
      %v2873 = vpack.c.bf16 %v2824, %v2823
      %v2874 = vpack.c.bf16 %v2826, %v2825
      %v2875 = vpack.c.bf16 %v2828, %v2827
      %v2876 = vpack.c.bf16 %v2830, %v2829
      %v2877 = vpack.c.bf16 %v2832, %v2831
      %v2878 = vpack.c.bf16 %v2834, %v2833
      %v2879 = vpack.c.bf16 %v2836, %v2835
      %v2880 = vpack.c.bf16 %v2838, %v2837
      %v2881 = vpack.c.bf16 %v2840, %v2839
      %v2882 = vpack.c.bf16 %v2842, %v2841
      %v2883 = vpack.c.bf16 %v2844, %v2843
      %v2884 = vpack.c.bf16 %v2846, %v2845
      %v2885 = vpack.c.bf16 %v2848, %v2847
      %v2886 = vpack.c.bf16 %v2850, %v2849
      %v2887 = vpack.c.bf16 %v2852, %v2851
      %v2888 = vpack.c.bf16 %v2854, %v2853
      %v2889 = vpack.c.bf16 %v2856, %v2855
      %v2890 = vpack.c.bf16 %v2858, %v2857
      %v2891 = vld [vmem:[%s330 + $0x38] sm:$0xf]
      %v2892 = vld [vmem:[%s330 + $0x3c] sm:$0xf]
      %v2893 = vld [vmem:[%s330 + $0x40] sm:$0xf]
      %v2894 = vld [vmem:[%s330 + $0x44] sm:$0xf]
      %v2895 = vld [vmem:[%s334 + $0x2] sm:$0x1]
      %v2896 = vperm.slane %v2895, 0
      %v2901 = vunpack.c.l.b16 %v2891
      %v2902 = vunpack.c.l.b16 %v2892
      %v2903 = vunpack.c.l.b16 %v2893
      %v2904 = vunpack.c.l.b16 %v2894
      %v2905 = vpack.c.b16 %v2902, %v2901
      %v2906 = vpack.c.b16 %v2904, %v2903
      %v2910 = vsel %vm2465, %v2859, 0
      %v2913 = vsel %vm2465, %v2860, 0
      %v2916 = vsel %vm2465, %v2861, 0
      %v2919 = vsel %vm2465, %v2862, 0
      %v2922 = vsel %vm2465, %v2863, 0
      %v2925 = vsel %vm2465, %v2864, 0
      %v2928 = vsel %vm2465, %v2865, 0
      %v2931 = vsel %vm2465, %v2866, 0
      %v2934 = vsel %vm2465, %v2867, 0
      %v2937 = vsel %vm2465, %v2868, 0
      %v2940 = vsel %vm2465, %v2869, 0
      %v2943 = vsel %vm2465, %v2870, 0
      %v2946 = vsel %vm2465, %v2871, 0
      %v2949 = vsel %vm2465, %v2872, 0
      %v2952 = vsel %vm2465, %v2873, 0
      %v2955 = vsel %vm2465, %v2874, 0
      %v2958 = vsel %vm2465, %v2875, 0
      %v2961 = vsel %vm2465, %v2876, 0
      %v2964 = vsel %vm2465, %v2877, 0
      %v2967 = vsel %vm2465, %v2878, 0
      %v2970 = vsel %vm2465, %v2879, 0
      %v2973 = vsel %vm2465, %v2880, 0
      %v2976 = vsel %vm2465, %v2881, 0
      %v2979 = vsel %vm2465, %v2882, 0
      %v2982 = vsel %vm2465, %v2883, 0
      %v2985 = vsel %vm2465, %v2884, 0
      %v2988 = vsel %vm2465, %v2885, 0
      %v2991 = vsel %vm2465, %v2886, 0
      %v2994 = vsel %vm2465, %v2887, 0
      %v2997 = vsel %vm2465, %v2888, 0
      %v3000 = vsel %vm2465, %v2889, 0
      %v3003 = vsel %vm2465, %v2890, 0
      %3005 = vmatpush.bf16.msra.mxu0 0
      %3006 = vmatpush.bf16.msra.mxu0 0
      %3007 = vmatpush.bf16.msra.mxu0 0
      %3008 = vmatpush.bf16.msra.mxu0 0
      %3009 = vmatpush.bf16.msra.mxu0 0
      %3010 = vmatpush.bf16.msra.mxu0 0
      %3011 = vmatpush.bf16.msra.mxu0 %v2906
      %3012 = vmatpush.bf16.msra.mxu0 %v2905
      %3013 = vmatmul.bf16.gmra.mxu0 %v2910
      %v3014 = vpop.f32.mrf.mxu0
      %v3015 = vadd.f32 %v2896, %v3014
      %v3016 = vpop.f32.mrf.mxu0
      %v3017 = vadd.f32 %v2896, %v3016
      %3018 = vmatmul.bf16.gmra.mxu0 %v2913
      %v3019 = vpop.f32.mrf.mxu0
      %v3020 = vadd.f32 %v2896, %v3019
      %v3021 = vpop.f32.mrf.mxu0
      %v3022 = vadd.f32 %v2896, %v3021
      %3023 = vmatmul.bf16.gmra.mxu0 %v2916
      %v3024 = vpop.f32.mrf.mxu0
      %v3025 = vadd.f32 %v2896, %v3024
      %v3026 = vpop.f32.mrf.mxu0
      %v3027 = vadd.f32 %v2896, %v3026
      %3028 = vmatmul.bf16.gmra.mxu0 %v2919
      %v3029 = vpop.f32.mrf.mxu0
      %v3030 = vadd.f32 %v2896, %v3029
      %v3031 = vpop.f32.mrf.mxu0
      %v3032 = vadd.f32 %v2896, %v3031
      %3033 = vmatmul.bf16.gmra.mxu0 %v2922
      %v3034 = vpop.f32.mrf.mxu0
      %v3035 = vadd.f32 %v2896, %v3034
      %v3036 = vpop.f32.mrf.mxu0
      %v3037 = vadd.f32 %v2896, %v3036
      %3038 = vmatmul.bf16.gmra.mxu0 %v2925
      %v3039 = vpop.f32.mrf.mxu0
      %v3040 = vadd.f32 %v2896, %v3039
      %v3041 = vpop.f32.mrf.mxu0
      %v3042 = vadd.f32 %v2896, %v3041
      %3043 = vmatmul.bf16.gmra.mxu0 %v2928
      %v3044 = vpop.f32.mrf.mxu0
      %v3045 = vadd.f32 %v2896, %v3044
      %v3046 = vpop.f32.mrf.mxu0
      %v3047 = vadd.f32 %v2896, %v3046
      %3048 = vmatmul.bf16.gmra.mxu0 %v2931
      %v3049 = vpop.f32.mrf.mxu0
      %v3050 = vadd.f32 %v2896, %v3049
      %v3051 = vpop.f32.mrf.mxu0
      %v3052 = vadd.f32 %v2896, %v3051
      %3053 = vmatmul.bf16.gmra.mxu0 %v2934
      %v3054 = vpop.f32.mrf.mxu0
      %v3055 = vadd.f32 %v2896, %v3054
      %v3056 = vpop.f32.mrf.mxu0
      %v3057 = vadd.f32 %v2896, %v3056
      %3058 = vmatmul.bf16.gmra.mxu0 %v2937
      %v3059 = vpop.f32.mrf.mxu0
      %v3060 = vadd.f32 %v2896, %v3059
      %v3061 = vpop.f32.mrf.mxu0
      %v3062 = vadd.f32 %v2896, %v3061
      %3063 = vmatmul.bf16.gmra.mxu0 %v2940
      %v3064 = vpop.f32.mrf.mxu0
      %v3065 = vadd.f32 %v2896, %v3064
      %v3066 = vpop.f32.mrf.mxu0
      %v3067 = vadd.f32 %v2896, %v3066
      %3068 = vmatmul.bf16.gmra.mxu0 %v2943
      %v3069 = vpop.f32.mrf.mxu0
      %v3070 = vadd.f32 %v2896, %v3069
      %v3071 = vpop.f32.mrf.mxu0
      %v3072 = vadd.f32 %v2896, %v3071
      %3073 = vmatmul.bf16.gmra.mxu0 %v2946
      %v3074 = vpop.f32.mrf.mxu0
      %v3075 = vadd.f32 %v2896, %v3074
      %v3076 = vpop.f32.mrf.mxu0
      %v3077 = vadd.f32 %v2896, %v3076
      %3078 = vmatmul.bf16.gmra.mxu0 %v2949
      %v3079 = vpop.f32.mrf.mxu0
      %v3080 = vadd.f32 %v2896, %v3079
      %v3081 = vpop.f32.mrf.mxu0
      %v3082 = vadd.f32 %v2896, %v3081
      %3083 = vmatmul.bf16.gmra.mxu0 %v2952
      %v3084 = vpop.f32.mrf.mxu0
      %v3085 = vadd.f32 %v2896, %v3084
      %v3086 = vpop.f32.mrf.mxu0
      %v3087 = vadd.f32 %v2896, %v3086
      %3088 = vmatmul.bf16.gmra.mxu0 %v2955
      %v3089 = vpop.f32.mrf.mxu0
      %v3090 = vadd.f32 %v2896, %v3089
      %v3091 = vpop.f32.mrf.mxu0
      %v3092 = vadd.f32 %v2896, %v3091
      %3093 = vmatmul.bf16.gmra.mxu0 %v2958
      %v3094 = vpop.f32.mrf.mxu0
      %v3095 = vadd.f32 %v2896, %v3094
      %v3096 = vpop.f32.mrf.mxu0
      %v3097 = vadd.f32 %v2896, %v3096
      %3098 = vmatmul.bf16.gmra.mxu0 %v2961
      %v3099 = vpop.f32.mrf.mxu0
      %v3100 = vadd.f32 %v2896, %v3099
      %v3101 = vpop.f32.mrf.mxu0
      %v3102 = vadd.f32 %v2896, %v3101
      %3103 = vmatmul.bf16.gmra.mxu0 %v2964
      %v3104 = vpop.f32.mrf.mxu0
      %v3105 = vadd.f32 %v2896, %v3104
      %v3106 = vpop.f32.mrf.mxu0
      %v3107 = vadd.f32 %v2896, %v3106
      %3108 = vmatmul.bf16.gmra.mxu0 %v2967
      %v3109 = vpop.f32.mrf.mxu0
      %v3110 = vadd.f32 %v2896, %v3109
      %v3111 = vpop.f32.mrf.mxu0
      %v3112 = vadd.f32 %v2896, %v3111
      %3113 = vmatmul.bf16.gmra.mxu0 %v2970
      %v3114 = vpop.f32.mrf.mxu0
      %v3115 = vadd.f32 %v2896, %v3114
      %v3116 = vpop.f32.mrf.mxu0
      %v3117 = vadd.f32 %v2896, %v3116
      %3118 = vmatmul.bf16.gmra.mxu0 %v2973
      %v3119 = vpop.f32.mrf.mxu0
      %v3120 = vadd.f32 %v2896, %v3119
      %v3121 = vpop.f32.mrf.mxu0
      %v3122 = vadd.f32 %v2896, %v3121
      %3123 = vmatmul.bf16.gmra.mxu0 %v2976
      %v3124 = vpop.f32.mrf.mxu0
      %v3125 = vadd.f32 %v2896, %v3124
      %v3126 = vpop.f32.mrf.mxu0
      %v3127 = vadd.f32 %v2896, %v3126
      %3128 = vmatmul.bf16.gmra.mxu0 %v2979
      %v3129 = vpop.f32.mrf.mxu0
      %v3130 = vadd.f32 %v2896, %v3129
      %v3131 = vpop.f32.mrf.mxu0
      %v3132 = vadd.f32 %v2896, %v3131
      %3133 = vmatmul.bf16.gmra.mxu0 %v2982
      %v3134 = vpop.f32.mrf.mxu0
      %v3135 = vadd.f32 %v2896, %v3134
      %v3136 = vpop.f32.mrf.mxu0
      %v3137 = vadd.f32 %v2896, %v3136
      %3138 = vmatmul.bf16.gmra.mxu0 %v2985
      %v3139 = vpop.f32.mrf.mxu0
      %v3140 = vadd.f32 %v2896, %v3139
      %v3141 = vpop.f32.mrf.mxu0
      %v3142 = vadd.f32 %v2896, %v3141
      %3143 = vmatmul.bf16.gmra.mxu0 %v2988
      %v3144 = vpop.f32.mrf.mxu0
      %v3145 = vadd.f32 %v2896, %v3144
      %v3146 = vpop.f32.mrf.mxu0
      %v3147 = vadd.f32 %v2896, %v3146
      %3148 = vmatmul.bf16.gmra.mxu0 %v2991
      %v3149 = vpop.f32.mrf.mxu0
      %v3150 = vadd.f32 %v2896, %v3149
      %v3151 = vpop.f32.mrf.mxu0
      %v3152 = vadd.f32 %v2896, %v3151
      %3153 = vmatmul.bf16.gmra.mxu0 %v2994
      %v3154 = vpop.f32.mrf.mxu0
      %v3155 = vadd.f32 %v2896, %v3154
      %v3156 = vpop.f32.mrf.mxu0
      %v3157 = vadd.f32 %v2896, %v3156
      %3158 = vmatmul.bf16.gmra.mxu0 %v2997
      %v3159 = vpop.f32.mrf.mxu0
      %v3160 = vadd.f32 %v2896, %v3159
      %v3161 = vpop.f32.mrf.mxu0
      %v3162 = vadd.f32 %v2896, %v3161
      %3163 = vmatmul.bf16.gmra.mxu0 %v3000
      %v3164 = vpop.f32.mrf.mxu0
      %v3165 = vadd.f32 %v2896, %v3164
      %v3166 = vpop.f32.mrf.mxu0
      %v3167 = vadd.f32 %v2896, %v3166
      %3168 = vmatmul.bf16.gmra.mxu0 %v3003
      %v3169 = vpop.f32.mrf.mxu0
      %v3170 = vadd.f32 %v2896, %v3169
      %v3171 = vpop.f32.mrf.mxu0
      %v3172 = vadd.f32 %v2896, %v3171
      %3173 = vdwg.mxu0
      %v3174 = vmul.f32 %v3015, 0.2
      %v3175 = vmul.f32 %v3017, 0.2
      %v3176 = vmul.f32 %v3020, 0.2
      %v3177 = vmul.f32 %v3022, 0.2
      %v3178 = vmul.f32 %v3025, 0.2
      %v3179 = vmul.f32 %v3027, 0.2
      %v3180 = vmul.f32 %v3030, 0.2
      %v3181 = vmul.f32 %v3032, 0.2
      %v3182 = vmul.f32 %v3035, 0.2
      %v3183 = vmul.f32 %v3037, 0.2
      %v3184 = vmul.f32 %v3040, 0.2
      %v3185 = vmul.f32 %v3042, 0.2
      %v3186 = vmul.f32 %v3045, 0.2
      %v3187 = vmul.f32 %v3047, 0.2
      %v3188 = vmul.f32 %v3050, 0.2
      %v3189 = vmul.f32 %v3052, 0.2
      %v3190 = vmul.f32 %v3055, 0.2
      %v3191 = vmul.f32 %v3057, 0.2
      %v3192 = vmul.f32 %v3060, 0.2
      %v3193 = vmul.f32 %v3062, 0.2
      %v3194 = vmul.f32 %v3065, 0.2
      %v3195 = vmul.f32 %v3067, 0.2
      %v3196 = vmul.f32 %v3070, 0.2
      %v3197 = vmul.f32 %v3072, 0.2
      %v3198 = vmul.f32 %v3075, 0.2
      %v3199 = vmul.f32 %v3077, 0.2
      %v3200 = vmul.f32 %v3080, 0.2
      %v3201 = vmul.f32 %v3082, 0.2
      %v3202 = vmul.f32 %v3085, 0.2
      %v3203 = vmul.f32 %v3087, 0.2
      %v3204 = vmul.f32 %v3090, 0.2
      %v3205 = vmul.f32 %v3092, 0.2
      %v3206 = vmul.f32 %v3095, 0.2
      %v3207 = vmul.f32 %v3097, 0.2
      %v3208 = vmul.f32 %v3100, 0.2
      %v3209 = vmul.f32 %v3102, 0.2
      %v3210 = vmul.f32 %v3105, 0.2
      %v3211 = vmul.f32 %v3107, 0.2
      %v3212 = vmul.f32 %v3110, 0.2
      %v3213 = vmul.f32 %v3112, 0.2
      %v3214 = vmul.f32 %v3115, 0.2
      %v3215 = vmul.f32 %v3117, 0.2
      %v3216 = vmul.f32 %v3120, 0.2
      %v3217 = vmul.f32 %v3122, 0.2
      %v3218 = vmul.f32 %v3125, 0.2
      %v3219 = vmul.f32 %v3127, 0.2
      %v3220 = vmul.f32 %v3130, 0.2
      %v3221 = vmul.f32 %v3132, 0.2
      %v3222 = vmul.f32 %v3135, 0.2
      %v3223 = vmul.f32 %v3137, 0.2
      %v3224 = vmul.f32 %v3140, 0.2
      %v3225 = vmul.f32 %v3142, 0.2
      %v3226 = vmul.f32 %v3145, 0.2
      %v3227 = vmul.f32 %v3147, 0.2
      %v3228 = vmul.f32 %v3150, 0.2
      %v3229 = vmul.f32 %v3152, 0.2
      %v3230 = vmul.f32 %v3155, 0.2
      %v3231 = vmul.f32 %v3157, 0.2
      %v3232 = vmul.f32 %v3160, 0.2
      %v3233 = vmul.f32 %v3162, 0.2
      %v3234 = vmul.f32 %v3165, 0.2
      %v3235 = vmul.f32 %v3167, 0.2
      %v3236 = vmul.f32 %v3170, 0.2
      %v3237 = vmul.f32 %v3172, 0.2
      %v3238 = vmax.f32 %v3015, %v3174
      %v3239 = vmax.f32 %v3017, %v3175
      %v3240 = vmax.f32 %v3020, %v3176
      %v3241 = vmax.f32 %v3022, %v3177
      %v3242 = vmax.f32 %v3025, %v3178
      %v3243 = vmax.f32 %v3027, %v3179
      %v3244 = vmax.f32 %v3030, %v3180
      %v3245 = vmax.f32 %v3032, %v3181
      %v3246 = vmax.f32 %v3035, %v3182
      %v3247 = vmax.f32 %v3037, %v3183
      %v3248 = vmax.f32 %v3040, %v3184
      %v3249 = vmax.f32 %v3042, %v3185
      %v3250 = vmax.f32 %v3045, %v3186
      %v3251 = vmax.f32 %v3047, %v3187
      %v3252 = vmax.f32 %v3050, %v3188
      %v3253 = vmax.f32 %v3052, %v3189
      %v3254 = vmax.f32 %v3055, %v3190
      %v3255 = vmax.f32 %v3057, %v3191
      %v3256 = vmax.f32 %v3060, %v3192
      %v3257 = vmax.f32 %v3062, %v3193
      %v3258 = vmax.f32 %v3065, %v3194
      %v3259 = vmax.f32 %v3067, %v3195
      %v3260 = vmax.f32 %v3070, %v3196
      %v3261 = vmax.f32 %v3072, %v3197
      %v3262 = vmax.f32 %v3075, %v3198
      %v3263 = vmax.f32 %v3077, %v3199
      %v3264 = vmax.f32 %v3080, %v3200
      %v3265 = vmax.f32 %v3082, %v3201
      %v3266 = vmax.f32 %v3085, %v3202
      %v3267 = vmax.f32 %v3087, %v3203
      %v3268 = vmax.f32 %v3090, %v3204
      %v3269 = vmax.f32 %v3092, %v3205
      %v3270 = vmax.f32 %v3095, %v3206
      %v3271 = vmax.f32 %v3097, %v3207
      %v3272 = vmax.f32 %v3100, %v3208
      %v3273 = vmax.f32 %v3102, %v3209
      %v3274 = vmax.f32 %v3105, %v3210
      %v3275 = vmax.f32 %v3107, %v3211
      %v3276 = vmax.f32 %v3110, %v3212
      %v3277 = vmax.f32 %v3112, %v3213
      %v3278 = vmax.f32 %v3115, %v3214
      %v3279 = vmax.f32 %v3117, %v3215
      %v3280 = vmax.f32 %v3120, %v3216
      %v3281 = vmax.f32 %v3122, %v3217
      %v3282 = vmax.f32 %v3125, %v3218
      %v3283 = vmax.f32 %v3127, %v3219
      %v3284 = vmax.f32 %v3130, %v3220
      %v3285 = vmax.f32 %v3132, %v3221
      %v3286 = vmax.f32 %v3135, %v3222
      %v3287 = vmax.f32 %v3137, %v3223
      %v3288 = vmax.f32 %v3140, %v3224
      %v3289 = vmax.f32 %v3142, %v3225
      %v3290 = vmax.f32 %v3145, %v3226
      %v3291 = vmax.f32 %v3147, %v3227
      %v3292 = vmax.f32 %v3150, %v3228
      %v3293 = vmax.f32 %v3152, %v3229
      %v3294 = vmax.f32 %v3155, %v3230
      %v3295 = vmax.f32 %v3157, %v3231
      %v3296 = vmax.f32 %v3160, %v3232
      %v3297 = vmax.f32 %v3162, %v3233
      %v3298 = vmax.f32 %v3165, %v3234
      %v3299 = vmax.f32 %v3167, %v3235
      %v3300 = vmax.f32 %v3170, %v3236
      %v3301 = vmax.f32 %v3172, %v3237
      %v3302 = vpack.c.bf16 %v3239, %v3238
      %v3303 = vpack.c.bf16 %v3241, %v3240
      %v3304 = vpack.c.bf16 %v3243, %v3242
      %v3305 = vpack.c.bf16 %v3245, %v3244
      %v3306 = vpack.c.bf16 %v3247, %v3246
      %v3307 = vpack.c.bf16 %v3249, %v3248
      %v3308 = vpack.c.bf16 %v3251, %v3250
      %v3309 = vpack.c.bf16 %v3253, %v3252
      %v3310 = vpack.c.bf16 %v3255, %v3254
      %v3311 = vpack.c.bf16 %v3257, %v3256
      %v3312 = vpack.c.bf16 %v3259, %v3258
      %v3313 = vpack.c.bf16 %v3261, %v3260
      %v3314 = vpack.c.bf16 %v3263, %v3262
      %v3315 = vpack.c.bf16 %v3265, %v3264
      %v3316 = vpack.c.bf16 %v3267, %v3266
      %v3317 = vpack.c.bf16 %v3269, %v3268
      %v3318 = vpack.c.bf16 %v3271, %v3270
      %v3319 = vpack.c.bf16 %v3273, %v3272
      %v3320 = vpack.c.bf16 %v3275, %v3274
      %v3321 = vpack.c.bf16 %v3277, %v3276
      %v3322 = vpack.c.bf16 %v3279, %v3278
      %v3323 = vpack.c.bf16 %v3281, %v3280
      %v3324 = vpack.c.bf16 %v3283, %v3282
      %v3325 = vpack.c.bf16 %v3285, %v3284
      %v3326 = vpack.c.bf16 %v3287, %v3286
      %v3327 = vpack.c.bf16 %v3289, %v3288
      %v3328 = vpack.c.bf16 %v3291, %v3290
      %v3329 = vpack.c.bf16 %v3293, %v3292
      %v3330 = vpack.c.bf16 %v3295, %v3294
      %v3331 = vpack.c.bf16 %v3297, %v3296
      %v3332 = vpack.c.bf16 %v3299, %v3298
      %v3333 = vpack.c.bf16 %v3301, %v3300
      %v3334 = vld [vmem:[%s330 + $0x48] sm:$0xf]
      %v3335 = vld [vmem:[%s330 + $0x4c] sm:$0xf]
      %v3336 = vld [vmem:[%s330 + $0x50] sm:$0xf]
      %v3337 = vld [vmem:[%s330 + $0x54] sm:$0xf]
      %v3338 = vld [vmem:[%s334 + $0x3] sm:$0x1]
      %v3339 = vperm.slane %v3338, 0
      %v3344 = vunpack.c.l.b16 %v3334
      %v3345 = vunpack.c.l.b16 %v3335
      %v3346 = vunpack.c.l.b16 %v3336
      %v3347 = vunpack.c.l.b16 %v3337
      %v3348 = vpack.c.b16 %v3345, %v3344
      %v3349 = vpack.c.b16 %v3347, %v3346
      %v3353 = vsel %vm2465, %v3302, 0
      %v3356 = vsel %vm2465, %v3303, 0
      %v3359 = vsel %vm2465, %v3304, 0
      %v3362 = vsel %vm2465, %v3305, 0
      %v3365 = vsel %vm2465, %v3306, 0
      %v3368 = vsel %vm2465, %v3307, 0
      %v3371 = vsel %vm2465, %v3308, 0
      %v3374 = vsel %vm2465, %v3309, 0
      %v3377 = vsel %vm2465, %v3310, 0
      %v3380 = vsel %vm2465, %v3311, 0
      %v3383 = vsel %vm2465, %v3312, 0
      %v3386 = vsel %vm2465, %v3313, 0
      %v3389 = vsel %vm2465, %v3314, 0
      %v3392 = vsel %vm2465, %v3315, 0
      %v3395 = vsel %vm2465, %v3316, 0
      %v3398 = vsel %vm2465, %v3317, 0
      %v3401 = vsel %vm2465, %v3318, 0
      %v3404 = vsel %vm2465, %v3319, 0
      %v3407 = vsel %vm2465, %v3320, 0
      %v3410 = vsel %vm2465, %v3321, 0
      %v3413 = vsel %vm2465, %v3322, 0
      %v3416 = vsel %vm2465, %v3323, 0
      %v3419 = vsel %vm2465, %v3324, 0
      %v3422 = vsel %vm2465, %v3325, 0
      %v3425 = vsel %vm2465, %v3326, 0
      %v3428 = vsel %vm2465, %v3327, 0
      %v3431 = vsel %vm2465, %v3328, 0
      %v3434 = vsel %vm2465, %v3329, 0
      %v3437 = vsel %vm2465, %v3330, 0
      %v3440 = vsel %vm2465, %v3331, 0
      %v3443 = vsel %vm2465, %v3332, 0
      %v3446 = vsel %vm2465, %v3333, 0
      %3448 = vmatpush.bf16.msra.mxu0 0
      %3449 = vmatpush.bf16.msra.mxu0 0
      %3450 = vmatpush.bf16.msra.mxu0 0
      %3451 = vmatpush.bf16.msra.mxu0 0
      %3452 = vmatpush.bf16.msra.mxu0 0
      %3453 = vmatpush.bf16.msra.mxu0 0
      %3454 = vmatpush.bf16.msra.mxu0 %v3349
      %3455 = vmatpush.bf16.msra.mxu0 %v3348
      %3456 = vmatmul.bf16.gmra.mxu0 %v3353
      %v3457 = vpop.f32.mrf.mxu0
      %v3458 = vadd.f32 %v3339, %v3457
      %v3459 = vpop.f32.mrf.mxu0
      %v3460 = vadd.f32 %v3339, %v3459
      %3461 = vmatmul.bf16.gmra.mxu0 %v3356
      %v3462 = vpop.f32.mrf.mxu0
      %v3463 = vadd.f32 %v3339, %v3462
      %v3464 = vpop.f32.mrf.mxu0
      %v3465 = vadd.f32 %v3339, %v3464
      %3466 = vmatmul.bf16.gmra.mxu0 %v3359
      %v3467 = vpop.f32.mrf.mxu0
      %v3468 = vadd.f32 %v3339, %v3467
      %v3469 = vpop.f32.mrf.mxu0
      %v3470 = vadd.f32 %v3339, %v3469
      %3471 = vmatmul.bf16.gmra.mxu0 %v3362
      %v3472 = vpop.f32.mrf.mxu0
      %v3473 = vadd.f32 %v3339, %v3472
      %v3474 = vpop.f32.mrf.mxu0
      %v3475 = vadd.f32 %v3339, %v3474
      %3476 = vmatmul.bf16.gmra.mxu0 %v3365
      %v3477 = vpop.f32.mrf.mxu0
      %v3478 = vadd.f32 %v3339, %v3477
      %v3479 = vpop.f32.mrf.mxu0
      %v3480 = vadd.f32 %v3339, %v3479
      %3481 = vmatmul.bf16.gmra.mxu0 %v3368
      %v3482 = vpop.f32.mrf.mxu0
      %v3483 = vadd.f32 %v3339, %v3482
      %v3484 = vpop.f32.mrf.mxu0
      %v3485 = vadd.f32 %v3339, %v3484
      %3486 = vmatmul.bf16.gmra.mxu0 %v3371
      %v3487 = vpop.f32.mrf.mxu0
      %v3488 = vadd.f32 %v3339, %v3487
      %v3489 = vpop.f32.mrf.mxu0
      %v3490 = vadd.f32 %v3339, %v3489
      %3491 = vmatmul.bf16.gmra.mxu0 %v3374
      %v3492 = vpop.f32.mrf.mxu0
      %v3493 = vadd.f32 %v3339, %v3492
      %v3494 = vpop.f32.mrf.mxu0
      %v3495 = vadd.f32 %v3339, %v3494
      %3496 = vmatmul.bf16.gmra.mxu0 %v3377
      %v3497 = vpop.f32.mrf.mxu0
      %v3498 = vadd.f32 %v3339, %v3497
      %v3499 = vpop.f32.mrf.mxu0
      %v3500 = vadd.f32 %v3339, %v3499
      %3501 = vmatmul.bf16.gmra.mxu0 %v3380
      %v3502 = vpop.f32.mrf.mxu0
      %v3503 = vadd.f32 %v3339, %v3502
      %v3504 = vpop.f32.mrf.mxu0
      %v3505 = vadd.f32 %v3339, %v3504
      %3506 = vmatmul.bf16.gmra.mxu0 %v3383
      %v3507 = vpop.f32.mrf.mxu0
      %v3508 = vadd.f32 %v3339, %v3507
      %v3509 = vpop.f32.mrf.mxu0
      %v3510 = vadd.f32 %v3339, %v3509
      %3511 = vmatmul.bf16.gmra.mxu0 %v3386
      %v3512 = vpop.f32.mrf.mxu0
      %v3513 = vadd.f32 %v3339, %v3512
      %v3514 = vpop.f32.mrf.mxu0
      %v3515 = vadd.f32 %v3339, %v3514
      %3516 = vmatmul.bf16.gmra.mxu0 %v3389
      %v3517 = vpop.f32.mrf.mxu0
      %v3518 = vadd.f32 %v3339, %v3517
      %v3519 = vpop.f32.mrf.mxu0
      %v3520 = vadd.f32 %v3339, %v3519
      %3521 = vmatmul.bf16.gmra.mxu0 %v3392
      %v3522 = vpop.f32.mrf.mxu0
      %v3523 = vadd.f32 %v3339, %v3522
      %v3524 = vpop.f32.mrf.mxu0
      %v3525 = vadd.f32 %v3339, %v3524
      %3526 = vmatmul.bf16.gmra.mxu0 %v3395
      %v3527 = vpop.f32.mrf.mxu0
      %v3528 = vadd.f32 %v3339, %v3527
      %v3529 = vpop.f32.mrf.mxu0
      %v3530 = vadd.f32 %v3339, %v3529
      %3531 = vmatmul.bf16.gmra.mxu0 %v3398
      %v3532 = vpop.f32.mrf.mxu0
      %v3533 = vadd.f32 %v3339, %v3532
      %v3534 = vpop.f32.mrf.mxu0
      %v3535 = vadd.f32 %v3339, %v3534
      %3536 = vmatmul.bf16.gmra.mxu0 %v3401
      %v3537 = vpop.f32.mrf.mxu0
      %v3538 = vadd.f32 %v3339, %v3537
      %v3539 = vpop.f32.mrf.mxu0
      %v3540 = vadd.f32 %v3339, %v3539
      %3541 = vmatmul.bf16.gmra.mxu0 %v3404
      %v3542 = vpop.f32.mrf.mxu0
      %v3543 = vadd.f32 %v3339, %v3542
      %v3544 = vpop.f32.mrf.mxu0
      %v3545 = vadd.f32 %v3339, %v3544
      %3546 = vmatmul.bf16.gmra.mxu0 %v3407
      %v3547 = vpop.f32.mrf.mxu0
      %v3548 = vadd.f32 %v3339, %v3547
      %v3549 = vpop.f32.mrf.mxu0
      %v3550 = vadd.f32 %v3339, %v3549
      %3551 = vmatmul.bf16.gmra.mxu0 %v3410
      %v3552 = vpop.f32.mrf.mxu0
      %v3553 = vadd.f32 %v3339, %v3552
      %v3554 = vpop.f32.mrf.mxu0
      %v3555 = vadd.f32 %v3339, %v3554
      %3556 = vmatmul.bf16.gmra.mxu0 %v3413
      %v3557 = vpop.f32.mrf.mxu0
      %v3558 = vadd.f32 %v3339, %v3557
      %v3559 = vpop.f32.mrf.mxu0
      %v3560 = vadd.f32 %v3339, %v3559
      %3561 = vmatmul.bf16.gmra.mxu0 %v3416
      %v3562 = vpop.f32.mrf.mxu0
      %v3563 = vadd.f32 %v3339, %v3562
      %v3564 = vpop.f32.mrf.mxu0
      %v3565 = vadd.f32 %v3339, %v3564
      %3566 = vmatmul.bf16.gmra.mxu0 %v3419
      %v3567 = vpop.f32.mrf.mxu0
      %v3568 = vadd.f32 %v3339, %v3567
      %v3569 = vpop.f32.mrf.mxu0
      %v3570 = vadd.f32 %v3339, %v3569
      %3571 = vmatmul.bf16.gmra.mxu0 %v3422
      %v3572 = vpop.f32.mrf.mxu0
      %v3573 = vadd.f32 %v3339, %v3572
      %v3574 = vpop.f32.mrf.mxu0
      %v3575 = vadd.f32 %v3339, %v3574
      %3576 = vmatmul.bf16.gmra.mxu0 %v3425
      %v3577 = vpop.f32.mrf.mxu0
      %v3578 = vadd.f32 %v3339, %v3577
      %v3579 = vpop.f32.mrf.mxu0
      %v3580 = vadd.f32 %v3339, %v3579
      %3581 = vmatmul.bf16.gmra.mxu0 %v3428
      %v3582 = vpop.f32.mrf.mxu0
      %v3583 = vadd.f32 %v3339, %v3582
      %v3584 = vpop.f32.mrf.mxu0
      %v3585 = vadd.f32 %v3339, %v3584
      %3586 = vmatmul.bf16.gmra.mxu0 %v3431
      %v3587 = vpop.f32.mrf.mxu0
      %v3588 = vadd.f32 %v3339, %v3587
      %v3589 = vpop.f32.mrf.mxu0
      %v3590 = vadd.f32 %v3339, %v3589
      %3591 = vmatmul.bf16.gmra.mxu0 %v3434
      %v3592 = vpop.f32.mrf.mxu0
      %v3593 = vadd.f32 %v3339, %v3592
      %v3594 = vpop.f32.mrf.mxu0
      %v3595 = vadd.f32 %v3339, %v3594
      %3596 = vmatmul.bf16.gmra.mxu0 %v3437
      %v3597 = vpop.f32.mrf.mxu0
      %v3598 = vadd.f32 %v3339, %v3597
      %v3599 = vpop.f32.mrf.mxu0
      %v3600 = vadd.f32 %v3339, %v3599
      %3601 = vmatmul.bf16.gmra.mxu0 %v3440
      %v3602 = vpop.f32.mrf.mxu0
      %v3603 = vadd.f32 %v3339, %v3602
      %v3604 = vpop.f32.mrf.mxu0
      %v3605 = vadd.f32 %v3339, %v3604
      %3606 = vmatmul.bf16.gmra.mxu0 %v3443
      %v3607 = vpop.f32.mrf.mxu0
      %v3608 = vadd.f32 %v3339, %v3607
      %v3609 = vpop.f32.mrf.mxu0
      %v3610 = vadd.f32 %v3339, %v3609
      %3611 = vmatmul.bf16.gmra.mxu0 %v3446
      %v3612 = vpop.f32.mrf.mxu0
      %v3613 = vadd.f32 %v3339, %v3612
      %v3614 = vpop.f32.mrf.mxu0
      %v3615 = vadd.f32 %v3339, %v3614
      %3616 = vdwg.mxu0
      %v3617 = vmul.f32 %v3458, 0.5
      %v3618 = vmul.f32 %v3460, 0.5
      %v3619 = vmul.f32 %v3463, 0.5
      %v3620 = vmul.f32 %v3465, 0.5
      %v3621 = vmul.f32 %v3468, 0.5
      %v3622 = vmul.f32 %v3470, 0.5
      %v3623 = vmul.f32 %v3473, 0.5
      %v3624 = vmul.f32 %v3475, 0.5
      %v3625 = vmul.f32 %v3478, 0.5
      %v3626 = vmul.f32 %v3480, 0.5
      %v3627 = vmul.f32 %v3483, 0.5
      %v3628 = vmul.f32 %v3485, 0.5
      %v3629 = vmul.f32 %v3488, 0.5
      %v3630 = vmul.f32 %v3490, 0.5
      %v3631 = vmul.f32 %v3493, 0.5
      %v3632 = vmul.f32 %v3495, 0.5
      %v3633 = vmul.f32 %v3498, 0.5
      %v3634 = vmul.f32 %v3500, 0.5
      %v3635 = vmul.f32 %v3503, 0.5
      %v3636 = vmul.f32 %v3505, 0.5
      %v3637 = vmul.f32 %v3508, 0.5
      %v3638 = vmul.f32 %v3510, 0.5
      %v3639 = vmul.f32 %v3513, 0.5
      %v3640 = vmul.f32 %v3515, 0.5
      %v3641 = vmul.f32 %v3518, 0.5
      %v3642 = vmul.f32 %v3520, 0.5
      %v3643 = vmul.f32 %v3523, 0.5
      %v3644 = vmul.f32 %v3525, 0.5
      %v3645 = vmul.f32 %v3528, 0.5
      %v3646 = vmul.f32 %v3530, 0.5
      %v3647 = vmul.f32 %v3533, 0.5
      %v3648 = vmul.f32 %v3535, 0.5
      %v3649 = vmul.f32 %v3538, 0.5
      %v3650 = vmul.f32 %v3540, 0.5
      %v3651 = vmul.f32 %v3543, 0.5
      %v3652 = vmul.f32 %v3545, 0.5
      %v3653 = vmul.f32 %v3548, 0.5
      %v3654 = vmul.f32 %v3550, 0.5
      %v3655 = vmul.f32 %v3553, 0.5
      %v3656 = vmul.f32 %v3555, 0.5
      %v3657 = vmul.f32 %v3558, 0.5
      %v3658 = vmul.f32 %v3560, 0.5
      %v3659 = vmul.f32 %v3563, 0.5
      %v3660 = vmul.f32 %v3565, 0.5
      %v3661 = vmul.f32 %v3568, 0.5
      %v3662 = vmul.f32 %v3570, 0.5
      %v3663 = vmul.f32 %v3573, 0.5
      %v3664 = vmul.f32 %v3575, 0.5
      %v3665 = vmul.f32 %v3578, 0.5
      %v3666 = vmul.f32 %v3580, 0.5
      %v3667 = vmul.f32 %v3583, 0.5
      %v3668 = vmul.f32 %v3585, 0.5
      %v3669 = vmul.f32 %v3588, 0.5
      %v3670 = vmul.f32 %v3590, 0.5
      %v3671 = vmul.f32 %v3593, 0.5
      %v3672 = vmul.f32 %v3595, 0.5
      %v3673 = vmul.f32 %v3598, 0.5
      %v3674 = vmul.f32 %v3600, 0.5
      %v3675 = vmul.f32 %v3603, 0.5
      %v3676 = vmul.f32 %v3605, 0.5
      %v3677 = vmul.f32 %v3608, 0.5
      %v3678 = vmul.f32 %v3610, 0.5
      %v3679 = vmul.f32 %v3613, 0.5
      %v3680 = vmul.f32 %v3615, 0.5
      %v3681 = vtanh.pop %v3617
      %v3682 = vtanh.pop %v3618
      %v3683 = vtanh.pop %v3619
      %v3684 = vtanh.pop %v3620
      %v3685 = vtanh.pop %v3621
      %v3686 = vtanh.pop %v3622
      %v3687 = vtanh.pop %v3623
      %v3688 = vtanh.pop %v3624
      %v3689 = vtanh.pop %v3625
      %v3690 = vtanh.pop %v3626
      %v3691 = vtanh.pop %v3627
      %v3692 = vtanh.pop %v3628
      %v3693 = vtanh.pop %v3629
      %v3694 = vtanh.pop %v3630
      %v3695 = vtanh.pop %v3631
      %v3696 = vtanh.pop %v3632
      %v3697 = vtanh.pop %v3633
      %v3698 = vtanh.pop %v3634
      %v3699 = vtanh.pop %v3635
      %v3700 = vtanh.pop %v3636
      %v3701 = vtanh.pop %v3637
      %v3702 = vtanh.pop %v3638
      %v3703 = vtanh.pop %v3639
      %v3704 = vtanh.pop %v3640
      %v3705 = vtanh.pop %v3641
      %v3706 = vtanh.pop %v3642
      %v3707 = vtanh.pop %v3643
      %v3708 = vtanh.pop %v3644
      %v3709 = vtanh.pop %v3645
      %v3710 = vtanh.pop %v3646
      %v3711 = vtanh.pop %v3647
      %v3712 = vtanh.pop %v3648
      %v3713 = vtanh.pop %v3649
      %v3714 = vtanh.pop %v3650
      %v3715 = vtanh.pop %v3651
      %v3716 = vtanh.pop %v3652
      %v3717 = vtanh.pop %v3653
      %v3718 = vtanh.pop %v3654
      %v3719 = vtanh.pop %v3655
      %v3720 = vtanh.pop %v3656
      %v3721 = vtanh.pop %v3657
      %v3722 = vtanh.pop %v3658
      %v3723 = vtanh.pop %v3659
      %v3724 = vtanh.pop %v3660
      %v3725 = vtanh.pop %v3661
      %v3726 = vtanh.pop %v3662
      %v3727 = vtanh.pop %v3663
      %v3728 = vtanh.pop %v3664
      %v3729 = vtanh.pop %v3665
      %v3730 = vtanh.pop %v3666
      %v3731 = vtanh.pop %v3667
      %v3732 = vtanh.pop %v3668
      %v3733 = vtanh.pop %v3669
      %v3734 = vtanh.pop %v3670
      %v3735 = vtanh.pop %v3671
      %v3736 = vtanh.pop %v3672
      %v3737 = vtanh.pop %v3673
      %v3738 = vtanh.pop %v3674
      %v3739 = vtanh.pop %v3675
      %v3740 = vtanh.pop %v3676
      %v3741 = vtanh.pop %v3677
      %v3742 = vtanh.pop %v3678
      %v3743 = vtanh.pop %v3679
      %v3744 = vtanh.pop %v3680
      %v3745 = vadd.f32 %v3681, 1.0
      %v3746 = vadd.f32 %v3682, 1.0
      %v3747 = vadd.f32 %v3683, 1.0
      %v3748 = vadd.f32 %v3684, 1.0
      %v3749 = vadd.f32 %v3685, 1.0
      %v3750 = vadd.f32 %v3686, 1.0
      %v3751 = vadd.f32 %v3687, 1.0
      %v3752 = vadd.f32 %v3688, 1.0
      %v3753 = vadd.f32 %v3689, 1.0
      %v3754 = vadd.f32 %v3690, 1.0
      %v3755 = vadd.f32 %v3691, 1.0
      %v3756 = vadd.f32 %v3692, 1.0
      %v3757 = vadd.f32 %v3693, 1.0
      %v3758 = vadd.f32 %v3694, 1.0
      %v3759 = vadd.f32 %v3695, 1.0
      %v3760 = vadd.f32 %v3696, 1.0
      %v3761 = vadd.f32 %v3697, 1.0
      %v3762 = vadd.f32 %v3698, 1.0
      %v3763 = vadd.f32 %v3699, 1.0
      %v3764 = vadd.f32 %v3700, 1.0
      %v3765 = vadd.f32 %v3701, 1.0
      %v3766 = vadd.f32 %v3702, 1.0
      %v3767 = vadd.f32 %v3703, 1.0
      %v3768 = vadd.f32 %v3704, 1.0
      %v3769 = vadd.f32 %v3705, 1.0
      %v3770 = vadd.f32 %v3706, 1.0
      %v3771 = vadd.f32 %v3707, 1.0
      %v3772 = vadd.f32 %v3708, 1.0
      %v3773 = vadd.f32 %v3709, 1.0
      %v3774 = vadd.f32 %v3710, 1.0
      %v3775 = vadd.f32 %v3711, 1.0
      %v3776 = vadd.f32 %v3712, 1.0
      %v3777 = vadd.f32 %v3713, 1.0
      %v3778 = vadd.f32 %v3714, 1.0
      %v3779 = vadd.f32 %v3715, 1.0
      %v3780 = vadd.f32 %v3716, 1.0
      %v3781 = vadd.f32 %v3717, 1.0
      %v3782 = vadd.f32 %v3718, 1.0
      %v3783 = vadd.f32 %v3719, 1.0
      %v3784 = vadd.f32 %v3720, 1.0
      %v3785 = vadd.f32 %v3721, 1.0
      %v3786 = vadd.f32 %v3722, 1.0
      %v3787 = vadd.f32 %v3723, 1.0
      %v3788 = vadd.f32 %v3724, 1.0
      %v3789 = vadd.f32 %v3725, 1.0
      %v3790 = vadd.f32 %v3726, 1.0
      %v3791 = vadd.f32 %v3727, 1.0
      %v3792 = vadd.f32 %v3728, 1.0
      %v3793 = vadd.f32 %v3729, 1.0
      %v3794 = vadd.f32 %v3730, 1.0
      %v3795 = vadd.f32 %v3731, 1.0
      %v3796 = vadd.f32 %v3732, 1.0
      %v3797 = vadd.f32 %v3733, 1.0
      %v3798 = vadd.f32 %v3734, 1.0
      %v3799 = vadd.f32 %v3735, 1.0
      %v3800 = vadd.f32 %v3736, 1.0
      %v3801 = vadd.f32 %v3737, 1.0
      %v3802 = vadd.f32 %v3738, 1.0
      %v3803 = vadd.f32 %v3739, 1.0
      %v3804 = vadd.f32 %v3740, 1.0
      %v3805 = vadd.f32 %v3741, 1.0
      %v3806 = vadd.f32 %v3742, 1.0
      %v3807 = vadd.f32 %v3743, 1.0
      %v3808 = vadd.f32 %v3744, 1.0
      %v3809 = vmul.f32 %v3745, 0.5
      %v3810 = vmul.f32 %v3746, 0.5
      %v3811 = vmul.f32 %v3747, 0.5
      %v3812 = vmul.f32 %v3748, 0.5
      %v3813 = vmul.f32 %v3749, 0.5
      %v3814 = vmul.f32 %v3750, 0.5
      %v3815 = vmul.f32 %v3751, 0.5
      %v3816 = vmul.f32 %v3752, 0.5
      %v3817 = vmul.f32 %v3753, 0.5
      %v3818 = vmul.f32 %v3754, 0.5
      %v3819 = vmul.f32 %v3755, 0.5
      %v3820 = vmul.f32 %v3756, 0.5
      %v3821 = vmul.f32 %v3757, 0.5
      %v3822 = vmul.f32 %v3758, 0.5
      %v3823 = vmul.f32 %v3759, 0.5
      %v3824 = vmul.f32 %v3760, 0.5
      %v3825 = vmul.f32 %v3761, 0.5
      %v3826 = vmul.f32 %v3762, 0.5
      %v3827 = vmul.f32 %v3763, 0.5
      %v3828 = vmul.f32 %v3764, 0.5
      %v3829 = vmul.f32 %v3765, 0.5
      %v3830 = vmul.f32 %v3766, 0.5
      %v3831 = vmul.f32 %v3767, 0.5
      %v3832 = vmul.f32 %v3768, 0.5
      %v3833 = vmul.f32 %v3769, 0.5
      %v3834 = vmul.f32 %v3770, 0.5
      %v3835 = vmul.f32 %v3771, 0.5
      %v3836 = vmul.f32 %v3772, 0.5
      %v3837 = vmul.f32 %v3773, 0.5
      %v3838 = vmul.f32 %v3774, 0.5
      %v3839 = vmul.f32 %v3775, 0.5
      %v3840 = vmul.f32 %v3776, 0.5
      %v3841 = vmul.f32 %v3777, 0.5
      %v3842 = vmul.f32 %v3778, 0.5
      %v3843 = vmul.f32 %v3779, 0.5
      %v3844 = vmul.f32 %v3780, 0.5
      %v3845 = vmul.f32 %v3781, 0.5
      %v3846 = vmul.f32 %v3782, 0.5
      %v3847 = vmul.f32 %v3783, 0.5
      %v3848 = vmul.f32 %v3784, 0.5
      %v3849 = vmul.f32 %v3785, 0.5
      %v3850 = vmul.f32 %v3786, 0.5
      %v3851 = vmul.f32 %v3787, 0.5
      %v3852 = vmul.f32 %v3788, 0.5
      %v3853 = vmul.f32 %v3789, 0.5
      %v3854 = vmul.f32 %v3790, 0.5
      %v3855 = vmul.f32 %v3791, 0.5
      %v3856 = vmul.f32 %v3792, 0.5
      %v3857 = vmul.f32 %v3793, 0.5
      %v3858 = vmul.f32 %v3794, 0.5
      %v3859 = vmul.f32 %v3795, 0.5
      %v3860 = vmul.f32 %v3796, 0.5
      %v3861 = vmul.f32 %v3797, 0.5
      %v3862 = vmul.f32 %v3798, 0.5
      %v3863 = vmul.f32 %v3799, 0.5
      %v3864 = vmul.f32 %v3800, 0.5
      %v3865 = vmul.f32 %v3801, 0.5
      %v3866 = vmul.f32 %v3802, 0.5
      %v3867 = vmul.f32 %v3803, 0.5
      %v3868 = vmul.f32 %v3804, 0.5
      %v3869 = vmul.f32 %v3805, 0.5
      %v3870 = vmul.f32 %v3806, 0.5
      %v3871 = vmul.f32 %v3807, 0.5
      %v3872 = vmul.f32 %v3808, 0.5
      %3874 = vset.pattern.permute.xlu0 10
      %3875 = vperm.xlu0 %3874, %v3809
      %v3876 = vpop.permute.xlu0 %3875
      %3879 = vset.pattern.permute.xlu0 10
      %3880 = vperm.xlu0 %3879, %v3810
      %v3881 = vpop.permute.xlu0 %3880
      %3884 = vset.pattern.permute.xlu0 10
      %3885 = vperm.xlu0 %3884, %v3811
      %v3886 = vpop.permute.xlu0 %3885
      %3889 = vset.pattern.permute.xlu0 10
      %3890 = vperm.xlu0 %3889, %v3812
      %v3891 = vpop.permute.xlu0 %3890
      %3894 = vset.pattern.permute.xlu0 10
      %3895 = vperm.xlu0 %3894, %v3813
      %v3896 = vpop.permute.xlu0 %3895
      %3899 = vset.pattern.permute.xlu0 10
      %3900 = vperm.xlu0 %3899, %v3814
      %v3901 = vpop.permute.xlu0 %3900
      %3904 = vset.pattern.permute.xlu0 10
      %3905 = vperm.xlu0 %3904, %v3815
      %v3906 = vpop.permute.xlu0 %3905
      %3909 = vset.pattern.permute.xlu0 10
      %3910 = vperm.xlu0 %3909, %v3816
      %v3911 = vpop.permute.xlu0 %3910
      %3914 = vset.pattern.permute.xlu0 10
      %3915 = vperm.xlu0 %3914, %v3817
      %v3916 = vpop.permute.xlu0 %3915
      %3919 = vset.pattern.permute.xlu0 10
      %3920 = vperm.xlu0 %3919, %v3818
      %v3921 = vpop.permute.xlu0 %3920
      %3924 = vset.pattern.permute.xlu0 10
      %3925 = vperm.xlu0 %3924, %v3819
      %v3926 = vpop.permute.xlu0 %3925
      %3929 = vset.pattern.permute.xlu0 10
      %3930 = vperm.xlu0 %3929, %v3820
      %v3931 = vpop.permute.xlu0 %3930
      %3934 = vset.pattern.permute.xlu0 10
      %3935 = vperm.xlu0 %3934, %v3821
      %v3936 = vpop.permute.xlu0 %3935
      %3939 = vset.pattern.permute.xlu0 10
      %3940 = vperm.xlu0 %3939, %v3822
      %v3941 = vpop.permute.xlu0 %3940
      %3944 = vset.pattern.permute.xlu0 10
      %3945 = vperm.xlu0 %3944, %v3823
      %v3946 = vpop.permute.xlu0 %3945
      %3949 = vset.pattern.permute.xlu0 10
      %3950 = vperm.xlu0 %3949, %v3824
      %v3951 = vpop.permute.xlu0 %3950
      %3954 = vset.pattern.permute.xlu0 10
      %3955 = vperm.xlu0 %3954, %v3825
      %v3956 = vpop.permute.xlu0 %3955
      %3959 = vset.pattern.permute.xlu0 10
      %3960 = vperm.xlu0 %3959, %v3826
      %v3961 = vpop.permute.xlu0 %3960
      %3964 = vset.pattern.permute.xlu0 10
      %3965 = vperm.xlu0 %3964, %v3827
      %v3966 = vpop.permute.xlu0 %3965
      %3969 = vset.pattern.permute.xlu0 10
      %3970 = vperm.xlu0 %3969, %v3828
      %v3971 = vpop.permute.xlu0 %3970
      %3974 = vset.pattern.permute.xlu0 10
      %3975 = vperm.xlu0 %3974, %v3829
      %v3976 = vpop.permute.xlu0 %3975
      %3979 = vset.pattern.permute.xlu0 10
      %3980 = vperm.xlu0 %3979, %v3830
      %v3981 = vpop.permute.xlu0 %3980
      %3984 = vset.pattern.permute.xlu0 10
      %3985 = vperm.xlu0 %3984, %v3831
      %v3986 = vpop.permute.xlu0 %3985
      %3989 = vset.pattern.permute.xlu0 10
      %3990 = vperm.xlu0 %3989, %v3832
      %v3991 = vpop.permute.xlu0 %3990
      %3994 = vset.pattern.permute.xlu0 10
      %3995 = vperm.xlu0 %3994, %v3833
      %v3996 = vpop.permute.xlu0 %3995
      %3999 = vset.pattern.permute.xlu0 10
      %4000 = vperm.xlu0 %3999, %v3834
      %v4001 = vpop.permute.xlu0 %4000
      %4004 = vset.pattern.permute.xlu0 10
      %4005 = vperm.xlu0 %4004, %v3835
      %v4006 = vpop.permute.xlu0 %4005
      %4009 = vset.pattern.permute.xlu0 10
      %4010 = vperm.xlu0 %4009, %v3836
      %v4011 = vpop.permute.xlu0 %4010
      %4014 = vset.pattern.permute.xlu0 10
      %4015 = vperm.xlu0 %4014, %v3837
      %v4016 = vpop.permute.xlu0 %4015
      %4019 = vset.pattern.permute.xlu0 10
      %4020 = vperm.xlu0 %4019, %v3838
      %v4021 = vpop.permute.xlu0 %4020
      %4024 = vset.pattern.permute.xlu0 10
      %4025 = vperm.xlu0 %4024, %v3839
      %v4026 = vpop.permute.xlu0 %4025
      %4029 = vset.pattern.permute.xlu0 10
      %4030 = vperm.xlu0 %4029, %v3840
      %v4031 = vpop.permute.xlu0 %4030
      %4034 = vset.pattern.permute.xlu0 10
      %4035 = vperm.xlu0 %4034, %v3841
      %v4036 = vpop.permute.xlu0 %4035
      %4039 = vset.pattern.permute.xlu0 10
      %4040 = vperm.xlu0 %4039, %v3842
      %v4041 = vpop.permute.xlu0 %4040
      %4044 = vset.pattern.permute.xlu0 10
      %4045 = vperm.xlu0 %4044, %v3843
      %v4046 = vpop.permute.xlu0 %4045
      %4049 = vset.pattern.permute.xlu0 10
      %4050 = vperm.xlu0 %4049, %v3844
      %v4051 = vpop.permute.xlu0 %4050
      %4054 = vset.pattern.permute.xlu0 10
      %4055 = vperm.xlu0 %4054, %v3845
      %v4056 = vpop.permute.xlu0 %4055
      %4059 = vset.pattern.permute.xlu0 10
      %4060 = vperm.xlu0 %4059, %v3846
      %v4061 = vpop.permute.xlu0 %4060
      %4064 = vset.pattern.permute.xlu0 10
      %4065 = vperm.xlu0 %4064, %v3847
      %v4066 = vpop.permute.xlu0 %4065
      %4069 = vset.pattern.permute.xlu0 10
      %4070 = vperm.xlu0 %4069, %v3848
      %v4071 = vpop.permute.xlu0 %4070
      %4074 = vset.pattern.permute.xlu0 10
      %4075 = vperm.xlu0 %4074, %v3849
      %v4076 = vpop.permute.xlu0 %4075
      %4079 = vset.pattern.permute.xlu0 10
      %4080 = vperm.xlu0 %4079, %v3850
      %v4081 = vpop.permute.xlu0 %4080
      %4084 = vset.pattern.permute.xlu0 10
      %4085 = vperm.xlu0 %4084, %v3851
      %v4086 = vpop.permute.xlu0 %4085
      %4089 = vset.pattern.permute.xlu0 10
      %4090 = vperm.xlu0 %4089, %v3852
      %v4091 = vpop.permute.xlu0 %4090
      %4094 = vset.pattern.permute.xlu0 10
      %4095 = vperm.xlu0 %4094, %v3853
      %v4096 = vpop.permute.xlu0 %4095
      %4099 = vset.pattern.permute.xlu0 10
      %4100 = vperm.xlu0 %4099, %v3854
      %v4101 = vpop.permute.xlu0 %4100
      %4104 = vset.pattern.permute.xlu0 10
      %4105 = vperm.xlu0 %4104, %v3855
      %v4106 = vpop.permute.xlu0 %4105
      %4109 = vset.pattern.permute.xlu0 10
      %4110 = vperm.xlu0 %4109, %v3856
      %v4111 = vpop.permute.xlu0 %4110
      %4114 = vset.pattern.permute.xlu0 10
      %4115 = vperm.xlu0 %4114, %v3857
      %v4116 = vpop.permute.xlu0 %4115
      %4119 = vset.pattern.permute.xlu0 10
      %4120 = vperm.xlu0 %4119, %v3858
      %v4121 = vpop.permute.xlu0 %4120
      %4124 = vset.pattern.permute.xlu0 10
      %4125 = vperm.xlu0 %4124, %v3859
      %v4126 = vpop.permute.xlu0 %4125
      %4129 = vset.pattern.permute.xlu0 10
      %4130 = vperm.xlu0 %4129, %v3860
      %v4131 = vpop.permute.xlu0 %4130
      %4134 = vset.pattern.permute.xlu0 10
      %4135 = vperm.xlu0 %4134, %v3861
      %v4136 = vpop.permute.xlu0 %4135
      %4139 = vset.pattern.permute.xlu0 10
      %4140 = vperm.xlu0 %4139, %v3862
      %v4141 = vpop.permute.xlu0 %4140
      %4144 = vset.pattern.permute.xlu0 10
      %4145 = vperm.xlu0 %4144, %v3863
      %v4146 = vpop.permute.xlu0 %4145
      %4149 = vset.pattern.permute.xlu0 10
      %4150 = vperm.xlu0 %4149, %v3864
      %v4151 = vpop.permute.xlu0 %4150
      %4154 = vset.pattern.permute.xlu0 10
      %4155 = vperm.xlu0 %4154, %v3865
      %v4156 = vpop.permute.xlu0 %4155
      %4159 = vset.pattern.permute.xlu0 10
      %4160 = vperm.xlu0 %4159, %v3866
      %v4161 = vpop.permute.xlu0 %4160
      %4164 = vset.pattern.permute.xlu0 10
      %4165 = vperm.xlu0 %4164, %v3867
      %v4166 = vpop.permute.xlu0 %4165
      %4169 = vset.pattern.permute.xlu0 10
      %4170 = vperm.xlu0 %4169, %v3868
      %v4171 = vpop.permute.xlu0 %4170
      %4174 = vset.pattern.permute.xlu0 10
      %4175 = vperm.xlu0 %4174, %v3869
      %v4176 = vpop.permute.xlu0 %4175
      %4179 = vset.pattern.permute.xlu0 10
      %4180 = vperm.xlu0 %4179, %v3870
      %v4181 = vpop.permute.xlu0 %4180
      %4184 = vset.pattern.permute.xlu0 10
      %4185 = vperm.xlu0 %4184, %v3871
      %v4186 = vpop.permute.xlu0 %4185
      %4189 = vset.pattern.permute.xlu0 10
      %4190 = vperm.xlu0 %4189, %v3872
      %v4191 = vpop.permute.xlu0 %4190
      %v4193 = vmul.f32 %v3458, %v3876
      %v4194 = vmul.f32 %v3460, %v3881
      %v4195 = vmul.f32 %v3463, %v3886
      %v4196 = vmul.f32 %v3465, %v3891
      %v4197 = vmul.f32 %v3468, %v3896
      %v4198 = vmul.f32 %v3470, %v3901
      %v4199 = vmul.f32 %v3473, %v3906
      %v4200 = vmul.f32 %v3475, %v3911
      %v4201 = vmul.f32 %v3478, %v3916
      %v4202 = vmul.f32 %v3480, %v3921
      %v4203 = vmul.f32 %v3483, %v3926
      %v4204 = vmul.f32 %v3485, %v3931
      %v4205 = vmul.f32 %v3488, %v3936
      %v4206 = vmul.f32 %v3490, %v3941
      %v4207 = vmul.f32 %v3493, %v3946
      %v4208 = vmul.f32 %v3495, %v3951
      %v4209 = vmul.f32 %v3498, %v3956
      %v4210 = vmul.f32 %v3500, %v3961
      %v4211 = vmul.f32 %v3503, %v3966
      %v4212 = vmul.f32 %v3505, %v3971
      %v4213 = vmul.f32 %v3508, %v3976
      %v4214 = vmul.f32 %v3510, %v3981
      %v4215 = vmul.f32 %v3513, %v3986
      %v4216 = vmul.f32 %v3515, %v3991
      %v4217 = vmul.f32 %v3518, %v3996
      %v4218 = vmul.f32 %v3520, %v4001
      %v4219 = vmul.f32 %v3523, %v4006
      %v4220 = vmul.f32 %v3525, %v4011
      %v4221 = vmul.f32 %v3528, %v4016
      %v4222 = vmul.f32 %v3530, %v4021
      %v4223 = vmul.f32 %v3533, %v4026
      %v4224 = vmul.f32 %v3535, %v4031
      %v4225 = vmul.f32 %v3538, %v4036
      %v4226 = vmul.f32 %v3540, %v4041
      %v4227 = vmul.f32 %v3543, %v4046
      %v4228 = vmul.f32 %v3545, %v4051
      %v4229 = vmul.f32 %v3548, %v4056
      %v4230 = vmul.f32 %v3550, %v4061
      %v4231 = vmul.f32 %v3553, %v4066
      %v4232 = vmul.f32 %v3555, %v4071
      %v4233 = vmul.f32 %v3558, %v4076
      %v4234 = vmul.f32 %v3560, %v4081
      %v4235 = vmul.f32 %v3563, %v4086
      %v4236 = vmul.f32 %v3565, %v4091
      %v4237 = vmul.f32 %v3568, %v4096
      %v4238 = vmul.f32 %v3570, %v4101
      %v4239 = vmul.f32 %v3573, %v4106
      %v4240 = vmul.f32 %v3575, %v4111
      %v4241 = vmul.f32 %v3578, %v4116
      %v4242 = vmul.f32 %v3580, %v4121
      %v4243 = vmul.f32 %v3583, %v4126
      %v4244 = vmul.f32 %v3585, %v4131
      %v4245 = vmul.f32 %v3588, %v4136
      %v4246 = vmul.f32 %v3590, %v4141
      %v4247 = vmul.f32 %v3593, %v4146
      %v4248 = vmul.f32 %v3595, %v4151
      %v4249 = vmul.f32 %v3598, %v4156
      %v4250 = vmul.f32 %v3600, %v4161
      %v4251 = vmul.f32 %v3603, %v4166
      %v4252 = vmul.f32 %v3605, %v4171
      %v4253 = vmul.f32 %v3608, %v4176
      %v4254 = vmul.f32 %v3610, %v4181
      %v4255 = vmul.f32 %v3613, %v4186
      %v4256 = vmul.f32 %v3615, %v4191
      %v4257 = vpack.c.bf16 %v4194, %v4193
      %v4258 = vpack.c.bf16 %v4196, %v4195
      %v4259 = vpack.c.bf16 %v4198, %v4197
      %v4260 = vpack.c.bf16 %v4200, %v4199
      %v4261 = vpack.c.bf16 %v4202, %v4201
      %v4262 = vpack.c.bf16 %v4204, %v4203
      %v4263 = vpack.c.bf16 %v4206, %v4205
      %v4264 = vpack.c.bf16 %v4208, %v4207
      %v4265 = vpack.c.bf16 %v4210, %v4209
      %v4266 = vpack.c.bf16 %v4212, %v4211
      %v4267 = vpack.c.bf16 %v4214, %v4213
      %v4268 = vpack.c.bf16 %v4216, %v4215
      %v4269 = vpack.c.bf16 %v4218, %v4217
      %v4270 = vpack.c.bf16 %v4220, %v4219
      %v4271 = vpack.c.bf16 %v4222, %v4221
      %v4272 = vpack.c.bf16 %v4224, %v4223
      %v4273 = vpack.c.bf16 %v4226, %v4225
      %v4274 = vpack.c.bf16 %v4228, %v4227
      %v4275 = vpack.c.bf16 %v4230, %v4229
      %v4276 = vpack.c.bf16 %v4232, %v4231
      %v4277 = vpack.c.bf16 %v4234, %v4233
      %v4278 = vpack.c.bf16 %v4236, %v4235
      %v4279 = vpack.c.bf16 %v4238, %v4237
      %v4280 = vpack.c.bf16 %v4240, %v4239
      %v4281 = vpack.c.bf16 %v4242, %v4241
      %v4282 = vpack.c.bf16 %v4244, %v4243
      %v4283 = vpack.c.bf16 %v4246, %v4245
      %v4284 = vpack.c.bf16 %v4248, %v4247
      %v4285 = vpack.c.bf16 %v4250, %v4249
      %v4286 = vpack.c.bf16 %v4252, %v4251
      %v4287 = vpack.c.bf16 %v4254, %v4253
      %v4288 = vpack.c.bf16 %v4256, %v4255
      %v4289 = vld [vmem:[%s330 + $0x58] sm:$0xf]
      %v4290 = vld [vmem:[%s330 + $0x5c] sm:$0xf]
      %v4291 = vld [vmem:[%s330 + $0x60] sm:$0xf]
      %v4292 = vld [vmem:[%s330 + $0x64] sm:$0xf]
      %v4293 = vunpack.c.l.bf16 %v4291
      %v4294 = vunpack.c.l.bf16 %v4292
      %4296 = vset.pattern.permute.xlu0 0
      %4297 = vperm.xlu0 %4296, %v4293
      %v4298 = vpop.permute.xlu0 %4297
      %4301 = vset.pattern.permute.xlu0 0
      %4302 = vperm.xlu0 %4301, %v4294
      %v4303 = vpop.permute.xlu0 %4302
      %v4307 = vunpack.c.l.b16 %v4289
      %v4308 = vunpack.c.l.b16 %v4290
      %v4309 = vpack.c.b16 %v4308, %v4307
      %v4311 = vsel %vm2465, %v4309, 0
      %4313 = vmatpush.bf16.xpose.msra.mxu0 %v3374
      %4314 = vmatpush.bf16.xpose.msra.mxu0 %v3371
      %4315 = vmatpush.bf16.xpose.msra.mxu0 %v3368
      %4316 = vmatpush.bf16.xpose.msra.mxu0 %v3365
      %4317 = vmatpush.bf16.xpose.msra.mxu0 %v3362
      %4318 = vmatpush.bf16.xpose.msra.mxu0 %v3359
      %4319 = vmatpush.bf16.xpose.msra.mxu0 %v3356
      %4320 = vmatpush.bf16.xpose.msra.mxu0 %v3353
      %4321 = vmatmul.bf16.gmra.mxu0 %v4311
      %v4322 = vpop.f32.mrf.mxu0
      %v4323 = vadd.f32 %v4298, %v4322
      %v4324 = vpop.f32.mrf.mxu0
      %v4325 = vadd.f32 %v4303, %v4324
      %4326 = vdwg.mxu0
      %4327 = vmatpush.bf16.xpose.msra.mxu0 %v3398
      %4328 = vmatpush.bf16.xpose.msra.mxu0 %v3395
      %4329 = vmatpush.bf16.xpose.msra.mxu0 %v3392
      %4330 = vmatpush.bf16.xpose.msra.mxu0 %v3389
      %4331 = vmatpush.bf16.xpose.msra.mxu0 %v3386
      %4332 = vmatpush.bf16.xpose.msra.mxu0 %v3383
      %4333 = vmatpush.bf16.xpose.msra.mxu0 %v3380
      %4334 = vmatpush.bf16.xpose.msra.mxu0 %v3377
      %4335 = vmatmul.bf16.gmra.mxu0 %v4311
      %v4336 = vpop.f32.mrf.mxu0
      %v4337 = vadd.f32 %v4298, %v4336
      %v4338 = vpop.f32.mrf.mxu0
      %v4339 = vadd.f32 %v4303, %v4338
      %4340 = vdwg.mxu0
      %4341 = vmatpush.bf16.xpose.msra.mxu0 %v3422
      %4342 = vmatpush.bf16.xpose.msra.mxu0 %v3419
      %4343 = vmatpush.bf16.xpose.msra.mxu0 %v3416
      %4344 = vmatpush.bf16.xpose.msra.mxu0 %v3413
      %4345 = vmatpush.bf16.xpose.msra.mxu0 %v3410
      %4346 = vmatpush.bf16.xpose.msra.mxu0 %v3407
      %4347 = vmatpush.bf16.xpose.msra.mxu0 %v3404
      %4348 = vmatpush.bf16.xpose.msra.mxu0 %v3401
      %4349 = vmatmul.bf16.gmra.mxu0 %v4311
      %v4350 = vpop.f32.mrf.mxu0
      %v4351 = vadd.f32 %v4298, %v4350
      %v4352 = vpop.f32.mrf.mxu0
      %v4353 = vadd.f32 %v4303, %v4352
      %4354 = vdwg.mxu0
      %4355 = vmatpush.bf16.xpose.msra.mxu0 %v3446
      %4356 = vmatpush.bf16.xpose.msra.mxu0 %v3443
      %4357 = vmatpush.bf16.xpose.msra.mxu0 %v3440
      %4358 = vmatpush.bf16.xpose.msra.mxu0 %v3437
      %4359 = vmatpush.bf16.xpose.msra.mxu0 %v3434
      %4360 = vmatpush.bf16.xpose.msra.mxu0 %v3431
      %4361 = vmatpush.bf16.xpose.msra.mxu0 %v3428
      %4362 = vmatpush.bf16.xpose.msra.mxu0 %v3425
      %4363 = vmatmul.bf16.gmra.mxu0 %v4311
      %v4364 = vpop.f32.mrf.mxu0
      %v4365 = vadd.f32 %v4298, %v4364
      %v4366 = vpop.f32.mrf.mxu0
      %v4367 = vadd.f32 %v4303, %v4366
      %4368 = vdwg.mxu0
      %v4369 = vmul.f32 %v4325, 0.5
      %v4370 = vmul.f32 %v4339, 0.5
      %v4371 = vmul.f32 %v4353, 0.5
      %v4372 = vmul.f32 %v4367, 0.5
      %v4373 = vtanh.pop %v4369
      %v4374 = vtanh.pop %v4370
      %v4375 = vtanh.pop %v4371
      %v4376 = vtanh.pop %v4372
      %v4377 = vadd.f32 %v4373, 1.0
      %v4378 = vadd.f32 %v4374, 1.0
      %v4379 = vadd.f32 %v4375, 1.0
      %v4380 = vadd.f32 %v4376, 1.0
      %v4381 = vmul.f32 %v4377, 0.5
      %v4382 = vmul.f32 %v4378, 0.5
      %v4383 = vmul.f32 %v4379, 0.5
      %v4384 = vmul.f32 %v4380, 0.5
      %v4385 = vperm.slane %v4381, 2
      %v4386 = vperm.slane %v4382, 2
      %v4387 = vperm.slane %v4383, 2
      %v4388 = vperm.slane %v4384, 2
      %v4389 = vmul.f32 %v4323, %v4385
      %v4390 = vmul.f32 %v4337, %v4386
      %v4391 = vmul.f32 %v4351, %v4387
      %v4392 = vmul.f32 %v4365, %v4388
      %v4393 = vmul.f32 %v4325, %v4385
      %v4394 = vmul.f32 %v4339, %v4386
      %v4395 = vmul.f32 %v4353, %v4387
      %v4396 = vmul.f32 %v4367, %v4388
      %v4397 = vpack.c.bf16 %v4390, %v4389
      %v4398 = vpack.c.bf16 %v4392, %v4391
      %v4399 = vpack.c.bf16 %v4394, %v4393
      %v4400 = vpack.c.bf16 %v4396, %v4395
      %v4433 = vunpack.c.l.b16 %v589
      %v4434 = vunpack.c.h.b16 %v589
      %v4435 = vunpack.c.l.b16 %v590
      %v4436 = vunpack.c.h.b16 %v590
      %v4437 = vunpack.c.l.b16 %v591
      %v4438 = vunpack.c.h.b16 %v591
      %v4439 = vunpack.c.l.b16 %v592
      %v4440 = vunpack.c.h.b16 %v592
      %v4441 = vunpack.c.l.b16 %v593
      %v4442 = vunpack.c.h.b16 %v593
      %v4443 = vunpack.c.l.b16 %v594
      %v4444 = vunpack.c.h.b16 %v594
      %v4445 = vunpack.c.l.b16 %v595
      %v4446 = vunpack.c.h.b16 %v595
      %v4447 = vunpack.c.l.b16 %v596
      %v4448 = vunpack.c.h.b16 %v596
      %v4449 = vunpack.c.l.b16 %v597
      %v4450 = vunpack.c.h.b16 %v597
      %v4451 = vunpack.c.l.b16 %v598
      %v4452 = vunpack.c.h.b16 %v598
      %v4453 = vunpack.c.l.b16 %v599
      %v4454 = vunpack.c.h.b16 %v599
      %v4455 = vunpack.c.l.b16 %v600
      %v4456 = vunpack.c.h.b16 %v600
      %v4457 = vunpack.c.l.b16 %v601
      %v4458 = vunpack.c.h.b16 %v601
      %v4459 = vunpack.c.l.b16 %v602
      %v4460 = vunpack.c.h.b16 %v602
      %v4461 = vunpack.c.l.b16 %v603
      %v4462 = vunpack.c.h.b16 %v603
      %v4463 = vunpack.c.l.b16 %v604
      %v4464 = vunpack.c.h.b16 %v604
      %v4465 = vunpack.c.l.b16 %v605
      %v4466 = vunpack.c.h.b16 %v605
      %v4467 = vunpack.c.l.b16 %v606
      %v4468 = vunpack.c.h.b16 %v606
      %v4469 = vunpack.c.l.b16 %v607
      %v4470 = vunpack.c.h.b16 %v607
      %v4471 = vunpack.c.l.b16 %v608
      %v4472 = vunpack.c.h.b16 %v608
      %v4473 = vunpack.c.l.b16 %v609
      %v4474 = vunpack.c.h.b16 %v609
      %v4475 = vunpack.c.l.b16 %v610
      %v4476 = vunpack.c.h.b16 %v610
      %v4477 = vunpack.c.l.b16 %v611
      %v4478 = vunpack.c.h.b16 %v611
      %v4479 = vunpack.c.l.b16 %v612
      %v4480 = vunpack.c.h.b16 %v612
      %v4481 = vunpack.c.l.b16 %v613
      %v4482 = vunpack.c.h.b16 %v613
      %v4483 = vunpack.c.l.b16 %v614
      %v4484 = vunpack.c.h.b16 %v614
      %v4485 = vunpack.c.l.b16 %v615
      %v4486 = vunpack.c.h.b16 %v615
      %v4487 = vunpack.c.l.b16 %v616
      %v4488 = vunpack.c.h.b16 %v616
      %v4489 = vunpack.c.l.b16 %v617
      %v4490 = vunpack.c.h.b16 %v617
      %v4491 = vunpack.c.l.b16 %v618
      %v4492 = vunpack.c.h.b16 %v618
      %v4493 = vunpack.c.l.b16 %v619
      %v4494 = vunpack.c.h.b16 %v619
      %v4495 = vunpack.c.l.b16 %v620
      %v4496 = vunpack.c.h.b16 %v620
      %v4497 = vpack.c.b16 %v4437, %v4433
      %v4498 = vpack.c.b16 %v4438, %v4434
      %v4499 = vpack.c.b16 %v4439, %v4435
      %v4500 = vpack.c.b16 %v4440, %v4436
      %v4501 = vpack.c.b16 %v4445, %v4441
      %v4502 = vpack.c.b16 %v4446, %v4442
      %v4503 = vpack.c.b16 %v4447, %v4443
      %v4504 = vpack.c.b16 %v4448, %v4444
      %v4505 = vpack.c.b16 %v4453, %v4449
      %v4506 = vpack.c.b16 %v4454, %v4450
      %v4507 = vpack.c.b16 %v4455, %v4451
      %v4508 = vpack.c.b16 %v4456, %v4452
      %v4509 = vpack.c.b16 %v4461, %v4457
      %v4510 = vpack.c.b16 %v4462, %v4458
      %v4511 = vpack.c.b16 %v4463, %v4459
      %v4512 = vpack.c.b16 %v4464, %v4460
      %v4513 = vpack.c.b16 %v4469, %v4465
      %v4514 = vpack.c.b16 %v4470, %v4466
      %v4515 = vpack.c.b16 %v4471, %v4467
      %v4516 = vpack.c.b16 %v4472, %v4468
      %v4517 = vpack.c.b16 %v4477, %v4473
      %v4518 = vpack.c.b16 %v4478, %v4474
      %v4519 = vpack.c.b16 %v4479, %v4475
      %v4520 = vpack.c.b16 %v4480, %v4476
      %v4521 = vpack.c.b16 %v4485, %v4481
      %v4522 = vpack.c.b16 %v4486, %v4482
      %v4523 = vpack.c.b16 %v4487, %v4483
      %v4524 = vpack.c.b16 %v4488, %v4484
      %v4525 = vpack.c.b16 %v4493, %v4489
      %v4526 = vpack.c.b16 %v4494, %v4490
      %v4527 = vpack.c.b16 %v4495, %v4491
      %v4528 = vpack.c.b16 %v4496, %v4492
      %4561 = vmatpush.bf16.msra.mxu0 %v4264
      %4562 = vmatpush.bf16.msra.mxu0 %v4263
      %4563 = vmatpush.bf16.msra.mxu0 %v4262
      %4564 = vmatpush.bf16.msra.mxu0 %v4261
      %4565 = vmatpush.bf16.msra.mxu0 %v4260
      %4566 = vmatpush.bf16.msra.mxu0 %v4259
      %4567 = vmatpush.bf16.msra.mxu0 %v4258
      %4568 = vmatpush.bf16.msra.mxu0 %v4257
      %4569 = vmatmul.bf16.gmra.mxu0 %v4497
      %v4570 = vpop.f32.mrf.mxu0
      %v4571 = vadd.f32 0.0, %v4570
      %v4572 = vpop.f32.mrf.mxu0
      %v4573 = vadd.f32 0.0, %v4572
      %4574 = vmatmul.bf16.gmra.mxu0 %v4501
      %v4575 = vpop.f32.mrf.mxu0
      %v4576 = vadd.f32 0.0, %v4575
      %v4577 = vpop.f32.mrf.mxu0
      %v4578 = vadd.f32 0.0, %v4577
      %4579 = vmatmul.bf16.gmra.mxu0 %v4505
      %v4580 = vpop.f32.mrf.mxu0
      %v4581 = vadd.f32 0.0, %v4580
      %v4582 = vpop.f32.mrf.mxu0
      %v4583 = vadd.f32 0.0, %v4582
      %4584 = vmatmul.bf16.gmra.mxu0 %v4509
      %v4585 = vpop.f32.mrf.mxu0
      %v4586 = vadd.f32 0.0, %v4585
      %v4587 = vpop.f32.mrf.mxu0
      %v4588 = vadd.f32 0.0, %v4587
      %4589 = vmatmul.bf16.gmra.mxu0 %v4513
      %v4590 = vpop.f32.mrf.mxu0
      %v4591 = vadd.f32 0.0, %v4590
      %v4592 = vpop.f32.mrf.mxu0
      %v4593 = vadd.f32 0.0, %v4592
      %4594 = vmatmul.bf16.gmra.mxu0 %v4517
      %v4595 = vpop.f32.mrf.mxu0
      %v4596 = vadd.f32 0.0, %v4595
      %v4597 = vpop.f32.mrf.mxu0
      %v4598 = vadd.f32 0.0, %v4597
      %4599 = vmatmul.bf16.gmra.mxu0 %v4521
      %v4600 = vpop.f32.mrf.mxu0
      %v4601 = vadd.f32 0.0, %v4600
      %v4602 = vpop.f32.mrf.mxu0
      %v4603 = vadd.f32 0.0, %v4602
      %4604 = vmatmul.bf16.gmra.mxu0 %v4525
      %v4605 = vpop.f32.mrf.mxu0
      %v4606 = vadd.f32 0.0, %v4605
      %v4607 = vpop.f32.mrf.mxu0
      %v4608 = vadd.f32 0.0, %v4607
      %4609 = vdwg.mxu0
      %4610 = vmatpush.bf16.msra.mxu0 %v4272
      %4611 = vmatpush.bf16.msra.mxu0 %v4271
      %4612 = vmatpush.bf16.msra.mxu0 %v4270
      %4613 = vmatpush.bf16.msra.mxu0 %v4269
      %4614 = vmatpush.bf16.msra.mxu0 %v4268
      %4615 = vmatpush.bf16.msra.mxu0 %v4267
      %4616 = vmatpush.bf16.msra.mxu0 %v4266
      %4617 = vmatpush.bf16.msra.mxu0 %v4265
      %4618 = vmatmul.bf16.gmra.mxu0 %v4498
      %v4619 = vpop.f32.mrf.mxu0
      %v4620 = vadd.f32 %v4571, %v4619
      %v4621 = vpop.f32.mrf.mxu0
      %v4622 = vadd.f32 %v4573, %v4621
      %4623 = vmatmul.bf16.gmra.mxu0 %v4502
      %v4624 = vpop.f32.mrf.mxu0
      %v4625 = vadd.f32 %v4576, %v4624
      %v4626 = vpop.f32.mrf.mxu0
      %v4627 = vadd.f32 %v4578, %v4626
      %4628 = vmatmul.bf16.gmra.mxu0 %v4506
      %v4629 = vpop.f32.mrf.mxu0
      %v4630 = vadd.f32 %v4581, %v4629
      %v4631 = vpop.f32.mrf.mxu0
      %v4632 = vadd.f32 %v4583, %v4631
      %4633 = vmatmul.bf16.gmra.mxu0 %v4510
      %v4634 = vpop.f32.mrf.mxu0
      %v4635 = vadd.f32 %v4586, %v4634
      %v4636 = vpop.f32.mrf.mxu0
      %v4637 = vadd.f32 %v4588, %v4636
      %4638 = vmatmul.bf16.gmra.mxu0 %v4514
      %v4639 = vpop.f32.mrf.mxu0
      %v4640 = vadd.f32 %v4591, %v4639
      %v4641 = vpop.f32.mrf.mxu0
      %v4642 = vadd.f32 %v4593, %v4641
      %4643 = vmatmul.bf16.gmra.mxu0 %v4518
      %v4644 = vpop.f32.mrf.mxu0
      %v4645 = vadd.f32 %v4596, %v4644
      %v4646 = vpop.f32.mrf.mxu0
      %v4647 = vadd.f32 %v4598, %v4646
      %4648 = vmatmul.bf16.gmra.mxu0 %v4522
      %v4649 = vpop.f32.mrf.mxu0
      %v4650 = vadd.f32 %v4601, %v4649
      %v4651 = vpop.f32.mrf.mxu0
      %v4652 = vadd.f32 %v4603, %v4651
      %4653 = vmatmul.bf16.gmra.mxu0 %v4526
      %v4654 = vpop.f32.mrf.mxu0
      %v4655 = vadd.f32 %v4606, %v4654
      %v4656 = vpop.f32.mrf.mxu0
      %v4657 = vadd.f32 %v4608, %v4656
      %4658 = vdwg.mxu0
      %4659 = vmatpush.bf16.msra.mxu0 %v4280
      %4660 = vmatpush.bf16.msra.mxu0 %v4279
      %4661 = vmatpush.bf16.msra.mxu0 %v4278
      %4662 = vmatpush.bf16.msra.mxu0 %v4277
      %4663 = vmatpush.bf16.msra.mxu0 %v4276
      %4664 = vmatpush.bf16.msra.mxu0 %v4275
      %4665 = vmatpush.bf16.msra.mxu0 %v4274
      %4666 = vmatpush.bf16.msra.mxu0 %v4273
      %4667 = vmatmul.bf16.gmra.mxu0 %v4499
      %v4668 = vpop.f32.mrf.mxu0
      %v4669 = vadd.f32 %v4620, %v4668
      %v4670 = vpop.f32.mrf.mxu0
      %v4671 = vadd.f32 %v4622, %v4670
      %4672 = vmatmul.bf16.gmra.mxu0 %v4503
      %v4673 = vpop.f32.mrf.mxu0
      %v4674 = vadd.f32 %v4625, %v4673
      %v4675 = vpop.f32.mrf.mxu0
      %v4676 = vadd.f32 %v4627, %v4675
      %4677 = vmatmul.bf16.gmra.mxu0 %v4507
      %v4678 = vpop.f32.mrf.mxu0
      %v4679 = vadd.f32 %v4630, %v4678
      %v4680 = vpop.f32.mrf.mxu0
      %v4681 = vadd.f32 %v4632, %v4680
      %4682 = vmatmul.bf16.gmra.mxu0 %v4511
      %v4683 = vpop.f32.mrf.mxu0
      %v4684 = vadd.f32 %v4635, %v4683
      %v4685 = vpop.f32.mrf.mxu0
      %v4686 = vadd.f32 %v4637, %v4685
      %4687 = vmatmul.bf16.gmra.mxu0 %v4515
      %v4688 = vpop.f32.mrf.mxu0
      %v4689 = vadd.f32 %v4640, %v4688
      %v4690 = vpop.f32.mrf.mxu0
      %v4691 = vadd.f32 %v4642, %v4690
      %4692 = vmatmul.bf16.gmra.mxu0 %v4519
      %v4693 = vpop.f32.mrf.mxu0
      %v4694 = vadd.f32 %v4645, %v4693
      %v4695 = vpop.f32.mrf.mxu0
      %v4696 = vadd.f32 %v4647, %v4695
      %4697 = vmatmul.bf16.gmra.mxu0 %v4523
      %v4698 = vpop.f32.mrf.mxu0
      %v4699 = vadd.f32 %v4650, %v4698
      %v4700 = vpop.f32.mrf.mxu0
      %v4701 = vadd.f32 %v4652, %v4700
      %4702 = vmatmul.bf16.gmra.mxu0 %v4527
      %v4703 = vpop.f32.mrf.mxu0
      %v4704 = vadd.f32 %v4655, %v4703
      %v4705 = vpop.f32.mrf.mxu0
      %v4706 = vadd.f32 %v4657, %v4705
      %4707 = vdwg.mxu0
      %4708 = vmatpush.bf16.msra.mxu0 %v4288
      %4709 = vmatpush.bf16.msra.mxu0 %v4287
      %4710 = vmatpush.bf16.msra.mxu0 %v4286
      %4711 = vmatpush.bf16.msra.mxu0 %v4285
      %4712 = vmatpush.bf16.msra.mxu0 %v4284
      %4713 = vmatpush.bf16.msra.mxu0 %v4283
      %4714 = vmatpush.bf16.msra.mxu0 %v4282
      %4715 = vmatpush.bf16.msra.mxu0 %v4281
      %4716 = vmatmul.bf16.gmra.mxu0 %v4500
      %v4717 = vpop.f32.mrf.mxu0
      %v4718 = vadd.f32 %v4669, %v4717
      %v4719 = vpop.f32.mrf.mxu0
      %v4720 = vadd.f32 %v4671, %v4719
      %4721 = vmatmul.bf16.gmra.mxu0 %v4504
      %v4722 = vpop.f32.mrf.mxu0
      %v4723 = vadd.f32 %v4674, %v4722
      %v4724 = vpop.f32.mrf.mxu0
      %v4725 = vadd.f32 %v4676, %v4724
      %4726 = vmatmul.bf16.gmra.mxu0 %v4508
      %v4727 = vpop.f32.mrf.mxu0
      %v4728 = vadd.f32 %v4679, %v4727
      %v4729 = vpop.f32.mrf.mxu0
      %v4730 = vadd.f32 %v4681, %v4729
      %4731 = vmatmul.bf16.gmra.mxu0 %v4512
      %v4732 = vpop.f32.mrf.mxu0
      %v4733 = vadd.f32 %v4684, %v4732
      %v4734 = vpop.f32.mrf.mxu0
      %v4735 = vadd.f32 %v4686, %v4734
      %4736 = vmatmul.bf16.gmra.mxu0 %v4516
      %v4737 = vpop.f32.mrf.mxu0
      %v4738 = vadd.f32 %v4689, %v4737
      %v4739 = vpop.f32.mrf.mxu0
      %v4740 = vadd.f32 %v4691, %v4739
      %4741 = vmatmul.bf16.gmra.mxu0 %v4520
      %v4742 = vpop.f32.mrf.mxu0
      %v4743 = vadd.f32 %v4694, %v4742
      %v4744 = vpop.f32.mrf.mxu0
      %v4745 = vadd.f32 %v4696, %v4744
      %4746 = vmatmul.bf16.gmra.mxu0 %v4524
      %v4747 = vpop.f32.mrf.mxu0
      %v4748 = vadd.f32 %v4699, %v4747
      %v4749 = vpop.f32.mrf.mxu0
      %v4750 = vadd.f32 %v4701, %v4749
      %4751 = vmatmul.bf16.gmra.mxu0 %v4528
      %v4752 = vpop.f32.mrf.mxu0
      %v4753 = vadd.f32 %v4704, %v4752
      %v4754 = vpop.f32.mrf.mxu0
      %v4755 = vadd.f32 %v4706, %v4754
      %4756 = vdwg.mxu0
      %v4757 = vld [vmem:[%s330 + $0x80] sm:$0xf]
      %v4758 = vld [vmem:[%s330 + $0x84] sm:$0xf]
      %v4759 = vunpack.c.l.bf16 %v4757
      %v4760 = vunpack.c.l.bf16 %v4758
      %v4763 = vunpack.c.l.b16 %v4397
      %v4764 = vunpack.c.h.b16 %v4397
      %v4765 = vunpack.c.l.b16 %v4398
      %v4766 = vunpack.c.h.b16 %v4398
      %v4767 = vpack.c.b16 %v4763, %v4763
      %v4768 = vpack.c.b16 %v4764, %v4764
      %v4769 = vpack.c.b16 %v4765, %v4765
      %v4770 = vpack.c.b16 %v4766, %v4766
      %v4772 = vpack.i.b16 %v4767, %v4767
      %v4774 = vperm.slane %v4772, 0
      %v4776 = vpack.i.b16 %v4768, %v4768
      %v4778 = vperm.slane %v4776, 0
      %v4780 = vpack.i.b16 %v4769, %v4769
      %v4782 = vperm.slane %v4780, 0
      %v4784 = vpack.i.b16 %v4770, %v4770
      %v4786 = vperm.slane %v4784, 0
      %v4787 = vunpack.c.l.bf16 %v4774
      %v4788 = vunpack.c.l.bf16 %v4778
      %v4789 = vunpack.c.l.bf16 %v4782
      %v4790 = vunpack.c.l.bf16 %v4786
      %v4791 = vunpack.c.l.bf16 %v621
      %v4792 = vunpack.c.h.bf16 %v621
      %v4793 = vunpack.c.l.bf16 %v622
      %v4794 = vunpack.c.h.bf16 %v622
      %v4795 = vunpack.c.l.bf16 %v623
      %v4796 = vunpack.c.h.bf16 %v623
      %v4797 = vunpack.c.l.bf16 %v624
      %v4798 = vunpack.c.h.bf16 %v624
      %v4799 = vunpack.c.l.bf16 %v625
      %v4800 = vunpack.c.h.bf16 %v625
      %v4801 = vunpack.c.l.bf16 %v626
      %v4802 = vunpack.c.h.bf16 %v626
      %v4803 = vunpack.c.l.bf16 %v627
      %v4804 = vunpack.c.h.bf16 %v627
      %v4805 = vunpack.c.l.bf16 %v628
      %v4806 = vunpack.c.h.bf16 %v628
      %v4807 = vunpack.c.l.bf16 %v629
      %v4808 = vunpack.c.h.bf16 %v629
      %v4809 = vunpack.c.l.bf16 %v630
      %v4810 = vunpack.c.h.bf16 %v630
      %v4811 = vunpack.c.l.bf16 %v631
      %v4812 = vunpack.c.h.bf16 %v631
      %v4813 = vunpack.c.l.bf16 %v632
      %v4814 = vunpack.c.h.bf16 %v632
      %v4815 = vunpack.c.l.bf16 %v633
      %v4816 = vunpack.c.h.bf16 %v633
      %v4817 = vunpack.c.l.bf16 %v634
      %v4818 = vunpack.c.h.bf16 %v634
      %v4819 = vunpack.c.l.bf16 %v635
      %v4820 = vunpack.c.h.bf16 %v635
      %v4821 = vunpack.c.l.bf16 %v636
      %v4822 = vunpack.c.h.bf16 %v636
      %v4823 = vunpack.c.l.bf16 %v637
      %v4824 = vunpack.c.h.bf16 %v637
      %v4825 = vunpack.c.l.bf16 %v638
      %v4826 = vunpack.c.h.bf16 %v638
      %v4827 = vunpack.c.l.bf16 %v639
      %v4828 = vunpack.c.h.bf16 %v639
      %v4829 = vunpack.c.l.bf16 %v640
      %v4830 = vunpack.c.h.bf16 %v640
      %v4831 = vunpack.c.l.bf16 %v641
      %v4832 = vunpack.c.h.bf16 %v641
      %v4833 = vunpack.c.l.bf16 %v642
      %v4834 = vunpack.c.h.bf16 %v642
      %v4835 = vunpack.c.l.bf16 %v643
      %v4836 = vunpack.c.h.bf16 %v643
      %v4837 = vunpack.c.l.bf16 %v644
      %v4838 = vunpack.c.h.bf16 %v644
      %v4839 = vunpack.c.l.bf16 %v645
      %v4840 = vunpack.c.h.bf16 %v645
      %v4841 = vunpack.c.l.bf16 %v646
      %v4842 = vunpack.c.h.bf16 %v646
      %v4843 = vunpack.c.l.bf16 %v647
      %v4844 = vunpack.c.h.bf16 %v647
      %v4845 = vunpack.c.l.bf16 %v648
      %v4846 = vunpack.c.h.bf16 %v648
      %v4847 = vunpack.c.l.bf16 %v649
      %v4848 = vunpack.c.h.bf16 %v649
      %v4849 = vunpack.c.l.bf16 %v650
      %v4850 = vunpack.c.h.bf16 %v650
      %v4851 = vunpack.c.l.bf16 %v651
      %v4852 = vunpack.c.h.bf16 %v651
      %v4853 = vunpack.c.l.bf16 %v652
      %v4854 = vunpack.c.h.bf16 %v652
      %v4855 = vadd.f32 %v4787, %v4791
      %v4856 = vadd.f32 %v4788, %v4792
      %v4857 = vadd.f32 %v4789, %v4793
      %v4858 = vadd.f32 %v4790, %v4794
      %v4859 = vadd.f32 %v4787, %v4795
      %v4860 = vadd.f32 %v4788, %v4796
      %v4861 = vadd.f32 %v4789, %v4797
      %v4862 = vadd.f32 %v4790, %v4798
      %v4863 = vadd.f32 %v4787, %v4799
      %v4864 = vadd.f32 %v4788, %v4800
      %v4865 = vadd.f32 %v4789, %v4801
      %v4866 = vadd.f32 %v4790, %v4802
      %v4867 = vadd.f32 %v4787, %v4803
      %v4868 = vadd.f32 %v4788, %v4804
      %v4869 = vadd.f32 %v4789, %v4805
      %v4870 = vadd.f32 %v4790, %v4806
      %v4871 = vadd.f32 %v4787, %v4807
      %v4872 = vadd.f32 %v4788, %v4808
      %v4873 = vadd.f32 %v4789, %v4809
      %v4874 = vadd.f32 %v4790, %v4810
      %v4875 = vadd.f32 %v4787, %v4811
      %v4876 = vadd.f32 %v4788, %v4812
      %v4877 = vadd.f32 %v4789, %v4813
      %v4878 = vadd.f32 %v4790, %v4814
      %v4879 = vadd.f32 %v4787, %v4815
      %v4880 = vadd.f32 %v4788, %v4816
      %v4881 = vadd.f32 %v4789, %v4817
      %v4882 = vadd.f32 %v4790, %v4818
      %v4883 = vadd.f32 %v4787, %v4819
      %v4884 = vadd.f32 %v4788, %v4820
      %v4885 = vadd.f32 %v4789, %v4821
      %v4886 = vadd.f32 %v4790, %v4822
      %v4887 = vadd.f32 %v4787, %v4823
      %v4888 = vadd.f32 %v4788, %v4824
      %v4889 = vadd.f32 %v4789, %v4825
      %v4890 = vadd.f32 %v4790, %v4826
      %v4891 = vadd.f32 %v4787, %v4827
      %v4892 = vadd.f32 %v4788, %v4828
      %v4893 = vadd.f32 %v4789, %v4829
      %v4894 = vadd.f32 %v4790, %v4830
      %v4895 = vadd.f32 %v4787, %v4831
      %v4896 = vadd.f32 %v4788, %v4832
      %v4897 = vadd.f32 %v4789, %v4833
      %v4898 = vadd.f32 %v4790, %v4834
      %v4899 = vadd.f32 %v4787, %v4835
      %v4900 = vadd.f32 %v4788, %v4836
      %v4901 = vadd.f32 %v4789, %v4837
      %v4902 = vadd.f32 %v4790, %v4838
      %v4903 = vadd.f32 %v4787, %v4839
      %v4904 = vadd.f32 %v4788, %v4840
      %v4905 = vadd.f32 %v4789, %v4841
      %v4906 = vadd.f32 %v4790, %v4842
      %v4907 = vadd.f32 %v4787, %v4843
      %v4908 = vadd.f32 %v4788, %v4844
      %v4909 = vadd.f32 %v4789, %v4845
      %v4910 = vadd.f32 %v4790, %v4846
      %v4911 = vadd.f32 %v4787, %v4847
      %v4912 = vadd.f32 %v4788, %v4848
      %v4913 = vadd.f32 %v4789, %v4849
      %v4914 = vadd.f32 %v4790, %v4850
      %v4915 = vadd.f32 %v4787, %v4851
      %v4916 = vadd.f32 %v4788, %v4852
      %v4917 = vadd.f32 %v4789, %v4853
      %v4918 = vadd.f32 %v4790, %v4854
      %v4919 = vpack.c.bf16 %v4859, %v4855
      %v4920 = vpack.c.bf16 %v4860, %v4856
      %v4921 = vpack.c.bf16 %v4861, %v4857
      %v4922 = vpack.c.bf16 %v4862, %v4858
      %v4923 = vpack.c.bf16 %v4867, %v4863
      %v4924 = vpack.c.bf16 %v4868, %v4864
      %v4925 = vpack.c.bf16 %v4869, %v4865
      %v4926 = vpack.c.bf16 %v4870, %v4866
      %v4927 = vpack.c.bf16 %v4875, %v4871
      %v4928 = vpack.c.bf16 %v4876, %v4872
      %v4929 = vpack.c.bf16 %v4877, %v4873
      %v4930 = vpack.c.bf16 %v4878, %v4874
      %v4931 = vpack.c.bf16 %v4883, %v4879
      %v4932 = vpack.c.bf16 %v4884, %v4880
      %v4933 = vpack.c.bf16 %v4885, %v4881
      %v4934 = vpack.c.bf16 %v4886, %v4882
      %v4935 = vpack.c.bf16 %v4891, %v4887
      %v4936 = vpack.c.bf16 %v4892, %v4888
      %v4937 = vpack.c.bf16 %v4893, %v4889
      %v4938 = vpack.c.bf16 %v4894, %v4890
      %v4939 = vpack.c.bf16 %v4899, %v4895
      %v4940 = vpack.c.bf16 %v4900, %v4896
      %v4941 = vpack.c.bf16 %v4901, %v4897
      %v4942 = vpack.c.bf16 %v4902, %v4898
      %v4943 = vpack.c.bf16 %v4907, %v4903
      %v4944 = vpack.c.bf16 %v4908, %v4904
      %v4945 = vpack.c.bf16 %v4909, %v4905
      %v4946 = vpack.c.bf16 %v4910, %v4906
      %v4947 = vpack.c.bf16 %v4915, %v4911
      %v4948 = vpack.c.bf16 %v4916, %v4912
      %v4949 = vpack.c.bf16 %v4917, %v4913
      %v4950 = vpack.c.bf16 %v4918, %v4914
      %v4951 = vunpack.c.l.bf16 %v4919
      %v4952 = vunpack.c.l.bf16 %v4920
      %v4953 = vunpack.c.l.bf16 %v4921
      %v4954 = vunpack.c.l.bf16 %v4922
      %v4955 = vunpack.c.h.bf16 %v4919
      %v4956 = vunpack.c.h.bf16 %v4920
      %v4957 = vunpack.c.h.bf16 %v4921
      %v4958 = vunpack.c.h.bf16 %v4922
      %v4959 = vunpack.c.l.bf16 %v4923
      %v4960 = vunpack.c.l.bf16 %v4924
      %v4961 = vunpack.c.l.bf16 %v4925
      %v4962 = vunpack.c.l.bf16 %v4926
      %v4963 = vunpack.c.h.bf16 %v4923
      %v4964 = vunpack.c.h.bf16 %v4924
      %v4965 = vunpack.c.h.bf16 %v4925
      %v4966 = vunpack.c.h.bf16 %v4926
      %v4967 = vunpack.c.l.bf16 %v4927
      %v4968 = vunpack.c.l.bf16 %v4928
      %v4969 = vunpack.c.l.bf16 %v4929
      %v4970 = vunpack.c.l.bf16 %v4930
      %v4971 = vunpack.c.h.bf16 %v4927
      %v4972 = vunpack.c.h.bf16 %v4928
      %v4973 = vunpack.c.h.bf16 %v4929
      %v4974 = vunpack.c.h.bf16 %v4930
      %v4975 = vunpack.c.l.bf16 %v4931
      %v4976 = vunpack.c.l.bf16 %v4932
      %v4977 = vunpack.c.l.bf16 %v4933
      %v4978 = vunpack.c.l.bf16 %v4934
      %v4979 = vunpack.c.h.bf16 %v4931
      %v4980 = vunpack.c.h.bf16 %v4932
      %v4981 = vunpack.c.h.bf16 %v4933
      %v4982 = vunpack.c.h.bf16 %v4934
      %v4983 = vunpack.c.l.bf16 %v4935
      %v4984 = vunpack.c.l.bf16 %v4936
      %v4985 = vunpack.c.l.bf16 %v4937
      %v4986 = vunpack.c.l.bf16 %v4938
      %v4987 = vunpack.c.h.bf16 %v4935
      %v4988 = vunpack.c.h.bf16 %v4936
      %v4989 = vunpack.c.h.bf16 %v4937
      %v4990 = vunpack.c.h.bf16 %v4938
      %v4991 = vunpack.c.l.bf16 %v4939
      %v4992 = vunpack.c.l.bf16 %v4940
      %v4993 = vunpack.c.l.bf16 %v4941
      %v4994 = vunpack.c.l.bf16 %v4942
      %v4995 = vunpack.c.h.bf16 %v4939
      %v4996 = vunpack.c.h.bf16 %v4940
      %v4997 = vunpack.c.h.bf16 %v4941
      %v4998 = vunpack.c.h.bf16 %v4942
      %v4999 = vunpack.c.l.bf16 %v4943
      %v5000 = vunpack.c.l.bf16 %v4944
      %v5001 = vunpack.c.l.bf16 %v4945
      %v5002 = vunpack.c.l.bf16 %v4946
      %v5003 = vunpack.c.h.bf16 %v4943
      %v5004 = vunpack.c.h.bf16 %v4944
      %v5005 = vunpack.c.h.bf16 %v4945
      %v5006 = vunpack.c.h.bf16 %v4946
      %v5007 = vunpack.c.l.bf16 %v4947
      %v5008 = vunpack.c.l.bf16 %v4948
      %v5009 = vunpack.c.l.bf16 %v4949
      %v5010 = vunpack.c.l.bf16 %v4950
      %v5011 = vunpack.c.h.bf16 %v4947
      %v5012 = vunpack.c.h.bf16 %v4948
      %v5013 = vunpack.c.h.bf16 %v4949
      %v5014 = vunpack.c.h.bf16 %v4950
      %v5015 = vmax.f32 %v4951, %v4952
      %v5016 = vmax.f32 %v5015, %v4953
      %v5017 = vmax.f32 %v5016, %v4954
      %5018 = vmax.xlane.f32.xlu0 %v5017
      %v5019 = vpop.xlane.xlu0 %5018
      %v5020 = vmax.f32 %v4955, %v4956
      %v5021 = vmax.f32 %v5020, %v4957
      %v5022 = vmax.f32 %v5021, %v4958
      %5023 = vmax.xlane.f32.xlu0 %v5022
      %v5024 = vpop.xlane.xlu0 %5023
      %v5025 = vmax.f32 %v4959, %v4960
      %v5026 = vmax.f32 %v5025, %v4961
      %v5027 = vmax.f32 %v5026, %v4962
      %5028 = vmax.xlane.f32.xlu0 %v5027
      %v5029 = vpop.xlane.xlu0 %5028
      %v5030 = vmax.f32 %v4963, %v4964
      %v5031 = vmax.f32 %v5030, %v4965
      %v5032 = vmax.f32 %v5031, %v4966
      %5033 = vmax.xlane.f32.xlu0 %v5032
      %v5034 = vpop.xlane.xlu0 %5033
      %v5035 = vmax.f32 %v4967, %v4968
      %v5036 = vmax.f32 %v5035, %v4969
      %v5037 = vmax.f32 %v5036, %v4970
      %5038 = vmax.xlane.f32.xlu0 %v5037
      %v5039 = vpop.xlane.xlu0 %5038
      %v5040 = vmax.f32 %v4971, %v4972
      %v5041 = vmax.f32 %v5040, %v4973
      %v5042 = vmax.f32 %v5041, %v4974
      %5043 = vmax.xlane.f32.xlu0 %v5042
      %v5044 = vpop.xlane.xlu0 %5043
      %v5045 = vmax.f32 %v4975, %v4976
      %v5046 = vmax.f32 %v5045, %v4977
      %v5047 = vmax.f32 %v5046, %v4978
      %5048 = vmax.xlane.f32.xlu0 %v5047
      %v5049 = vpop.xlane.xlu0 %5048
      %v5050 = vmax.f32 %v4979, %v4980
      %v5051 = vmax.f32 %v5050, %v4981
      %v5052 = vmax.f32 %v5051, %v4982
      %5053 = vmax.xlane.f32.xlu0 %v5052
      %v5054 = vpop.xlane.xlu0 %5053
      %v5055 = vmax.f32 %v4983, %v4984
      %v5056 = vmax.f32 %v5055, %v4985
      %v5057 = vmax.f32 %v5056, %v4986
      %5058 = vmax.xlane.f32.xlu0 %v5057
      %v5059 = vpop.xlane.xlu0 %5058
      %v5060 = vmax.f32 %v4987, %v4988
      %v5061 = vmax.f32 %v5060, %v4989
      %v5062 = vmax.f32 %v5061, %v4990
      %5063 = vmax.xlane.f32.xlu0 %v5062
      %v5064 = vpop.xlane.xlu0 %5063
      %v5065 = vmax.f32 %v4991, %v4992
      %v5066 = vmax.f32 %v5065, %v4993
      %v5067 = vmax.f32 %v5066, %v4994
      %5068 = vmax.xlane.f32.xlu0 %v5067
      %v5069 = vpop.xlane.xlu0 %5068
      %v5070 = vmax.f32 %v4995, %v4996
      %v5071 = vmax.f32 %v5070, %v4997
      %v5072 = vmax.f32 %v5071, %v4998
      %5073 = vmax.xlane.f32.xlu0 %v5072
      %v5074 = vpop.xlane.xlu0 %5073
      %v5075 = vmax.f32 %v4999, %v5000
      %v5076 = vmax.f32 %v5075, %v5001
      %v5077 = vmax.f32 %v5076, %v5002
      %5078 = vmax.xlane.f32.xlu0 %v5077
      %v5079 = vpop.xlane.xlu0 %5078
      %v5080 = vmax.f32 %v5003, %v5004
      %v5081 = vmax.f32 %v5080, %v5005
      %v5082 = vmax.f32 %v5081, %v5006
      %5083 = vmax.xlane.f32.xlu0 %v5082
      %v5084 = vpop.xlane.xlu0 %5083
      %v5085 = vmax.f32 %v5007, %v5008
      %v5086 = vmax.f32 %v5085, %v5009
      %v5087 = vmax.f32 %v5086, %v5010
      %5088 = vmax.xlane.f32.xlu0 %v5087
      %v5089 = vpop.xlane.xlu0 %5088
      %v5090 = vmax.f32 %v5011, %v5012
      %v5091 = vmax.f32 %v5090, %v5013
      %v5092 = vmax.f32 %v5091, %v5014
      %5093 = vmax.xlane.f32.xlu0 %v5092
      %v5094 = vpop.xlane.xlu0 %5093
      %v5095 = vpack.c.bf16 %v5019, %v5019
      %v5096 = vpack.c.bf16 %v5024, %v5024
      %v5097 = vpack.c.bf16 %v5029, %v5029
      %v5098 = vpack.c.bf16 %v5034, %v5034
      %v5099 = vpack.c.bf16 %v5039, %v5039
      %v5100 = vpack.c.bf16 %v5044, %v5044
      %v5101 = vpack.c.bf16 %v5049, %v5049
      %v5102 = vpack.c.bf16 %v5054, %v5054
      %v5103 = vpack.c.bf16 %v5059, %v5059
      %v5104 = vpack.c.bf16 %v5064, %v5064
      %v5105 = vpack.c.bf16 %v5069, %v5069
      %v5106 = vpack.c.bf16 %v5074, %v5074
      %v5107 = vpack.c.bf16 %v5079, %v5079
      %v5108 = vpack.c.bf16 %v5084, %v5084
      %v5109 = vpack.c.bf16 %v5089, %v5089
      %v5110 = vpack.c.bf16 %v5094, %v5094
      %v5111 = vunpack.c.l.bf16 %v5095
      %v5112 = vunpack.c.l.bf16 %v5096
      %v5113 = vunpack.c.l.bf16 %v5097
      %v5114 = vunpack.c.l.bf16 %v5098
      %v5115 = vunpack.c.l.bf16 %v5099
      %v5116 = vunpack.c.l.bf16 %v5100
      %v5117 = vunpack.c.l.bf16 %v5101
      %v5118 = vunpack.c.l.bf16 %v5102
      %v5119 = vunpack.c.l.bf16 %v5103
      %v5120 = vunpack.c.l.bf16 %v5104
      %v5121 = vunpack.c.l.bf16 %v5105
      %v5122 = vunpack.c.l.bf16 %v5106
      %v5123 = vunpack.c.l.bf16 %v5107
      %v5124 = vunpack.c.l.bf16 %v5108
      %v5125 = vunpack.c.l.bf16 %v5109
      %v5126 = vunpack.c.l.bf16 %v5110
      %v5127 = vmul.f32 %v5111, %v653
      %v5128 = vmul.f32 %v5112, %v654
      %v5129 = vmul.f32 %v5113, %v655
      %v5130 = vmul.f32 %v5114, %v656
      %v5131 = vmul.f32 %v5115, %v657
      %v5132 = vmul.f32 %v5116, %v658
      %v5133 = vmul.f32 %v5117, %v659
      %v5134 = vmul.f32 %v5118, %v660
      %v5135 = vmul.f32 %v5119, %v661
      %v5136 = vmul.f32 %v5120, %v662
      %v5137 = vmul.f32 %v5121, %v663
      %v5138 = vmul.f32 %v5122, %v664
      %v5139 = vmul.f32 %v5123, %v665
      %v5140 = vmul.f32 %v5124, %v666
      %v5141 = vmul.f32 %v5125, %v667
      %v5142 = vmul.f32 %v5126, %v668
      %5144 = vset.pattern.permute.xlu0 0
      %5145 = vperm.xlu0 %5144, %v5127
      %v5146 = vpop.permute.xlu0 %5145
      %5149 = vset.pattern.permute.xlu0 0
      %5150 = vperm.xlu0 %5149, %v5128
      %v5151 = vpop.permute.xlu0 %5150
      %5154 = vset.pattern.permute.xlu0 0
      %5155 = vperm.xlu0 %5154, %v5129
      %v5156 = vpop.permute.xlu0 %5155
      %5159 = vset.pattern.permute.xlu0 0
      %5160 = vperm.xlu0 %5159, %v5130
      %v5161 = vpop.permute.xlu0 %5160
      %5164 = vset.pattern.permute.xlu0 0
      %5165 = vperm.xlu0 %5164, %v5131
      %v5166 = vpop.permute.xlu0 %5165
      %5169 = vset.pattern.permute.xlu0 0
      %5170 = vperm.xlu0 %5169, %v5132
      %v5171 = vpop.permute.xlu0 %5170
      %5174 = vset.pattern.permute.xlu0 0
      %5175 = vperm.xlu0 %5174, %v5133
      %v5176 = vpop.permute.xlu0 %5175
      %5179 = vset.pattern.permute.xlu0 0
      %5180 = vperm.xlu0 %5179, %v5134
      %v5181 = vpop.permute.xlu0 %5180
      %5184 = vset.pattern.permute.xlu0 0
      %5185 = vperm.xlu0 %5184, %v5135
      %v5186 = vpop.permute.xlu0 %5185
      %5189 = vset.pattern.permute.xlu0 0
      %5190 = vperm.xlu0 %5189, %v5136
      %v5191 = vpop.permute.xlu0 %5190
      %5194 = vset.pattern.permute.xlu0 0
      %5195 = vperm.xlu0 %5194, %v5137
      %v5196 = vpop.permute.xlu0 %5195
      %5199 = vset.pattern.permute.xlu0 0
      %5200 = vperm.xlu0 %5199, %v5138
      %v5201 = vpop.permute.xlu0 %5200
      %5204 = vset.pattern.permute.xlu0 0
      %5205 = vperm.xlu0 %5204, %v5139
      %v5206 = vpop.permute.xlu0 %5205
      %5209 = vset.pattern.permute.xlu0 0
      %5210 = vperm.xlu0 %5209, %v5140
      %v5211 = vpop.permute.xlu0 %5210
      %5214 = vset.pattern.permute.xlu0 0
      %5215 = vperm.xlu0 %5214, %v5141
      %v5216 = vpop.permute.xlu0 %5215
      %5219 = vset.pattern.permute.xlu0 0
      %5220 = vperm.xlu0 %5219, %v5142
      %v5221 = vpop.permute.xlu0 %5220
      %v5223 = vperm.slane %v4759, 0
      %v5224 = vmul.f32 %v5146, %v5223
      %v5225 = vmul.f32 %v5151, %v5223
      %v5226 = vmul.f32 %v5156, %v5223
      %v5227 = vmul.f32 %v5161, %v5223
      %v5228 = vmul.f32 %v5166, %v5223
      %v5229 = vmul.f32 %v5171, %v5223
      %v5230 = vmul.f32 %v5176, %v5223
      %v5231 = vmul.f32 %v5181, %v5223
      %v5232 = vmul.f32 %v5186, %v5223
      %v5233 = vmul.f32 %v5191, %v5223
      %v5234 = vmul.f32 %v5196, %v5223
      %v5235 = vmul.f32 %v5201, %v5223
      %v5236 = vmul.f32 %v5206, %v5223
      %v5237 = vmul.f32 %v5211, %v5223
      %v5238 = vmul.f32 %v5216, %v5223
      %v5239 = vmul.f32 %v5221, %v5223
      %v5240 = vadd.f32 %v5224, 0.0
      %v5241 = vadd.f32 %v5225, 0.0
      %v5242 = vadd.f32 %v5226, 0.0
      %v5243 = vadd.f32 %v5227, 0.0
      %v5244 = vadd.f32 %v5228, 0.0
      %v5245 = vadd.f32 %v5229, 0.0
      %v5246 = vadd.f32 %v5230, 0.0
      %v5247 = vadd.f32 %v5231, 0.0
      %v5248 = vadd.f32 %v5232, 0.0
      %v5249 = vadd.f32 %v5233, 0.0
      %v5250 = vadd.f32 %v5234, 0.0
      %v5251 = vadd.f32 %v5235, 0.0
      %v5252 = vadd.f32 %v5236, 0.0
      %v5253 = vadd.f32 %v5237, 0.0
      %v5254 = vadd.f32 %v5238, 0.0
      %v5255 = vadd.f32 %v5239, 0.0
      %v5256 = vshrl.u32 %v4767, 16
      %v5257 = vpack.i.b16 %v5256, %v5256
      %v5259 = vperm.slane %v5257, 0
      %v5260 = vshrl.u32 %v4768, 16
      %v5261 = vpack.i.b16 %v5260, %v5260
      %v5263 = vperm.slane %v5261, 0
      %v5264 = vshrl.u32 %v4769, 16
      %v5265 = vpack.i.b16 %v5264, %v5264
      %v5267 = vperm.slane %v5265, 0
      %v5268 = vshrl.u32 %v4770, 16
      %v5269 = vpack.i.b16 %v5268, %v5268
      %v5271 = vperm.slane %v5269, 0
      %v5272 = vunpack.c.l.bf16 %v5259
      %v5273 = vunpack.c.l.bf16 %v5263
      %v5274 = vunpack.c.l.bf16 %v5267
      %v5275 = vunpack.c.l.bf16 %v5271
      %v5276 = vadd.f32 %v5272, %v4791
      %v5277 = vadd.f32 %v5273, %v4792
      %v5278 = vadd.f32 %v5274, %v4793
      %v5279 = vadd.f32 %v5275, %v4794
      %v5280 = vadd.f32 %v5272, %v4795
      %v5281 = vadd.f32 %v5273, %v4796
      %v5282 = vadd.f32 %v5274, %v4797
      %v5283 = vadd.f32 %v5275, %v4798
      %v5284 = vadd.f32 %v5272, %v4799
      %v5285 = vadd.f32 %v5273, %v4800
      %v5286 = vadd.f32 %v5274, %v4801
      %v5287 = vadd.f32 %v5275, %v4802
      %v5288 = vadd.f32 %v5272, %v4803
      %v5289 = vadd.f32 %v5273, %v4804
      %v5290 = vadd.f32 %v5274, %v4805
      %v5291 = vadd.f32 %v5275, %v4806
      %v5292 = vadd.f32 %v5272, %v4807
      %v5293 = vadd.f32 %v5273, %v4808
      %v5294 = vadd.f32 %v5274, %v4809
      %v5295 = vadd.f32 %v5275, %v4810
      %v5296 = vadd.f32 %v5272, %v4811
      %v5297 = vadd.f32 %v5273, %v4812
      %v5298 = vadd.f32 %v5274, %v4813
      %v5299 = vadd.f32 %v5275, %v4814
      %v5300 = vadd.f32 %v5272, %v4815
      %v5301 = vadd.f32 %v5273, %v4816
      %v5302 = vadd.f32 %v5274, %v4817
      %v5303 = vadd.f32 %v5275, %v4818
      %v5304 = vadd.f32 %v5272, %v4819
      %v5305 = vadd.f32 %v5273, %v4820
      %v5306 = vadd.f32 %v5274, %v4821
      %v5307 = vadd.f32 %v5275, %v4822
      %v5308 = vadd.f32 %v5272, %v4823
      %v5309 = vadd.f32 %v5273, %v4824
      %v5310 = vadd.f32 %v5274, %v4825
      %v5311 = vadd.f32 %v5275, %v4826
      %v5312 = vadd.f32 %v5272, %v4827
      %v5313 = vadd.f32 %v5273, %v4828
      %v5314 = vadd.f32 %v5274, %v4829
      %v5315 = vadd.f32 %v5275, %v4830
      %v5316 = vadd.f32 %v5272, %v4831
      %v5317 = vadd.f32 %v5273, %v4832
      %v5318 = vadd.f32 %v5274, %v4833
      %v5319 = vadd.f32 %v5275, %v4834
      %v5320 = vadd.f32 %v5272, %v4835
      %v5321 = vadd.f32 %v5273, %v4836
      %v5322 = vadd.f32 %v5274, %v4837
      %v5323 = vadd.f32 %v5275, %v4838
      %v5324 = vadd.f32 %v5272, %v4839
      %v5325 = vadd.f32 %v5273, %v4840
      %v5326 = vadd.f32 %v5274, %v4841
      %v5327 = vadd.f32 %v5275, %v4842
      %v5328 = vadd.f32 %v5272, %v4843
      %v5329 = vadd.f32 %v5273, %v4844
      %v5330 = vadd.f32 %v5274, %v4845
      %v5331 = vadd.f32 %v5275, %v4846
      %v5332 = vadd.f32 %v5272, %v4847
      %v5333 = vadd.f32 %v5273, %v4848
      %v5334 = vadd.f32 %v5274, %v4849
      %v5335 = vadd.f32 %v5275, %v4850
      %v5336 = vadd.f32 %v5272, %v4851
      %v5337 = vadd.f32 %v5273, %v4852
      %v5338 = vadd.f32 %v5274, %v4853
      %v5339 = vadd.f32 %v5275, %v4854
      %v5340 = vpack.c.bf16 %v5280, %v5276
      %v5341 = vpack.c.bf16 %v5281, %v5277
      %v5342 = vpack.c.bf16 %v5282, %v5278
      %v5343 = vpack.c.bf16 %v5283, %v5279
      %v5344 = vpack.c.bf16 %v5288, %v5284
      %v5345 = vpack.c.bf16 %v5289, %v5285
      %v5346 = vpack.c.bf16 %v5290, %v5286
      %v5347 = vpack.c.bf16 %v5291, %v5287
      %v5348 = vpack.c.bf16 %v5296, %v5292
      %v5349 = vpack.c.bf16 %v5297, %v5293
      %v5350 = vpack.c.bf16 %v5298, %v5294
      %v5351 = vpack.c.bf16 %v5299, %v5295
      %v5352 = vpack.c.bf16 %v5304, %v5300
      %v5353 = vpack.c.bf16 %v5305, %v5301
      %v5354 = vpack.c.bf16 %v5306, %v5302
      %v5355 = vpack.c.bf16 %v5307, %v5303
      %v5356 = vpack.c.bf16 %v5312, %v5308
      %v5357 = vpack.c.bf16 %v5313, %v5309
      %v5358 = vpack.c.bf16 %v5314, %v5310
      %v5359 = vpack.c.bf16 %v5315, %v5311
      %v5360 = vpack.c.bf16 %v5320, %v5316
      %v5361 = vpack.c.bf16 %v5321, %v5317
      %v5362 = vpack.c.bf16 %v5322, %v5318
      %v5363 = vpack.c.bf16 %v5323, %v5319
      %v5364 = vpack.c.bf16 %v5328, %v5324
      %v5365 = vpack.c.bf16 %v5329, %v5325
      %v5366 = vpack.c.bf16 %v5330, %v5326
      %v5367 = vpack.c.bf16 %v5331, %v5327
      %v5368 = vpack.c.bf16 %v5336, %v5332
      %v5369 = vpack.c.bf16 %v5337, %v5333
      %v5370 = vpack.c.bf16 %v5338, %v5334
      %v5371 = vpack.c.bf16 %v5339, %v5335
      %v5372 = vunpack.c.l.bf16 %v5340
      %v5373 = vunpack.c.l.bf16 %v5341
      %v5374 = vunpack.c.l.bf16 %v5342
      %v5375 = vunpack.c.l.bf16 %v5343
      %v5376 = vunpack.c.h.bf16 %v5340
      %v5377 = vunpack.c.h.bf16 %v5341
      %v5378 = vunpack.c.h.bf16 %v5342
      %v5379 = vunpack.c.h.bf16 %v5343
      %v5380 = vunpack.c.l.bf16 %v5344
      %v5381 = vunpack.c.l.bf16 %v5345
      %v5382 = vunpack.c.l.bf16 %v5346
      %v5383 = vunpack.c.l.bf16 %v5347
      %v5384 = vunpack.c.h.bf16 %v5344
      %v5385 = vunpack.c.h.bf16 %v5345
      %v5386 = vunpack.c.h.bf16 %v5346
      %v5387 = vunpack.c.h.bf16 %v5347
      %v5388 = vunpack.c.l.bf16 %v5348
      %v5389 = vunpack.c.l.bf16 %v5349
      %v5390 = vunpack.c.l.bf16 %v5350
      %v5391 = vunpack.c.l.bf16 %v5351
      %v5392 = vunpack.c.h.bf16 %v5348
      %v5393 = vunpack.c.h.bf16 %v5349
      %v5394 = vunpack.c.h.bf16 %v5350
      %v5395 = vunpack.c.h.bf16 %v5351
      %v5396 = vunpack.c.l.bf16 %v5352
      %v5397 = vunpack.c.l.bf16 %v5353
      %v5398 = vunpack.c.l.bf16 %v5354
      %v5399 = vunpack.c.l.bf16 %v5355
      %v5400 = vunpack.c.h.bf16 %v5352
      %v5401 = vunpack.c.h.bf16 %v5353
      %v5402 = vunpack.c.h.bf16 %v5354
      %v5403 = vunpack.c.h.bf16 %v5355
      %v5404 = vunpack.c.l.bf16 %v5356
      %v5405 = vunpack.c.l.bf16 %v5357
      %v5406 = vunpack.c.l.bf16 %v5358
      %v5407 = vunpack.c.l.bf16 %v5359
      %v5408 = vunpack.c.h.bf16 %v5356
      %v5409 = vunpack.c.h.bf16 %v5357
      %v5410 = vunpack.c.h.bf16 %v5358
      %v5411 = vunpack.c.h.bf16 %v5359
      %v5412 = vunpack.c.l.bf16 %v5360
      %v5413 = vunpack.c.l.bf16 %v5361
      %v5414 = vunpack.c.l.bf16 %v5362
      %v5415 = vunpack.c.l.bf16 %v5363
      %v5416 = vunpack.c.h.bf16 %v5360
      %v5417 = vunpack.c.h.bf16 %v5361
      %v5418 = vunpack.c.h.bf16 %v5362
      %v5419 = vunpack.c.h.bf16 %v5363
      %v5420 = vunpack.c.l.bf16 %v5364
      %v5421 = vunpack.c.l.bf16 %v5365
      %v5422 = vunpack.c.l.bf16 %v5366
      %v5423 = vunpack.c.l.bf16 %v5367
      %v5424 = vunpack.c.h.bf16 %v5364
      %v5425 = vunpack.c.h.bf16 %v5365
      %v5426 = vunpack.c.h.bf16 %v5366
      %v5427 = vunpack.c.h.bf16 %v5367
      %v5428 = vunpack.c.l.bf16 %v5368
      %v5429 = vunpack.c.l.bf16 %v5369
      %v5430 = vunpack.c.l.bf16 %v5370
      %v5431 = vunpack.c.l.bf16 %v5371
      %v5432 = vunpack.c.h.bf16 %v5368
      %v5433 = vunpack.c.h.bf16 %v5369
      %v5434 = vunpack.c.h.bf16 %v5370
      %v5435 = vunpack.c.h.bf16 %v5371
      %v5436 = vmax.f32 %v5372, %v5373
      %v5437 = vmax.f32 %v5436, %v5374
      %v5438 = vmax.f32 %v5437, %v5375
      %5439 = vmax.xlane.f32.xlu0 %v5438
      %v5440 = vpop.xlane.xlu0 %5439
      %v5441 = vmax.f32 %v5376, %v5377
      %v5442 = vmax.f32 %v5441, %v5378
      %v5443 = vmax.f32 %v5442, %v5379
      %5444 = vmax.xlane.f32.xlu0 %v5443
      %v5445 = vpop.xlane.xlu0 %5444
      %v5446 = vmax.f32 %v5380, %v5381
      %v5447 = vmax.f32 %v5446, %v5382
      %v5448 = vmax.f32 %v5447, %v5383
      %5449 = vmax.xlane.f32.xlu0 %v5448
      %v5450 = vpop.xlane.xlu0 %5449
      %v5451 = vmax.f32 %v5384, %v5385
      %v5452 = vmax.f32 %v5451, %v5386
      %v5453 = vmax.f32 %v5452, %v5387
      %5454 = vmax.xlane.f32.xlu0 %v5453
      %v5455 = vpop.xlane.xlu0 %5454
      %v5456 = vmax.f32 %v5388, %v5389
      %v5457 = vmax.f32 %v5456, %v5390
      %v5458 = vmax.f32 %v5457, %v5391
      %5459 = vmax.xlane.f32.xlu0 %v5458
      %v5460 = vpop.xlane.xlu0 %5459
      %v5461 = vmax.f32 %v5392, %v5393
      %v5462 = vmax.f32 %v5461, %v5394
      %v5463 = vmax.f32 %v5462, %v5395
      %5464 = vmax.xlane.f32.xlu0 %v5463
      %v5465 = vpop.xlane.xlu0 %5464
      %v5466 = vmax.f32 %v5396, %v5397
      %v5467 = vmax.f32 %v5466, %v5398
      %v5468 = vmax.f32 %v5467, %v5399
      %5469 = vmax.xlane.f32.xlu0 %v5468
      %v5470 = vpop.xlane.xlu0 %5469
      %v5471 = vmax.f32 %v5400, %v5401
      %v5472 = vmax.f32 %v5471, %v5402
      %v5473 = vmax.f32 %v5472, %v5403
      %5474 = vmax.xlane.f32.xlu0 %v5473
      %v5475 = vpop.xlane.xlu0 %5474
      %v5476 = vmax.f32 %v5404, %v5405
      %v5477 = vmax.f32 %v5476, %v5406
      %v5478 = vmax.f32 %v5477, %v5407
      %5479 = vmax.xlane.f32.xlu0 %v5478
      %v5480 = vpop.xlane.xlu0 %5479
      %v5481 = vmax.f32 %v5408, %v5409
      %v5482 = vmax.f32 %v5481, %v5410
      %v5483 = vmax.f32 %v5482, %v5411
      %5484 = vmax.xlane.f32.xlu0 %v5483
      %v5485 = vpop.xlane.xlu0 %5484
      %v5486 = vmax.f32 %v5412, %v5413
      %v5487 = vmax.f32 %v5486, %v5414
      %v5488 = vmax.f32 %v5487, %v5415
      %5489 = vmax.xlane.f32.xlu0 %v5488
      %v5490 = vpop.xlane.xlu0 %5489
      %v5491 = vmax.f32 %v5416, %v5417
      %v5492 = vmax.f32 %v5491, %v5418
      %v5493 = vmax.f32 %v5492, %v5419
      %5494 = vmax.xlane.f32.xlu0 %v5493
      %v5495 = vpop.xlane.xlu0 %5494
      %v5496 = vmax.f32 %v5420, %v5421
      %v5497 = vmax.f32 %v5496, %v5422
      %v5498 = vmax.f32 %v5497, %v5423
      %5499 = vmax.xlane.f32.xlu0 %v5498
      %v5500 = vpop.xlane.xlu0 %5499
      %v5501 = vmax.f32 %v5424, %v5425
      %v5502 = vmax.f32 %v5501, %v5426
      %v5503 = vmax.f32 %v5502, %v5427
      %5504 = vmax.xlane.f32.xlu0 %v5503
      %v5505 = vpop.xlane.xlu0 %5504
      %v5506 = vmax.f32 %v5428, %v5429
      %v5507 = vmax.f32 %v5506, %v5430
      %v5508 = vmax.f32 %v5507, %v5431
      %5509 = vmax.xlane.f32.xlu0 %v5508
      %v5510 = vpop.xlane.xlu0 %5509
      %v5511 = vmax.f32 %v5432, %v5433
      %v5512 = vmax.f32 %v5511, %v5434
      %v5513 = vmax.f32 %v5512, %v5435
      %5514 = vmax.xlane.f32.xlu0 %v5513
      %v5515 = vpop.xlane.xlu0 %5514
      %v5516 = vpack.c.bf16 %v5440, %v5440
      %v5517 = vpack.c.bf16 %v5445, %v5445
      %v5518 = vpack.c.bf16 %v5450, %v5450
      %v5519 = vpack.c.bf16 %v5455, %v5455
      %v5520 = vpack.c.bf16 %v5460, %v5460
      %v5521 = vpack.c.bf16 %v5465, %v5465
      %v5522 = vpack.c.bf16 %v5470, %v5470
      %v5523 = vpack.c.bf16 %v5475, %v5475
      %v5524 = vpack.c.bf16 %v5480, %v5480
      %v5525 = vpack.c.bf16 %v5485, %v5485
      %v5526 = vpack.c.bf16 %v5490, %v5490
      %v5527 = vpack.c.bf16 %v5495, %v5495
      %v5528 = vpack.c.bf16 %v5500, %v5500
      %v5529 = vpack.c.bf16 %v5505, %v5505
      %v5530 = vpack.c.bf16 %v5510, %v5510
      %v5531 = vpack.c.bf16 %v5515, %v5515
      %v5532 = vunpack.c.l.bf16 %v5516
      %v5533 = vunpack.c.l.bf16 %v5517
      %v5534 = vunpack.c.l.bf16 %v5518
      %v5535 = vunpack.c.l.bf16 %v5519
      %v5536 = vunpack.c.l.bf16 %v5520
      %v5537 = vunpack.c.l.bf16 %v5521
      %v5538 = vunpack.c.l.bf16 %v5522
      %v5539 = vunpack.c.l.bf16 %v5523
      %v5540 = vunpack.c.l.bf16 %v5524
      %v5541 = vunpack.c.l.bf16 %v5525
      %v5542 = vunpack.c.l.bf16 %v5526
      %v5543 = vunpack.c.l.bf16 %v5527
      %v5544 = vunpack.c.l.bf16 %v5528
      %v5545 = vunpack.c.l.bf16 %v5529
      %v5546 = vunpack.c.l.bf16 %v5530
      %v5547 = vunpack.c.l.bf16 %v5531
      %v5548 = vmul.f32 %v5532, %v653
      %v5549 = vmul.f32 %v5533, %v654
      %v5550 = vmul.f32 %v5534, %v655
      %v5551 = vmul.f32 %v5535, %v656
      %v5552 = vmul.f32 %v5536, %v657
      %v5553 = vmul.f32 %v5537, %v658
      %v5554 = vmul.f32 %v5538, %v659
      %v5555 = vmul.f32 %v5539, %v660
      %v5556 = vmul.f32 %v5540, %v661
      %v5557 = vmul.f32 %v5541, %v662
      %v5558 = vmul.f32 %v5542, %v663
      %v5559 = vmul.f32 %v5543, %v664
      %v5560 = vmul.f32 %v5544, %v665
      %v5561 = vmul.f32 %v5545, %v666
      %v5562 = vmul.f32 %v5546, %v667
      %v5563 = vmul.f32 %v5547, %v668
      %5565 = vset.pattern.permute.xlu0 0
      %5566 = vperm.xlu0 %5565, %v5548
      %v5567 = vpop.permute.xlu0 %5566
      %5570 = vset.pattern.permute.xlu0 0
      %5571 = vperm.xlu0 %5570, %v5549
      %v5572 = vpop.permute.xlu0 %5571
      %5575 = vset.pattern.permute.xlu0 0
      %5576 = vperm.xlu0 %5575, %v5550
      %v5577 = vpop.permute.xlu0 %5576
      %5580 = vset.pattern.permute.xlu0 0
      %5581 = vperm.xlu0 %5580, %v5551
      %v5582 = vpop.permute.xlu0 %5581
      %5585 = vset.pattern.permute.xlu0 0
      %5586 = vperm.xlu0 %5585, %v5552
      %v5587 = vpop.permute.xlu0 %5586
      %5590 = vset.pattern.permute.xlu0 0
      %5591 = vperm.xlu0 %5590, %v5553
      %v5592 = vpop.permute.xlu0 %5591
      %5595 = vset.pattern.permute.xlu0 0
      %5596 = vperm.xlu0 %5595, %v5554
      %v5597 = vpop.permute.xlu0 %5596
      %5600 = vset.pattern.permute.xlu0 0
      %5601 = vperm.xlu0 %5600, %v5555
      %v5602 = vpop.permute.xlu0 %5601
      %5605 = vset.pattern.permute.xlu0 0
      %5606 = vperm.xlu0 %5605, %v5556
      %v5607 = vpop.permute.xlu0 %5606
      %5610 = vset.pattern.permute.xlu0 0
      %5611 = vperm.xlu0 %5610, %v5557
      %v5612 = vpop.permute.xlu0 %5611
      %5615 = vset.pattern.permute.xlu0 0
      %5616 = vperm.xlu0 %5615, %v5558
      %v5617 = vpop.permute.xlu0 %5616
      %5620 = vset.pattern.permute.xlu0 0
      %5621 = vperm.xlu0 %5620, %v5559
      %v5622 = vpop.permute.xlu0 %5621
      %5625 = vset.pattern.permute.xlu0 0
      %5626 = vperm.xlu0 %5625, %v5560
      %v5627 = vpop.permute.xlu0 %5626
      %5630 = vset.pattern.permute.xlu0 0
      %5631 = vperm.xlu0 %5630, %v5561
      %v5632 = vpop.permute.xlu0 %5631
      %5635 = vset.pattern.permute.xlu0 0
      %5636 = vperm.xlu0 %5635, %v5562
      %v5637 = vpop.permute.xlu0 %5636
      %5640 = vset.pattern.permute.xlu0 0
      %5641 = vperm.xlu0 %5640, %v5563
      %v5642 = vpop.permute.xlu0 %5641
      %v5644 = vperm.slane %v4759, 1
      %v5645 = vmul.f32 %v5567, %v5644
      %v5646 = vmul.f32 %v5572, %v5644
      %v5647 = vmul.f32 %v5577, %v5644
      %v5648 = vmul.f32 %v5582, %v5644
      %v5649 = vmul.f32 %v5587, %v5644
      %v5650 = vmul.f32 %v5592, %v5644
      %v5651 = vmul.f32 %v5597, %v5644
      %v5652 = vmul.f32 %v5602, %v5644
      %v5653 = vmul.f32 %v5607, %v5644
      %v5654 = vmul.f32 %v5612, %v5644
      %v5655 = vmul.f32 %v5617, %v5644
      %v5656 = vmul.f32 %v5622, %v5644
      %v5657 = vmul.f32 %v5627, %v5644
      %v5658 = vmul.f32 %v5632, %v5644
      %v5659 = vmul.f32 %v5637, %v5644
      %v5660 = vmul.f32 %v5642, %v5644
      %v5661 = vadd.f32 %v5240, %v5645
      %v5662 = vadd.f32 %v5241, %v5646
      %v5663 = vadd.f32 %v5242, %v5647
      %v5664 = vadd.f32 %v5243, %v5648
      %v5665 = vadd.f32 %v5244, %v5649
      %v5666 = vadd.f32 %v5245, %v5650
      %v5667 = vadd.f32 %v5246, %v5651
      %v5668 = vadd.f32 %v5247, %v5652
      %v5669 = vadd.f32 %v5248, %v5653
      %v5670 = vadd.f32 %v5249, %v5654
      %v5671 = vadd.f32 %v5250, %v5655
      %v5672 = vadd.f32 %v5251, %v5656
      %v5673 = vadd.f32 %v5252, %v5657
      %v5674 = vadd.f32 %v5253, %v5658
      %v5675 = vadd.f32 %v5254, %v5659
      %v5676 = vadd.f32 %v5255, %v5660
      %v5677 = vperm.slane %v4772, 1
      %v5678 = vperm.slane %v4776, 1
      %v5679 = vperm.slane %v4780, 1
      %v5680 = vperm.slane %v4784, 1
      %v5681 = vunpack.c.l.bf16 %v5677
      %v5682 = vunpack.c.l.bf16 %v5678
      %v5683 = vunpack.c.l.bf16 %v5679
      %v5684 = vunpack.c.l.bf16 %v5680
      %v5685 = vadd.f32 %v5681, %v4791
      %v5686 = vadd.f32 %v5682, %v4792
      %v5687 = vadd.f32 %v5683, %v4793
      %v5688 = vadd.f32 %v5684, %v4794
      %v5689 = vadd.f32 %v5681, %v4795
      %v5690 = vadd.f32 %v5682, %v4796
      %v5691 = vadd.f32 %v5683, %v4797
      %v5692 = vadd.f32 %v5684, %v4798
      %v5693 = vadd.f32 %v5681, %v4799
      %v5694 = vadd.f32 %v5682, %v4800
      %v5695 = vadd.f32 %v5683, %v4801
      %v5696 = vadd.f32 %v5684, %v4802
      %v5697 = vadd.f32 %v5681, %v4803
      %v5698 = vadd.f32 %v5682, %v4804
      %v5699 = vadd.f32 %v5683, %v4805
      %v5700 = vadd.f32 %v5684, %v4806
      %v5701 = vadd.f32 %v5681, %v4807
      %v5702 = vadd.f32 %v5682, %v4808
      %v5703 = vadd.f32 %v5683, %v4809
      %v5704 = vadd.f32 %v5684, %v4810
      %v5705 = vadd.f32 %v5681, %v4811
      %v5706 = vadd.f32 %v5682, %v4812
      %v5707 = vadd.f32 %v5683, %v4813
      %v5708 = vadd.f32 %v5684, %v4814
      %v5709 = vadd.f32 %v5681, %v4815
      %v5710 = vadd.f32 %v5682, %v4816
      %v5711 = vadd.f32 %v5683, %v4817
      %v5712 = vadd.f32 %v5684, %v4818
      %v5713 = vadd.f32 %v5681, %v4819
      %v5714 = vadd.f32 %v5682, %v4820
      %v5715 = vadd.f32 %v5683, %v4821
      %v5716 = vadd.f32 %v5684, %v4822
      %v5717 = vadd.f32 %v5681, %v4823
      %v5718 = vadd.f32 %v5682, %v4824
      %v5719 = vadd.f32 %v5683, %v4825
      %v5720 = vadd.f32 %v5684, %v4826
      %v5721 = vadd.f32 %v5681, %v4827
      %v5722 = vadd.f32 %v5682, %v4828
      %v5723 = vadd.f32 %v5683, %v4829
      %v5724 = vadd.f32 %v5684, %v4830
      %v5725 = vadd.f32 %v5681, %v4831
      %v5726 = vadd.f32 %v5682, %v4832
      %v5727 = vadd.f32 %v5683, %v4833
      %v5728 = vadd.f32 %v5684, %v4834
      %v5729 = vadd.f32 %v5681, %v4835
      %v5730 = vadd.f32 %v5682, %v4836
      %v5731 = vadd.f32 %v5683, %v4837
      %v5732 = vadd.f32 %v5684, %v4838
      %v5733 = vadd.f32 %v5681, %v4839
      %v5734 = vadd.f32 %v5682, %v4840
      %v5735 = vadd.f32 %v5683, %v4841
      %v5736 = vadd.f32 %v5684, %v4842
      %v5737 = vadd.f32 %v5681, %v4843
      %v5738 = vadd.f32 %v5682, %v4844
      %v5739 = vadd.f32 %v5683, %v4845
      %v5740 = vadd.f32 %v5684, %v4846
      %v5741 = vadd.f32 %v5681, %v4847
      %v5742 = vadd.f32 %v5682, %v4848
      %v5743 = vadd.f32 %v5683, %v4849
      %v5744 = vadd.f32 %v5684, %v4850
      %v5745 = vadd.f32 %v5681, %v4851
      %v5746 = vadd.f32 %v5682, %v4852
      %v5747 = vadd.f32 %v5683, %v4853
      %v5748 = vadd.f32 %v5684, %v4854
      %v5749 = vpack.c.bf16 %v5689, %v5685
      %v5750 = vpack.c.bf16 %v5690, %v5686
      %v5751 = vpack.c.bf16 %v5691, %v5687
      %v5752 = vpack.c.bf16 %v5692, %v5688
      %v5753 = vpack.c.bf16 %v5697, %v5693
      %v5754 = vpack.c.bf16 %v5698, %v5694
      %v5755 = vpack.c.bf16 %v5699, %v5695
      %v5756 = vpack.c.bf16 %v5700, %v5696
      %v5757 = vpack.c.bf16 %v5705, %v5701
      %v5758 = vpack.c.bf16 %v5706, %v5702
      %v5759 = vpack.c.bf16 %v5707, %v5703
      %v5760 = vpack.c.bf16 %v5708, %v5704
      %v5761 = vpack.c.bf16 %v5713, %v5709
      %v5762 = vpack.c.bf16 %v5714, %v5710
      %v5763 = vpack.c.bf16 %v5715, %v5711
      %v5764 = vpack.c.bf16 %v5716, %v5712
      %v5765 = vpack.c.bf16 %v5721, %v5717
      %v5766 = vpack.c.bf16 %v5722, %v5718
      %v5767 = vpack.c.bf16 %v5723, %v5719
      %v5768 = vpack.c.bf16 %v5724, %v5720
      %v5769 = vpack.c.bf16 %v5729, %v5725
      %v5770 = vpack.c.bf16 %v5730, %v5726
      %v5771 = vpack.c.bf16 %v5731, %v5727
      %v5772 = vpack.c.bf16 %v5732, %v5728
      %v5773 = vpack.c.bf16 %v5737, %v5733
      %v5774 = vpack.c.bf16 %v5738, %v5734
      %v5775 = vpack.c.bf16 %v5739, %v5735
      %v5776 = vpack.c.bf16 %v5740, %v5736
      %v5777 = vpack.c.bf16 %v5745, %v5741
      %v5778 = vpack.c.bf16 %v5746, %v5742
      %v5779 = vpack.c.bf16 %v5747, %v5743
      %v5780 = vpack.c.bf16 %v5748, %v5744
      %v5781 = vunpack.c.l.bf16 %v5749
      %v5782 = vunpack.c.l.bf16 %v5750
      %v5783 = vunpack.c.l.bf16 %v5751
      %v5784 = vunpack.c.l.bf16 %v5752
      %v5785 = vunpack.c.h.bf16 %v5749
      %v5786 = vunpack.c.h.bf16 %v5750
      %v5787 = vunpack.c.h.bf16 %v5751
      %v5788 = vunpack.c.h.bf16 %v5752
      %v5789 = vunpack.c.l.bf16 %v5753
      %v5790 = vunpack.c.l.bf16 %v5754
      %v5791 = vunpack.c.l.bf16 %v5755
      %v5792 = vunpack.c.l.bf16 %v5756
      %v5793 = vunpack.c.h.bf16 %v5753
      %v5794 = vunpack.c.h.bf16 %v5754
      %v5795 = vunpack.c.h.bf16 %v5755
      %v5796 = vunpack.c.h.bf16 %v5756
      %v5797 = vunpack.c.l.bf16 %v5757
      %v5798 = vunpack.c.l.bf16 %v5758
      %v5799 = vunpack.c.l.bf16 %v5759
      %v5800 = vunpack.c.l.bf16 %v5760
      %v5801 = vunpack.c.h.bf16 %v5757
      %v5802 = vunpack.c.h.bf16 %v5758
      %v5803 = vunpack.c.h.bf16 %v5759
      %v5804 = vunpack.c.h.bf16 %v5760
      %v5805 = vunpack.c.l.bf16 %v5761
      %v5806 = vunpack.c.l.bf16 %v5762
      %v5807 = vunpack.c.l.bf16 %v5763
      %v5808 = vunpack.c.l.bf16 %v5764
      %v5809 = vunpack.c.h.bf16 %v5761
      %v5810 = vunpack.c.h.bf16 %v5762
      %v5811 = vunpack.c.h.bf16 %v5763
      %v5812 = vunpack.c.h.bf16 %v5764
      %v5813 = vunpack.c.l.bf16 %v5765
      %v5814 = vunpack.c.l.bf16 %v5766
      %v5815 = vunpack.c.l.bf16 %v5767
      %v5816 = vunpack.c.l.bf16 %v5768
      %v5817 = vunpack.c.h.bf16 %v5765
      %v5818 = vunpack.c.h.bf16 %v5766
      %v5819 = vunpack.c.h.bf16 %v5767
      %v5820 = vunpack.c.h.bf16 %v5768
      %v5821 = vunpack.c.l.bf16 %v5769
      %v5822 = vunpack.c.l.bf16 %v5770
      %v5823 = vunpack.c.l.bf16 %v5771
      %v5824 = vunpack.c.l.bf16 %v5772
      %v5825 = vunpack.c.h.bf16 %v5769
      %v5826 = vunpack.c.h.bf16 %v5770
      %v5827 = vunpack.c.h.bf16 %v5771
      %v5828 = vunpack.c.h.bf16 %v5772
      %v5829 = vunpack.c.l.bf16 %v5773
      %v5830 = vunpack.c.l.bf16 %v5774
      %v5831 = vunpack.c.l.bf16 %v5775
      %v5832 = vunpack.c.l.bf16 %v5776
      %v5833 = vunpack.c.h.bf16 %v5773
      %v5834 = vunpack.c.h.bf16 %v5774
      %v5835 = vunpack.c.h.bf16 %v5775
      %v5836 = vunpack.c.h.bf16 %v5776
      %v5837 = vunpack.c.l.bf16 %v5777
      %v5838 = vunpack.c.l.bf16 %v5778
      %v5839 = vunpack.c.l.bf16 %v5779
      %v5840 = vunpack.c.l.bf16 %v5780
      %v5841 = vunpack.c.h.bf16 %v5777
      %v5842 = vunpack.c.h.bf16 %v5778
      %v5843 = vunpack.c.h.bf16 %v5779
      %v5844 = vunpack.c.h.bf16 %v5780
      %v5845 = vmax.f32 %v5781, %v5782
      %v5846 = vmax.f32 %v5845, %v5783
      %v5847 = vmax.f32 %v5846, %v5784
      %5848 = vmax.xlane.f32.xlu0 %v5847
      %v5849 = vpop.xlane.xlu0 %5848
      %v5850 = vmax.f32 %v5785, %v5786
      %v5851 = vmax.f32 %v5850, %v5787
      %v5852 = vmax.f32 %v5851, %v5788
      %5853 = vmax.xlane.f32.xlu0 %v5852
      %v5854 = vpop.xlane.xlu0 %5853
      %v5855 = vmax.f32 %v5789, %v5790
      %v5856 = vmax.f32 %v5855, %v5791
      %v5857 = vmax.f32 %v5856, %v5792
      %5858 = vmax.xlane.f32.xlu0 %v5857
      %v5859 = vpop.xlane.xlu0 %5858
      %v5860 = vmax.f32 %v5793, %v5794
      %v5861 = vmax.f32 %v5860, %v5795
      %v5862 = vmax.f32 %v5861, %v5796
      %5863 = vmax.xlane.f32.xlu0 %v5862
      %v5864 = vpop.xlane.xlu0 %5863
      %v5865 = vmax.f32 %v5797, %v5798
      %v5866 = vmax.f32 %v5865, %v5799
      %v5867 = vmax.f32 %v5866, %v5800
      %5868 = vmax.xlane.f32.xlu0 %v5867
      %v5869 = vpop.xlane.xlu0 %5868
      %v5870 = vmax.f32 %v5801, %v5802
      %v5871 = vmax.f32 %v5870, %v5803
      %v5872 = vmax.f32 %v5871, %v5804
      %5873 = vmax.xlane.f32.xlu0 %v5872
      %v5874 = vpop.xlane.xlu0 %5873
      %v5875 = vmax.f32 %v5805, %v5806
      %v5876 = vmax.f32 %v5875, %v5807
      %v5877 = vmax.f32 %v5876, %v5808
      %5878 = vmax.xlane.f32.xlu0 %v5877
      %v5879 = vpop.xlane.xlu0 %5878
      %v5880 = vmax.f32 %v5809, %v5810
      %v5881 = vmax.f32 %v5880, %v5811
      %v5882 = vmax.f32 %v5881, %v5812
      %5883 = vmax.xlane.f32.xlu0 %v5882
      %v5884 = vpop.xlane.xlu0 %5883
      %v5885 = vmax.f32 %v5813, %v5814
      %v5886 = vmax.f32 %v5885, %v5815
      %v5887 = vmax.f32 %v5886, %v5816
      %5888 = vmax.xlane.f32.xlu0 %v5887
      %v5889 = vpop.xlane.xlu0 %5888
      %v5890 = vmax.f32 %v5817, %v5818
      %v5891 = vmax.f32 %v5890, %v5819
      %v5892 = vmax.f32 %v5891, %v5820
      %5893 = vmax.xlane.f32.xlu0 %v5892
      %v5894 = vpop.xlane.xlu0 %5893
      %v5895 = vmax.f32 %v5821, %v5822
      %v5896 = vmax.f32 %v5895, %v5823
      %v5897 = vmax.f32 %v5896, %v5824
      %5898 = vmax.xlane.f32.xlu0 %v5897
      %v5899 = vpop.xlane.xlu0 %5898
      %v5900 = vmax.f32 %v5825, %v5826
      %v5901 = vmax.f32 %v5900, %v5827
      %v5902 = vmax.f32 %v5901, %v5828
      %5903 = vmax.xlane.f32.xlu0 %v5902
      %v5904 = vpop.xlane.xlu0 %5903
      %v5905 = vmax.f32 %v5829, %v5830
      %v5906 = vmax.f32 %v5905, %v5831
      %v5907 = vmax.f32 %v5906, %v5832
      %5908 = vmax.xlane.f32.xlu0 %v5907
      %v5909 = vpop.xlane.xlu0 %5908
      %v5910 = vmax.f32 %v5833, %v5834
      %v5911 = vmax.f32 %v5910, %v5835
      %v5912 = vmax.f32 %v5911, %v5836
      %5913 = vmax.xlane.f32.xlu0 %v5912
      %v5914 = vpop.xlane.xlu0 %5913
      %v5915 = vmax.f32 %v5837, %v5838
      %v5916 = vmax.f32 %v5915, %v5839
      %v5917 = vmax.f32 %v5916, %v5840
      %5918 = vmax.xlane.f32.xlu0 %v5917
      %v5919 = vpop.xlane.xlu0 %5918
      %v5920 = vmax.f32 %v5841, %v5842
      %v5921 = vmax.f32 %v5920, %v5843
      %v5922 = vmax.f32 %v5921, %v5844
      %5923 = vmax.xlane.f32.xlu0 %v5922
      %v5924 = vpop.xlane.xlu0 %5923
      %v5925 = vpack.c.bf16 %v5849, %v5849
      %v5926 = vpack.c.bf16 %v5854, %v5854
      %v5927 = vpack.c.bf16 %v5859, %v5859
      %v5928 = vpack.c.bf16 %v5864, %v5864
      %v5929 = vpack.c.bf16 %v5869, %v5869
      %v5930 = vpack.c.bf16 %v5874, %v5874
      %v5931 = vpack.c.bf16 %v5879, %v5879
      %v5932 = vpack.c.bf16 %v5884, %v5884
      %v5933 = vpack.c.bf16 %v5889, %v5889
      %v5934 = vpack.c.bf16 %v5894, %v5894
      %v5935 = vpack.c.bf16 %v5899, %v5899
      %v5936 = vpack.c.bf16 %v5904, %v5904
      %v5937 = vpack.c.bf16 %v5909, %v5909
      %v5938 = vpack.c.bf16 %v5914, %v5914
      %v5939 = vpack.c.bf16 %v5919, %v5919
      %v5940 = vpack.c.bf16 %v5924, %v5924
      %v5941 = vunpack.c.l.bf16 %v5925
      %v5942 = vunpack.c.l.bf16 %v5926
      %v5943 = vunpack.c.l.bf16 %v5927
      %v5944 = vunpack.c.l.bf16 %v5928
      %v5945 = vunpack.c.l.bf16 %v5929
      %v5946 = vunpack.c.l.bf16 %v5930
      %v5947 = vunpack.c.l.bf16 %v5931
      %v5948 = vunpack.c.l.bf16 %v5932
      %v5949 = vunpack.c.l.bf16 %v5933
      %v5950 = vunpack.c.l.bf16 %v5934
      %v5951 = vunpack.c.l.bf16 %v5935
      %v5952 = vunpack.c.l.bf16 %v5936
      %v5953 = vunpack.c.l.bf16 %v5937
      %v5954 = vunpack.c.l.bf16 %v5938
      %v5955 = vunpack.c.l.bf16 %v5939
      %v5956 = vunpack.c.l.bf16 %v5940
      %v5957 = vmul.f32 %v5941, %v653
      %v5958 = vmul.f32 %v5942, %v654
      %v5959 = vmul.f32 %v5943, %v655
      %v5960 = vmul.f32 %v5944, %v656
      %v5961 = vmul.f32 %v5945, %v657
      %v5962 = vmul.f32 %v5946, %v658
      %v5963 = vmul.f32 %v5947, %v659
      %v5964 = vmul.f32 %v5948, %v660
      %v5965 = vmul.f32 %v5949, %v661
      %v5966 = vmul.f32 %v5950, %v662
      %v5967 = vmul.f32 %v5951, %v663
      %v5968 = vmul.f32 %v5952, %v664
      %v5969 = vmul.f32 %v5953, %v665
      %v5970 = vmul.f32 %v5954, %v666
      %v5971 = vmul.f32 %v5955, %v667
      %v5972 = vmul.f32 %v5956, %v668
      %5974 = vset.pattern.permute.xlu0 0
      %5975 = vperm.xlu0 %5974, %v5957
      %v5976 = vpop.permute.xlu0 %5975
      %5979 = vset.pattern.permute.xlu0 0
      %5980 = vperm.xlu0 %5979, %v5958
      %v5981 = vpop.permute.xlu0 %5980
      %5984 = vset.pattern.permute.xlu0 0
      %5985 = vperm.xlu0 %5984, %v5959
      %v5986 = vpop.permute.xlu0 %5985
      %5989 = vset.pattern.permute.xlu0 0
      %5990 = vperm.xlu0 %5989, %v5960
      %v5991 = vpop.permute.xlu0 %5990
      %5994 = vset.pattern.permute.xlu0 0
      %5995 = vperm.xlu0 %5994, %v5961
      %v5996 = vpop.permute.xlu0 %5995
      %5999 = vset.pattern.permute.xlu0 0
      %6000 = vperm.xlu0 %5999, %v5962
      %v6001 = vpop.permute.xlu0 %6000
      %6004 = vset.pattern.permute.xlu0 0
      %6005 = vperm.xlu0 %6004, %v5963
      %v6006 = vpop.permute.xlu0 %6005
      %6009 = vset.pattern.permute.xlu0 0
      %6010 = vperm.xlu0 %6009, %v5964
      %v6011 = vpop.permute.xlu0 %6010
      %6014 = vset.pattern.permute.xlu0 0
      %6015 = vperm.xlu0 %6014, %v5965
      %v6016 = vpop.permute.xlu0 %6015
      %6019 = vset.pattern.permute.xlu0 0
      %6020 = vperm.xlu0 %6019, %v5966
      %v6021 = vpop.permute.xlu0 %6020
      %6024 = vset.pattern.permute.xlu0 0
      %6025 = vperm.xlu0 %6024, %v5967
      %v6026 = vpop.permute.xlu0 %6025
      %6029 = vset.pattern.permute.xlu0 0
      %6030 = vperm.xlu0 %6029, %v5968
      %v6031 = vpop.permute.xlu0 %6030
      %6034 = vset.pattern.permute.xlu0 0
      %6035 = vperm.xlu0 %6034, %v5969
      %v6036 = vpop.permute.xlu0 %6035
      %6039 = vset.pattern.permute.xlu0 0
      %6040 = vperm.xlu0 %6039, %v5970
      %v6041 = vpop.permute.xlu0 %6040
      %6044 = vset.pattern.permute.xlu0 0
      %6045 = vperm.xlu0 %6044, %v5971
      %v6046 = vpop.permute.xlu0 %6045
      %6049 = vset.pattern.permute.xlu0 0
      %6050 = vperm.xlu0 %6049, %v5972
      %v6051 = vpop.permute.xlu0 %6050
      %v6053 = vperm.slane %v4759, 2
      %v6054 = vmul.f32 %v5976, %v6053
      %v6055 = vmul.f32 %v5981, %v6053
      %v6056 = vmul.f32 %v5986, %v6053
      %v6057 = vmul.f32 %v5991, %v6053
      %v6058 = vmul.f32 %v5996, %v6053
      %v6059 = vmul.f32 %v6001, %v6053
      %v6060 = vmul.f32 %v6006, %v6053
      %v6061 = vmul.f32 %v6011, %v6053
      %v6062 = vmul.f32 %v6016, %v6053
      %v6063 = vmul.f32 %v6021, %v6053
      %v6064 = vmul.f32 %v6026, %v6053
      %v6065 = vmul.f32 %v6031, %v6053
      %v6066 = vmul.f32 %v6036, %v6053
      %v6067 = vmul.f32 %v6041, %v6053
      %v6068 = vmul.f32 %v6046, %v6053
      %v6069 = vmul.f32 %v6051, %v6053
      %v6070 = vadd.f32 %v5661, %v6054
      %v6071 = vadd.f32 %v5662, %v6055
      %v6072 = vadd.f32 %v5663, %v6056
      %v6073 = vadd.f32 %v5664, %v6057
      %v6074 = vadd.f32 %v5665, %v6058
      %v6075 = vadd.f32 %v5666, %v6059
      %v6076 = vadd.f32 %v5667, %v6060
      %v6077 = vadd.f32 %v5668, %v6061
      %v6078 = vadd.f32 %v5669, %v6062
      %v6079 = vadd.f32 %v5670, %v6063
      %v6080 = vadd.f32 %v5671, %v6064
      %v6081 = vadd.f32 %v5672, %v6065
      %v6082 = vadd.f32 %v5673, %v6066
      %v6083 = vadd.f32 %v5674, %v6067
      %v6084 = vadd.f32 %v5675, %v6068
      %v6085 = vadd.f32 %v5676, %v6069
      %v6086 = vperm.slane %v5257, 1
      %v6087 = vperm.slane %v5261, 1
      %v6088 = vperm.slane %v5265, 1
      %v6089 = vperm.slane %v5269, 1
      %v6090 = vunpack.c.l.bf16 %v6086
      %v6091 = vunpack.c.l.bf16 %v6087
      %v6092 = vunpack.c.l.bf16 %v6088
      %v6093 = vunpack.c.l.bf16 %v6089
      %v6094 = vadd.f32 %v6090, %v4791
      %v6095 = vadd.f32 %v6091, %v4792
      %v6096 = vadd.f32 %v6092, %v4793
      %v6097 = vadd.f32 %v6093, %v4794
      %v6098 = vadd.f32 %v6090, %v4795
      %v6099 = vadd.f32 %v6091, %v4796
      %v6100 = vadd.f32 %v6092, %v4797
      %v6101 = vadd.f32 %v6093, %v4798
      %v6102 = vadd.f32 %v6090, %v4799
      %v6103 = vadd.f32 %v6091, %v4800
      %v6104 = vadd.f32 %v6092, %v4801
      %v6105 = vadd.f32 %v6093, %v4802
      %v6106 = vadd.f32 %v6090, %v4803
      %v6107 = vadd.f32 %v6091, %v4804
      %v6108 = vadd.f32 %v6092, %v4805
      %v6109 = vadd.f32 %v6093, %v4806
      %v6110 = vadd.f32 %v6090, %v4807
      %v6111 = vadd.f32 %v6091, %v4808
      %v6112 = vadd.f32 %v6092, %v4809
      %v6113 = vadd.f32 %v6093, %v4810
      %v6114 = vadd.f32 %v6090, %v4811
      %v6115 = vadd.f32 %v6091, %v4812
      %v6116 = vadd.f32 %v6092, %v4813
      %v6117 = vadd.f32 %v6093, %v4814
      %v6118 = vadd.f32 %v6090, %v4815
      %v6119 = vadd.f32 %v6091, %v4816
      %v6120 = vadd.f32 %v6092, %v4817
      %v6121 = vadd.f32 %v6093, %v4818
      %v6122 = vadd.f32 %v6090, %v4819
      %v6123 = vadd.f32 %v6091, %v4820
      %v6124 = vadd.f32 %v6092, %v4821
      %v6125 = vadd.f32 %v6093, %v4822
      %v6126 = vadd.f32 %v6090, %v4823
      %v6127 = vadd.f32 %v6091, %v4824
      %v6128 = vadd.f32 %v6092, %v4825
      %v6129 = vadd.f32 %v6093, %v4826
      %v6130 = vadd.f32 %v6090, %v4827
      %v6131 = vadd.f32 %v6091, %v4828
      %v6132 = vadd.f32 %v6092, %v4829
      %v6133 = vadd.f32 %v6093, %v4830
      %v6134 = vadd.f32 %v6090, %v4831
      %v6135 = vadd.f32 %v6091, %v4832
      %v6136 = vadd.f32 %v6092, %v4833
      %v6137 = vadd.f32 %v6093, %v4834
      %v6138 = vadd.f32 %v6090, %v4835
      %v6139 = vadd.f32 %v6091, %v4836
      %v6140 = vadd.f32 %v6092, %v4837
      %v6141 = vadd.f32 %v6093, %v4838
      %v6142 = vadd.f32 %v6090, %v4839
      %v6143 = vadd.f32 %v6091, %v4840
      %v6144 = vadd.f32 %v6092, %v4841
      %v6145 = vadd.f32 %v6093, %v4842
      %v6146 = vadd.f32 %v6090, %v4843
      %v6147 = vadd.f32 %v6091, %v4844
      %v6148 = vadd.f32 %v6092, %v4845
      %v6149 = vadd.f32 %v6093, %v4846
      %v6150 = vadd.f32 %v6090, %v4847
      %v6151 = vadd.f32 %v6091, %v4848
      %v6152 = vadd.f32 %v6092, %v4849
      %v6153 = vadd.f32 %v6093, %v4850
      %v6154 = vadd.f32 %v6090, %v4851
      %v6155 = vadd.f32 %v6091, %v4852
      %v6156 = vadd.f32 %v6092, %v4853
      %v6157 = vadd.f32 %v6093, %v4854
      %v6158 = vpack.c.bf16 %v6098, %v6094
      %v6159 = vpack.c.bf16 %v6099, %v6095
      %v6160 = vpack.c.bf16 %v6100, %v6096
      %v6161 = vpack.c.bf16 %v6101, %v6097
      %v6162 = vpack.c.bf16 %v6106, %v6102
      %v6163 = vpack.c.bf16 %v6107, %v6103
      %v6164 = vpack.c.bf16 %v6108, %v6104
      %v6165 = vpack.c.bf16 %v6109, %v6105
      %v6166 = vpack.c.bf16 %v6114, %v6110
      %v6167 = vpack.c.bf16 %v6115, %v6111
      %v6168 = vpack.c.bf16 %v6116, %v6112
      %v6169 = vpack.c.bf16 %v6117, %v6113
      %v6170 = vpack.c.bf16 %v6122, %v6118
      %v6171 = vpack.c.bf16 %v6123, %v6119
      %v6172 = vpack.c.bf16 %v6124, %v6120
      %v6173 = vpack.c.bf16 %v6125, %v6121
      %v6174 = vpack.c.bf16 %v6130, %v6126
      %v6175 = vpack.c.bf16 %v6131, %v6127
      %v6176 = vpack.c.bf16 %v6132, %v6128
      %v6177 = vpack.c.bf16 %v6133, %v6129
      %v6178 = vpack.c.bf16 %v6138, %v6134
      %v6179 = vpack.c.bf16 %v6139, %v6135
      %v6180 = vpack.c.bf16 %v6140, %v6136
      %v6181 = vpack.c.bf16 %v6141, %v6137
      %v6182 = vpack.c.bf16 %v6146, %v6142
      %v6183 = vpack.c.bf16 %v6147, %v6143
      %v6184 = vpack.c.bf16 %v6148, %v6144
      %v6185 = vpack.c.bf16 %v6149, %v6145
      %v6186 = vpack.c.bf16 %v6154, %v6150
      %v6187 = vpack.c.bf16 %v6155, %v6151
      %v6188 = vpack.c.bf16 %v6156, %v6152
      %v6189 = vpack.c.bf16 %v6157, %v6153
      %v6190 = vunpack.c.l.bf16 %v6158
      %v6191 = vunpack.c.l.bf16 %v6159
      %v6192 = vunpack.c.l.bf16 %v6160
      %v6193 = vunpack.c.l.bf16 %v6161
      %v6194 = vunpack.c.h.bf16 %v6158
      %v6195 = vunpack.c.h.bf16 %v6159
      %v6196 = vunpack.c.h.bf16 %v6160
      %v6197 = vunpack.c.h.bf16 %v6161
      %v6198 = vunpack.c.l.bf16 %v6162
      %v6199 = vunpack.c.l.bf16 %v6163
      %v6200 = vunpack.c.l.bf16 %v6164
      %v6201 = vunpack.c.l.bf16 %v6165
      %v6202 = vunpack.c.h.bf16 %v6162
      %v6203 = vunpack.c.h.bf16 %v6163
      %v6204 = vunpack.c.h.bf16 %v6164
      %v6205 = vunpack.c.h.bf16 %v6165
      %v6206 = vunpack.c.l.bf16 %v6166
      %v6207 = vunpack.c.l.bf16 %v6167
      %v6208 = vunpack.c.l.bf16 %v6168
      %v6209 = vunpack.c.l.bf16 %v6169
      %v6210 = vunpack.c.h.bf16 %v6166
      %v6211 = vunpack.c.h.bf16 %v6167
      %v6212 = vunpack.c.h.bf16 %v6168
      %v6213 = vunpack.c.h.bf16 %v6169
      %v6214 = vunpack.c.l.bf16 %v6170
      %v6215 = vunpack.c.l.bf16 %v6171
      %v6216 = vunpack.c.l.bf16 %v6172
      %v6217 = vunpack.c.l.bf16 %v6173
      %v6218 = vunpack.c.h.bf16 %v6170
      %v6219 = vunpack.c.h.bf16 %v6171
      %v6220 = vunpack.c.h.bf16 %v6172
      %v6221 = vunpack.c.h.bf16 %v6173
      %v6222 = vunpack.c.l.bf16 %v6174
      %v6223 = vunpack.c.l.bf16 %v6175
      %v6224 = vunpack.c.l.bf16 %v6176
      %v6225 = vunpack.c.l.bf16 %v6177
      %v6226 = vunpack.c.h.bf16 %v6174
      %v6227 = vunpack.c.h.bf16 %v6175
      %v6228 = vunpack.c.h.bf16 %v6176
      %v6229 = vunpack.c.h.bf16 %v6177
      %v6230 = vunpack.c.l.bf16 %v6178
      %v6231 = vunpack.c.l.bf16 %v6179
      %v6232 = vunpack.c.l.bf16 %v6180
      %v6233 = vunpack.c.l.bf16 %v6181
      %v6234 = vunpack.c.h.bf16 %v6178
      %v6235 = vunpack.c.h.bf16 %v6179
      %v6236 = vunpack.c.h.bf16 %v6180
      %v6237 = vunpack.c.h.bf16 %v6181
      %v6238 = vunpack.c.l.bf16 %v6182
      %v6239 = vunpack.c.l.bf16 %v6183
      %v6240 = vunpack.c.l.bf16 %v6184
      %v6241 = vunpack.c.l.bf16 %v6185
      %v6242 = vunpack.c.h.bf16 %v6182
      %v6243 = vunpack.c.h.bf16 %v6183
      %v6244 = vunpack.c.h.bf16 %v6184
      %v6245 = vunpack.c.h.bf16 %v6185
      %v6246 = vunpack.c.l.bf16 %v6186
      %v6247 = vunpack.c.l.bf16 %v6187
      %v6248 = vunpack.c.l.bf16 %v6188
      %v6249 = vunpack.c.l.bf16 %v6189
      %v6250 = vunpack.c.h.bf16 %v6186
      %v6251 = vunpack.c.h.bf16 %v6187
      %v6252 = vunpack.c.h.bf16 %v6188
      %v6253 = vunpack.c.h.bf16 %v6189
      %v6254 = vmax.f32 %v6190, %v6191
      %v6255 = vmax.f32 %v6254, %v6192
      %v6256 = vmax.f32 %v6255, %v6193
      %6257 = vmax.xlane.f32.xlu0 %v6256
      %v6258 = vpop.xlane.xlu0 %6257
      %v6259 = vmax.f32 %v6194, %v6195
      %v6260 = vmax.f32 %v6259, %v6196
      %v6261 = vmax.f32 %v6260, %v6197
      %6262 = vmax.xlane.f32.xlu0 %v6261
      %v6263 = vpop.xlane.xlu0 %6262
      %v6264 = vmax.f32 %v6198, %v6199
      %v6265 = vmax.f32 %v6264, %v6200
      %v6266 = vmax.f32 %v6265, %v6201
      %6267 = vmax.xlane.f32.xlu0 %v6266
      %v6268 = vpop.xlane.xlu0 %6267
      %v6269 = vmax.f32 %v6202, %v6203
      %v6270 = vmax.f32 %v6269, %v6204
      %v6271 = vmax.f32 %v6270, %v6205
      %6272 = vmax.xlane.f32.xlu0 %v6271
      %v6273 = vpop.xlane.xlu0 %6272
      %v6274 = vmax.f32 %v6206, %v6207
      %v6275 = vmax.f32 %v6274, %v6208
      %v6276 = vmax.f32 %v6275, %v6209
      %6277 = vmax.xlane.f32.xlu0 %v6276
      %v6278 = vpop.xlane.xlu0 %6277
      %v6279 = vmax.f32 %v6210, %v6211
      %v6280 = vmax.f32 %v6279, %v6212
      %v6281 = vmax.f32 %v6280, %v6213
      %6282 = vmax.xlane.f32.xlu0 %v6281
      %v6283 = vpop.xlane.xlu0 %6282
      %v6284 = vmax.f32 %v6214, %v6215
      %v6285 = vmax.f32 %v6284, %v6216
      %v6286 = vmax.f32 %v6285, %v6217
      %6287 = vmax.xlane.f32.xlu0 %v6286
      %v6288 = vpop.xlane.xlu0 %6287
      %v6289 = vmax.f32 %v6218, %v6219
      %v6290 = vmax.f32 %v6289, %v6220
      %v6291 = vmax.f32 %v6290, %v6221
      %6292 = vmax.xlane.f32.xlu0 %v6291
      %v6293 = vpop.xlane.xlu0 %6292
      %v6294 = vmax.f32 %v6222, %v6223
      %v6295 = vmax.f32 %v6294, %v6224
      %v6296 = vmax.f32 %v6295, %v6225
      %6297 = vmax.xlane.f32.xlu0 %v6296
      %v6298 = vpop.xlane.xlu0 %6297
      %v6299 = vmax.f32 %v6226, %v6227
      %v6300 = vmax.f32 %v6299, %v6228
      %v6301 = vmax.f32 %v6300, %v6229
      %6302 = vmax.xlane.f32.xlu0 %v6301
      %v6303 = vpop.xlane.xlu0 %6302
      %v6304 = vmax.f32 %v6230, %v6231
      %v6305 = vmax.f32 %v6304, %v6232
      %v6306 = vmax.f32 %v6305, %v6233
      %6307 = vmax.xlane.f32.xlu0 %v6306
      %v6308 = vpop.xlane.xlu0 %6307
      %v6309 = vmax.f32 %v6234, %v6235
      %v6310 = vmax.f32 %v6309, %v6236
      %v6311 = vmax.f32 %v6310, %v6237
      %6312 = vmax.xlane.f32.xlu0 %v6311
      %v6313 = vpop.xlane.xlu0 %6312
      %v6314 = vmax.f32 %v6238, %v6239
      %v6315 = vmax.f32 %v6314, %v6240
      %v6316 = vmax.f32 %v6315, %v6241
      %6317 = vmax.xlane.f32.xlu0 %v6316
      %v6318 = vpop.xlane.xlu0 %6317
      %v6319 = vmax.f32 %v6242, %v6243
      %v6320 = vmax.f32 %v6319, %v6244
      %v6321 = vmax.f32 %v6320, %v6245
      %6322 = vmax.xlane.f32.xlu0 %v6321
      %v6323 = vpop.xlane.xlu0 %6322
      %v6324 = vmax.f32 %v6246, %v6247
      %v6325 = vmax.f32 %v6324, %v6248
      %v6326 = vmax.f32 %v6325, %v6249
      %6327 = vmax.xlane.f32.xlu0 %v6326
      %v6328 = vpop.xlane.xlu0 %6327
      %v6329 = vmax.f32 %v6250, %v6251
      %v6330 = vmax.f32 %v6329, %v6252
      %v6331 = vmax.f32 %v6330, %v6253
      %6332 = vmax.xlane.f32.xlu0 %v6331
      %v6333 = vpop.xlane.xlu0 %6332
      %v6334 = vpack.c.bf16 %v6258, %v6258
      %v6335 = vpack.c.bf16 %v6263, %v6263
      %v6336 = vpack.c.bf16 %v6268, %v6268
      %v6337 = vpack.c.bf16 %v6273, %v6273
      %v6338 = vpack.c.bf16 %v6278, %v6278
      %v6339 = vpack.c.bf16 %v6283, %v6283
      %v6340 = vpack.c.bf16 %v6288, %v6288
      %v6341 = vpack.c.bf16 %v6293, %v6293
      %v6342 = vpack.c.bf16 %v6298, %v6298
      %v6343 = vpack.c.bf16 %v6303, %v6303
      %v6344 = vpack.c.bf16 %v6308, %v6308
      %v6345 = vpack.c.bf16 %v6313, %v6313
      %v6346 = vpack.c.bf16 %v6318, %v6318
      %v6347 = vpack.c.bf16 %v6323, %v6323
      %v6348 = vpack.c.bf16 %v6328, %v6328
      %v6349 = vpack.c.bf16 %v6333, %v6333
      %v6350 = vunpack.c.l.bf16 %v6334
      %v6351 = vunpack.c.l.bf16 %v6335
      %v6352 = vunpack.c.l.bf16 %v6336
      %v6353 = vunpack.c.l.bf16 %v6337
      %v6354 = vunpack.c.l.bf16 %v6338
      %v6355 = vunpack.c.l.bf16 %v6339
      %v6356 = vunpack.c.l.bf16 %v6340
      %v6357 = vunpack.c.l.bf16 %v6341
      %v6358 = vunpack.c.l.bf16 %v6342
      %v6359 = vunpack.c.l.bf16 %v6343
      %v6360 = vunpack.c.l.bf16 %v6344
      %v6361 = vunpack.c.l.bf16 %v6345
      %v6362 = vunpack.c.l.bf16 %v6346
      %v6363 = vunpack.c.l.bf16 %v6347
      %v6364 = vunpack.c.l.bf16 %v6348
      %v6365 = vunpack.c.l.bf16 %v6349
      %v6366 = vmul.f32 %v6350, %v653
      %v6367 = vmul.f32 %v6351, %v654
      %v6368 = vmul.f32 %v6352, %v655
      %v6369 = vmul.f32 %v6353, %v656
      %v6370 = vmul.f32 %v6354, %v657
      %v6371 = vmul.f32 %v6355, %v658
      %v6372 = vmul.f32 %v6356, %v659
      %v6373 = vmul.f32 %v6357, %v660
      %v6374 = vmul.f32 %v6358, %v661
      %v6375 = vmul.f32 %v6359, %v662
      %v6376 = vmul.f32 %v6360, %v663
      %v6377 = vmul.f32 %v6361, %v664
      %v6378 = vmul.f32 %v6362, %v665
      %v6379 = vmul.f32 %v6363, %v666
      %v6380 = vmul.f32 %v6364, %v667
      %v6381 = vmul.f32 %v6365, %v668
      %6383 = vset.pattern.permute.xlu0 0
      %6384 = vperm.xlu0 %6383, %v6366
      %v6385 = vpop.permute.xlu0 %6384
      %6388 = vset.pattern.permute.xlu0 0
      %6389 = vperm.xlu0 %6388, %v6367
      %v6390 = vpop.permute.xlu0 %6389
      %6393 = vset.pattern.permute.xlu0 0
      %6394 = vperm.xlu0 %6393, %v6368
      %v6395 = vpop.permute.xlu0 %6394
      %6398 = vset.pattern.permute.xlu0 0
      %6399 = vperm.xlu0 %6398, %v6369
      %v6400 = vpop.permute.xlu0 %6399
      %6403 = vset.pattern.permute.xlu0 0
      %6404 = vperm.xlu0 %6403, %v6370
      %v6405 = vpop.permute.xlu0 %6404
      %6408 = vset.pattern.permute.xlu0 0
      %6409 = vperm.xlu0 %6408, %v6371
      %v6410 = vpop.permute.xlu0 %6409
      %6413 = vset.pattern.permute.xlu0 0
      %6414 = vperm.xlu0 %6413, %v6372
      %v6415 = vpop.permute.xlu0 %6414
      %6418 = vset.pattern.permute.xlu0 0
      %6419 = vperm.xlu0 %6418, %v6373
      %v6420 = vpop.permute.xlu0 %6419
      %6423 = vset.pattern.permute.xlu0 0
      %6424 = vperm.xlu0 %6423, %v6374
      %v6425 = vpop.permute.xlu0 %6424
      %6428 = vset.pattern.permute.xlu0 0
      %6429 = vperm.xlu0 %6428, %v6375
      %v6430 = vpop.permute.xlu0 %6429
      %6433 = vset.pattern.permute.xlu0 0
      %6434 = vperm.xlu0 %6433, %v6376
      %v6435 = vpop.permute.xlu0 %6434
      %6438 = vset.pattern.permute.xlu0 0
      %6439 = vperm.xlu0 %6438, %v6377
      %v6440 = vpop.permute.xlu0 %6439
      %6443 = vset.pattern.permute.xlu0 0
      %6444 = vperm.xlu0 %6443, %v6378
      %v6445 = vpop.permute.xlu0 %6444
      %6448 = vset.pattern.permute.xlu0 0
      %6449 = vperm.xlu0 %6448, %v6379
      %v6450 = vpop.permute.xlu0 %6449
      %6453 = vset.pattern.permute.xlu0 0
      %6454 = vperm.xlu0 %6453, %v6380
      %v6455 = vpop.permute.xlu0 %6454
      %6458 = vset.pattern.permute.xlu0 0
      %6459 = vperm.xlu0 %6458, %v6381
      %v6460 = vpop.permute.xlu0 %6459
      %v6462 = vperm.slane %v4759, 3
      %v6463 = vmul.f32 %v6385, %v6462
      %v6464 = vmul.f32 %v6390, %v6462
      %v6465 = vmul.f32 %v6395, %v6462
      %v6466 = vmul.f32 %v6400, %v6462
      %v6467 = vmul.f32 %v6405, %v6462
      %v6468 = vmul.f32 %v6410, %v6462
      %v6469 = vmul.f32 %v6415, %v6462
      %v6470 = vmul.f32 %v6420, %v6462
      %v6471 = vmul.f32 %v6425, %v6462
      %v6472 = vmul.f32 %v6430, %v6462
      %v6473 = vmul.f32 %v6435, %v6462
      %v6474 = vmul.f32 %v6440, %v6462
      %v6475 = vmul.f32 %v6445, %v6462
      %v6476 = vmul.f32 %v6450, %v6462
      %v6477 = vmul.f32 %v6455, %v6462
      %v6478 = vmul.f32 %v6460, %v6462
      %v6479 = vadd.f32 %v6070, %v6463
      %v6480 = vadd.f32 %v6071, %v6464
      %v6481 = vadd.f32 %v6072, %v6465
      %v6482 = vadd.f32 %v6073, %v6466
      %v6483 = vadd.f32 %v6074, %v6467
      %v6484 = vadd.f32 %v6075, %v6468
      %v6485 = vadd.f32 %v6076, %v6469
      %v6486 = vadd.f32 %v6077, %v6470
      %v6487 = vadd.f32 %v6078, %v6471
      %v6488 = vadd.f32 %v6079, %v6472
      %v6489 = vadd.f32 %v6080, %v6473
      %v6490 = vadd.f32 %v6081, %v6474
      %v6491 = vadd.f32 %v6082, %v6475
      %v6492 = vadd.f32 %v6083, %v6476
      %v6493 = vadd.f32 %v6084, %v6477
      %v6494 = vadd.f32 %v6085, %v6478
      %v6495 = vperm.slane %v4772, 2
      %v6496 = vperm.slane %v4776, 2
      %v6497 = vperm.slane %v4780, 2
      %v6498 = vperm.slane %v4784, 2
      %v6499 = vunpack.c.l.bf16 %v6495
      %v6500 = vunpack.c.l.bf16 %v6496
      %v6501 = vunpack.c.l.bf16 %v6497
      %v6502 = vunpack.c.l.bf16 %v6498
      %v6503 = vadd.f32 %v6499, %v4791
      %v6504 = vadd.f32 %v6500, %v4792
      %v6505 = vadd.f32 %v6501, %v4793
      %v6506 = vadd.f32 %v6502, %v4794
      %v6507 = vadd.f32 %v6499, %v4795
      %v6508 = vadd.f32 %v6500, %v4796
      %v6509 = vadd.f32 %v6501, %v4797
      %v6510 = vadd.f32 %v6502, %v4798
      %v6511 = vadd.f32 %v6499, %v4799
      %v6512 = vadd.f32 %v6500, %v4800
      %v6513 = vadd.f32 %v6501, %v4801
      %v6514 = vadd.f32 %v6502, %v4802
      %v6515 = vadd.f32 %v6499, %v4803
      %v6516 = vadd.f32 %v6500, %v4804
      %v6517 = vadd.f32 %v6501, %v4805
      %v6518 = vadd.f32 %v6502, %v4806
      %v6519 = vadd.f32 %v6499, %v4807
      %v6520 = vadd.f32 %v6500, %v4808
      %v6521 = vadd.f32 %v6501, %v4809
      %v6522 = vadd.f32 %v6502, %v4810
      %v6523 = vadd.f32 %v6499, %v4811
      %v6524 = vadd.f32 %v6500, %v4812
      %v6525 = vadd.f32 %v6501, %v4813
      %v6526 = vadd.f32 %v6502, %v4814
      %v6527 = vadd.f32 %v6499, %v4815
      %v6528 = vadd.f32 %v6500, %v4816
      %v6529 = vadd.f32 %v6501, %v4817
      %v6530 = vadd.f32 %v6502, %v4818
      %v6531 = vadd.f32 %v6499, %v4819
      %v6532 = vadd.f32 %v6500, %v4820
      %v6533 = vadd.f32 %v6501, %v4821
      %v6534 = vadd.f32 %v6502, %v4822
      %v6535 = vadd.f32 %v6499, %v4823
      %v6536 = vadd.f32 %v6500, %v4824
      %v6537 = vadd.f32 %v6501, %v4825
      %v6538 = vadd.f32 %v6502, %v4826
      %v6539 = vadd.f32 %v6499, %v4827
      %v6540 = vadd.f32 %v6500, %v4828
      %v6541 = vadd.f32 %v6501, %v4829
      %v6542 = vadd.f32 %v6502, %v4830
      %v6543 = vadd.f32 %v6499, %v4831
      %v6544 = vadd.f32 %v6500, %v4832
      %v6545 = vadd.f32 %v6501, %v4833
      %v6546 = vadd.f32 %v6502, %v4834
      %v6547 = vadd.f32 %v6499, %v4835
      %v6548 = vadd.f32 %v6500, %v4836
      %v6549 = vadd.f32 %v6501, %v4837
      %v6550 = vadd.f32 %v6502, %v4838
      %v6551 = vadd.f32 %v6499, %v4839
      %v6552 = vadd.f32 %v6500, %v4840
      %v6553 = vadd.f32 %v6501, %v4841
      %v6554 = vadd.f32 %v6502, %v4842
      %v6555 = vadd.f32 %v6499, %v4843
      %v6556 = vadd.f32 %v6500, %v4844
      %v6557 = vadd.f32 %v6501, %v4845
      %v6558 = vadd.f32 %v6502, %v4846
      %v6559 = vadd.f32 %v6499, %v4847
      %v6560 = vadd.f32 %v6500, %v4848
      %v6561 = vadd.f32 %v6501, %v4849
      %v6562 = vadd.f32 %v6502, %v4850
      %v6563 = vadd.f32 %v6499, %v4851
      %v6564 = vadd.f32 %v6500, %v4852
      %v6565 = vadd.f32 %v6501, %v4853
      %v6566 = vadd.f32 %v6502, %v4854
      %v6567 = vpack.c.bf16 %v6507, %v6503
      %v6568 = vpack.c.bf16 %v6508, %v6504
      %v6569 = vpack.c.bf16 %v6509, %v6505
      %v6570 = vpack.c.bf16 %v6510, %v6506
      %v6571 = vpack.c.bf16 %v6515, %v6511
      %v6572 = vpack.c.bf16 %v6516, %v6512
      %v6573 = vpack.c.bf16 %v6517, %v6513
      %v6574 = vpack.c.bf16 %v6518, %v6514
      %v6575 = vpack.c.bf16 %v6523, %v6519
      %v6576 = vpack.c.bf16 %v6524, %v6520
      %v6577 = vpack.c.bf16 %v6525, %v6521
      %v6578 = vpack.c.bf16 %v6526, %v6522
      %v6579 = vpack.c.bf16 %v6531, %v6527
      %v6580 = vpack.c.bf16 %v6532, %v6528
      %v6581 = vpack.c.bf16 %v6533, %v6529
      %v6582 = vpack.c.bf16 %v6534, %v6530
      %v6583 = vpack.c.bf16 %v6539, %v6535
      %v6584 = vpack.c.bf16 %v6540, %v6536
      %v6585 = vpack.c.bf16 %v6541, %v6537
      %v6586 = vpack.c.bf16 %v6542, %v6538
      %v6587 = vpack.c.bf16 %v6547, %v6543
      %v6588 = vpack.c.bf16 %v6548, %v6544
      %v6589 = vpack.c.bf16 %v6549, %v6545
      %v6590 = vpack.c.bf16 %v6550, %v6546
      %v6591 = vpack.c.bf16 %v6555, %v6551
      %v6592 = vpack.c.bf16 %v6556, %v6552
      %v6593 = vpack.c.bf16 %v6557, %v6553
      %v6594 = vpack.c.bf16 %v6558, %v6554
      %v6595 = vpack.c.bf16 %v6563, %v6559
      %v6596 = vpack.c.bf16 %v6564, %v6560
      %v6597 = vpack.c.bf16 %v6565, %v6561
      %v6598 = vpack.c.bf16 %v6566, %v6562
      %v6599 = vunpack.c.l.bf16 %v6567
      %v6600 = vunpack.c.l.bf16 %v6568
      %v6601 = vunpack.c.l.bf16 %v6569
      %v6602 = vunpack.c.l.bf16 %v6570
      %v6603 = vunpack.c.h.bf16 %v6567
      %v6604 = vunpack.c.h.bf16 %v6568
      %v6605 = vunpack.c.h.bf16 %v6569
      %v6606 = vunpack.c.h.bf16 %v6570
      %v6607 = vunpack.c.l.bf16 %v6571
      %v6608 = vunpack.c.l.bf16 %v6572
      %v6609 = vunpack.c.l.bf16 %v6573
      %v6610 = vunpack.c.l.bf16 %v6574
      %v6611 = vunpack.c.h.bf16 %v6571
      %v6612 = vunpack.c.h.bf16 %v6572
      %v6613 = vunpack.c.h.bf16 %v6573
      %v6614 = vunpack.c.h.bf16 %v6574
      %v6615 = vunpack.c.l.bf16 %v6575
      %v6616 = vunpack.c.l.bf16 %v6576
      %v6617 = vunpack.c.l.bf16 %v6577
      %v6618 = vunpack.c.l.bf16 %v6578
      %v6619 = vunpack.c.h.bf16 %v6575
      %v6620 = vunpack.c.h.bf16 %v6576
      %v6621 = vunpack.c.h.bf16 %v6577
      %v6622 = vunpack.c.h.bf16 %v6578
      %v6623 = vunpack.c.l.bf16 %v6579
      %v6624 = vunpack.c.l.bf16 %v6580
      %v6625 = vunpack.c.l.bf16 %v6581
      %v6626 = vunpack.c.l.bf16 %v6582
      %v6627 = vunpack.c.h.bf16 %v6579
      %v6628 = vunpack.c.h.bf16 %v6580
      %v6629 = vunpack.c.h.bf16 %v6581
      %v6630 = vunpack.c.h.bf16 %v6582
      %v6631 = vunpack.c.l.bf16 %v6583
      %v6632 = vunpack.c.l.bf16 %v6584
      %v6633 = vunpack.c.l.bf16 %v6585
      %v6634 = vunpack.c.l.bf16 %v6586
      %v6635 = vunpack.c.h.bf16 %v6583
      %v6636 = vunpack.c.h.bf16 %v6584
      %v6637 = vunpack.c.h.bf16 %v6585
      %v6638 = vunpack.c.h.bf16 %v6586
      %v6639 = vunpack.c.l.bf16 %v6587
      %v6640 = vunpack.c.l.bf16 %v6588
      %v6641 = vunpack.c.l.bf16 %v6589
      %v6642 = vunpack.c.l.bf16 %v6590
      %v6643 = vunpack.c.h.bf16 %v6587
      %v6644 = vunpack.c.h.bf16 %v6588
      %v6645 = vunpack.c.h.bf16 %v6589
      %v6646 = vunpack.c.h.bf16 %v6590
      %v6647 = vunpack.c.l.bf16 %v6591
      %v6648 = vunpack.c.l.bf16 %v6592
      %v6649 = vunpack.c.l.bf16 %v6593
      %v6650 = vunpack.c.l.bf16 %v6594
      %v6651 = vunpack.c.h.bf16 %v6591
      %v6652 = vunpack.c.h.bf16 %v6592
      %v6653 = vunpack.c.h.bf16 %v6593
      %v6654 = vunpack.c.h.bf16 %v6594
      %v6655 = vunpack.c.l.bf16 %v6595
      %v6656 = vunpack.c.l.bf16 %v6596
      %v6657 = vunpack.c.l.bf16 %v6597
      %v6658 = vunpack.c.l.bf16 %v6598
      %v6659 = vunpack.c.h.bf16 %v6595
      %v6660 = vunpack.c.h.bf16 %v6596
      %v6661 = vunpack.c.h.bf16 %v6597
      %v6662 = vunpack.c.h.bf16 %v6598
      %v6663 = vmax.f32 %v6599, %v6600
      %v6664 = vmax.f32 %v6663, %v6601
      %v6665 = vmax.f32 %v6664, %v6602
      %6666 = vmax.xlane.f32.xlu0 %v6665
      %v6667 = vpop.xlane.xlu0 %6666
      %v6668 = vmax.f32 %v6603, %v6604
      %v6669 = vmax.f32 %v6668, %v6605
      %v6670 = vmax.f32 %v6669, %v6606
      %6671 = vmax.xlane.f32.xlu0 %v6670
      %v6672 = vpop.xlane.xlu0 %6671
      %v6673 = vmax.f32 %v6607, %v6608
      %v6674 = vmax.f32 %v6673, %v6609
      %v6675 = vmax.f32 %v6674, %v6610
      %6676 = vmax.xlane.f32.xlu0 %v6675
      %v6677 = vpop.xlane.xlu0 %6676
      %v6678 = vmax.f32 %v6611, %v6612
      %v6679 = vmax.f32 %v6678, %v6613
      %v6680 = vmax.f32 %v6679, %v6614
      %6681 = vmax.xlane.f32.xlu0 %v6680
      %v6682 = vpop.xlane.xlu0 %6681
      %v6683 = vmax.f32 %v6615, %v6616
      %v6684 = vmax.f32 %v6683, %v6617
      %v6685 = vmax.f32 %v6684, %v6618
      %6686 = vmax.xlane.f32.xlu0 %v6685
      %v6687 = vpop.xlane.xlu0 %6686
      %v6688 = vmax.f32 %v6619, %v6620
      %v6689 = vmax.f32 %v6688, %v6621
      %v6690 = vmax.f32 %v6689, %v6622
      %6691 = vmax.xlane.f32.xlu0 %v6690
      %v6692 = vpop.xlane.xlu0 %6691
      %v6693 = vmax.f32 %v6623, %v6624
      %v6694 = vmax.f32 %v6693, %v6625
      %v6695 = vmax.f32 %v6694, %v6626
      %6696 = vmax.xlane.f32.xlu0 %v6695
      %v6697 = vpop.xlane.xlu0 %6696
      %v6698 = vmax.f32 %v6627, %v6628
      %v6699 = vmax.f32 %v6698, %v6629
      %v6700 = vmax.f32 %v6699, %v6630
      %6701 = vmax.xlane.f32.xlu0 %v6700
      %v6702 = vpop.xlane.xlu0 %6701
      %v6703 = vmax.f32 %v6631, %v6632
      %v6704 = vmax.f32 %v6703, %v6633
      %v6705 = vmax.f32 %v6704, %v6634
      %6706 = vmax.xlane.f32.xlu0 %v6705
      %v6707 = vpop.xlane.xlu0 %6706
      %v6708 = vmax.f32 %v6635, %v6636
      %v6709 = vmax.f32 %v6708, %v6637
      %v6710 = vmax.f32 %v6709, %v6638
      %6711 = vmax.xlane.f32.xlu0 %v6710
      %v6712 = vpop.xlane.xlu0 %6711
      %v6713 = vmax.f32 %v6639, %v6640
      %v6714 = vmax.f32 %v6713, %v6641
      %v6715 = vmax.f32 %v6714, %v6642
      %6716 = vmax.xlane.f32.xlu0 %v6715
      %v6717 = vpop.xlane.xlu0 %6716
      %v6718 = vmax.f32 %v6643, %v6644
      %v6719 = vmax.f32 %v6718, %v6645
      %v6720 = vmax.f32 %v6719, %v6646
      %6721 = vmax.xlane.f32.xlu0 %v6720
      %v6722 = vpop.xlane.xlu0 %6721
      %v6723 = vmax.f32 %v6647, %v6648
      %v6724 = vmax.f32 %v6723, %v6649
      %v6725 = vmax.f32 %v6724, %v6650
      %6726 = vmax.xlane.f32.xlu0 %v6725
      %v6727 = vpop.xlane.xlu0 %6726
      %v6728 = vmax.f32 %v6651, %v6652
      %v6729 = vmax.f32 %v6728, %v6653
      %v6730 = vmax.f32 %v6729, %v6654
      %6731 = vmax.xlane.f32.xlu0 %v6730
      %v6732 = vpop.xlane.xlu0 %6731
      %v6733 = vmax.f32 %v6655, %v6656
      %v6734 = vmax.f32 %v6733, %v6657
      %v6735 = vmax.f32 %v6734, %v6658
      %6736 = vmax.xlane.f32.xlu0 %v6735
      %v6737 = vpop.xlane.xlu0 %6736
      %v6738 = vmax.f32 %v6659, %v6660
      %v6739 = vmax.f32 %v6738, %v6661
      %v6740 = vmax.f32 %v6739, %v6662
      %6741 = vmax.xlane.f32.xlu0 %v6740
      %v6742 = vpop.xlane.xlu0 %6741
      %v6743 = vpack.c.bf16 %v6667, %v6667
      %v6744 = vpack.c.bf16 %v6672, %v6672
      %v6745 = vpack.c.bf16 %v6677, %v6677
      %v6746 = vpack.c.bf16 %v6682, %v6682
      %v6747 = vpack.c.bf16 %v6687, %v6687
      %v6748 = vpack.c.bf16 %v6692, %v6692
      %v6749 = vpack.c.bf16 %v6697, %v6697
      %v6750 = vpack.c.bf16 %v6702, %v6702
      %v6751 = vpack.c.bf16 %v6707, %v6707
      %v6752 = vpack.c.bf16 %v6712, %v6712
      %v6753 = vpack.c.bf16 %v6717, %v6717
      %v6754 = vpack.c.bf16 %v6722, %v6722
      %v6755 = vpack.c.bf16 %v6727, %v6727
      %v6756 = vpack.c.bf16 %v6732, %v6732
      %v6757 = vpack.c.bf16 %v6737, %v6737
      %v6758 = vpack.c.bf16 %v6742, %v6742
      %v6759 = vunpack.c.l.bf16 %v6743
      %v6760 = vunpack.c.l.bf16 %v6744
      %v6761 = vunpack.c.l.bf16 %v6745
      %v6762 = vunpack.c.l.bf16 %v6746
      %v6763 = vunpack.c.l.bf16 %v6747
      %v6764 = vunpack.c.l.bf16 %v6748
      %v6765 = vunpack.c.l.bf16 %v6749
      %v6766 = vunpack.c.l.bf16 %v6750
      %v6767 = vunpack.c.l.bf16 %v6751
      %v6768 = vunpack.c.l.bf16 %v6752
      %v6769 = vunpack.c.l.bf16 %v6753
      %v6770 = vunpack.c.l.bf16 %v6754
      %v6771 = vunpack.c.l.bf16 %v6755
      %v6772 = vunpack.c.l.bf16 %v6756
      %v6773 = vunpack.c.l.bf16 %v6757
      %v6774 = vunpack.c.l.bf16 %v6758
      %v6775 = vmul.f32 %v6759, %v653
      %v6776 = vmul.f32 %v6760, %v654
      %v6777 = vmul.f32 %v6761, %v655
      %v6778 = vmul.f32 %v6762, %v656
      %v6779 = vmul.f32 %v6763, %v657
      %v6780 = vmul.f32 %v6764, %v658
      %v6781 = vmul.f32 %v6765, %v659
      %v6782 = vmul.f32 %v6766, %v660
      %v6783 = vmul.f32 %v6767, %v661
      %v6784 = vmul.f32 %v6768, %v662
      %v6785 = vmul.f32 %v6769, %v663
      %v6786 = vmul.f32 %v6770, %v664
      %v6787 = vmul.f32 %v6771, %v665
      %v6788 = vmul.f32 %v6772, %v666
      %v6789 = vmul.f32 %v6773, %v667
      %v6790 = vmul.f32 %v6774, %v668
      %6792 = vset.pattern.permute.xlu0 0
      %6793 = vperm.xlu0 %6792, %v6775
      %v6794 = vpop.permute.xlu0 %6793
      %6797 = vset.pattern.permute.xlu0 0
      %6798 = vperm.xlu0 %6797, %v6776
      %v6799 = vpop.permute.xlu0 %6798
      %6802 = vset.pattern.permute.xlu0 0
      %6803 = vperm.xlu0 %6802, %v6777
      %v6804 = vpop.permute.xlu0 %6803
      %6807 = vset.pattern.permute.xlu0 0
      %6808 = vperm.xlu0 %6807, %v6778
      %v6809 = vpop.permute.xlu0 %6808
      %6812 = vset.pattern.permute.xlu0 0
      %6813 = vperm.xlu0 %6812, %v6779
      %v6814 = vpop.permute.xlu0 %6813
      %6817 = vset.pattern.permute.xlu0 0
      %6818 = vperm.xlu0 %6817, %v6780
      %v6819 = vpop.permute.xlu0 %6818
      %6822 = vset.pattern.permute.xlu0 0
      %6823 = vperm.xlu0 %6822, %v6781
      %v6824 = vpop.permute.xlu0 %6823
      %6827 = vset.pattern.permute.xlu0 0
      %6828 = vperm.xlu0 %6827, %v6782
      %v6829 = vpop.permute.xlu0 %6828
      %6832 = vset.pattern.permute.xlu0 0
      %6833 = vperm.xlu0 %6832, %v6783
      %v6834 = vpop.permute.xlu0 %6833
      %6837 = vset.pattern.permute.xlu0 0
      %6838 = vperm.xlu0 %6837, %v6784
      %v6839 = vpop.permute.xlu0 %6838
      %6842 = vset.pattern.permute.xlu0 0
      %6843 = vperm.xlu0 %6842, %v6785
      %v6844 = vpop.permute.xlu0 %6843
      %6847 = vset.pattern.permute.xlu0 0
      %6848 = vperm.xlu0 %6847, %v6786
      %v6849 = vpop.permute.xlu0 %6848
      %6852 = vset.pattern.permute.xlu0 0
      %6853 = vperm.xlu0 %6852, %v6787
      %v6854 = vpop.permute.xlu0 %6853
      %6857 = vset.pattern.permute.xlu0 0
      %6858 = vperm.xlu0 %6857, %v6788
      %v6859 = vpop.permute.xlu0 %6858
      %6862 = vset.pattern.permute.xlu0 0
      %6863 = vperm.xlu0 %6862, %v6789
      %v6864 = vpop.permute.xlu0 %6863
      %6867 = vset.pattern.permute.xlu0 0
      %6868 = vperm.xlu0 %6867, %v6790
      %v6869 = vpop.permute.xlu0 %6868
      %v6871 = vperm.slane %v4759, 4
      %v6872 = vmul.f32 %v6794, %v6871
      %v6873 = vmul.f32 %v6799, %v6871
      %v6874 = vmul.f32 %v6804, %v6871
      %v6875 = vmul.f32 %v6809, %v6871
      %v6876 = vmul.f32 %v6814, %v6871
      %v6877 = vmul.f32 %v6819, %v6871
      %v6878 = vmul.f32 %v6824, %v6871
      %v6879 = vmul.f32 %v6829, %v6871
      %v6880 = vmul.f32 %v6834, %v6871
      %v6881 = vmul.f32 %v6839, %v6871
      %v6882 = vmul.f32 %v6844, %v6871
      %v6883 = vmul.f32 %v6849, %v6871
      %v6884 = vmul.f32 %v6854, %v6871
      %v6885 = vmul.f32 %v6859, %v6871
      %v6886 = vmul.f32 %v6864, %v6871
      %v6887 = vmul.f32 %v6869, %v6871
      %v6888 = vadd.f32 %v6479, %v6872
      %v6889 = vadd.f32 %v6480, %v6873
      %v6890 = vadd.f32 %v6481, %v6874
      %v6891 = vadd.f32 %v6482, %v6875
      %v6892 = vadd.f32 %v6483, %v6876
      %v6893 = vadd.f32 %v6484, %v6877
      %v6894 = vadd.f32 %v6485, %v6878
      %v6895 = vadd.f32 %v6486, %v6879
      %v6896 = vadd.f32 %v6487, %v6880
      %v6897 = vadd.f32 %v6488, %v6881
      %v6898 = vadd.f32 %v6489, %v6882
      %v6899 = vadd.f32 %v6490, %v6883
      %v6900 = vadd.f32 %v6491, %v6884
      %v6901 = vadd.f32 %v6492, %v6885
      %v6902 = vadd.f32 %v6493, %v6886
      %v6903 = vadd.f32 %v6494, %v6887
      %v6904 = vperm.slane %v5257, 2
      %v6905 = vperm.slane %v5261, 2
      %v6906 = vperm.slane %v5265, 2
      %v6907 = vperm.slane %v5269, 2
      %v6908 = vunpack.c.l.bf16 %v6904
      %v6909 = vunpack.c.l.bf16 %v6905
      %v6910 = vunpack.c.l.bf16 %v6906
      %v6911 = vunpack.c.l.bf16 %v6907
      %v6912 = vadd.f32 %v6908, %v4791
      %v6913 = vadd.f32 %v6909, %v4792
      %v6914 = vadd.f32 %v6910, %v4793
      %v6915 = vadd.f32 %v6911, %v4794
      %v6916 = vadd.f32 %v6908, %v4795
      %v6917 = vadd.f32 %v6909, %v4796
      %v6918 = vadd.f32 %v6910, %v4797
      %v6919 = vadd.f32 %v6911, %v4798
      %v6920 = vadd.f32 %v6908, %v4799
      %v6921 = vadd.f32 %v6909, %v4800
      %v6922 = vadd.f32 %v6910, %v4801
      %v6923 = vadd.f32 %v6911, %v4802
      %v6924 = vadd.f32 %v6908, %v4803
      %v6925 = vadd.f32 %v6909, %v4804
      %v6926 = vadd.f32 %v6910, %v4805
      %v6927 = vadd.f32 %v6911, %v4806
      %v6928 = vadd.f32 %v6908, %v4807
      %v6929 = vadd.f32 %v6909, %v4808
      %v6930 = vadd.f32 %v6910, %v4809
      %v6931 = vadd.f32 %v6911, %v4810
      %v6932 = vadd.f32 %v6908, %v4811
      %v6933 = vadd.f32 %v6909, %v4812
      %v6934 = vadd.f32 %v6910, %v4813
      %v6935 = vadd.f32 %v6911, %v4814
      %v6936 = vadd.f32 %v6908, %v4815
      %v6937 = vadd.f32 %v6909, %v4816
      %v6938 = vadd.f32 %v6910, %v4817
      %v6939 = vadd.f32 %v6911, %v4818
      %v6940 = vadd.f32 %v6908, %v4819
      %v6941 = vadd.f32 %v6909, %v4820
      %v6942 = vadd.f32 %v6910, %v4821
      %v6943 = vadd.f32 %v6911, %v4822
      %v6944 = vadd.f32 %v6908, %v4823
      %v6945 = vadd.f32 %v6909, %v4824
      %v6946 = vadd.f32 %v6910, %v4825
      %v6947 = vadd.f32 %v6911, %v4826
      %v6948 = vadd.f32 %v6908, %v4827
      %v6949 = vadd.f32 %v6909, %v4828
      %v6950 = vadd.f32 %v6910, %v4829
      %v6951 = vadd.f32 %v6911, %v4830
      %v6952 = vadd.f32 %v6908, %v4831
      %v6953 = vadd.f32 %v6909, %v4832
      %v6954 = vadd.f32 %v6910, %v4833
      %v6955 = vadd.f32 %v6911, %v4834
      %v6956 = vadd.f32 %v6908, %v4835
      %v6957 = vadd.f32 %v6909, %v4836
      %v6958 = vadd.f32 %v6910, %v4837
      %v6959 = vadd.f32 %v6911, %v4838
      %v6960 = vadd.f32 %v6908, %v4839
      %v6961 = vadd.f32 %v6909, %v4840
      %v6962 = vadd.f32 %v6910, %v4841
      %v6963 = vadd.f32 %v6911, %v4842
      %v6964 = vadd.f32 %v6908, %v4843
      %v6965 = vadd.f32 %v6909, %v4844
      %v6966 = vadd.f32 %v6910, %v4845
      %v6967 = vadd.f32 %v6911, %v4846
      %v6968 = vadd.f32 %v6908, %v4847
      %v6969 = vadd.f32 %v6909, %v4848
      %v6970 = vadd.f32 %v6910, %v4849
      %v6971 = vadd.f32 %v6911, %v4850
      %v6972 = vadd.f32 %v6908, %v4851
      %v6973 = vadd.f32 %v6909, %v4852
      %v6974 = vadd.f32 %v6910, %v4853
      %v6975 = vadd.f32 %v6911, %v4854
      %v6976 = vpack.c.bf16 %v6916, %v6912
      %v6977 = vpack.c.bf16 %v6917, %v6913
      %v6978 = vpack.c.bf16 %v6918, %v6914
      %v6979 = vpack.c.bf16 %v6919, %v6915
      %v6980 = vpack.c.bf16 %v6924, %v6920
      %v6981 = vpack.c.bf16 %v6925, %v6921
      %v6982 = vpack.c.bf16 %v6926, %v6922
      %v6983 = vpack.c.bf16 %v6927, %v6923
      %v6984 = vpack.c.bf16 %v6932, %v6928
      %v6985 = vpack.c.bf16 %v6933, %v6929
      %v6986 = vpack.c.bf16 %v6934, %v6930
      %v6987 = vpack.c.bf16 %v6935, %v6931
      %v6988 = vpack.c.bf16 %v6940, %v6936
      %v6989 = vpack.c.bf16 %v6941, %v6937
      %v6990 = vpack.c.bf16 %v6942, %v6938
      %v6991 = vpack.c.bf16 %v6943, %v6939
      %v6992 = vpack.c.bf16 %v6948, %v6944
      %v6993 = vpack.c.bf16 %v6949, %v6945
      %v6994 = vpack.c.bf16 %v6950, %v6946
      %v6995 = vpack.c.bf16 %v6951, %v6947
      %v6996 = vpack.c.bf16 %v6956, %v6952
      %v6997 = vpack.c.bf16 %v6957, %v6953
      %v6998 = vpack.c.bf16 %v6958, %v6954
      %v6999 = vpack.c.bf16 %v6959, %v6955
      %v7000 = vpack.c.bf16 %v6964, %v6960
      %v7001 = vpack.c.bf16 %v6965, %v6961
      %v7002 = vpack.c.bf16 %v6966, %v6962
      %v7003 = vpack.c.bf16 %v6967, %v6963
      %v7004 = vpack.c.bf16 %v6972, %v6968
      %v7005 = vpack.c.bf16 %v6973, %v6969
      %v7006 = vpack.c.bf16 %v6974, %v6970
      %v7007 = vpack.c.bf16 %v6975, %v6971
      %v7008 = vunpack.c.l.bf16 %v6976
      %v7009 = vunpack.c.l.bf16 %v6977
      %v7010 = vunpack.c.l.bf16 %v6978
      %v7011 = vunpack.c.l.bf16 %v6979
      %v7012 = vunpack.c.h.bf16 %v6976
      %v7013 = vunpack.c.h.bf16 %v6977
      %v7014 = vunpack.c.h.bf16 %v6978
      %v7015 = vunpack.c.h.bf16 %v6979
      %v7016 = vunpack.c.l.bf16 %v6980
      %v7017 = vunpack.c.l.bf16 %v6981
      %v7018 = vunpack.c.l.bf16 %v6982
      %v7019 = vunpack.c.l.bf16 %v6983
      %v7020 = vunpack.c.h.bf16 %v6980
      %v7021 = vunpack.c.h.bf16 %v6981
      %v7022 = vunpack.c.h.bf16 %v6982
      %v7023 = vunpack.c.h.bf16 %v6983
      %v7024 = vunpack.c.l.bf16 %v6984
      %v7025 = vunpack.c.l.bf16 %v6985
      %v7026 = vunpack.c.l.bf16 %v6986
      %v7027 = vunpack.c.l.bf16 %v6987
      %v7028 = vunpack.c.h.bf16 %v6984
      %v7029 = vunpack.c.h.bf16 %v6985
      %v7030 = vunpack.c.h.bf16 %v6986
      %v7031 = vunpack.c.h.bf16 %v6987
      %v7032 = vunpack.c.l.bf16 %v6988
      %v7033 = vunpack.c.l.bf16 %v6989
      %v7034 = vunpack.c.l.bf16 %v6990
      %v7035 = vunpack.c.l.bf16 %v6991
      %v7036 = vunpack.c.h.bf16 %v6988
      %v7037 = vunpack.c.h.bf16 %v6989
      %v7038 = vunpack.c.h.bf16 %v6990
      %v7039 = vunpack.c.h.bf16 %v6991
      %v7040 = vunpack.c.l.bf16 %v6992
      %v7041 = vunpack.c.l.bf16 %v6993
      %v7042 = vunpack.c.l.bf16 %v6994
      %v7043 = vunpack.c.l.bf16 %v6995
      %v7044 = vunpack.c.h.bf16 %v6992
      %v7045 = vunpack.c.h.bf16 %v6993
      %v7046 = vunpack.c.h.bf16 %v6994
      %v7047 = vunpack.c.h.bf16 %v6995
      %v7048 = vunpack.c.l.bf16 %v6996
      %v7049 = vunpack.c.l.bf16 %v6997
      %v7050 = vunpack.c.l.bf16 %v6998
      %v7051 = vunpack.c.l.bf16 %v6999
      %v7052 = vunpack.c.h.bf16 %v6996
      %v7053 = vunpack.c.h.bf16 %v6997
      %v7054 = vunpack.c.h.bf16 %v6998
      %v7055 = vunpack.c.h.bf16 %v6999
      %v7056 = vunpack.c.l.bf16 %v7000
      %v7057 = vunpack.c.l.bf16 %v7001
      %v7058 = vunpack.c.l.bf16 %v7002
      %v7059 = vunpack.c.l.bf16 %v7003
      %v7060 = vunpack.c.h.bf16 %v7000
      %v7061 = vunpack.c.h.bf16 %v7001
      %v7062 = vunpack.c.h.bf16 %v7002
      %v7063 = vunpack.c.h.bf16 %v7003
      %v7064 = vunpack.c.l.bf16 %v7004
      %v7065 = vunpack.c.l.bf16 %v7005
      %v7066 = vunpack.c.l.bf16 %v7006
      %v7067 = vunpack.c.l.bf16 %v7007
      %v7068 = vunpack.c.h.bf16 %v7004
      %v7069 = vunpack.c.h.bf16 %v7005
      %v7070 = vunpack.c.h.bf16 %v7006
      %v7071 = vunpack.c.h.bf16 %v7007
      %v7072 = vmax.f32 %v7008, %v7009
      %v7073 = vmax.f32 %v7072, %v7010
      %v7074 = vmax.f32 %v7073, %v7011
      %7075 = vmax.xlane.f32.xlu0 %v7074
      %v7076 = vpop.xlane.xlu0 %7075
      %v7077 = vmax.f32 %v7012, %v7013
      %v7078 = vmax.f32 %v7077, %v7014
      %v7079 = vmax.f32 %v7078, %v7015
      %7080 = vmax.xlane.f32.xlu0 %v7079
      %v7081 = vpop.xlane.xlu0 %7080
      %v7082 = vmax.f32 %v7016, %v7017
      %v7083 = vmax.f32 %v7082, %v7018
      %v7084 = vmax.f32 %v7083, %v7019
      %7085 = vmax.xlane.f32.xlu0 %v7084
      %v7086 = vpop.xlane.xlu0 %7085
      %v7087 = vmax.f32 %v7020, %v7021
      %v7088 = vmax.f32 %v7087, %v7022
      %v7089 = vmax.f32 %v7088, %v7023
      %7090 = vmax.xlane.f32.xlu0 %v7089
      %v7091 = vpop.xlane.xlu0 %7090
      %v7092 = vmax.f32 %v7024, %v7025
      %v7093 = vmax.f32 %v7092, %v7026
      %v7094 = vmax.f32 %v7093, %v7027
      %7095 = vmax.xlane.f32.xlu0 %v7094
      %v7096 = vpop.xlane.xlu0 %7095
      %v7097 = vmax.f32 %v7028, %v7029
      %v7098 = vmax.f32 %v7097, %v7030
      %v7099 = vmax.f32 %v7098, %v7031
      %7100 = vmax.xlane.f32.xlu0 %v7099
      %v7101 = vpop.xlane.xlu0 %7100
      %v7102 = vmax.f32 %v7032, %v7033
      %v7103 = vmax.f32 %v7102, %v7034
      %v7104 = vmax.f32 %v7103, %v7035
      %7105 = vmax.xlane.f32.xlu0 %v7104
      %v7106 = vpop.xlane.xlu0 %7105
      %v7107 = vmax.f32 %v7036, %v7037
      %v7108 = vmax.f32 %v7107, %v7038
      %v7109 = vmax.f32 %v7108, %v7039
      %7110 = vmax.xlane.f32.xlu0 %v7109
      %v7111 = vpop.xlane.xlu0 %7110
      %v7112 = vmax.f32 %v7040, %v7041
      %v7113 = vmax.f32 %v7112, %v7042
      %v7114 = vmax.f32 %v7113, %v7043
      %7115 = vmax.xlane.f32.xlu0 %v7114
      %v7116 = vpop.xlane.xlu0 %7115
      %v7117 = vmax.f32 %v7044, %v7045
      %v7118 = vmax.f32 %v7117, %v7046
      %v7119 = vmax.f32 %v7118, %v7047
      %7120 = vmax.xlane.f32.xlu0 %v7119
      %v7121 = vpop.xlane.xlu0 %7120
      %v7122 = vmax.f32 %v7048, %v7049
      %v7123 = vmax.f32 %v7122, %v7050
      %v7124 = vmax.f32 %v7123, %v7051
      %7125 = vmax.xlane.f32.xlu0 %v7124
      %v7126 = vpop.xlane.xlu0 %7125
      %v7127 = vmax.f32 %v7052, %v7053
      %v7128 = vmax.f32 %v7127, %v7054
      %v7129 = vmax.f32 %v7128, %v7055
      %7130 = vmax.xlane.f32.xlu0 %v7129
      %v7131 = vpop.xlane.xlu0 %7130
      %v7132 = vmax.f32 %v7056, %v7057
      %v7133 = vmax.f32 %v7132, %v7058
      %v7134 = vmax.f32 %v7133, %v7059
      %7135 = vmax.xlane.f32.xlu0 %v7134
      %v7136 = vpop.xlane.xlu0 %7135
      %v7137 = vmax.f32 %v7060, %v7061
      %v7138 = vmax.f32 %v7137, %v7062
      %v7139 = vmax.f32 %v7138, %v7063
      %7140 = vmax.xlane.f32.xlu0 %v7139
      %v7141 = vpop.xlane.xlu0 %7140
      %v7142 = vmax.f32 %v7064, %v7065
      %v7143 = vmax.f32 %v7142, %v7066
      %v7144 = vmax.f32 %v7143, %v7067
      %7145 = vmax.xlane.f32.xlu0 %v7144
      %v7146 = vpop.xlane.xlu0 %7145
      %v7147 = vmax.f32 %v7068, %v7069
      %v7148 = vmax.f32 %v7147, %v7070
      %v7149 = vmax.f32 %v7148, %v7071
      %7150 = vmax.xlane.f32.xlu0 %v7149
      %v7151 = vpop.xlane.xlu0 %7150
      %v7152 = vpack.c.bf16 %v7076, %v7076
      %v7153 = vpack.c.bf16 %v7081, %v7081
      %v7154 = vpack.c.bf16 %v7086, %v7086
      %v7155 = vpack.c.bf16 %v7091, %v7091
      %v7156 = vpack.c.bf16 %v7096, %v7096
      %v7157 = vpack.c.bf16 %v7101, %v7101
      %v7158 = vpack.c.bf16 %v7106, %v7106
      %v7159 = vpack.c.bf16 %v7111, %v7111
      %v7160 = vpack.c.bf16 %v7116, %v7116
      %v7161 = vpack.c.bf16 %v7121, %v7121
      %v7162 = vpack.c.bf16 %v7126, %v7126
      %v7163 = vpack.c.bf16 %v7131, %v7131
      %v7164 = vpack.c.bf16 %v7136, %v7136
      %v7165 = vpack.c.bf16 %v7141, %v7141
      %v7166 = vpack.c.bf16 %v7146, %v7146
      %v7167 = vpack.c.bf16 %v7151, %v7151
      %v7168 = vunpack.c.l.bf16 %v7152
      %v7169 = vunpack.c.l.bf16 %v7153
      %v7170 = vunpack.c.l.bf16 %v7154
      %v7171 = vunpack.c.l.bf16 %v7155
      %v7172 = vunpack.c.l.bf16 %v7156
      %v7173 = vunpack.c.l.bf16 %v7157
      %v7174 = vunpack.c.l.bf16 %v7158
      %v7175 = vunpack.c.l.bf16 %v7159
      %v7176 = vunpack.c.l.bf16 %v7160
      %v7177 = vunpack.c.l.bf16 %v7161
      %v7178 = vunpack.c.l.bf16 %v7162
      %v7179 = vunpack.c.l.bf16 %v7163
      %v7180 = vunpack.c.l.bf16 %v7164
      %v7181 = vunpack.c.l.bf16 %v7165
      %v7182 = vunpack.c.l.bf16 %v7166
      %v7183 = vunpack.c.l.bf16 %v7167
      %v7184 = vmul.f32 %v7168, %v653
      %v7185 = vmul.f32 %v7169, %v654
      %v7186 = vmul.f32 %v7170, %v655
      %v7187 = vmul.f32 %v7171, %v656
      %v7188 = vmul.f32 %v7172, %v657
      %v7189 = vmul.f32 %v7173, %v658
      %v7190 = vmul.f32 %v7174, %v659
      %v7191 = vmul.f32 %v7175, %v660
      %v7192 = vmul.f32 %v7176, %v661
      %v7193 = vmul.f32 %v7177, %v662
      %v7194 = vmul.f32 %v7178, %v663
      %v7195 = vmul.f32 %v7179, %v664
      %v7196 = vmul.f32 %v7180, %v665
      %v7197 = vmul.f32 %v7181, %v666
      %v7198 = vmul.f32 %v7182, %v667
      %v7199 = vmul.f32 %v7183, %v668
      %7201 = vset.pattern.permute.xlu0 0
      %7202 = vperm.xlu0 %7201, %v7184
      %v7203 = vpop.permute.xlu0 %7202
      %7206 = vset.pattern.permute.xlu0 0
      %7207 = vperm.xlu0 %7206, %v7185
      %v7208 = vpop.permute.xlu0 %7207
      %7211 = vset.pattern.permute.xlu0 0
      %7212 = vperm.xlu0 %7211, %v7186
      %v7213 = vpop.permute.xlu0 %7212
      %7216 = vset.pattern.permute.xlu0 0
      %7217 = vperm.xlu0 %7216, %v7187
      %v7218 = vpop.permute.xlu0 %7217
      %7221 = vset.pattern.permute.xlu0 0
      %7222 = vperm.xlu0 %7221, %v7188
      %v7223 = vpop.permute.xlu0 %7222
      %7226 = vset.pattern.permute.xlu0 0
      %7227 = vperm.xlu0 %7226, %v7189
      %v7228 = vpop.permute.xlu0 %7227
      %7231 = vset.pattern.permute.xlu0 0
      %7232 = vperm.xlu0 %7231, %v7190
      %v7233 = vpop.permute.xlu0 %7232
      %7236 = vset.pattern.permute.xlu0 0
      %7237 = vperm.xlu0 %7236, %v7191
      %v7238 = vpop.permute.xlu0 %7237
      %7241 = vset.pattern.permute.xlu0 0
      %7242 = vperm.xlu0 %7241, %v7192
      %v7243 = vpop.permute.xlu0 %7242
      %7246 = vset.pattern.permute.xlu0 0
      %7247 = vperm.xlu0 %7246, %v7193
      %v7248 = vpop.permute.xlu0 %7247
      %7251 = vset.pattern.permute.xlu0 0
      %7252 = vperm.xlu0 %7251, %v7194
      %v7253 = vpop.permute.xlu0 %7252
      %7256 = vset.pattern.permute.xlu0 0
      %7257 = vperm.xlu0 %7256, %v7195
      %v7258 = vpop.permute.xlu0 %7257
      %7261 = vset.pattern.permute.xlu0 0
      %7262 = vperm.xlu0 %7261, %v7196
      %v7263 = vpop.permute.xlu0 %7262
      %7266 = vset.pattern.permute.xlu0 0
      %7267 = vperm.xlu0 %7266, %v7197
      %v7268 = vpop.permute.xlu0 %7267
      %7271 = vset.pattern.permute.xlu0 0
      %7272 = vperm.xlu0 %7271, %v7198
      %v7273 = vpop.permute.xlu0 %7272
      %7276 = vset.pattern.permute.xlu0 0
      %7277 = vperm.xlu0 %7276, %v7199
      %v7278 = vpop.permute.xlu0 %7277
      %v7280 = vperm.slane %v4759, 5
      %v7281 = vmul.f32 %v7203, %v7280
      %v7282 = vmul.f32 %v7208, %v7280
      %v7283 = vmul.f32 %v7213, %v7280
      %v7284 = vmul.f32 %v7218, %v7280
      %v7285 = vmul.f32 %v7223, %v7280
      %v7286 = vmul.f32 %v7228, %v7280
      %v7287 = vmul.f32 %v7233, %v7280
      %v7288 = vmul.f32 %v7238, %v7280
      %v7289 = vmul.f32 %v7243, %v7280
      %v7290 = vmul.f32 %v7248, %v7280
      %v7291 = vmul.f32 %v7253, %v7280
      %v7292 = vmul.f32 %v7258, %v7280
      %v7293 = vmul.f32 %v7263, %v7280
      %v7294 = vmul.f32 %v7268, %v7280
      %v7295 = vmul.f32 %v7273, %v7280
      %v7296 = vmul.f32 %v7278, %v7280
      %v7297 = vadd.f32 %v6888, %v7281
      %v7298 = vadd.f32 %v6889, %v7282
      %v7299 = vadd.f32 %v6890, %v7283
      %v7300 = vadd.f32 %v6891, %v7284
      %v7301 = vadd.f32 %v6892, %v7285
      %v7302 = vadd.f32 %v6893, %v7286
      %v7303 = vadd.f32 %v6894, %v7287
      %v7304 = vadd.f32 %v6895, %v7288
      %v7305 = vadd.f32 %v6896, %v7289
      %v7306 = vadd.f32 %v6897, %v7290
      %v7307 = vadd.f32 %v6898, %v7291
      %v7308 = vadd.f32 %v6899, %v7292
      %v7309 = vadd.f32 %v6900, %v7293
      %v7310 = vadd.f32 %v6901, %v7294
      %v7311 = vadd.f32 %v6902, %v7295
      %v7312 = vadd.f32 %v6903, %v7296
      %v7313 = vperm.slane %v4772, 3
      %v7314 = vperm.slane %v4776, 3
      %v7315 = vperm.slane %v4780, 3
      %v7316 = vperm.slane %v4784, 3
      %v7317 = vunpack.c.l.bf16 %v7313
      %v7318 = vunpack.c.l.bf16 %v7314
      %v7319 = vunpack.c.l.bf16 %v7315
      %v7320 = vunpack.c.l.bf16 %v7316
      %v7321 = vadd.f32 %v7317, %v4791
      %v7322 = vadd.f32 %v7318, %v4792
      %v7323 = vadd.f32 %v7319, %v4793
      %v7324 = vadd.f32 %v7320, %v4794
      %v7325 = vadd.f32 %v7317, %v4795
      %v7326 = vadd.f32 %v7318, %v4796
      %v7327 = vadd.f32 %v7319, %v4797
      %v7328 = vadd.f32 %v7320, %v4798
      %v7329 = vadd.f32 %v7317, %v4799
      %v7330 = vadd.f32 %v7318, %v4800
      %v7331 = vadd.f32 %v7319, %v4801
      %v7332 = vadd.f32 %v7320, %v4802
      %v7333 = vadd.f32 %v7317, %v4803
      %v7334 = vadd.f32 %v7318, %v4804
      %v7335 = vadd.f32 %v7319, %v4805
      %v7336 = vadd.f32 %v7320, %v4806
      %v7337 = vadd.f32 %v7317, %v4807
      %v7338 = vadd.f32 %v7318, %v4808
      %v7339 = vadd.f32 %v7319, %v4809
      %v7340 = vadd.f32 %v7320, %v4810
      %v7341 = vadd.f32 %v7317, %v4811
      %v7342 = vadd.f32 %v7318, %v4812
      %v7343 = vadd.f32 %v7319, %v4813
      %v7344 = vadd.f32 %v7320, %v4814
      %v7345 = vadd.f32 %v7317, %v4815
      %v7346 = vadd.f32 %v7318, %v4816
      %v7347 = vadd.f32 %v7319, %v4817
      %v7348 = vadd.f32 %v7320, %v4818
      %v7349 = vadd.f32 %v7317, %v4819
      %v7350 = vadd.f32 %v7318, %v4820
      %v7351 = vadd.f32 %v7319, %v4821
      %v7352 = vadd.f32 %v7320, %v4822
      %v7353 = vadd.f32 %v7317, %v4823
      %v7354 = vadd.f32 %v7318, %v4824
      %v7355 = vadd.f32 %v7319, %v4825
      %v7356 = vadd.f32 %v7320, %v4826
      %v7357 = vadd.f32 %v7317, %v4827
      %v7358 = vadd.f32 %v7318, %v4828
      %v7359 = vadd.f32 %v7319, %v4829
      %v7360 = vadd.f32 %v7320, %v4830
      %v7361 = vadd.f32 %v7317, %v4831
      %v7362 = vadd.f32 %v7318, %v4832
      %v7363 = vadd.f32 %v7319, %v4833
      %v7364 = vadd.f32 %v7320, %v4834
      %v7365 = vadd.f32 %v7317, %v4835
      %v7366 = vadd.f32 %v7318, %v4836
      %v7367 = vadd.f32 %v7319, %v4837
      %v7368 = vadd.f32 %v7320, %v4838
      %v7369 = vadd.f32 %v7317, %v4839
      %v7370 = vadd.f32 %v7318, %v4840
      %v7371 = vadd.f32 %v7319, %v4841
      %v7372 = vadd.f32 %v7320, %v4842
      %v7373 = vadd.f32 %v7317, %v4843
      %v7374 = vadd.f32 %v7318, %v4844
      %v7375 = vadd.f32 %v7319, %v4845
      %v7376 = vadd.f32 %v7320, %v4846
      %v7377 = vadd.f32 %v7317, %v4847
      %v7378 = vadd.f32 %v7318, %v4848
      %v7379 = vadd.f32 %v7319, %v4849
      %v7380 = vadd.f32 %v7320, %v4850
      %v7381 = vadd.f32 %v7317, %v4851
      %v7382 = vadd.f32 %v7318, %v4852
      %v7383 = vadd.f32 %v7319, %v4853
      %v7384 = vadd.f32 %v7320, %v4854
      %v7385 = vpack.c.bf16 %v7325, %v7321
      %v7386 = vpack.c.bf16 %v7326, %v7322
      %v7387 = vpack.c.bf16 %v7327, %v7323
      %v7388 = vpack.c.bf16 %v7328, %v7324
      %v7389 = vpack.c.bf16 %v7333, %v7329
      %v7390 = vpack.c.bf16 %v7334, %v7330
      %v7391 = vpack.c.bf16 %v7335, %v7331
      %v7392 = vpack.c.bf16 %v7336, %v7332
      %v7393 = vpack.c.bf16 %v7341, %v7337
      %v7394 = vpack.c.bf16 %v7342, %v7338
      %v7395 = vpack.c.bf16 %v7343, %v7339
      %v7396 = vpack.c.bf16 %v7344, %v7340
      %v7397 = vpack.c.bf16 %v7349, %v7345
      %v7398 = vpack.c.bf16 %v7350, %v7346
      %v7399 = vpack.c.bf16 %v7351, %v7347
      %v7400 = vpack.c.bf16 %v7352, %v7348
      %v7401 = vpack.c.bf16 %v7357, %v7353
      %v7402 = vpack.c.bf16 %v7358, %v7354
      %v7403 = vpack.c.bf16 %v7359, %v7355
      %v7404 = vpack.c.bf16 %v7360, %v7356
      %v7405 = vpack.c.bf16 %v7365, %v7361
      %v7406 = vpack.c.bf16 %v7366, %v7362
      %v7407 = vpack.c.bf16 %v7367, %v7363
      %v7408 = vpack.c.bf16 %v7368, %v7364
      %v7409 = vpack.c.bf16 %v7373, %v7369
      %v7410 = vpack.c.bf16 %v7374, %v7370
      %v7411 = vpack.c.bf16 %v7375, %v7371
      %v7412 = vpack.c.bf16 %v7376, %v7372
      %v7413 = vpack.c.bf16 %v7381, %v7377
      %v7414 = vpack.c.bf16 %v7382, %v7378
      %v7415 = vpack.c.bf16 %v7383, %v7379
      %v7416 = vpack.c.bf16 %v7384, %v7380
      %v7417 = vunpack.c.l.bf16 %v7385
      %v7418 = vunpack.c.l.bf16 %v7386
      %v7419 = vunpack.c.l.bf16 %v7387
      %v7420 = vunpack.c.l.bf16 %v7388
      %v7421 = vunpack.c.h.bf16 %v7385
      %v7422 = vunpack.c.h.bf16 %v7386
      %v7423 = vunpack.c.h.bf16 %v7387
      %v7424 = vunpack.c.h.bf16 %v7388
      %v7425 = vunpack.c.l.bf16 %v7389
      %v7426 = vunpack.c.l.bf16 %v7390
      %v7427 = vunpack.c.l.bf16 %v7391
      %v7428 = vunpack.c.l.bf16 %v7392
      %v7429 = vunpack.c.h.bf16 %v7389
      %v7430 = vunpack.c.h.bf16 %v7390
      %v7431 = vunpack.c.h.bf16 %v7391
      %v7432 = vunpack.c.h.bf16 %v7392
      %v7433 = vunpack.c.l.bf16 %v7393
      %v7434 = vunpack.c.l.bf16 %v7394
      %v7435 = vunpack.c.l.bf16 %v7395
      %v7436 = vunpack.c.l.bf16 %v7396
      %v7437 = vunpack.c.h.bf16 %v7393
      %v7438 = vunpack.c.h.bf16 %v7394
      %v7439 = vunpack.c.h.bf16 %v7395
      %v7440 = vunpack.c.h.bf16 %v7396
      %v7441 = vunpack.c.l.bf16 %v7397
      %v7442 = vunpack.c.l.bf16 %v7398
      %v7443 = vunpack.c.l.bf16 %v7399
      %v7444 = vunpack.c.l.bf16 %v7400
      %v7445 = vunpack.c.h.bf16 %v7397
      %v7446 = vunpack.c.h.bf16 %v7398
      %v7447 = vunpack.c.h.bf16 %v7399
      %v7448 = vunpack.c.h.bf16 %v7400
      %v7449 = vunpack.c.l.bf16 %v7401
      %v7450 = vunpack.c.l.bf16 %v7402
      %v7451 = vunpack.c.l.bf16 %v7403
      %v7452 = vunpack.c.l.bf16 %v7404
      %v7453 = vunpack.c.h.bf16 %v7401
      %v7454 = vunpack.c.h.bf16 %v7402
      %v7455 = vunpack.c.h.bf16 %v7403
      %v7456 = vunpack.c.h.bf16 %v7404
      %v7457 = vunpack.c.l.bf16 %v7405
      %v7458 = vunpack.c.l.bf16 %v7406
      %v7459 = vunpack.c.l.bf16 %v7407
      %v7460 = vunpack.c.l.bf16 %v7408
      %v7461 = vunpack.c.h.bf16 %v7405
      %v7462 = vunpack.c.h.bf16 %v7406
      %v7463 = vunpack.c.h.bf16 %v7407
      %v7464 = vunpack.c.h.bf16 %v7408
      %v7465 = vunpack.c.l.bf16 %v7409
      %v7466 = vunpack.c.l.bf16 %v7410
      %v7467 = vunpack.c.l.bf16 %v7411
      %v7468 = vunpack.c.l.bf16 %v7412
      %v7469 = vunpack.c.h.bf16 %v7409
      %v7470 = vunpack.c.h.bf16 %v7410
      %v7471 = vunpack.c.h.bf16 %v7411
      %v7472 = vunpack.c.h.bf16 %v7412
      %v7473 = vunpack.c.l.bf16 %v7413
      %v7474 = vunpack.c.l.bf16 %v7414
      %v7475 = vunpack.c.l.bf16 %v7415
      %v7476 = vunpack.c.l.bf16 %v7416
      %v7477 = vunpack.c.h.bf16 %v7413
      %v7478 = vunpack.c.h.bf16 %v7414
      %v7479 = vunpack.c.h.bf16 %v7415
      %v7480 = vunpack.c.h.bf16 %v7416
      %v7481 = vmax.f32 %v7417, %v7418
      %v7482 = vmax.f32 %v7481, %v7419
      %v7483 = vmax.f32 %v7482, %v7420
      %7484 = vmax.xlane.f32.xlu0 %v7483
      %v7485 = vpop.xlane.xlu0 %7484
      %v7486 = vmax.f32 %v7421, %v7422
      %v7487 = vmax.f32 %v7486, %v7423
      %v7488 = vmax.f32 %v7487, %v7424
      %7489 = vmax.xlane.f32.xlu0 %v7488
      %v7490 = vpop.xlane.xlu0 %7489
      %v7491 = vmax.f32 %v7425, %v7426
      %v7492 = vmax.f32 %v7491, %v7427
      %v7493 = vmax.f32 %v7492, %v7428
      %7494 = vmax.xlane.f32.xlu0 %v7493
      %v7495 = vpop.xlane.xlu0 %7494
      %v7496 = vmax.f32 %v7429, %v7430
      %v7497 = vmax.f32 %v7496, %v7431
      %v7498 = vmax.f32 %v7497, %v7432
      %7499 = vmax.xlane.f32.xlu0 %v7498
      %v7500 = vpop.xlane.xlu0 %7499
      %v7501 = vmax.f32 %v7433, %v7434
      %v7502 = vmax.f32 %v7501, %v7435
      %v7503 = vmax.f32 %v7502, %v7436
      %7504 = vmax.xlane.f32.xlu0 %v7503
      %v7505 = vpop.xlane.xlu0 %7504
      %v7506 = vmax.f32 %v7437, %v7438
      %v7507 = vmax.f32 %v7506, %v7439
      %v7508 = vmax.f32 %v7507, %v7440
      %7509 = vmax.xlane.f32.xlu0 %v7508
      %v7510 = vpop.xlane.xlu0 %7509
      %v7511 = vmax.f32 %v7441, %v7442
      %v7512 = vmax.f32 %v7511, %v7443
      %v7513 = vmax.f32 %v7512, %v7444
      %7514 = vmax.xlane.f32.xlu0 %v7513
      %v7515 = vpop.xlane.xlu0 %7514
      %v7516 = vmax.f32 %v7445, %v7446
      %v7517 = vmax.f32 %v7516, %v7447
      %v7518 = vmax.f32 %v7517, %v7448
      %7519 = vmax.xlane.f32.xlu0 %v7518
      %v7520 = vpop.xlane.xlu0 %7519
      %v7521 = vmax.f32 %v7449, %v7450
      %v7522 = vmax.f32 %v7521, %v7451
      %v7523 = vmax.f32 %v7522, %v7452
      %7524 = vmax.xlane.f32.xlu0 %v7523
      %v7525 = vpop.xlane.xlu0 %7524
      %v7526 = vmax.f32 %v7453, %v7454
      %v7527 = vmax.f32 %v7526, %v7455
      %v7528 = vmax.f32 %v7527, %v7456
      %7529 = vmax.xlane.f32.xlu0 %v7528
      %v7530 = vpop.xlane.xlu0 %7529
      %v7531 = vmax.f32 %v7457, %v7458
      %v7532 = vmax.f32 %v7531, %v7459
      %v7533 = vmax.f32 %v7532, %v7460
      %7534 = vmax.xlane.f32.xlu0 %v7533
      %v7535 = vpop.xlane.xlu0 %7534
      %v7536 = vmax.f32 %v7461, %v7462
      %v7537 = vmax.f32 %v7536, %v7463
      %v7538 = vmax.f32 %v7537, %v7464
      %7539 = vmax.xlane.f32.xlu0 %v7538
      %v7540 = vpop.xlane.xlu0 %7539
      %v7541 = vmax.f32 %v7465, %v7466
      %v7542 = vmax.f32 %v7541, %v7467
      %v7543 = vmax.f32 %v7542, %v7468
      %7544 = vmax.xlane.f32.xlu0 %v7543
      %v7545 = vpop.xlane.xlu0 %7544
      %v7546 = vmax.f32 %v7469, %v7470
      %v7547 = vmax.f32 %v7546, %v7471
      %v7548 = vmax.f32 %v7547, %v7472
      %7549 = vmax.xlane.f32.xlu0 %v7548
      %v7550 = vpop.xlane.xlu0 %7549
      %v7551 = vmax.f32 %v7473, %v7474
      %v7552 = vmax.f32 %v7551, %v7475
      %v7553 = vmax.f32 %v7552, %v7476
      %7554 = vmax.xlane.f32.xlu0 %v7553
      %v7555 = vpop.xlane.xlu0 %7554
      %v7556 = vmax.f32 %v7477, %v7478
      %v7557 = vmax.f32 %v7556, %v7479
      %v7558 = vmax.f32 %v7557, %v7480
      %7559 = vmax.xlane.f32.xlu0 %v7558
      %v7560 = vpop.xlane.xlu0 %7559
      %v7561 = vpack.c.bf16 %v7485, %v7485
      %v7562 = vpack.c.bf16 %v7490, %v7490
      %v7563 = vpack.c.bf16 %v7495, %v7495
      %v7564 = vpack.c.bf16 %v7500, %v7500
      %v7565 = vpack.c.bf16 %v7505, %v7505
      %v7566 = vpack.c.bf16 %v7510, %v7510
      %v7567 = vpack.c.bf16 %v7515, %v7515
      %v7568 = vpack.c.bf16 %v7520, %v7520
      %v7569 = vpack.c.bf16 %v7525, %v7525
      %v7570 = vpack.c.bf16 %v7530, %v7530
      %v7571 = vpack.c.bf16 %v7535, %v7535
      %v7572 = vpack.c.bf16 %v7540, %v7540
      %v7573 = vpack.c.bf16 %v7545, %v7545
      %v7574 = vpack.c.bf16 %v7550, %v7550
      %v7575 = vpack.c.bf16 %v7555, %v7555
      %v7576 = vpack.c.bf16 %v7560, %v7560
      %v7577 = vunpack.c.l.bf16 %v7561
      %v7578 = vunpack.c.l.bf16 %v7562
      %v7579 = vunpack.c.l.bf16 %v7563
      %v7580 = vunpack.c.l.bf16 %v7564
      %v7581 = vunpack.c.l.bf16 %v7565
      %v7582 = vunpack.c.l.bf16 %v7566
      %v7583 = vunpack.c.l.bf16 %v7567
      %v7584 = vunpack.c.l.bf16 %v7568
      %v7585 = vunpack.c.l.bf16 %v7569
      %v7586 = vunpack.c.l.bf16 %v7570
      %v7587 = vunpack.c.l.bf16 %v7571
      %v7588 = vunpack.c.l.bf16 %v7572
      %v7589 = vunpack.c.l.bf16 %v7573
      %v7590 = vunpack.c.l.bf16 %v7574
      %v7591 = vunpack.c.l.bf16 %v7575
      %v7592 = vunpack.c.l.bf16 %v7576
      %v7593 = vmul.f32 %v7577, %v653
      %v7594 = vmul.f32 %v7578, %v654
      %v7595 = vmul.f32 %v7579, %v655
      %v7596 = vmul.f32 %v7580, %v656
      %v7597 = vmul.f32 %v7581, %v657
      %v7598 = vmul.f32 %v7582, %v658
      %v7599 = vmul.f32 %v7583, %v659
      %v7600 = vmul.f32 %v7584, %v660
      %v7601 = vmul.f32 %v7585, %v661
      %v7602 = vmul.f32 %v7586, %v662
      %v7603 = vmul.f32 %v7587, %v663
      %v7604 = vmul.f32 %v7588, %v664
      %v7605 = vmul.f32 %v7589, %v665
      %v7606 = vmul.f32 %v7590, %v666
      %v7607 = vmul.f32 %v7591, %v667
      %v7608 = vmul.f32 %v7592, %v668
      %7610 = vset.pattern.permute.xlu0 0
      %7611 = vperm.xlu0 %7610, %v7593
      %v7612 = vpop.permute.xlu0 %7611
      %7615 = vset.pattern.permute.xlu0 0
      %7616 = vperm.xlu0 %7615, %v7594
      %v7617 = vpop.permute.xlu0 %7616
      %7620 = vset.pattern.permute.xlu0 0
      %7621 = vperm.xlu0 %7620, %v7595
      %v7622 = vpop.permute.xlu0 %7621
      %7625 = vset.pattern.permute.xlu0 0
      %7626 = vperm.xlu0 %7625, %v7596
      %v7627 = vpop.permute.xlu0 %7626
      %7630 = vset.pattern.permute.xlu0 0
      %7631 = vperm.xlu0 %7630, %v7597
      %v7632 = vpop.permute.xlu0 %7631
      %7635 = vset.pattern.permute.xlu0 0
      %7636 = vperm.xlu0 %7635, %v7598
      %v7637 = vpop.permute.xlu0 %7636
      %7640 = vset.pattern.permute.xlu0 0
      %7641 = vperm.xlu0 %7640, %v7599
      %v7642 = vpop.permute.xlu0 %7641
      %7645 = vset.pattern.permute.xlu0 0
      %7646 = vperm.xlu0 %7645, %v7600
      %v7647 = vpop.permute.xlu0 %7646
      %7650 = vset.pattern.permute.xlu0 0
      %7651 = vperm.xlu0 %7650, %v7601
      %v7652 = vpop.permute.xlu0 %7651
      %7655 = vset.pattern.permute.xlu0 0
      %7656 = vperm.xlu0 %7655, %v7602
      %v7657 = vpop.permute.xlu0 %7656
      %7660 = vset.pattern.permute.xlu0 0
      %7661 = vperm.xlu0 %7660, %v7603
      %v7662 = vpop.permute.xlu0 %7661
      %7665 = vset.pattern.permute.xlu0 0
      %7666 = vperm.xlu0 %7665, %v7604
      %v7667 = vpop.permute.xlu0 %7666
      %7670 = vset.pattern.permute.xlu0 0
      %7671 = vperm.xlu0 %7670, %v7605
      %v7672 = vpop.permute.xlu0 %7671
      %7675 = vset.pattern.permute.xlu0 0
      %7676 = vperm.xlu0 %7675, %v7606
      %v7677 = vpop.permute.xlu0 %7676
      %7680 = vset.pattern.permute.xlu0 0
      %7681 = vperm.xlu0 %7680, %v7607
      %v7682 = vpop.permute.xlu0 %7681
      %7685 = vset.pattern.permute.xlu0 0
      %7686 = vperm.xlu0 %7685, %v7608
      %v7687 = vpop.permute.xlu0 %7686
      %v7689 = vperm.slane %v4759, 6
      %v7690 = vmul.f32 %v7612, %v7689
      %v7691 = vmul.f32 %v7617, %v7689
      %v7692 = vmul.f32 %v7622, %v7689
      %v7693 = vmul.f32 %v7627, %v7689
      %v7694 = vmul.f32 %v7632, %v7689
      %v7695 = vmul.f32 %v7637, %v7689
      %v7696 = vmul.f32 %v7642, %v7689
      %v7697 = vmul.f32 %v7647, %v7689
      %v7698 = vmul.f32 %v7652, %v7689
      %v7699 = vmul.f32 %v7657, %v7689
      %v7700 = vmul.f32 %v7662, %v7689
      %v7701 = vmul.f32 %v7667, %v7689
      %v7702 = vmul.f32 %v7672, %v7689
      %v7703 = vmul.f32 %v7677, %v7689
      %v7704 = vmul.f32 %v7682, %v7689
      %v7705 = vmul.f32 %v7687, %v7689
      %v7706 = vadd.f32 %v7297, %v7690
      %v7707 = vadd.f32 %v7298, %v7691
      %v7708 = vadd.f32 %v7299, %v7692
      %v7709 = vadd.f32 %v7300, %v7693
      %v7710 = vadd.f32 %v7301, %v7694
      %v7711 = vadd.f32 %v7302, %v7695
      %v7712 = vadd.f32 %v7303, %v7696
      %v7713 = vadd.f32 %v7304, %v7697
      %v7714 = vadd.f32 %v7305, %v7698
      %v7715 = vadd.f32 %v7306, %v7699
      %v7716 = vadd.f32 %v7307, %v7700
      %v7717 = vadd.f32 %v7308, %v7701
      %v7718 = vadd.f32 %v7309, %v7702
      %v7719 = vadd.f32 %v7310, %v7703
      %v7720 = vadd.f32 %v7311, %v7704
      %v7721 = vadd.f32 %v7312, %v7705
      %v7722 = vperm.slane %v5257, 3
      %v7723 = vperm.slane %v5261, 3
      %v7724 = vperm.slane %v5265, 3
      %v7725 = vperm.slane %v5269, 3
      %v7726 = vunpack.c.l.bf16 %v7722
      %v7727 = vunpack.c.l.bf16 %v7723
      %v7728 = vunpack.c.l.bf16 %v7724
      %v7729 = vunpack.c.l.bf16 %v7725
      %v7730 = vadd.f32 %v7726, %v4791
      %v7731 = vadd.f32 %v7727, %v4792
      %v7732 = vadd.f32 %v7728, %v4793
      %v7733 = vadd.f32 %v7729, %v4794
      %v7734 = vadd.f32 %v7726, %v4795
      %v7735 = vadd.f32 %v7727, %v4796
      %v7736 = vadd.f32 %v7728, %v4797
      %v7737 = vadd.f32 %v7729, %v4798
      %v7738 = vadd.f32 %v7726, %v4799
      %v7739 = vadd.f32 %v7727, %v4800
      %v7740 = vadd.f32 %v7728, %v4801
      %v7741 = vadd.f32 %v7729, %v4802
      %v7742 = vadd.f32 %v7726, %v4803
      %v7743 = vadd.f32 %v7727, %v4804
      %v7744 = vadd.f32 %v7728, %v4805
      %v7745 = vadd.f32 %v7729, %v4806
      %v7746 = vadd.f32 %v7726, %v4807
      %v7747 = vadd.f32 %v7727, %v4808
      %v7748 = vadd.f32 %v7728, %v4809
      %v7749 = vadd.f32 %v7729, %v4810
      %v7750 = vadd.f32 %v7726, %v4811
      %v7751 = vadd.f32 %v7727, %v4812
      %v7752 = vadd.f32 %v7728, %v4813
      %v7753 = vadd.f32 %v7729, %v4814
      %v7754 = vadd.f32 %v7726, %v4815
      %v7755 = vadd.f32 %v7727, %v4816
      %v7756 = vadd.f32 %v7728, %v4817
      %v7757 = vadd.f32 %v7729, %v4818
      %v7758 = vadd.f32 %v7726, %v4819
      %v7759 = vadd.f32 %v7727, %v4820
      %v7760 = vadd.f32 %v7728, %v4821
      %v7761 = vadd.f32 %v7729, %v4822
      %v7762 = vadd.f32 %v7726, %v4823
      %v7763 = vadd.f32 %v7727, %v4824
      %v7764 = vadd.f32 %v7728, %v4825
      %v7765 = vadd.f32 %v7729, %v4826
      %v7766 = vadd.f32 %v7726, %v4827
      %v7767 = vadd.f32 %v7727, %v4828
      %v7768 = vadd.f32 %v7728, %v4829
      %v7769 = vadd.f32 %v7729, %v4830
      %v7770 = vadd.f32 %v7726, %v4831
      %v7771 = vadd.f32 %v7727, %v4832
      %v7772 = vadd.f32 %v7728, %v4833
      %v7773 = vadd.f32 %v7729, %v4834
      %v7774 = vadd.f32 %v7726, %v4835
      %v7775 = vadd.f32 %v7727, %v4836
      %v7776 = vadd.f32 %v7728, %v4837
      %v7777 = vadd.f32 %v7729, %v4838
      %v7778 = vadd.f32 %v7726, %v4839
      %v7779 = vadd.f32 %v7727, %v4840
      %v7780 = vadd.f32 %v7728, %v4841
      %v7781 = vadd.f32 %v7729, %v4842
      %v7782 = vadd.f32 %v7726, %v4843
      %v7783 = vadd.f32 %v7727, %v4844
      %v7784 = vadd.f32 %v7728, %v4845
      %v7785 = vadd.f32 %v7729, %v4846
      %v7786 = vadd.f32 %v7726, %v4847
      %v7787 = vadd.f32 %v7727, %v4848
      %v7788 = vadd.f32 %v7728, %v4849
      %v7789 = vadd.f32 %v7729, %v4850
      %v7790 = vadd.f32 %v7726, %v4851
      %v7791 = vadd.f32 %v7727, %v4852
      %v7792 = vadd.f32 %v7728, %v4853
      %v7793 = vadd.f32 %v7729, %v4854
      %v7794 = vpack.c.bf16 %v7734, %v7730
      %v7795 = vpack.c.bf16 %v7735, %v7731
      %v7796 = vpack.c.bf16 %v7736, %v7732
      %v7797 = vpack.c.bf16 %v7737, %v7733
      %v7798 = vpack.c.bf16 %v7742, %v7738
      %v7799 = vpack.c.bf16 %v7743, %v7739
      %v7800 = vpack.c.bf16 %v7744, %v7740
      %v7801 = vpack.c.bf16 %v7745, %v7741
      %v7802 = vpack.c.bf16 %v7750, %v7746
      %v7803 = vpack.c.bf16 %v7751, %v7747
      %v7804 = vpack.c.bf16 %v7752, %v7748
      %v7805 = vpack.c.bf16 %v7753, %v7749
      %v7806 = vpack.c.bf16 %v7758, %v7754
      %v7807 = vpack.c.bf16 %v7759, %v7755
      %v7808 = vpack.c.bf16 %v7760, %v7756
      %v7809 = vpack.c.bf16 %v7761, %v7757
      %v7810 = vpack.c.bf16 %v7766, %v7762
      %v7811 = vpack.c.bf16 %v7767, %v7763
      %v7812 = vpack.c.bf16 %v7768, %v7764
      %v7813 = vpack.c.bf16 %v7769, %v7765
      %v7814 = vpack.c.bf16 %v7774, %v7770
      %v7815 = vpack.c.bf16 %v7775, %v7771
      %v7816 = vpack.c.bf16 %v7776, %v7772
      %v7817 = vpack.c.bf16 %v7777, %v7773
      %v7818 = vpack.c.bf16 %v7782, %v7778
      %v7819 = vpack.c.bf16 %v7783, %v7779
      %v7820 = vpack.c.bf16 %v7784, %v7780
      %v7821 = vpack.c.bf16 %v7785, %v7781
      %v7822 = vpack.c.bf16 %v7790, %v7786
      %v7823 = vpack.c.bf16 %v7791, %v7787
      %v7824 = vpack.c.bf16 %v7792, %v7788
      %v7825 = vpack.c.bf16 %v7793, %v7789
      %v7826 = vunpack.c.l.bf16 %v7794
      %v7827 = vunpack.c.l.bf16 %v7795
      %v7828 = vunpack.c.l.bf16 %v7796
      %v7829 = vunpack.c.l.bf16 %v7797
      %v7830 = vunpack.c.h.bf16 %v7794
      %v7831 = vunpack.c.h.bf16 %v7795
      %v7832 = vunpack.c.h.bf16 %v7796
      %v7833 = vunpack.c.h.bf16 %v7797
      %v7834 = vunpack.c.l.bf16 %v7798
      %v7835 = vunpack.c.l.bf16 %v7799
      %v7836 = vunpack.c.l.bf16 %v7800
      %v7837 = vunpack.c.l.bf16 %v7801
      %v7838 = vunpack.c.h.bf16 %v7798
      %v7839 = vunpack.c.h.bf16 %v7799
      %v7840 = vunpack.c.h.bf16 %v7800
      %v7841 = vunpack.c.h.bf16 %v7801
      %v7842 = vunpack.c.l.bf16 %v7802
      %v7843 = vunpack.c.l.bf16 %v7803
      %v7844 = vunpack.c.l.bf16 %v7804
      %v7845 = vunpack.c.l.bf16 %v7805
      %v7846 = vunpack.c.h.bf16 %v7802
      %v7847 = vunpack.c.h.bf16 %v7803
      %v7848 = vunpack.c.h.bf16 %v7804
      %v7849 = vunpack.c.h.bf16 %v7805
      %v7850 = vunpack.c.l.bf16 %v7806
      %v7851 = vunpack.c.l.bf16 %v7807
      %v7852 = vunpack.c.l.bf16 %v7808
      %v7853 = vunpack.c.l.bf16 %v7809
      %v7854 = vunpack.c.h.bf16 %v7806
      %v7855 = vunpack.c.h.bf16 %v7807
      %v7856 = vunpack.c.h.bf16 %v7808
      %v7857 = vunpack.c.h.bf16 %v7809
      %v7858 = vunpack.c.l.bf16 %v7810
      %v7859 = vunpack.c.l.bf16 %v7811
      %v7860 = vunpack.c.l.bf16 %v7812
      %v7861 = vunpack.c.l.bf16 %v7813
      %v7862 = vunpack.c.h.bf16 %v7810
      %v7863 = vunpack.c.h.bf16 %v7811
      %v7864 = vunpack.c.h.bf16 %v7812
      %v7865 = vunpack.c.h.bf16 %v7813
      %v7866 = vunpack.c.l.bf16 %v7814
      %v7867 = vunpack.c.l.bf16 %v7815
      %v7868 = vunpack.c.l.bf16 %v7816
      %v7869 = vunpack.c.l.bf16 %v7817
      %v7870 = vunpack.c.h.bf16 %v7814
      %v7871 = vunpack.c.h.bf16 %v7815
      %v7872 = vunpack.c.h.bf16 %v7816
      %v7873 = vunpack.c.h.bf16 %v7817
      %v7874 = vunpack.c.l.bf16 %v7818
      %v7875 = vunpack.c.l.bf16 %v7819
      %v7876 = vunpack.c.l.bf16 %v7820
      %v7877 = vunpack.c.l.bf16 %v7821
      %v7878 = vunpack.c.h.bf16 %v7818
      %v7879 = vunpack.c.h.bf16 %v7819
      %v7880 = vunpack.c.h.bf16 %v7820
      %v7881 = vunpack.c.h.bf16 %v7821
      %v7882 = vunpack.c.l.bf16 %v7822
      %v7883 = vunpack.c.l.bf16 %v7823
      %v7884 = vunpack.c.l.bf16 %v7824
      %v7885 = vunpack.c.l.bf16 %v7825
      %v7886 = vunpack.c.h.bf16 %v7822
      %v7887 = vunpack.c.h.bf16 %v7823
      %v7888 = vunpack.c.h.bf16 %v7824
      %v7889 = vunpack.c.h.bf16 %v7825
      %v7890 = vmax.f32 %v7826, %v7827
      %v7891 = vmax.f32 %v7890, %v7828
      %v7892 = vmax.f32 %v7891, %v7829
      %7893 = vmax.xlane.f32.xlu0 %v7892
      %v7894 = vpop.xlane.xlu0 %7893
      %v7895 = vmax.f32 %v7830, %v7831
      %v7896 = vmax.f32 %v7895, %v7832
      %v7897 = vmax.f32 %v7896, %v7833
      %7898 = vmax.xlane.f32.xlu0 %v7897
      %v7899 = vpop.xlane.xlu0 %7898
      %v7900 = vmax.f32 %v7834, %v7835
      %v7901 = vmax.f32 %v7900, %v7836
      %v7902 = vmax.f32 %v7901, %v7837
      %7903 = vmax.xlane.f32.xlu0 %v7902
      %v7904 = vpop.xlane.xlu0 %7903
      %v7905 = vmax.f32 %v7838, %v7839
      %v7906 = vmax.f32 %v7905, %v7840
      %v7907 = vmax.f32 %v7906, %v7841
      %7908 = vmax.xlane.f32.xlu0 %v7907
      %v7909 = vpop.xlane.xlu0 %7908
      %v7910 = vmax.f32 %v7842, %v7843
      %v7911 = vmax.f32 %v7910, %v7844
      %v7912 = vmax.f32 %v7911, %v7845
      %7913 = vmax.xlane.f32.xlu0 %v7912
      %v7914 = vpop.xlane.xlu0 %7913
      %v7915 = vmax.f32 %v7846, %v7847
      %v7916 = vmax.f32 %v7915, %v7848
      %v7917 = vmax.f32 %v7916, %v7849
      %7918 = vmax.xlane.f32.xlu0 %v7917
      %v7919 = vpop.xlane.xlu0 %7918
      %v7920 = vmax.f32 %v7850, %v7851
      %v7921 = vmax.f32 %v7920, %v7852
      %v7922 = vmax.f32 %v7921, %v7853
      %7923 = vmax.xlane.f32.xlu0 %v7922
      %v7924 = vpop.xlane.xlu0 %7923
      %v7925 = vmax.f32 %v7854, %v7855
      %v7926 = vmax.f32 %v7925, %v7856
      %v7927 = vmax.f32 %v7926, %v7857
      %7928 = vmax.xlane.f32.xlu0 %v7927
      %v7929 = vpop.xlane.xlu0 %7928
      %v7930 = vmax.f32 %v7858, %v7859
      %v7931 = vmax.f32 %v7930, %v7860
      %v7932 = vmax.f32 %v7931, %v7861
      %7933 = vmax.xlane.f32.xlu0 %v7932
      %v7934 = vpop.xlane.xlu0 %7933
      %v7935 = vmax.f32 %v7862, %v7863
      %v7936 = vmax.f32 %v7935, %v7864
      %v7937 = vmax.f32 %v7936, %v7865
      %7938 = vmax.xlane.f32.xlu0 %v7937
      %v7939 = vpop.xlane.xlu0 %7938
      %v7940 = vmax.f32 %v7866, %v7867
      %v7941 = vmax.f32 %v7940, %v7868
      %v7942 = vmax.f32 %v7941, %v7869
      %7943 = vmax.xlane.f32.xlu0 %v7942
      %v7944 = vpop.xlane.xlu0 %7943
      %v7945 = vmax.f32 %v7870, %v7871
      %v7946 = vmax.f32 %v7945, %v7872
      %v7947 = vmax.f32 %v7946, %v7873
      %7948 = vmax.xlane.f32.xlu0 %v7947
      %v7949 = vpop.xlane.xlu0 %7948
      %v7950 = vmax.f32 %v7874, %v7875
      %v7951 = vmax.f32 %v7950, %v7876
      %v7952 = vmax.f32 %v7951, %v7877
      %7953 = vmax.xlane.f32.xlu0 %v7952
      %v7954 = vpop.xlane.xlu0 %7953
      %v7955 = vmax.f32 %v7878, %v7879
      %v7956 = vmax.f32 %v7955, %v7880
      %v7957 = vmax.f32 %v7956, %v7881
      %7958 = vmax.xlane.f32.xlu0 %v7957
      %v7959 = vpop.xlane.xlu0 %7958
      %v7960 = vmax.f32 %v7882, %v7883
      %v7961 = vmax.f32 %v7960, %v7884
      %v7962 = vmax.f32 %v7961, %v7885
      %7963 = vmax.xlane.f32.xlu0 %v7962
      %v7964 = vpop.xlane.xlu0 %7963
      %v7965 = vmax.f32 %v7886, %v7887
      %v7966 = vmax.f32 %v7965, %v7888
      %v7967 = vmax.f32 %v7966, %v7889
      %7968 = vmax.xlane.f32.xlu0 %v7967
      %v7969 = vpop.xlane.xlu0 %7968
      %v7970 = vpack.c.bf16 %v7894, %v7894
      %v7971 = vpack.c.bf16 %v7899, %v7899
      %v7972 = vpack.c.bf16 %v7904, %v7904
      %v7973 = vpack.c.bf16 %v7909, %v7909
      %v7974 = vpack.c.bf16 %v7914, %v7914
      %v7975 = vpack.c.bf16 %v7919, %v7919
      %v7976 = vpack.c.bf16 %v7924, %v7924
      %v7977 = vpack.c.bf16 %v7929, %v7929
      %v7978 = vpack.c.bf16 %v7934, %v7934
      %v7979 = vpack.c.bf16 %v7939, %v7939
      %v7980 = vpack.c.bf16 %v7944, %v7944
      %v7981 = vpack.c.bf16 %v7949, %v7949
      %v7982 = vpack.c.bf16 %v7954, %v7954
      %v7983 = vpack.c.bf16 %v7959, %v7959
      %v7984 = vpack.c.bf16 %v7964, %v7964
      %v7985 = vpack.c.bf16 %v7969, %v7969
      %v7986 = vunpack.c.l.bf16 %v7970
      %v7987 = vunpack.c.l.bf16 %v7971
      %v7988 = vunpack.c.l.bf16 %v7972
      %v7989 = vunpack.c.l.bf16 %v7973
      %v7990 = vunpack.c.l.bf16 %v7974
      %v7991 = vunpack.c.l.bf16 %v7975
      %v7992 = vunpack.c.l.bf16 %v7976
      %v7993 = vunpack.c.l.bf16 %v7977
      %v7994 = vunpack.c.l.bf16 %v7978
      %v7995 = vunpack.c.l.bf16 %v7979
      %v7996 = vunpack.c.l.bf16 %v7980
      %v7997 = vunpack.c.l.bf16 %v7981
      %v7998 = vunpack.c.l.bf16 %v7982
      %v7999 = vunpack.c.l.bf16 %v7983
      %v8000 = vunpack.c.l.bf16 %v7984
      %v8001 = vunpack.c.l.bf16 %v7985
      %v8002 = vmul.f32 %v7986, %v653
      %v8003 = vmul.f32 %v7987, %v654
      %v8004 = vmul.f32 %v7988, %v655
      %v8005 = vmul.f32 %v7989, %v656
      %v8006 = vmul.f32 %v7990, %v657
      %v8007 = vmul.f32 %v7991, %v658
      %v8008 = vmul.f32 %v7992, %v659
      %v8009 = vmul.f32 %v7993, %v660
      %v8010 = vmul.f32 %v7994, %v661
      %v8011 = vmul.f32 %v7995, %v662
      %v8012 = vmul.f32 %v7996, %v663
      %v8013 = vmul.f32 %v7997, %v664
      %v8014 = vmul.f32 %v7998, %v665
      %v8015 = vmul.f32 %v7999, %v666
      %v8016 = vmul.f32 %v8000, %v667
      %v8017 = vmul.f32 %v8001, %v668
      %8019 = vset.pattern.permute.xlu0 0
      %8020 = vperm.xlu0 %8019, %v8002
      %v8021 = vpop.permute.xlu0 %8020
      %8024 = vset.pattern.permute.xlu0 0
      %8025 = vperm.xlu0 %8024, %v8003
      %v8026 = vpop.permute.xlu0 %8025
      %8029 = vset.pattern.permute.xlu0 0
      %8030 = vperm.xlu0 %8029, %v8004
      %v8031 = vpop.permute.xlu0 %8030
      %8034 = vset.pattern.permute.xlu0 0
      %8035 = vperm.xlu0 %8034, %v8005
      %v8036 = vpop.permute.xlu0 %8035
      %8039 = vset.pattern.permute.xlu0 0
      %8040 = vperm.xlu0 %8039, %v8006
      %v8041 = vpop.permute.xlu0 %8040
      %8044 = vset.pattern.permute.xlu0 0
      %8045 = vperm.xlu0 %8044, %v8007
      %v8046 = vpop.permute.xlu0 %8045
      %8049 = vset.pattern.permute.xlu0 0
      %8050 = vperm.xlu0 %8049, %v8008
      %v8051 = vpop.permute.xlu0 %8050
      %8054 = vset.pattern.permute.xlu0 0
      %8055 = vperm.xlu0 %8054, %v8009
      %v8056 = vpop.permute.xlu0 %8055
      %8059 = vset.pattern.permute.xlu0 0
      %8060 = vperm.xlu0 %8059, %v8010
      %v8061 = vpop.permute.xlu0 %8060
      %8064 = vset.pattern.permute.xlu0 0
      %8065 = vperm.xlu0 %8064, %v8011
      %v8066 = vpop.permute.xlu0 %8065
      %8069 = vset.pattern.permute.xlu0 0
      %8070 = vperm.xlu0 %8069, %v8012
      %v8071 = vpop.permute.xlu0 %8070
      %8074 = vset.pattern.permute.xlu0 0
      %8075 = vperm.xlu0 %8074, %v8013
      %v8076 = vpop.permute.xlu0 %8075
      %8079 = vset.pattern.permute.xlu0 0
      %8080 = vperm.xlu0 %8079, %v8014
      %v8081 = vpop.permute.xlu0 %8080
      %8084 = vset.pattern.permute.xlu0 0
      %8085 = vperm.xlu0 %8084, %v8015
      %v8086 = vpop.permute.xlu0 %8085
      %8089 = vset.pattern.permute.xlu0 0
      %8090 = vperm.xlu0 %8089, %v8016
      %v8091 = vpop.permute.xlu0 %8090
      %8094 = vset.pattern.permute.xlu0 0
      %8095 = vperm.xlu0 %8094, %v8017
      %v8096 = vpop.permute.xlu0 %8095
      %v8098 = vperm.slane %v4759, 7
      %v8099 = vmul.f32 %v8021, %v8098
      %v8100 = vmul.f32 %v8026, %v8098
      %v8101 = vmul.f32 %v8031, %v8098
      %v8102 = vmul.f32 %v8036, %v8098
      %v8103 = vmul.f32 %v8041, %v8098
      %v8104 = vmul.f32 %v8046, %v8098
      %v8105 = vmul.f32 %v8051, %v8098
      %v8106 = vmul.f32 %v8056, %v8098
      %v8107 = vmul.f32 %v8061, %v8098
      %v8108 = vmul.f32 %v8066, %v8098
      %v8109 = vmul.f32 %v8071, %v8098
      %v8110 = vmul.f32 %v8076, %v8098
      %v8111 = vmul.f32 %v8081, %v8098
      %v8112 = vmul.f32 %v8086, %v8098
      %v8113 = vmul.f32 %v8091, %v8098
      %v8114 = vmul.f32 %v8096, %v8098
      %v8115 = vadd.f32 %v7706, %v8099
      %v8116 = vadd.f32 %v7707, %v8100
      %v8117 = vadd.f32 %v7708, %v8101
      %v8118 = vadd.f32 %v7709, %v8102
      %v8119 = vadd.f32 %v7710, %v8103
      %v8120 = vadd.f32 %v7711, %v8104
      %v8121 = vadd.f32 %v7712, %v8105
      %v8122 = vadd.f32 %v7713, %v8106
      %v8123 = vadd.f32 %v7714, %v8107
      %v8124 = vadd.f32 %v7715, %v8108
      %v8125 = vadd.f32 %v7716, %v8109
      %v8126 = vadd.f32 %v7717, %v8110
      %v8127 = vadd.f32 %v7718, %v8111
      %v8128 = vadd.f32 %v7719, %v8112
      %v8129 = vadd.f32 %v7720, %v8113
      %v8130 = vadd.f32 %v7721, %v8114
      %v8133 = vunpack.c.l.b16 %v4399
      %v8134 = vunpack.c.h.b16 %v4399
      %v8135 = vunpack.c.l.b16 %v4400
      %v8136 = vunpack.c.h.b16 %v4400
      %v8137 = vpack.c.b16 %v8133, %v8133
      %v8138 = vpack.c.b16 %v8134, %v8134
      %v8139 = vpack.c.b16 %v8135, %v8135
      %v8140 = vpack.c.b16 %v8136, %v8136
      %v8142 = vpack.i.b16 %v8137, %v8137
      %v8144 = vperm.slane %v8142, 0
      %v8146 = vpack.i.b16 %v8138, %v8138
      %v8148 = vperm.slane %v8146, 0
      %v8150 = vpack.i.b16 %v8139, %v8139
      %v8152 = vperm.slane %v8150, 0
      %v8154 = vpack.i.b16 %v8140, %v8140
      %v8156 = vperm.slane %v8154, 0
      %v8157 = vunpack.c.l.bf16 %v8144
      %v8158 = vunpack.c.l.bf16 %v8148
      %v8159 = vunpack.c.l.bf16 %v8152
      %v8160 = vunpack.c.l.bf16 %v8156
      %v8161 = vadd.f32 %v8157, %v4791
      %v8162 = vadd.f32 %v8158, %v4792
      %v8163 = vadd.f32 %v8159, %v4793
      %v8164 = vadd.f32 %v8160, %v4794
      %v8165 = vadd.f32 %v8157, %v4795
      %v8166 = vadd.f32 %v8158, %v4796
      %v8167 = vadd.f32 %v8159, %v4797
      %v8168 = vadd.f32 %v8160, %v4798
      %v8169 = vadd.f32 %v8157, %v4799
      %v8170 = vadd.f32 %v8158, %v4800
      %v8171 = vadd.f32 %v8159, %v4801
      %v8172 = vadd.f32 %v8160, %v4802
      %v8173 = vadd.f32 %v8157, %v4803
      %v8174 = vadd.f32 %v8158, %v4804
      %v8175 = vadd.f32 %v8159, %v4805
      %v8176 = vadd.f32 %v8160, %v4806
      %v8177 = vadd.f32 %v8157, %v4807
      %v8178 = vadd.f32 %v8158, %v4808
      %v8179 = vadd.f32 %v8159, %v4809
      %v8180 = vadd.f32 %v8160, %v4810
      %v8181 = vadd.f32 %v8157, %v4811
      %v8182 = vadd.f32 %v8158, %v4812
      %v8183 = vadd.f32 %v8159, %v4813
      %v8184 = vadd.f32 %v8160, %v4814
      %v8185 = vadd.f32 %v8157, %v4815
      %v8186 = vadd.f32 %v8158, %v4816
      %v8187 = vadd.f32 %v8159, %v4817
      %v8188 = vadd.f32 %v8160, %v4818
      %v8189 = vadd.f32 %v8157, %v4819
      %v8190 = vadd.f32 %v8158, %v4820
      %v8191 = vadd.f32 %v8159, %v4821
      %v8192 = vadd.f32 %v8160, %v4822
      %v8193 = vadd.f32 %v8157, %v4823
      %v8194 = vadd.f32 %v8158, %v4824
      %v8195 = vadd.f32 %v8159, %v4825
      %v8196 = vadd.f32 %v8160, %v4826
      %v8197 = vadd.f32 %v8157, %v4827
      %v8198 = vadd.f32 %v8158, %v4828
      %v8199 = vadd.f32 %v8159, %v4829
      %v8200 = vadd.f32 %v8160, %v4830
      %v8201 = vadd.f32 %v8157, %v4831
      %v8202 = vadd.f32 %v8158, %v4832
      %v8203 = vadd.f32 %v8159, %v4833
      %v8204 = vadd.f32 %v8160, %v4834
      %v8205 = vadd.f32 %v8157, %v4835
      %v8206 = vadd.f32 %v8158, %v4836
      %v8207 = vadd.f32 %v8159, %v4837
      %v8208 = vadd.f32 %v8160, %v4838
      %v8209 = vadd.f32 %v8157, %v4839
      %v8210 = vadd.f32 %v8158, %v4840
      %v8211 = vadd.f32 %v8159, %v4841
      %v8212 = vadd.f32 %v8160, %v4842
      %v8213 = vadd.f32 %v8157, %v4843
      %v8214 = vadd.f32 %v8158, %v4844
      %v8215 = vadd.f32 %v8159, %v4845
      %v8216 = vadd.f32 %v8160, %v4846
      %v8217 = vadd.f32 %v8157, %v4847
      %v8218 = vadd.f32 %v8158, %v4848
      %v8219 = vadd.f32 %v8159, %v4849
      %v8220 = vadd.f32 %v8160, %v4850
      %v8221 = vadd.f32 %v8157, %v4851
      %v8222 = vadd.f32 %v8158, %v4852
      %v8223 = vadd.f32 %v8159, %v4853
      %v8224 = vadd.f32 %v8160, %v4854
      %v8225 = vpack.c.bf16 %v8165, %v8161
      %v8226 = vpack.c.bf16 %v8166, %v8162
      %v8227 = vpack.c.bf16 %v8167, %v8163
      %v8228 = vpack.c.bf16 %v8168, %v8164
      %v8229 = vpack.c.bf16 %v8173, %v8169
      %v8230 = vpack.c.bf16 %v8174, %v8170
      %v8231 = vpack.c.bf16 %v8175, %v8171
      %v8232 = vpack.c.bf16 %v8176, %v8172
      %v8233 = vpack.c.bf16 %v8181, %v8177
      %v8234 = vpack.c.bf16 %v8182, %v8178
      %v8235 = vpack.c.bf16 %v8183, %v8179
      %v8236 = vpack.c.bf16 %v8184, %v8180
      %v8237 = vpack.c.bf16 %v8189, %v8185
      %v8238 = vpack.c.bf16 %v8190, %v8186
      %v8239 = vpack.c.bf16 %v8191, %v8187
      %v8240 = vpack.c.bf16 %v8192, %v8188
      %v8241 = vpack.c.bf16 %v8197, %v8193
      %v8242 = vpack.c.bf16 %v8198, %v8194
      %v8243 = vpack.c.bf16 %v8199, %v8195
      %v8244 = vpack.c.bf16 %v8200, %v8196
      %v8245 = vpack.c.bf16 %v8205, %v8201
      %v8246 = vpack.c.bf16 %v8206, %v8202
      %v8247 = vpack.c.bf16 %v8207, %v8203
      %v8248 = vpack.c.bf16 %v8208, %v8204
      %v8249 = vpack.c.bf16 %v8213, %v8209
      %v8250 = vpack.c.bf16 %v8214, %v8210
      %v8251 = vpack.c.bf16 %v8215, %v8211
      %v8252 = vpack.c.bf16 %v8216, %v8212
      %v8253 = vpack.c.bf16 %v8221, %v8217
      %v8254 = vpack.c.bf16 %v8222, %v8218
      %v8255 = vpack.c.bf16 %v8223, %v8219
      %v8256 = vpack.c.bf16 %v8224, %v8220
      %v8257 = vunpack.c.l.bf16 %v8225
      %v8258 = vunpack.c.l.bf16 %v8226
      %v8259 = vunpack.c.l.bf16 %v8227
      %v8260 = vunpack.c.l.bf16 %v8228
      %v8261 = vunpack.c.h.bf16 %v8225
      %v8262 = vunpack.c.h.bf16 %v8226
      %v8263 = vunpack.c.h.bf16 %v8227
      %v8264 = vunpack.c.h.bf16 %v8228
      %v8265 = vunpack.c.l.bf16 %v8229
      %v8266 = vunpack.c.l.bf16 %v8230
      %v8267 = vunpack.c.l.bf16 %v8231
      %v8268 = vunpack.c.l.bf16 %v8232
      %v8269 = vunpack.c.h.bf16 %v8229
      %v8270 = vunpack.c.h.bf16 %v8230
      %v8271 = vunpack.c.h.bf16 %v8231
      %v8272 = vunpack.c.h.bf16 %v8232
      %v8273 = vunpack.c.l.bf16 %v8233
      %v8274 = vunpack.c.l.bf16 %v8234
      %v8275 = vunpack.c.l.bf16 %v8235
      %v8276 = vunpack.c.l.bf16 %v8236
      %v8277 = vunpack.c.h.bf16 %v8233
      %v8278 = vunpack.c.h.bf16 %v8234
      %v8279 = vunpack.c.h.bf16 %v8235
      %v8280 = vunpack.c.h.bf16 %v8236
      %v8281 = vunpack.c.l.bf16 %v8237
      %v8282 = vunpack.c.l.bf16 %v8238
      %v8283 = vunpack.c.l.bf16 %v8239
      %v8284 = vunpack.c.l.bf16 %v8240
      %v8285 = vunpack.c.h.bf16 %v8237
      %v8286 = vunpack.c.h.bf16 %v8238
      %v8287 = vunpack.c.h.bf16 %v8239
      %v8288 = vunpack.c.h.bf16 %v8240
      %v8289 = vunpack.c.l.bf16 %v8241
      %v8290 = vunpack.c.l.bf16 %v8242
      %v8291 = vunpack.c.l.bf16 %v8243
      %v8292 = vunpack.c.l.bf16 %v8244
      %v8293 = vunpack.c.h.bf16 %v8241
      %v8294 = vunpack.c.h.bf16 %v8242
      %v8295 = vunpack.c.h.bf16 %v8243
      %v8296 = vunpack.c.h.bf16 %v8244
      %v8297 = vunpack.c.l.bf16 %v8245
      %v8298 = vunpack.c.l.bf16 %v8246
      %v8299 = vunpack.c.l.bf16 %v8247
      %v8300 = vunpack.c.l.bf16 %v8248
      %v8301 = vunpack.c.h.bf16 %v8245
      %v8302 = vunpack.c.h.bf16 %v8246
      %v8303 = vunpack.c.h.bf16 %v8247
      %v8304 = vunpack.c.h.bf16 %v8248
      %v8305 = vunpack.c.l.bf16 %v8249
      %v8306 = vunpack.c.l.bf16 %v8250
      %v8307 = vunpack.c.l.bf16 %v8251
      %v8308 = vunpack.c.l.bf16 %v8252
      %v8309 = vunpack.c.h.bf16 %v8249
      %v8310 = vunpack.c.h.bf16 %v8250
      %v8311 = vunpack.c.h.bf16 %v8251
      %v8312 = vunpack.c.h.bf16 %v8252
      %v8313 = vunpack.c.l.bf16 %v8253
      %v8314 = vunpack.c.l.bf16 %v8254
      %v8315 = vunpack.c.l.bf16 %v8255
      %v8316 = vunpack.c.l.bf16 %v8256
      %v8317 = vunpack.c.h.bf16 %v8253
      %v8318 = vunpack.c.h.bf16 %v8254
      %v8319 = vunpack.c.h.bf16 %v8255
      %v8320 = vunpack.c.h.bf16 %v8256
      %v8321 = vmax.f32 %v8257, %v8258
      %v8322 = vmax.f32 %v8321, %v8259
      %v8323 = vmax.f32 %v8322, %v8260
      %8324 = vmax.xlane.f32.xlu0 %v8323
      %v8325 = vpop.xlane.xlu0 %8324
      %v8326 = vmax.f32 %v8261, %v8262
      %v8327 = vmax.f32 %v8326, %v8263
      %v8328 = vmax.f32 %v8327, %v8264
      %8329 = vmax.xlane.f32.xlu0 %v8328
      %v8330 = vpop.xlane.xlu0 %8329
      %v8331 = vmax.f32 %v8265, %v8266
      %v8332 = vmax.f32 %v8331, %v8267
      %v8333 = vmax.f32 %v8332, %v8268
      %8334 = vmax.xlane.f32.xlu0 %v8333
      %v8335 = vpop.xlane.xlu0 %8334
      %v8336 = vmax.f32 %v8269, %v8270
      %v8337 = vmax.f32 %v8336, %v8271
      %v8338 = vmax.f32 %v8337, %v8272
      %8339 = vmax.xlane.f32.xlu0 %v8338
      %v8340 = vpop.xlane.xlu0 %8339
      %v8341 = vmax.f32 %v8273, %v8274
      %v8342 = vmax.f32 %v8341, %v8275
      %v8343 = vmax.f32 %v8342, %v8276
      %8344 = vmax.xlane.f32.xlu0 %v8343
      %v8345 = vpop.xlane.xlu0 %8344
      %v8346 = vmax.f32 %v8277, %v8278
      %v8347 = vmax.f32 %v8346, %v8279
      %v8348 = vmax.f32 %v8347, %v8280
      %8349 = vmax.xlane.f32.xlu0 %v8348
      %v8350 = vpop.xlane.xlu0 %8349
      %v8351 = vmax.f32 %v8281, %v8282
      %v8352 = vmax.f32 %v8351, %v8283
      %v8353 = vmax.f32 %v8352, %v8284
      %8354 = vmax.xlane.f32.xlu0 %v8353
      %v8355 = vpop.xlane.xlu0 %8354
      %v8356 = vmax.f32 %v8285, %v8286
      %v8357 = vmax.f32 %v8356, %v8287
      %v8358 = vmax.f32 %v8357, %v8288
      %8359 = vmax.xlane.f32.xlu0 %v8358
      %v8360 = vpop.xlane.xlu0 %8359
      %v8361 = vmax.f32 %v8289, %v8290
      %v8362 = vmax.f32 %v8361, %v8291
      %v8363 = vmax.f32 %v8362, %v8292
      %8364 = vmax.xlane.f32.xlu0 %v8363
      %v8365 = vpop.xlane.xlu0 %8364
      %v8366 = vmax.f32 %v8293, %v8294
      %v8367 = vmax.f32 %v8366, %v8295
      %v8368 = vmax.f32 %v8367, %v8296
      %8369 = vmax.xlane.f32.xlu0 %v8368
      %v8370 = vpop.xlane.xlu0 %8369
      %v8371 = vmax.f32 %v8297, %v8298
      %v8372 = vmax.f32 %v8371, %v8299
      %v8373 = vmax.f32 %v8372, %v8300
      %8374 = vmax.xlane.f32.xlu0 %v8373
      %v8375 = vpop.xlane.xlu0 %8374
      %v8376 = vmax.f32 %v8301, %v8302
      %v8377 = vmax.f32 %v8376, %v8303
      %v8378 = vmax.f32 %v8377, %v8304
      %8379 = vmax.xlane.f32.xlu0 %v8378
      %v8380 = vpop.xlane.xlu0 %8379
      %v8381 = vmax.f32 %v8305, %v8306
      %v8382 = vmax.f32 %v8381, %v8307
      %v8383 = vmax.f32 %v8382, %v8308
      %8384 = vmax.xlane.f32.xlu0 %v8383
      %v8385 = vpop.xlane.xlu0 %8384
      %v8386 = vmax.f32 %v8309, %v8310
      %v8387 = vmax.f32 %v8386, %v8311
      %v8388 = vmax.f32 %v8387, %v8312
      %8389 = vmax.xlane.f32.xlu0 %v8388
      %v8390 = vpop.xlane.xlu0 %8389
      %v8391 = vmax.f32 %v8313, %v8314
      %v8392 = vmax.f32 %v8391, %v8315
      %v8393 = vmax.f32 %v8392, %v8316
      %8394 = vmax.xlane.f32.xlu0 %v8393
      %v8395 = vpop.xlane.xlu0 %8394
      %v8396 = vmax.f32 %v8317, %v8318
      %v8397 = vmax.f32 %v8396, %v8319
      %v8398 = vmax.f32 %v8397, %v8320
      %8399 = vmax.xlane.f32.xlu0 %v8398
      %v8400 = vpop.xlane.xlu0 %8399
      %v8401 = vpack.c.bf16 %v8325, %v8325
      %v8402 = vpack.c.bf16 %v8330, %v8330
      %v8403 = vpack.c.bf16 %v8335, %v8335
      %v8404 = vpack.c.bf16 %v8340, %v8340
      %v8405 = vpack.c.bf16 %v8345, %v8345
      %v8406 = vpack.c.bf16 %v8350, %v8350
      %v8407 = vpack.c.bf16 %v8355, %v8355
      %v8408 = vpack.c.bf16 %v8360, %v8360
      %v8409 = vpack.c.bf16 %v8365, %v8365
      %v8410 = vpack.c.bf16 %v8370, %v8370
      %v8411 = vpack.c.bf16 %v8375, %v8375
      %v8412 = vpack.c.bf16 %v8380, %v8380
      %v8413 = vpack.c.bf16 %v8385, %v8385
      %v8414 = vpack.c.bf16 %v8390, %v8390
      %v8415 = vpack.c.bf16 %v8395, %v8395
      %v8416 = vpack.c.bf16 %v8400, %v8400
      %v8417 = vunpack.c.l.bf16 %v8401
      %v8418 = vunpack.c.l.bf16 %v8402
      %v8419 = vunpack.c.l.bf16 %v8403
      %v8420 = vunpack.c.l.bf16 %v8404
      %v8421 = vunpack.c.l.bf16 %v8405
      %v8422 = vunpack.c.l.bf16 %v8406
      %v8423 = vunpack.c.l.bf16 %v8407
      %v8424 = vunpack.c.l.bf16 %v8408
      %v8425 = vunpack.c.l.bf16 %v8409
      %v8426 = vunpack.c.l.bf16 %v8410
      %v8427 = vunpack.c.l.bf16 %v8411
      %v8428 = vunpack.c.l.bf16 %v8412
      %v8429 = vunpack.c.l.bf16 %v8413
      %v8430 = vunpack.c.l.bf16 %v8414
      %v8431 = vunpack.c.l.bf16 %v8415
      %v8432 = vunpack.c.l.bf16 %v8416
      %v8433 = vmul.f32 %v8417, %v653
      %v8434 = vmul.f32 %v8418, %v654
      %v8435 = vmul.f32 %v8419, %v655
      %v8436 = vmul.f32 %v8420, %v656
      %v8437 = vmul.f32 %v8421, %v657
      %v8438 = vmul.f32 %v8422, %v658
      %v8439 = vmul.f32 %v8423, %v659
      %v8440 = vmul.f32 %v8424, %v660
      %v8441 = vmul.f32 %v8425, %v661
      %v8442 = vmul.f32 %v8426, %v662
      %v8443 = vmul.f32 %v8427, %v663
      %v8444 = vmul.f32 %v8428, %v664
      %v8445 = vmul.f32 %v8429, %v665
      %v8446 = vmul.f32 %v8430, %v666
      %v8447 = vmul.f32 %v8431, %v667
      %v8448 = vmul.f32 %v8432, %v668
      %8450 = vset.pattern.permute.xlu0 0
      %8451 = vperm.xlu0 %8450, %v8433
      %v8452 = vpop.permute.xlu0 %8451
      %8455 = vset.pattern.permute.xlu0 0
      %8456 = vperm.xlu0 %8455, %v8434
      %v8457 = vpop.permute.xlu0 %8456
      %8460 = vset.pattern.permute.xlu0 0
      %8461 = vperm.xlu0 %8460, %v8435
      %v8462 = vpop.permute.xlu0 %8461
      %8465 = vset.pattern.permute.xlu0 0
      %8466 = vperm.xlu0 %8465, %v8436
      %v8467 = vpop.permute.xlu0 %8466
      %8470 = vset.pattern.permute.xlu0 0
      %8471 = vperm.xlu0 %8470, %v8437
      %v8472 = vpop.permute.xlu0 %8471
      %8475 = vset.pattern.permute.xlu0 0
      %8476 = vperm.xlu0 %8475, %v8438
      %v8477 = vpop.permute.xlu0 %8476
      %8480 = vset.pattern.permute.xlu0 0
      %8481 = vperm.xlu0 %8480, %v8439
      %v8482 = vpop.permute.xlu0 %8481
      %8485 = vset.pattern.permute.xlu0 0
      %8486 = vperm.xlu0 %8485, %v8440
      %v8487 = vpop.permute.xlu0 %8486
      %8490 = vset.pattern.permute.xlu0 0
      %8491 = vperm.xlu0 %8490, %v8441
      %v8492 = vpop.permute.xlu0 %8491
      %8495 = vset.pattern.permute.xlu0 0
      %8496 = vperm.xlu0 %8495, %v8442
      %v8497 = vpop.permute.xlu0 %8496
      %8500 = vset.pattern.permute.xlu0 0
      %8501 = vperm.xlu0 %8500, %v8443
      %v8502 = vpop.permute.xlu0 %8501
      %8505 = vset.pattern.permute.xlu0 0
      %8506 = vperm.xlu0 %8505, %v8444
      %v8507 = vpop.permute.xlu0 %8506
      %8510 = vset.pattern.permute.xlu0 0
      %8511 = vperm.xlu0 %8510, %v8445
      %v8512 = vpop.permute.xlu0 %8511
      %8515 = vset.pattern.permute.xlu0 0
      %8516 = vperm.xlu0 %8515, %v8446
      %v8517 = vpop.permute.xlu0 %8516
      %8520 = vset.pattern.permute.xlu0 0
      %8521 = vperm.xlu0 %8520, %v8447
      %v8522 = vpop.permute.xlu0 %8521
      %8525 = vset.pattern.permute.xlu0 0
      %8526 = vperm.xlu0 %8525, %v8448
      %v8527 = vpop.permute.xlu0 %8526
      %v8529 = vperm.slane %v4760, 0
      %v8530 = vmul.f32 %v8452, %v8529
      %v8531 = vmul.f32 %v8457, %v8529
      %v8532 = vmul.f32 %v8462, %v8529
      %v8533 = vmul.f32 %v8467, %v8529
      %v8534 = vmul.f32 %v8472, %v8529
      %v8535 = vmul.f32 %v8477, %v8529
      %v8536 = vmul.f32 %v8482, %v8529
      %v8537 = vmul.f32 %v8487, %v8529
      %v8538 = vmul.f32 %v8492, %v8529
      %v8539 = vmul.f32 %v8497, %v8529
      %v8540 = vmul.f32 %v8502, %v8529
      %v8541 = vmul.f32 %v8507, %v8529
      %v8542 = vmul.f32 %v8512, %v8529
      %v8543 = vmul.f32 %v8517, %v8529
      %v8544 = vmul.f32 %v8522, %v8529
      %v8545 = vmul.f32 %v8527, %v8529
      %v8546 = vadd.f32 %v8115, %v8530
      %v8547 = vadd.f32 %v8116, %v8531
      %v8548 = vadd.f32 %v8117, %v8532
      %v8549 = vadd.f32 %v8118, %v8533
      %v8550 = vadd.f32 %v8119, %v8534
      %v8551 = vadd.f32 %v8120, %v8535
      %v8552 = vadd.f32 %v8121, %v8536
      %v8553 = vadd.f32 %v8122, %v8537
      %v8554 = vadd.f32 %v8123, %v8538
      %v8555 = vadd.f32 %v8124, %v8539
      %v8556 = vadd.f32 %v8125, %v8540
      %v8557 = vadd.f32 %v8126, %v8541
      %v8558 = vadd.f32 %v8127, %v8542
      %v8559 = vadd.f32 %v8128, %v8543
      %v8560 = vadd.f32 %v8129, %v8544
      %v8561 = vadd.f32 %v8130, %v8545
      %v8562 = vshrl.u32 %v8137, 16
      %v8563 = vpack.i.b16 %v8562, %v8562
      %v8565 = vperm.slane %v8563, 0
      %v8566 = vshrl.u32 %v8138, 16
      %v8567 = vpack.i.b16 %v8566, %v8566
      %v8569 = vperm.slane %v8567, 0
      %v8570 = vshrl.u32 %v8139, 16
      %v8571 = vpack.i.b16 %v8570, %v8570
      %v8573 = vperm.slane %v8571, 0
      %v8574 = vshrl.u32 %v8140, 16
      %v8575 = vpack.i.b16 %v8574, %v8574
      %v8577 = vperm.slane %v8575, 0
      %v8578 = vunpack.c.l.bf16 %v8565
      %v8579 = vunpack.c.l.bf16 %v8569
      %v8580 = vunpack.c.l.bf16 %v8573
      %v8581 = vunpack.c.l.bf16 %v8577
      %v8582 = vadd.f32 %v8578, %v4791
      %v8583 = vadd.f32 %v8579, %v4792
      %v8584 = vadd.f32 %v8580, %v4793
      %v8585 = vadd.f32 %v8581, %v4794
      %v8586 = vadd.f32 %v8578, %v4795
      %v8587 = vadd.f32 %v8579, %v4796
      %v8588 = vadd.f32 %v8580, %v4797
      %v8589 = vadd.f32 %v8581, %v4798
      %v8590 = vadd.f32 %v8578, %v4799
      %v8591 = vadd.f32 %v8579, %v4800
      %v8592 = vadd.f32 %v8580, %v4801
      %v8593 = vadd.f32 %v8581, %v4802
      %v8594 = vadd.f32 %v8578, %v4803
      %v8595 = vadd.f32 %v8579, %v4804
      %v8596 = vadd.f32 %v8580, %v4805
      %v8597 = vadd.f32 %v8581, %v4806
      %v8598 = vadd.f32 %v8578, %v4807
      %v8599 = vadd.f32 %v8579, %v4808
      %v8600 = vadd.f32 %v8580, %v4809
      %v8601 = vadd.f32 %v8581, %v4810
      %v8602 = vadd.f32 %v8578, %v4811
      %v8603 = vadd.f32 %v8579, %v4812
      %v8604 = vadd.f32 %v8580, %v4813
      %v8605 = vadd.f32 %v8581, %v4814
      %v8606 = vadd.f32 %v8578, %v4815
      %v8607 = vadd.f32 %v8579, %v4816
      %v8608 = vadd.f32 %v8580, %v4817
      %v8609 = vadd.f32 %v8581, %v4818
      %v8610 = vadd.f32 %v8578, %v4819
      %v8611 = vadd.f32 %v8579, %v4820
      %v8612 = vadd.f32 %v8580, %v4821
      %v8613 = vadd.f32 %v8581, %v4822
      %v8614 = vadd.f32 %v8578, %v4823
      %v8615 = vadd.f32 %v8579, %v4824
      %v8616 = vadd.f32 %v8580, %v4825
      %v8617 = vadd.f32 %v8581, %v4826
      %v8618 = vadd.f32 %v8578, %v4827
      %v8619 = vadd.f32 %v8579, %v4828
      %v8620 = vadd.f32 %v8580, %v4829
      %v8621 = vadd.f32 %v8581, %v4830
      %v8622 = vadd.f32 %v8578, %v4831
      %v8623 = vadd.f32 %v8579, %v4832
      %v8624 = vadd.f32 %v8580, %v4833
      %v8625 = vadd.f32 %v8581, %v4834
      %v8626 = vadd.f32 %v8578, %v4835
      %v8627 = vadd.f32 %v8579, %v4836
      %v8628 = vadd.f32 %v8580, %v4837
      %v8629 = vadd.f32 %v8581, %v4838
      %v8630 = vadd.f32 %v8578, %v4839
      %v8631 = vadd.f32 %v8579, %v4840
      %v8632 = vadd.f32 %v8580, %v4841
      %v8633 = vadd.f32 %v8581, %v4842
      %v8634 = vadd.f32 %v8578, %v4843
      %v8635 = vadd.f32 %v8579, %v4844
      %v8636 = vadd.f32 %v8580, %v4845
      %v8637 = vadd.f32 %v8581, %v4846
      %v8638 = vadd.f32 %v8578, %v4847
      %v8639 = vadd.f32 %v8579, %v4848
      %v8640 = vadd.f32 %v8580, %v4849
      %v8641 = vadd.f32 %v8581, %v4850
      %v8642 = vadd.f32 %v8578, %v4851
      %v8643 = vadd.f32 %v8579, %v4852
      %v8644 = vadd.f32 %v8580, %v4853
      %v8645 = vadd.f32 %v8581, %v4854
      %v8646 = vpack.c.bf16 %v8586, %v8582
      %v8647 = vpack.c.bf16 %v8587, %v8583
      %v8648 = vpack.c.bf16 %v8588, %v8584
      %v8649 = vpack.c.bf16 %v8589, %v8585
      %v8650 = vpack.c.bf16 %v8594, %v8590
      %v8651 = vpack.c.bf16 %v8595, %v8591
      %v8652 = vpack.c.bf16 %v8596, %v8592
      %v8653 = vpack.c.bf16 %v8597, %v8593
      %v8654 = vpack.c.bf16 %v8602, %v8598
      %v8655 = vpack.c.bf16 %v8603, %v8599
      %v8656 = vpack.c.bf16 %v8604, %v8600
      %v8657 = vpack.c.bf16 %v8605, %v8601
      %v8658 = vpack.c.bf16 %v8610, %v8606
      %v8659 = vpack.c.bf16 %v8611, %v8607
      %v8660 = vpack.c.bf16 %v8612, %v8608
      %v8661 = vpack.c.bf16 %v8613, %v8609
      %v8662 = vpack.c.bf16 %v8618, %v8614
      %v8663 = vpack.c.bf16 %v8619, %v8615
      %v8664 = vpack.c.bf16 %v8620, %v8616
      %v8665 = vpack.c.bf16 %v8621, %v8617
      %v8666 = vpack.c.bf16 %v8626, %v8622
      %v8667 = vpack.c.bf16 %v8627, %v8623
      %v8668 = vpack.c.bf16 %v8628, %v8624
      %v8669 = vpack.c.bf16 %v8629, %v8625
      %v8670 = vpack.c.bf16 %v8634, %v8630
      %v8671 = vpack.c.bf16 %v8635, %v8631
      %v8672 = vpack.c.bf16 %v8636, %v8632
      %v8673 = vpack.c.bf16 %v8637, %v8633
      %v8674 = vpack.c.bf16 %v8642, %v8638
      %v8675 = vpack.c.bf16 %v8643, %v8639
      %v8676 = vpack.c.bf16 %v8644, %v8640
      %v8677 = vpack.c.bf16 %v8645, %v8641
      %v8678 = vunpack.c.l.bf16 %v8646
      %v8679 = vunpack.c.l.bf16 %v8647
      %v8680 = vunpack.c.l.bf16 %v8648
      %v8681 = vunpack.c.l.bf16 %v8649
      %v8682 = vunpack.c.h.bf16 %v8646
      %v8683 = vunpack.c.h.bf16 %v8647
      %v8684 = vunpack.c.h.bf16 %v8648
      %v8685 = vunpack.c.h.bf16 %v8649
      %v8686 = vunpack.c.l.bf16 %v8650
      %v8687 = vunpack.c.l.bf16 %v8651
      %v8688 = vunpack.c.l.bf16 %v8652
      %v8689 = vunpack.c.l.bf16 %v8653
      %v8690 = vunpack.c.h.bf16 %v8650
      %v8691 = vunpack.c.h.bf16 %v8651
      %v8692 = vunpack.c.h.bf16 %v8652
      %v8693 = vunpack.c.h.bf16 %v8653
      %v8694 = vunpack.c.l.bf16 %v8654
      %v8695 = vunpack.c.l.bf16 %v8655
      %v8696 = vunpack.c.l.bf16 %v8656
      %v8697 = vunpack.c.l.bf16 %v8657
      %v8698 = vunpack.c.h.bf16 %v8654
      %v8699 = vunpack.c.h.bf16 %v8655
      %v8700 = vunpack.c.h.bf16 %v8656
      %v8701 = vunpack.c.h.bf16 %v8657
      %v8702 = vunpack.c.l.bf16 %v8658
      %v8703 = vunpack.c.l.bf16 %v8659
      %v8704 = vunpack.c.l.bf16 %v8660
      %v8705 = vunpack.c.l.bf16 %v8661
      %v8706 = vunpack.c.h.bf16 %v8658
      %v8707 = vunpack.c.h.bf16 %v8659
      %v8708 = vunpack.c.h.bf16 %v8660
      %v8709 = vunpack.c.h.bf16 %v8661
      %v8710 = vunpack.c.l.bf16 %v8662
      %v8711 = vunpack.c.l.bf16 %v8663
      %v8712 = vunpack.c.l.bf16 %v8664
      %v8713 = vunpack.c.l.bf16 %v8665
      %v8714 = vunpack.c.h.bf16 %v8662
      %v8715 = vunpack.c.h.bf16 %v8663
      %v8716 = vunpack.c.h.bf16 %v8664
      %v8717 = vunpack.c.h.bf16 %v8665
      %v8718 = vunpack.c.l.bf16 %v8666
      %v8719 = vunpack.c.l.bf16 %v8667
      %v8720 = vunpack.c.l.bf16 %v8668
      %v8721 = vunpack.c.l.bf16 %v8669
      %v8722 = vunpack.c.h.bf16 %v8666
      %v8723 = vunpack.c.h.bf16 %v8667
      %v8724 = vunpack.c.h.bf16 %v8668
      %v8725 = vunpack.c.h.bf16 %v8669
      %v8726 = vunpack.c.l.bf16 %v8670
      %v8727 = vunpack.c.l.bf16 %v8671
      %v8728 = vunpack.c.l.bf16 %v8672
      %v8729 = vunpack.c.l.bf16 %v8673
      %v8730 = vunpack.c.h.bf16 %v8670
      %v8731 = vunpack.c.h.bf16 %v8671
      %v8732 = vunpack.c.h.bf16 %v8672
      %v8733 = vunpack.c.h.bf16 %v8673
      %v8734 = vunpack.c.l.bf16 %v8674
      %v8735 = vunpack.c.l.bf16 %v8675
      %v8736 = vunpack.c.l.bf16 %v8676
      %v8737 = vunpack.c.l.bf16 %v8677
      %v8738 = vunpack.c.h.bf16 %v8674
      %v8739 = vunpack.c.h.bf16 %v8675
      %v8740 = vunpack.c.h.bf16 %v8676
      %v8741 = vunpack.c.h.bf16 %v8677
      %v8742 = vmax.f32 %v8678, %v8679
      %v8743 = vmax.f32 %v8742, %v8680
      %v8744 = vmax.f32 %v8743, %v8681
      %8745 = vmax.xlane.f32.xlu0 %v8744
      %v8746 = vpop.xlane.xlu0 %8745
      %v8747 = vmax.f32 %v8682, %v8683
      %v8748 = vmax.f32 %v8747, %v8684
      %v8749 = vmax.f32 %v8748, %v8685
      %8750 = vmax.xlane.f32.xlu0 %v8749
      %v8751 = vpop.xlane.xlu0 %8750
      %v8752 = vmax.f32 %v8686, %v8687
      %v8753 = vmax.f32 %v8752, %v8688
      %v8754 = vmax.f32 %v8753, %v8689
      %8755 = vmax.xlane.f32.xlu0 %v8754
      %v8756 = vpop.xlane.xlu0 %8755
      %v8757 = vmax.f32 %v8690, %v8691
      %v8758 = vmax.f32 %v8757, %v8692
      %v8759 = vmax.f32 %v8758, %v8693
      %8760 = vmax.xlane.f32.xlu0 %v8759
      %v8761 = vpop.xlane.xlu0 %8760
      %v8762 = vmax.f32 %v8694, %v8695
      %v8763 = vmax.f32 %v8762, %v8696
      %v8764 = vmax.f32 %v8763, %v8697
      %8765 = vmax.xlane.f32.xlu0 %v8764
      %v8766 = vpop.xlane.xlu0 %8765
      %v8767 = vmax.f32 %v8698, %v8699
      %v8768 = vmax.f32 %v8767, %v8700
      %v8769 = vmax.f32 %v8768, %v8701
      %8770 = vmax.xlane.f32.xlu0 %v8769
      %v8771 = vpop.xlane.xlu0 %8770
      %v8772 = vmax.f32 %v8702, %v8703
      %v8773 = vmax.f32 %v8772, %v8704
      %v8774 = vmax.f32 %v8773, %v8705
      %8775 = vmax.xlane.f32.xlu0 %v8774
      %v8776 = vpop.xlane.xlu0 %8775
      %v8777 = vmax.f32 %v8706, %v8707
      %v8778 = vmax.f32 %v8777, %v8708
      %v8779 = vmax.f32 %v8778, %v8709
      %8780 = vmax.xlane.f32.xlu0 %v8779
      %v8781 = vpop.xlane.xlu0 %8780
      %v8782 = vmax.f32 %v8710, %v8711
      %v8783 = vmax.f32 %v8782, %v8712
      %v8784 = vmax.f32 %v8783, %v8713
      %8785 = vmax.xlane.f32.xlu0 %v8784
      %v8786 = vpop.xlane.xlu0 %8785
      %v8787 = vmax.f32 %v8714, %v8715
      %v8788 = vmax.f32 %v8787, %v8716
      %v8789 = vmax.f32 %v8788, %v8717
      %8790 = vmax.xlane.f32.xlu0 %v8789
      %v8791 = vpop.xlane.xlu0 %8790
      %v8792 = vmax.f32 %v8718, %v8719
      %v8793 = vmax.f32 %v8792, %v8720
      %v8794 = vmax.f32 %v8793, %v8721
      %8795 = vmax.xlane.f32.xlu0 %v8794
      %v8796 = vpop.xlane.xlu0 %8795
      %v8797 = vmax.f32 %v8722, %v8723
      %v8798 = vmax.f32 %v8797, %v8724
      %v8799 = vmax.f32 %v8798, %v8725
      %8800 = vmax.xlane.f32.xlu0 %v8799
      %v8801 = vpop.xlane.xlu0 %8800
      %v8802 = vmax.f32 %v8726, %v8727
      %v8803 = vmax.f32 %v8802, %v8728
      %v8804 = vmax.f32 %v8803, %v8729
      %8805 = vmax.xlane.f32.xlu0 %v8804
      %v8806 = vpop.xlane.xlu0 %8805
      %v8807 = vmax.f32 %v8730, %v8731
      %v8808 = vmax.f32 %v8807, %v8732
      %v8809 = vmax.f32 %v8808, %v8733
      %8810 = vmax.xlane.f32.xlu0 %v8809
      %v8811 = vpop.xlane.xlu0 %8810
      %v8812 = vmax.f32 %v8734, %v8735
      %v8813 = vmax.f32 %v8812, %v8736
      %v8814 = vmax.f32 %v8813, %v8737
      %8815 = vmax.xlane.f32.xlu0 %v8814
      %v8816 = vpop.xlane.xlu0 %8815
      %v8817 = vmax.f32 %v8738, %v8739
      %v8818 = vmax.f32 %v8817, %v8740
      %v8819 = vmax.f32 %v8818, %v8741
      %8820 = vmax.xlane.f32.xlu0 %v8819
      %v8821 = vpop.xlane.xlu0 %8820
      %v8822 = vpack.c.bf16 %v8746, %v8746
      %v8823 = vpack.c.bf16 %v8751, %v8751
      %v8824 = vpack.c.bf16 %v8756, %v8756
      %v8825 = vpack.c.bf16 %v8761, %v8761
      %v8826 = vpack.c.bf16 %v8766, %v8766
      %v8827 = vpack.c.bf16 %v8771, %v8771
      %v8828 = vpack.c.bf16 %v8776, %v8776
      %v8829 = vpack.c.bf16 %v8781, %v8781
      %v8830 = vpack.c.bf16 %v8786, %v8786
      %v8831 = vpack.c.bf16 %v8791, %v8791
      %v8832 = vpack.c.bf16 %v8796, %v8796
      %v8833 = vpack.c.bf16 %v8801, %v8801
      %v8834 = vpack.c.bf16 %v8806, %v8806
      %v8835 = vpack.c.bf16 %v8811, %v8811
      %v8836 = vpack.c.bf16 %v8816, %v8816
      %v8837 = vpack.c.bf16 %v8821, %v8821
      %v8838 = vunpack.c.l.bf16 %v8822
      %v8839 = vunpack.c.l.bf16 %v8823
      %v8840 = vunpack.c.l.bf16 %v8824
      %v8841 = vunpack.c.l.bf16 %v8825
      %v8842 = vunpack.c.l.bf16 %v8826
      %v8843 = vunpack.c.l.bf16 %v8827
      %v8844 = vunpack.c.l.bf16 %v8828
      %v8845 = vunpack.c.l.bf16 %v8829
      %v8846 = vunpack.c.l.bf16 %v8830
      %v8847 = vunpack.c.l.bf16 %v8831
      %v8848 = vunpack.c.l.bf16 %v8832
      %v8849 = vunpack.c.l.bf16 %v8833
      %v8850 = vunpack.c.l.bf16 %v8834
      %v8851 = vunpack.c.l.bf16 %v8835
      %v8852 = vunpack.c.l.bf16 %v8836
      %v8853 = vunpack.c.l.bf16 %v8837
      %v8854 = vmul.f32 %v8838, %v653
      %v8855 = vmul.f32 %v8839, %v654
      %v8856 = vmul.f32 %v8840, %v655
      %v8857 = vmul.f32 %v8841, %v656
      %v8858 = vmul.f32 %v8842, %v657
      %v8859 = vmul.f32 %v8843, %v658
      %v8860 = vmul.f32 %v8844, %v659
      %v8861 = vmul.f32 %v8845, %v660
      %v8862 = vmul.f32 %v8846, %v661
      %v8863 = vmul.f32 %v8847, %v662
      %v8864 = vmul.f32 %v8848, %v663
      %v8865 = vmul.f32 %v8849, %v664
      %v8866 = vmul.f32 %v8850, %v665
      %v8867 = vmul.f32 %v8851, %v666
      %v8868 = vmul.f32 %v8852, %v667
      %v8869 = vmul.f32 %v8853, %v668
      %8871 = vset.pattern.permute.xlu0 0
      %8872 = vperm.xlu0 %8871, %v8854
      %v8873 = vpop.permute.xlu0 %8872
      %8876 = vset.pattern.permute.xlu0 0
      %8877 = vperm.xlu0 %8876, %v8855
      %v8878 = vpop.permute.xlu0 %8877
      %8881 = vset.pattern.permute.xlu0 0
      %8882 = vperm.xlu0 %8881, %v8856
      %v8883 = vpop.permute.xlu0 %8882
      %8886 = vset.pattern.permute.xlu0 0
      %8887 = vperm.xlu0 %8886, %v8857
      %v8888 = vpop.permute.xlu0 %8887
      %8891 = vset.pattern.permute.xlu0 0
      %8892 = vperm.xlu0 %8891, %v8858
      %v8893 = vpop.permute.xlu0 %8892
      %8896 = vset.pattern.permute.xlu0 0
      %8897 = vperm.xlu0 %8896, %v8859
      %v8898 = vpop.permute.xlu0 %8897
      %8901 = vset.pattern.permute.xlu0 0
      %8902 = vperm.xlu0 %8901, %v8860
      %v8903 = vpop.permute.xlu0 %8902
      %8906 = vset.pattern.permute.xlu0 0
      %8907 = vperm.xlu0 %8906, %v8861
      %v8908 = vpop.permute.xlu0 %8907
      %8911 = vset.pattern.permute.xlu0 0
      %8912 = vperm.xlu0 %8911, %v8862
      %v8913 = vpop.permute.xlu0 %8912
      %8916 = vset.pattern.permute.xlu0 0
      %8917 = vperm.xlu0 %8916, %v8863
      %v8918 = vpop.permute.xlu0 %8917
      %8921 = vset.pattern.permute.xlu0 0
      %8922 = vperm.xlu0 %8921, %v8864
      %v8923 = vpop.permute.xlu0 %8922
      %8926 = vset.pattern.permute.xlu0 0
      %8927 = vperm.xlu0 %8926, %v8865
      %v8928 = vpop.permute.xlu0 %8927
      %8931 = vset.pattern.permute.xlu0 0
      %8932 = vperm.xlu0 %8931, %v8866
      %v8933 = vpop.permute.xlu0 %8932
      %8936 = vset.pattern.permute.xlu0 0
      %8937 = vperm.xlu0 %8936, %v8867
      %v8938 = vpop.permute.xlu0 %8937
      %8941 = vset.pattern.permute.xlu0 0
      %8942 = vperm.xlu0 %8941, %v8868
      %v8943 = vpop.permute.xlu0 %8942
      %8946 = vset.pattern.permute.xlu0 0
      %8947 = vperm.xlu0 %8946, %v8869
      %v8948 = vpop.permute.xlu0 %8947
      %v8950 = vperm.slane %v4760, 1
      %v8951 = vmul.f32 %v8873, %v8950
      %v8952 = vmul.f32 %v8878, %v8950
      %v8953 = vmul.f32 %v8883, %v8950
      %v8954 = vmul.f32 %v8888, %v8950
      %v8955 = vmul.f32 %v8893, %v8950
      %v8956 = vmul.f32 %v8898, %v8950
      %v8957 = vmul.f32 %v8903, %v8950
      %v8958 = vmul.f32 %v8908, %v8950
      %v8959 = vmul.f32 %v8913, %v8950
      %v8960 = vmul.f32 %v8918, %v8950
      %v8961 = vmul.f32 %v8923, %v8950
      %v8962 = vmul.f32 %v8928, %v8950
      %v8963 = vmul.f32 %v8933, %v8950
      %v8964 = vmul.f32 %v8938, %v8950
      %v8965 = vmul.f32 %v8943, %v8950
      %v8966 = vmul.f32 %v8948, %v8950
      %v8967 = vadd.f32 %v8546, %v8951
      %v8968 = vadd.f32 %v8547, %v8952
      %v8969 = vadd.f32 %v8548, %v8953
      %v8970 = vadd.f32 %v8549, %v8954
      %v8971 = vadd.f32 %v8550, %v8955
      %v8972 = vadd.f32 %v8551, %v8956
      %v8973 = vadd.f32 %v8552, %v8957
      %v8974 = vadd.f32 %v8553, %v8958
      %v8975 = vadd.f32 %v8554, %v8959
      %v8976 = vadd.f32 %v8555, %v8960
      %v8977 = vadd.f32 %v8556, %v8961
      %v8978 = vadd.f32 %v8557, %v8962
      %v8979 = vadd.f32 %v8558, %v8963
      %v8980 = vadd.f32 %v8559, %v8964
      %v8981 = vadd.f32 %v8560, %v8965
      %v8982 = vadd.f32 %v8561, %v8966
      %v8983 = vld [vmem:[%s330 + $0x68] sm:$0xf]
      %v8984 = vld [vmem:[%s330 + $0x6c] sm:$0xf]
      %v8985 = vld [vmem:[%s330 + $0x70] sm:$0xf]
      %v8986 = vld [vmem:[%s330 + $0x74] sm:$0xf]
      %v8989 = vunpack.c.l.b16 %v8985
      %v8990 = vunpack.c.l.b16 %v8986
      %v8991 = vpack.c.b16 %v8990, %v8989
      %8993 = vmatpush.bf16.msra.mxu0 0
      %8994 = vmatpush.bf16.msra.mxu0 0
      %8995 = vmatpush.bf16.msra.mxu0 0
      %8996 = vmatpush.bf16.msra.mxu0 0
      %8997 = vmatpush.bf16.msra.mxu0 0
      %8998 = vmatpush.bf16.msra.mxu0 0
      %8999 = vmatpush.bf16.msra.mxu0 0
      %9000 = vmatpush.bf16.msra.mxu0 %v8991
      %9001 = vmatmul.bf16.gmra.mxu0 %v721
      %v9002 = vpop.f32.mrf.mxu0
      %v9003 = vadd.f32 0.0, %v9002
      %v9004 = vpop.f32.mrf.mxu0
      %v9005 = vadd.f32 0.0, %v9004
      %9006 = vmatmul.bf16.gmra.mxu0 %v724
      %v9007 = vpop.f32.mrf.mxu0
      %v9008 = vadd.f32 0.0, %v9007
      %v9009 = vpop.f32.mrf.mxu0
      %v9010 = vadd.f32 0.0, %v9009
      %9011 = vmatmul.bf16.gmra.mxu0 %v727
      %v9012 = vpop.f32.mrf.mxu0
      %v9013 = vadd.f32 0.0, %v9012
      %v9014 = vpop.f32.mrf.mxu0
      %v9015 = vadd.f32 0.0, %v9014
      %9016 = vmatmul.bf16.gmra.mxu0 %v730
      %v9017 = vpop.f32.mrf.mxu0
      %v9018 = vadd.f32 0.0, %v9017
      %v9019 = vpop.f32.mrf.mxu0
      %v9020 = vadd.f32 0.0, %v9019
      %9021 = vmatmul.bf16.gmra.mxu0 %v733
      %v9022 = vpop.f32.mrf.mxu0
      %v9023 = vadd.f32 0.0, %v9022
      %v9024 = vpop.f32.mrf.mxu0
      %v9025 = vadd.f32 0.0, %v9024
      %9026 = vmatmul.bf16.gmra.mxu0 %v736
      %v9027 = vpop.f32.mrf.mxu0
      %v9028 = vadd.f32 0.0, %v9027
      %v9029 = vpop.f32.mrf.mxu0
      %v9030 = vadd.f32 0.0, %v9029
      %9031 = vmatmul.bf16.gmra.mxu0 %v739
      %v9032 = vpop.f32.mrf.mxu0
      %v9033 = vadd.f32 0.0, %v9032
      %v9034 = vpop.f32.mrf.mxu0
      %v9035 = vadd.f32 0.0, %v9034
      %9036 = vmatmul.bf16.gmra.mxu0 %v742
      %v9037 = vpop.f32.mrf.mxu0
      %v9038 = vadd.f32 0.0, %v9037
      %v9039 = vpop.f32.mrf.mxu0
      %v9040 = vadd.f32 0.0, %v9039
      %9041 = vdwg.mxu0
      %v9044 = vunpack.c.l.b16 %v8983
      %v9045 = vunpack.c.l.b16 %v8984
      %v9046 = vpack.c.b16 %v9045, %v9044
      %9048 = vmatpush.bf16.msra.mxu0 0
      %9049 = vmatpush.bf16.msra.mxu0 0
      %9050 = vmatpush.bf16.msra.mxu0 0
      %9051 = vmatpush.bf16.msra.mxu0 0
      %9052 = vmatpush.bf16.msra.mxu0 0
      %9053 = vmatpush.bf16.msra.mxu0 0
      %9054 = vmatpush.bf16.msra.mxu0 0
      %9055 = vmatpush.bf16.msra.mxu0 %v9046
      %9056 = vmatmul.bf16.gmra.mxu0 %v800
      %v9057 = vpop.f32.mrf.mxu0
      %v9058 = vadd.f32 %v9003, %v9057
      %v9059 = vpop.f32.mrf.mxu0
      %v9060 = vadd.f32 %v9005, %v9059
      %9061 = vmatmul.bf16.gmra.mxu0 %v803
      %v9062 = vpop.f32.mrf.mxu0
      %v9063 = vadd.f32 %v9008, %v9062
      %v9064 = vpop.f32.mrf.mxu0
      %v9065 = vadd.f32 %v9010, %v9064
      %9066 = vmatmul.bf16.gmra.mxu0 %v806
      %v9067 = vpop.f32.mrf.mxu0
      %v9068 = vadd.f32 %v9013, %v9067
      %v9069 = vpop.f32.mrf.mxu0
      %v9070 = vadd.f32 %v9015, %v9069
      %9071 = vmatmul.bf16.gmra.mxu0 %v809
      %v9072 = vpop.f32.mrf.mxu0
      %v9073 = vadd.f32 %v9018, %v9072
      %v9074 = vpop.f32.mrf.mxu0
      %v9075 = vadd.f32 %v9020, %v9074
      %9076 = vmatmul.bf16.gmra.mxu0 %v812
      %v9077 = vpop.f32.mrf.mxu0
      %v9078 = vadd.f32 %v9023, %v9077
      %v9079 = vpop.f32.mrf.mxu0
      %v9080 = vadd.f32 %v9025, %v9079
      %9081 = vmatmul.bf16.gmra.mxu0 %v815
      %v9082 = vpop.f32.mrf.mxu0
      %v9083 = vadd.f32 %v9028, %v9082
      %v9084 = vpop.f32.mrf.mxu0
      %v9085 = vadd.f32 %v9030, %v9084
      %9086 = vmatmul.bf16.gmra.mxu0 %v818
      %v9087 = vpop.f32.mrf.mxu0
      %v9088 = vadd.f32 %v9033, %v9087
      %v9089 = vpop.f32.mrf.mxu0
      %v9090 = vadd.f32 %v9035, %v9089
      %9091 = vmatmul.bf16.gmra.mxu0 %v821
      %v9092 = vpop.f32.mrf.mxu0
      %v9093 = vadd.f32 %v9038, %v9092
      %v9094 = vpop.f32.mrf.mxu0
      %v9095 = vadd.f32 %v9040, %v9094
      %9096 = vdwg.mxu0
      %v9097 = vpack.c.bf16 %v4720, %v4718
      %v9098 = vpack.c.bf16 %v4725, %v4723
      %v9099 = vpack.c.bf16 %v4730, %v4728
      %v9100 = vpack.c.bf16 %v4735, %v4733
      %v9101 = vpack.c.bf16 %v4740, %v4738
      %v9102 = vpack.c.bf16 %v4745, %v4743
      %v9103 = vpack.c.bf16 %v4750, %v4748
      %v9104 = vpack.c.bf16 %v4755, %v4753
      %v9105 = vld [vmem:[%s330 + $0x78] sm:$0xf]
      %v9106 = vld [vmem:[%s330 + $0x7c] sm:$0xf]
      %v9109 = vunpack.c.l.b16 %v9105
      %v9110 = vunpack.c.l.b16 %v9106
      %v9111 = vpack.c.b16 %v9110, %v9109
      %v9114 = vsel %vm719, %v9097, 0
      %v9117 = vsel %vm719, %v9098, 0
      %v9120 = vsel %vm719, %v9099, 0
      %v9123 = vsel %vm719, %v9100, 0
      %v9126 = vsel %vm719, %v9101, 0
      %v9129 = vsel %vm719, %v9102, 0
      %v9132 = vsel %vm719, %v9103, 0
      %v9135 = vsel %vm719, %v9104, 0
      %9137 = vmatpush.bf16.msra.mxu0 0
      %9138 = vmatpush.bf16.msra.mxu0 0
      %9139 = vmatpush.bf16.msra.mxu0 0
      %9140 = vmatpush.bf16.msra.mxu0 0
      %9141 = vmatpush.bf16.msra.mxu0 0
      %9142 = vmatpush.bf16.msra.mxu0 0
      %9143 = vmatpush.bf16.msra.mxu0 0
      %9144 = vmatpush.bf16.msra.mxu0 %v9111
      %9145 = vmatmul.bf16.gmra.mxu0 %v9114
      %v9146 = vpop.f32.mrf.mxu0
      %v9147 = vadd.f32 0.0, %v9146
      %v9148 = vpop.f32.mrf.mxu0
      %v9149 = vadd.f32 0.0, %v9148
      %9150 = vmatmul.bf16.gmra.mxu0 %v9117
      %v9151 = vpop.f32.mrf.mxu0
      %v9152 = vadd.f32 0.0, %v9151
      %v9153 = vpop.f32.mrf.mxu0
      %v9154 = vadd.f32 0.0, %v9153
      %9155 = vmatmul.bf16.gmra.mxu0 %v9120
      %v9156 = vpop.f32.mrf.mxu0
      %v9157 = vadd.f32 0.0, %v9156
      %v9158 = vpop.f32.mrf.mxu0
      %v9159 = vadd.f32 0.0, %v9158
      %9160 = vmatmul.bf16.gmra.mxu0 %v9123
      %v9161 = vpop.f32.mrf.mxu0
      %v9162 = vadd.f32 0.0, %v9161
      %v9163 = vpop.f32.mrf.mxu0
      %v9164 = vadd.f32 0.0, %v9163
      %9165 = vmatmul.bf16.gmra.mxu0 %v9126
      %v9166 = vpop.f32.mrf.mxu0
      %v9167 = vadd.f32 0.0, %v9166
      %v9168 = vpop.f32.mrf.mxu0
      %v9169 = vadd.f32 0.0, %v9168
      %9170 = vmatmul.bf16.gmra.mxu0 %v9129
      %v9171 = vpop.f32.mrf.mxu0
      %v9172 = vadd.f32 0.0, %v9171
      %v9173 = vpop.f32.mrf.mxu0
      %v9174 = vadd.f32 0.0, %v9173
      %9175 = vmatmul.bf16.gmra.mxu0 %v9132
      %v9176 = vpop.f32.mrf.mxu0
      %v9177 = vadd.f32 0.0, %v9176
      %v9178 = vpop.f32.mrf.mxu0
      %v9179 = vadd.f32 0.0, %v9178
      %9180 = vmatmul.bf16.gmra.mxu0 %v9135
      %v9181 = vpop.f32.mrf.mxu0
      %v9182 = vadd.f32 0.0, %v9181
      %v9183 = vpop.f32.mrf.mxu0
      %v9184 = vadd.f32 0.0, %v9183
      %9185 = vdwg.mxu0
      %v9186 = vadd.f32 %v9058, %v9147
      %v9187 = vadd.f32 %v9060, %v9149
      %v9188 = vadd.f32 %v9063, %v9152
      %v9189 = vadd.f32 %v9065, %v9154
      %v9190 = vadd.f32 %v9068, %v9157
      %v9191 = vadd.f32 %v9070, %v9159
      %v9192 = vadd.f32 %v9073, %v9162
      %v9193 = vadd.f32 %v9075, %v9164
      %v9194 = vadd.f32 %v9078, %v9167
      %v9195 = vadd.f32 %v9080, %v9169
      %v9196 = vadd.f32 %v9083, %v9172
      %v9197 = vadd.f32 %v9085, %v9174
      %v9198 = vadd.f32 %v9088, %v9177
      %v9199 = vadd.f32 %v9090, %v9179
      %v9200 = vadd.f32 %v9093, %v9182
      %v9201 = vadd.f32 %v9095, %v9184
      %v9202 = vadd.f32 %v9186, %v8967
      %v9203 = vadd.f32 %v9187, %v8968
      %v9204 = vadd.f32 %v9188, %v8969
      %v9205 = vadd.f32 %v9189, %v8970
      %v9206 = vadd.f32 %v9190, %v8971
      %v9207 = vadd.f32 %v9191, %v8972
      %v9208 = vadd.f32 %v9192, %v8973
      %v9209 = vadd.f32 %v9193, %v8974
      %v9210 = vadd.f32 %v9194, %v8975
      %v9211 = vadd.f32 %v9195, %v8976
      %v9212 = vadd.f32 %v9196, %v8977
      %v9213 = vadd.f32 %v9197, %v8978
      %v9214 = vadd.f32 %v9198, %v8979
      %v9215 = vadd.f32 %v9199, %v8980
      %v9216 = vadd.f32 %v9200, %v8981
      %v9217 = vadd.f32 %v9201, %v8982
      %v9218 = vld [vmem:[%s334 + $0x4] sm:$0x1]
      %v9219 = vperm.slane %v9218, 0
      %v9220 = vadd.f32 %v9202, %v9219
      %v9221 = vadd.f32 %v9203, %v9219
      %v9222 = vadd.f32 %v9204, %v9219
      %v9223 = vadd.f32 %v9205, %v9219
      %v9224 = vadd.f32 %v9206, %v9219
      %v9225 = vadd.f32 %v9207, %v9219
      %v9226 = vadd.f32 %v9208, %v9219
      %v9227 = vadd.f32 %v9209, %v9219
      %v9228 = vadd.f32 %v9210, %v9219
      %v9229 = vadd.f32 %v9211, %v9219
      %v9230 = vadd.f32 %v9212, %v9219
      %v9231 = vadd.f32 %v9213, %v9219
      %v9232 = vadd.f32 %v9214, %v9219
      %v9233 = vadd.f32 %v9215, %v9219
      %v9234 = vadd.f32 %v9216, %v9219
      %v9235 = vadd.f32 %v9217, %v9219
      %v9236 = vmul.f32 %v9220, 0.2
      %v9237 = vmul.f32 %v9221, 0.2
      %v9238 = vmul.f32 %v9222, 0.2
      %v9239 = vmul.f32 %v9223, 0.2
      %v9240 = vmul.f32 %v9224, 0.2
      %v9241 = vmul.f32 %v9225, 0.2
      %v9242 = vmul.f32 %v9226, 0.2
      %v9243 = vmul.f32 %v9227, 0.2
      %v9244 = vmul.f32 %v9228, 0.2
      %v9245 = vmul.f32 %v9229, 0.2
      %v9246 = vmul.f32 %v9230, 0.2
      %v9247 = vmul.f32 %v9231, 0.2
      %v9248 = vmul.f32 %v9232, 0.2
      %v9249 = vmul.f32 %v9233, 0.2
      %v9250 = vmul.f32 %v9234, 0.2
      %v9251 = vmul.f32 %v9235, 0.2
      %v9252 = vmax.f32 %v9220, %v9236
      %v9253 = vmax.f32 %v9221, %v9237
      %v9254 = vmax.f32 %v9222, %v9238
      %v9255 = vmax.f32 %v9223, %v9239
      %v9256 = vmax.f32 %v9224, %v9240
      %v9257 = vmax.f32 %v9225, %v9241
      %v9258 = vmax.f32 %v9226, %v9242
      %v9259 = vmax.f32 %v9227, %v9243
      %v9260 = vmax.f32 %v9228, %v9244
      %v9261 = vmax.f32 %v9229, %v9245
      %v9262 = vmax.f32 %v9230, %v9246
      %v9263 = vmax.f32 %v9231, %v9247
      %v9264 = vmax.f32 %v9232, %v9248
      %v9265 = vmax.f32 %v9233, %v9249
      %v9266 = vmax.f32 %v9234, %v9250
      %v9267 = vmax.f32 %v9235, %v9251
      %v9268 = vpack.c.bf16 %v9253, %v9252
      %v9269 = vpack.c.bf16 %v9255, %v9254
      %v9270 = vpack.c.bf16 %v9257, %v9256
      %v9271 = vpack.c.bf16 %v9259, %v9258
      %v9272 = vpack.c.bf16 %v9261, %v9260
      %v9273 = vpack.c.bf16 %v9263, %v9262
      %v9274 = vpack.c.bf16 %v9265, %v9264
      %v9275 = vpack.c.bf16 %v9267, %v9266
      %v9276 = vld [vmem:[%s330 + $0x88] sm:$0xf]
      %v9277 = vld [vmem:[%s330 + $0x8c] sm:$0xf]
      %v9278 = vld [vmem:[%s330 + $0x90] sm:$0xf]
      %v9279 = vld [vmem:[%s330 + $0x94] sm:$0xf]
      %v9280 = vld [vmem:[%s334 + $0x5] sm:$0x1]
      %v9281 = vperm.slane %v9280, 0
      %v9286 = vunpack.c.l.b16 %v9276
      %v9287 = vunpack.c.l.b16 %v9277
      %v9288 = vunpack.c.l.b16 %v9278
      %v9289 = vunpack.c.l.b16 %v9279
      %v9290 = vpack.c.b16 %v9287, %v9286
      %v9291 = vpack.c.b16 %v9289, %v9288
      %v9295 = vsel %vm2465, %v9268, 0
      %v9298 = vsel %vm2465, %v9269, 0
      %v9301 = vsel %vm2465, %v9270, 0
      %v9304 = vsel %vm2465, %v9271, 0
      %v9307 = vsel %vm2465, %v9272, 0
      %v9310 = vsel %vm2465, %v9273, 0
      %v9313 = vsel %vm2465, %v9274, 0
      %v9316 = vsel %vm2465, %v9275, 0
      %9318 = vmatpush.bf16.msra.mxu0 0
      %9319 = vmatpush.bf16.msra.mxu0 0
      %9320 = vmatpush.bf16.msra.mxu0 0
      %9321 = vmatpush.bf16.msra.mxu0 0
      %9322 = vmatpush.bf16.msra.mxu0 0
      %9323 = vmatpush.bf16.msra.mxu0 0
      %9324 = vmatpush.bf16.msra.mxu0 %v9291
      %9325 = vmatpush.bf16.msra.mxu0 %v9290
      %9326 = vmatmul.bf16.gmra.mxu0 %v9295
      %v9327 = vpop.f32.mrf.mxu0
      %v9328 = vadd.f32 %v9281, %v9327
      %v9329 = vpop.f32.mrf.mxu0
      %v9330 = vadd.f32 %v9281, %v9329
      %9331 = vmatmul.bf16.gmra.mxu0 %v9298
      %v9332 = vpop.f32.mrf.mxu0
      %v9333 = vadd.f32 %v9281, %v9332
      %v9334 = vpop.f32.mrf.mxu0
      %v9335 = vadd.f32 %v9281, %v9334
      %9336 = vmatmul.bf16.gmra.mxu0 %v9301
      %v9337 = vpop.f32.mrf.mxu0
      %v9338 = vadd.f32 %v9281, %v9337
      %v9339 = vpop.f32.mrf.mxu0
      %v9340 = vadd.f32 %v9281, %v9339
      %9341 = vmatmul.bf16.gmra.mxu0 %v9304
      %v9342 = vpop.f32.mrf.mxu0
      %v9343 = vadd.f32 %v9281, %v9342
      %v9344 = vpop.f32.mrf.mxu0
      %v9345 = vadd.f32 %v9281, %v9344
      %9346 = vmatmul.bf16.gmra.mxu0 %v9307
      %v9347 = vpop.f32.mrf.mxu0
      %v9348 = vadd.f32 %v9281, %v9347
      %v9349 = vpop.f32.mrf.mxu0
      %v9350 = vadd.f32 %v9281, %v9349
      %9351 = vmatmul.bf16.gmra.mxu0 %v9310
      %v9352 = vpop.f32.mrf.mxu0
      %v9353 = vadd.f32 %v9281, %v9352
      %v9354 = vpop.f32.mrf.mxu0
      %v9355 = vadd.f32 %v9281, %v9354
      %9356 = vmatmul.bf16.gmra.mxu0 %v9313
      %v9357 = vpop.f32.mrf.mxu0
      %v9358 = vadd.f32 %v9281, %v9357
      %v9359 = vpop.f32.mrf.mxu0
      %v9360 = vadd.f32 %v9281, %v9359
      %9361 = vmatmul.bf16.gmra.mxu0 %v9316
      %v9362 = vpop.f32.mrf.mxu0
      %v9363 = vadd.f32 %v9281, %v9362
      %v9364 = vpop.f32.mrf.mxu0
      %v9365 = vadd.f32 %v9281, %v9364
      %9366 = vdwg.mxu0
      %v9367 = vmul.f32 %v9328, 0.2
      %v9368 = vmul.f32 %v9330, 0.2
      %v9369 = vmul.f32 %v9333, 0.2
      %v9370 = vmul.f32 %v9335, 0.2
      %v9371 = vmul.f32 %v9338, 0.2
      %v9372 = vmul.f32 %v9340, 0.2
      %v9373 = vmul.f32 %v9343, 0.2
      %v9374 = vmul.f32 %v9345, 0.2
      %v9375 = vmul.f32 %v9348, 0.2
      %v9376 = vmul.f32 %v9350, 0.2
      %v9377 = vmul.f32 %v9353, 0.2
      %v9378 = vmul.f32 %v9355, 0.2
      %v9379 = vmul.f32 %v9358, 0.2
      %v9380 = vmul.f32 %v9360, 0.2
      %v9381 = vmul.f32 %v9363, 0.2
      %v9382 = vmul.f32 %v9365, 0.2
      %v9383 = vmax.f32 %v9328, %v9367
      %v9384 = vmax.f32 %v9330, %v9368
      %v9385 = vmax.f32 %v9333, %v9369
      %v9386 = vmax.f32 %v9335, %v9370
      %v9387 = vmax.f32 %v9338, %v9371
      %v9388 = vmax.f32 %v9340, %v9372
      %v9389 = vmax.f32 %v9343, %v9373
      %v9390 = vmax.f32 %v9345, %v9374
      %v9391 = vmax.f32 %v9348, %v9375
      %v9392 = vmax.f32 %v9350, %v9376
      %v9393 = vmax.f32 %v9353, %v9377
      %v9394 = vmax.f32 %v9355, %v9378
      %v9395 = vmax.f32 %v9358, %v9379
      %v9396 = vmax.f32 %v9360, %v9380
      %v9397 = vmax.f32 %v9363, %v9381
      %v9398 = vmax.f32 %v9365, %v9382
      %v9399 = vpack.c.bf16 %v9384, %v9383
      %v9400 = vpack.c.bf16 %v9386, %v9385
      %v9401 = vpack.c.bf16 %v9388, %v9387
      %v9402 = vpack.c.bf16 %v9390, %v9389
      %v9403 = vpack.c.bf16 %v9392, %v9391
      %v9404 = vpack.c.bf16 %v9394, %v9393
      %v9405 = vpack.c.bf16 %v9396, %v9395
      %v9406 = vpack.c.bf16 %v9398, %v9397
      %v9407 = vld [vmem:[%s330 + $0x98] sm:$0xf]
      %v9408 = vld [vmem:[%s330 + $0x9c] sm:$0xf]
      %v9409 = vld [vmem:[%s330 + $0xa0] sm:$0xf]
      %v9410 = vld [vmem:[%s330 + $0xa4] sm:$0xf]
      %v9411 = vld [vmem:[%s334 + $0x6] sm:$0x1]
      %v9412 = vperm.slane %v9411, 0
      %v9417 = vunpack.c.l.b16 %v9407
      %v9418 = vunpack.c.l.b16 %v9408
      %v9419 = vunpack.c.l.b16 %v9409
      %v9420 = vunpack.c.l.b16 %v9410
      %v9421 = vpack.c.b16 %v9418, %v9417
      %v9422 = vpack.c.b16 %v9420, %v9419
      %v9426 = vsel %vm2465, %v9399, 0
      %v9429 = vsel %vm2465, %v9400, 0
      %v9432 = vsel %vm2465, %v9401, 0
      %v9435 = vsel %vm2465, %v9402, 0
      %v9438 = vsel %vm2465, %v9403, 0
      %v9441 = vsel %vm2465, %v9404, 0
      %v9444 = vsel %vm2465, %v9405, 0
      %v9447 = vsel %vm2465, %v9406, 0
      %9449 = vmatpush.bf16.msra.mxu0 0
      %9450 = vmatpush.bf16.msra.mxu0 0
      %9451 = vmatpush.bf16.msra.mxu0 0
      %9452 = vmatpush.bf16.msra.mxu0 0
      %9453 = vmatpush.bf16.msra.mxu0 0
      %9454 = vmatpush.bf16.msra.mxu0 0
      %9455 = vmatpush.bf16.msra.mxu0 %v9422
      %9456 = vmatpush.bf16.msra.mxu0 %v9421
      %9457 = vmatmul.bf16.gmra.mxu0 %v9426
      %v9458 = vpop.f32.mrf.mxu0
      %v9459 = vadd.f32 %v9412, %v9458
      %v9460 = vpop.f32.mrf.mxu0
      %v9461 = vadd.f32 %v9412, %v9460
      %9462 = vmatmul.bf16.gmra.mxu0 %v9429
      %v9463 = vpop.f32.mrf.mxu0
      %v9464 = vadd.f32 %v9412, %v9463
      %v9465 = vpop.f32.mrf.mxu0
      %v9466 = vadd.f32 %v9412, %v9465
      %9467 = vmatmul.bf16.gmra.mxu0 %v9432
      %v9468 = vpop.f32.mrf.mxu0
      %v9469 = vadd.f32 %v9412, %v9468
      %v9470 = vpop.f32.mrf.mxu0
      %v9471 = vadd.f32 %v9412, %v9470
      %9472 = vmatmul.bf16.gmra.mxu0 %v9435
      %v9473 = vpop.f32.mrf.mxu0
      %v9474 = vadd.f32 %v9412, %v9473
      %v9475 = vpop.f32.mrf.mxu0
      %v9476 = vadd.f32 %v9412, %v9475
      %9477 = vmatmul.bf16.gmra.mxu0 %v9438
      %v9478 = vpop.f32.mrf.mxu0
      %v9479 = vadd.f32 %v9412, %v9478
      %v9480 = vpop.f32.mrf.mxu0
      %v9481 = vadd.f32 %v9412, %v9480
      %9482 = vmatmul.bf16.gmra.mxu0 %v9441
      %v9483 = vpop.f32.mrf.mxu0
      %v9484 = vadd.f32 %v9412, %v9483
      %v9485 = vpop.f32.mrf.mxu0
      %v9486 = vadd.f32 %v9412, %v9485
      %9487 = vmatmul.bf16.gmra.mxu0 %v9444
      %v9488 = vpop.f32.mrf.mxu0
      %v9489 = vadd.f32 %v9412, %v9488
      %v9490 = vpop.f32.mrf.mxu0
      %v9491 = vadd.f32 %v9412, %v9490
      %9492 = vmatmul.bf16.gmra.mxu0 %v9447
      %v9493 = vpop.f32.mrf.mxu0
      %v9494 = vadd.f32 %v9412, %v9493
      %v9495 = vpop.f32.mrf.mxu0
      %v9496 = vadd.f32 %v9412, %v9495
      %9497 = vdwg.mxu0
      %v9498 = vmul.f32 %v9459, 0.2
      %v9499 = vmul.f32 %v9461, 0.2
      %v9500 = vmul.f32 %v9464, 0.2
      %v9501 = vmul.f32 %v9466, 0.2
      %v9502 = vmul.f32 %v9469, 0.2
      %v9503 = vmul.f32 %v9471, 0.2
      %v9504 = vmul.f32 %v9474, 0.2
      %v9505 = vmul.f32 %v9476, 0.2
      %v9506 = vmul.f32 %v9479, 0.2
      %v9507 = vmul.f32 %v9481, 0.2
      %v9508 = vmul.f32 %v9484, 0.2
      %v9509 = vmul.f32 %v9486, 0.2
      %v9510 = vmul.f32 %v9489, 0.2
      %v9511 = vmul.f32 %v9491, 0.2
      %v9512 = vmul.f32 %v9494, 0.2
      %v9513 = vmul.f32 %v9496, 0.2
      %v9514 = vmax.f32 %v9459, %v9498
      %v9515 = vmax.f32 %v9461, %v9499
      %v9516 = vmax.f32 %v9464, %v9500
      %v9517 = vmax.f32 %v9466, %v9501
      %v9518 = vmax.f32 %v9469, %v9502
      %v9519 = vmax.f32 %v9471, %v9503
      %v9520 = vmax.f32 %v9474, %v9504
      %v9521 = vmax.f32 %v9476, %v9505
      %v9522 = vmax.f32 %v9479, %v9506
      %v9523 = vmax.f32 %v9481, %v9507
      %v9524 = vmax.f32 %v9484, %v9508
      %v9525 = vmax.f32 %v9486, %v9509
      %v9526 = vmax.f32 %v9489, %v9510
      %v9527 = vmax.f32 %v9491, %v9511
      %v9528 = vmax.f32 %v9494, %v9512
      %v9529 = vmax.f32 %v9496, %v9513
      %v9530 = vpack.c.bf16 %v9515, %v9514
      %v9531 = vpack.c.bf16 %v9517, %v9516
      %v9532 = vpack.c.bf16 %v9519, %v9518
      %v9533 = vpack.c.bf16 %v9521, %v9520
      %v9534 = vpack.c.bf16 %v9523, %v9522
      %v9535 = vpack.c.bf16 %v9525, %v9524
      %v9536 = vpack.c.bf16 %v9527, %v9526
      %v9537 = vpack.c.bf16 %v9529, %v9528
      %v9538 = vld [vmem:[%s330 + $0xa8] sm:$0xf]
      %v9539 = vld [vmem:[%s330 + $0xac] sm:$0xf]
      %v9540 = vld [vmem:[%s330 + $0xb0] sm:$0xf]
      %v9541 = vld [vmem:[%s330 + $0xb4] sm:$0xf]
      %v9542 = vld [vmem:[%s334 + $0x7] sm:$0x1]
      %v9543 = vperm.slane %v9542, 0
      %v9548 = vunpack.c.l.b16 %v9538
      %v9549 = vunpack.c.l.b16 %v9539
      %v9550 = vunpack.c.l.b16 %v9540
      %v9551 = vunpack.c.l.b16 %v9541
      %v9552 = vpack.c.b16 %v9549, %v9548
      %v9553 = vpack.c.b16 %v9551, %v9550
      %v9557 = vsel %vm2465, %v9530, 0
      %v9560 = vsel %vm2465, %v9531, 0
      %v9563 = vsel %vm2465, %v9532, 0
      %v9566 = vsel %vm2465, %v9533, 0
      %v9569 = vsel %vm2465, %v9534, 0
      %v9572 = vsel %vm2465, %v9535, 0
      %v9575 = vsel %vm2465, %v9536, 0
      %v9578 = vsel %vm2465, %v9537, 0
      %9580 = vmatpush.bf16.msra.mxu0 0
      %9581 = vmatpush.bf16.msra.mxu0 0
      %9582 = vmatpush.bf16.msra.mxu0 0
      %9583 = vmatpush.bf16.msra.mxu0 0
      %9584 = vmatpush.bf16.msra.mxu0 0
      %9585 = vmatpush.bf16.msra.mxu0 0
      %9586 = vmatpush.bf16.msra.mxu0 %v9553
      %9587 = vmatpush.bf16.msra.mxu0 %v9552
      %9588 = vmatmul.bf16.gmra.mxu0 %v9557
      %v9589 = vpop.f32.mrf.mxu0
      %v9590 = vadd.f32 %v9543, %v9589
      %v9591 = vpop.f32.mrf.mxu0
      %v9592 = vadd.f32 %v9543, %v9591
      %9593 = vmatmul.bf16.gmra.mxu0 %v9560
      %v9594 = vpop.f32.mrf.mxu0
      %v9595 = vadd.f32 %v9543, %v9594
      %v9596 = vpop.f32.mrf.mxu0
      %v9597 = vadd.f32 %v9543, %v9596
      %9598 = vmatmul.bf16.gmra.mxu0 %v9563
      %v9599 = vpop.f32.mrf.mxu0
      %v9600 = vadd.f32 %v9543, %v9599
      %v9601 = vpop.f32.mrf.mxu0
      %v9602 = vadd.f32 %v9543, %v9601
      %9603 = vmatmul.bf16.gmra.mxu0 %v9566
      %v9604 = vpop.f32.mrf.mxu0
      %v9605 = vadd.f32 %v9543, %v9604
      %v9606 = vpop.f32.mrf.mxu0
      %v9607 = vadd.f32 %v9543, %v9606
      %9608 = vmatmul.bf16.gmra.mxu0 %v9569
      %v9609 = vpop.f32.mrf.mxu0
      %v9610 = vadd.f32 %v9543, %v9609
      %v9611 = vpop.f32.mrf.mxu0
      %v9612 = vadd.f32 %v9543, %v9611
      %9613 = vmatmul.bf16.gmra.mxu0 %v9572
      %v9614 = vpop.f32.mrf.mxu0
      %v9615 = vadd.f32 %v9543, %v9614
      %v9616 = vpop.f32.mrf.mxu0
      %v9617 = vadd.f32 %v9543, %v9616
      %9618 = vmatmul.bf16.gmra.mxu0 %v9575
      %v9619 = vpop.f32.mrf.mxu0
      %v9620 = vadd.f32 %v9543, %v9619
      %v9621 = vpop.f32.mrf.mxu0
      %v9622 = vadd.f32 %v9543, %v9621
      %9623 = vmatmul.bf16.gmra.mxu0 %v9578
      %v9624 = vpop.f32.mrf.mxu0
      %v9625 = vadd.f32 %v9543, %v9624
      %v9626 = vpop.f32.mrf.mxu0
      %v9627 = vadd.f32 %v9543, %v9626
      %9628 = vdwg.mxu0
      %p9629 = scmp.lt.s32.totalorder %s20, 3
      // Predicated region
      $region61: #{deepgcnii_forward.1} parent=55 // pred_check
        %p9630 = pneg %p9629
      $region62: #{deepgcnii_forward.1} parent=55 // pred_check_branch
        %9632 = sbr.rel (%p9630) target = $region64
      $region63: #{deepgcnii_forward.1} parent=55 // pred_region
        %v9633 = vadd.f32 %v357, %v9590
        %v9634 = vadd.f32 %v358, %v9592
        %v9635 = vadd.f32 %v359, %v9595
        %v9636 = vadd.f32 %v360, %v9597
        %v9637 = vadd.f32 %v361, %v9600
        %v9638 = vadd.f32 %v362, %v9602
        %v9639 = vadd.f32 %v363, %v9605
        %v9640 = vadd.f32 %v364, %v9607
        %v9641 = vadd.f32 %v365, %v9610
        %v9642 = vadd.f32 %v366, %v9612
        %v9643 = vadd.f32 %v367, %v9615
        %v9644 = vadd.f32 %v368, %v9617
        %v9645 = vadd.f32 %v369, %v9620
        %v9646 = vadd.f32 %v370, %v9622
        %v9647 = vadd.f32 %v371, %v9625
        %v9648 = vadd.f32 %v372, %v9627
        %9649 = vst.msk [vmem:[#allocation2] sm:$0xff] %vm719, %v9633
        %9650 = vst.msk [vmem:[#allocation2 + $0x8] sm:$0xff] %vm719, %v9634
        %9651 = vst.msk [vmem:[#allocation2 + $0x10] sm:$0xff] %vm719, %v9635
        %9652 = vst.msk [vmem:[#allocation2 + $0x18] sm:$0xff] %vm719, %v9636
        %9653 = vst.msk [vmem:[#allocation2 + $0x20] sm:$0xff] %vm719, %v9637
        %9654 = vst.msk [vmem:[#allocation2 + $0x28] sm:$0xff] %vm719, %v9638
        %9655 = vst.msk [vmem:[#allocation2 + $0x30] sm:$0xff] %vm719, %v9639
        %9656 = vst.msk [vmem:[#allocation2 + $0x38] sm:$0xff] %vm719, %v9640
        %9657 = vst.msk [vmem:[#allocation2 + $0x40] sm:$0xff] %vm719, %v9641
        %9658 = vst.msk [vmem:[#allocation2 + $0x48] sm:$0xff] %vm719, %v9642
        %9659 = vst.msk [vmem:[#allocation2 + $0x50] sm:$0xff] %vm719, %v9643
        %9660 = vst.msk [vmem:[#allocation2 + $0x58] sm:$0xff] %vm719, %v9644
        %9661 = vst.msk [vmem:[#allocation2 + $0x60] sm:$0xff] %vm719, %v9645
        %9662 = vst.msk [vmem:[#allocation2 + $0x68] sm:$0xff] %vm719, %v9646
        %9663 = vst.msk [vmem:[#allocation2 + $0x70] sm:$0xff] %vm719, %v9647
        %9664 = vst.msk [vmem:[#allocation2 + $0x78] sm:$0xff] %vm719, %v9648
      $region64: #{deepgcnii_forward.1} parent=55 // pred_fallthru
        _
      %p9665 = scmp.eq.s32.totalorder %s20, 3
      // Predicated region
      $region65: #{deepgcnii_forward.1} parent=55 // pred_check
        %p9666 = pneg %p9665
      $region66: #{deepgcnii_forward.1} parent=55 // pred_check_branch
        %9668 = sbr.rel (%p9666) target = $region68
      $region67: #{deepgcnii_forward.1} parent=55 // pred_region
        %9669 = vst.msk [vmem:[%s9] sm:$0xff] %vm719, %v9590
        %9670 = vst.msk [vmem:[%s9 + $0x8] sm:$0xff] %vm719, %v9592
        %9671 = vst.msk [vmem:[%s9 + $0x10] sm:$0xff] %vm719, %v9595
        %9672 = vst.msk [vmem:[%s9 + $0x18] sm:$0xff] %vm719, %v9597
        %9673 = vst.msk [vmem:[%s9 + $0x20] sm:$0xff] %vm719, %v9600
        %9674 = vst.msk [vmem:[%s9 + $0x28] sm:$0xff] %vm719, %v9602
        %9675 = vst.msk [vmem:[%s9 + $0x30] sm:$0xff] %vm719, %v9605
        %9676 = vst.msk [vmem:[%s9 + $0x38] sm:$0xff] %vm719, %v9607
        %9677 = vst.msk [vmem:[%s9 + $0x40] sm:$0xff] %vm719, %v9610
        %9678 = vst.msk [vmem:[%s9 + $0x48] sm:$0xff] %vm719, %v9612
        %9679 = vst.msk [vmem:[%s9 + $0x50] sm:$0xff] %vm719, %v9615
        %9680 = vst.msk [vmem:[%s9 + $0x58] sm:$0xff] %vm719, %v9617
        %9681 = vst.msk [vmem:[%s9 + $0x60] sm:$0xff] %vm719, %v9620
        %9682 = vst.msk [vmem:[%s9 + $0x68] sm:$0xff] %vm719, %v9622
        %9683 = vst.msk [vmem:[%s9 + $0x70] sm:$0xff] %vm719, %v9625
        %9684 = vst.msk [vmem:[%s9 + $0x78] sm:$0xff] %vm719, %v9627
      $region68: #{deepgcnii_forward.1} parent=55 // pred_fallthru
        _
      // Predicated region
      $region69: #{deepgcnii_forward.1} parent=55 // pred_check
        %p9685 = pneg %p232
      $region70: #{deepgcnii_forward.1} parent=55 // pred_check_branch
        %9687 = sbr.rel (%p9685) target = $region72
      $region71: #{deepgcnii_forward.1} parent=55 // pred_region
        _
      $region72: #{deepgcnii_forward.1} parent=55 // pred_fallthru
        _
      // Predicated region
      $region73: #{deepgcnii_forward.1} parent=55 // pred_check
        %p9688 = pneg %p232
      $region74: #{deepgcnii_forward.1} parent=55 // pred_check_branch
        %9690 = sbr.rel (%p9688) target = $region76
      $region75: #{deepgcnii_forward.1} parent=55 // pred_region
        _
      $region76: #{deepgcnii_forward.1} parent=55 // pred_fallthru
        _
    $region56: #{deepgcnii_forward.1} parent=5 // pred_fallthru
      _
    %p9691 = scmp.le.s32.totalorder 2, %s15
    // Predicated region
    $region77: #{deepgcnii_forward.1} parent=5 // pred_check
      %p9692 = pneg %p9691
    $region78: #{deepgcnii_forward.1} parent=5 // pred_check_branch
      %9694 = sbr.rel (%p9692) target = $region80
    $region79: #{deepgcnii_forward.1} parent=5 // pred_region
      %s9695 = ssub.s32 %s15, 2
    $region80: #{deepgcnii_forward.1} parent=5 // pred_fallthru
      _
  $region6: #{deepgcnii_forward.1} parent=0 // loop_footer
    %s19 = sadd.s32 1, %s15
  $region7: #{deepgcnii_forward.1} parent=0 // loop_footer_branch
    %14 = sbr.rel target = $region3
  $region8: #{deepgcnii_forward.1} parent=0 // loop_exit
    _

</llo_original>
